<compile_context>
chip_gen: v5e
topology: v5e:2x2
jax: 0.10.0
libtpu: 0.0.40
codegen_flags: <defaults>
</compile_context>

<pallas_src>
import jax
import jax.numpy as jnp
from jax import lax
from jax.experimental import pallas as pl
from jax.experimental.pallas import tpu as pltpu

CP = 128        # carried (lane-padded) channel width
LATENT = 4      # VAE latent dim


def _round_up(x, m):
    return ((x + m - 1) // m) * m


# ----------------------------------------------------------------------------
# Pallas kernels: fused (x @ w) + bias [+ residual | + (xd @ wd) + bd] [+ relu]
#   x  : bf16 [TM, Kp]    (im2col patches, Kp multiple of 128)
#   w  : bf16 [Kp, Np]    (BN scale folded in, Np multiple of 128)
#   b  : f32  [1,  Np]
#   r  : bf16 [TM, Np]    (identity residual)              -- mode "res"
#   xd : bf16 [TM, Kd]    (strided block input, 1x1 conv)  -- mode "down"
#   wd : bf16 [Kd, Np], bd: f32 [1, Np]
#   o  : bf16 (or f32 for the FC head) [TM, Np]
# ----------------------------------------------------------------------------
def _make_kernel(relu: bool, mode: str):
    if mode == "plain":
        def kernel(x_ref, w_ref, b_ref, o_ref):
            out = jnp.dot(x_ref[...], w_ref[...],
                          preferred_element_type=jnp.float32) + b_ref[...]
            if relu:
                out = jnp.maximum(out, 0.0)
            o_ref[...] = out.astype(o_ref.dtype)
    elif mode == "res":
        def kernel(x_ref, w_ref, b_ref, r_ref, o_ref):
            out = (jnp.dot(x_ref[...], w_ref[...],
                           preferred_element_type=jnp.float32)
                   + b_ref[...] + r_ref[...].astype(jnp.float32))
            if relu:
                out = jnp.maximum(out, 0.0)
            o_ref[...] = out.astype(o_ref.dtype)
    else:  # "down": fused 1x1 downsample residual (second MXU matmul)
        def kernel(x_ref, w_ref, b_ref, xd_ref, wd_ref, bd_ref, o_ref):
            main = jnp.dot(x_ref[...], w_ref[...],
                           preferred_element_type=jnp.float32) + b_ref[...]
            res = jnp.dot(xd_ref[...], wd_ref[...],
                          preferred_element_type=jnp.float32) + bd_ref[...]
            out = main + res
            if relu:
                out = jnp.maximum(out, 0.0)
            o_ref[...] = out.astype(o_ref.dtype)
    return kernel


def fused_matmul(x, w, b, *, relu, residual=None, down=None,
                 out_dtype=jnp.bfloat16, tm=256):
    """x: bf16 [M, Kp]; w: bf16 [Kp, Np]; b: f32 [1, Np] -> [M, Np] out_dtype.

    residual: bf16 [M, Np] (identity skip) OR down=(xd, wd, bd) for the fused
    1x1-downsample residual.  K/N are already 128-aligned (done once at init
    for weights, and by the im2col glue for the stem patches)."""
    M, Kp = x.shape
    Kw, Np = w.shape
    assert Kp == Kw and Kp % 128 == 0 and Np % 128 == 0

    # TM: multiple of 16 (bf16 sublane packing); capped at 256 so the largest
    # layers give >=2 M-tiles for the v7x megacore "parallel" split, while the
    # tiny layers stay single-step.
    TM = min(tm, _round_up(M, 16))
    Mp = _round_up(M, TM)

    def pad_rows(a):
        return a if a.shape[0] == Mp else jnp.pad(a, ((0, Mp - a.shape[0]), (0, 0)))

    args = [pad_rows(x), w, b]
    in_specs = [
        pl.BlockSpec((TM, Kp), lambda i: (i, 0)),   # patch stream: one block / tile
        pl.BlockSpec((Kp, Np), lambda i: (0, 0)),   # weight: resident across grid
        pl.BlockSpec((1, Np), lambda i: (0, 0)),    # bias:   resident across grid
    ]
    mode = "plain"
    if residual is not None:
        mode = "res"
        args.append(pad_rows(residual))
        in_specs.append(pl.BlockSpec((TM, Np), lambda i: (i, 0)))
    elif down is not None:
        mode = "down"
        xd, wd, bd = down
        Kd = xd.shape[1]
        assert Kd % 128 == 0 and wd.shape == (Kd, Np)
        args.extend([pad_rows(xd), wd, bd])
        in_specs.extend([
            pl.BlockSpec((TM, Kd), lambda i: (i, 0)),
            pl.BlockSpec((Kd, Np), lambda i: (0, 0)),
            pl.BlockSpec((1, Np), lambda i: (0, 0)),
        ])

    out = pl.pallas_call(
        _make_kernel(relu, mode),
        out_shape=jax.ShapeDtypeStruct((Mp, Np), out_dtype),
        grid=(Mp // TM,),
        in_specs=in_specs,
        out_specs=pl.BlockSpec((TM, Np), lambda i: (i, 0)),
        compiler_params=pltpu.CompilerParams(
            dimension_semantics=("parallel",),   # v7x: two TCs split the M tiles
            vmem_limit_bytes=32 * 1024 * 1024,
        ),
    )(*args)
    return out if Mp == M else out[:M]


# ----------------------------------------------------------------------------
# im2col / pooling glue (plain JAX, fused by XLA under jit)
# ----------------------------------------------------------------------------
def _im2col(x, kh, kw, stride, pad):
    """x: [B,H,W,C] bf16 -> patches [B*Ho*Wo, kh*kw*C] (K order (kh,kw,C))."""
    B, H, W, C = x.shape
    Ho = (H + 2 * pad - kh) // stride + 1
    Wo = (W + 2 * pad - kw) // stride + 1
    xp = jnp.pad(x, ((0, 0), (pad, pad), (pad, pad), (0, 0)))
    cols = [xp[:, dy:dy + stride * Ho:stride, dx:dx + stride * Wo:stride, :]
            for dy in range(kh) for dx in range(kw)]
    patches = jnp.stack(cols, axis=3)                  # [B, Ho, Wo, taps, C]
    return patches.reshape(B * Ho * Wo, kh * kw * C), B, Ho, Wo


def _conv_patches(x, kh, kw, stride, pad, Kp):
    patches, B, Ho, Wo = _im2col(x, kh, kw, stride, pad)
    K = patches.shape[1]
    if K != Kp:                                        # only the stem (K=49->128)
        patches = jnp.pad(patches, ((0, 0), (0, Kp - K)))
    return patches, B, Ho, Wo


def maxpool2d_3x3_s2_p1(x):
    """MaxPool2d(kernel=3, stride=2, padding=1), NHWC, bf16.  Padded channels
    are exactly zero, so the -inf window padding keeps them zero."""
    return lax.reduce_window(
        x, jnp.array(-jnp.inf, dtype=x.dtype), lax.max,
        window_dimensions=(1, 3, 3, 1),
        window_strides=(1, 2, 2, 1),
        padding=((0, 0), (1, 1), (1, 1), (0, 0)),
    )


# ----------------------------------------------------------------------------
# Parameter init: synthetic weights, BN folded + padded + bf16-cast ONCE here.
# ----------------------------------------------------------------------------
class _KeyIter:
    def __init__(self, key):
        self._key = key

    def next(self):
        self._key, sub = jax.random.split(self._key)
        return sub


def _init_conv(key, kh, kw, cin, cout):
    # HWIO layout (kh, kw, cin, cout) — matches im2col K ordering.
    return (0.1 * jax.random.normal(key, (kh, kw, cin, cout))).astype(jnp.float32)


def _init_bn(key, c, eps=1e-5):
    k1, k2, k3, k4 = jax.random.split(key, 4)
    gamma = 1.0 + 0.1 * jax.random.normal(k1, (c,))
    beta = 0.1 * jax.random.normal(k2, (c,))
    mean = 0.1 * jax.random.normal(k3, (c,))
    var = 1.0 + 0.1 * jax.random.uniform(k4, (c,))
    scale = gamma / jnp.sqrt(var + eps)
    bias = beta - mean * scale
    return scale.astype(jnp.float32), bias.astype(jnp.float32)


def _prep_conv(conv_w, scale, bias, cin_pad, cout_pad):
    """Fold BN scale into the conv weight, pad (cin->cin_pad, cout->cout_pad,
    K->multiple of 128), reshape to 2-D and cast to bf16 — all once, at init."""
    kh, kw, cin, cout = conv_w.shape
    w = conv_w.astype(jnp.float32) * scale[None, None, None, :]
    w = jnp.pad(w, ((0, 0), (0, 0), (0, cin_pad - cin), (0, cout_pad - cout)))
    w2d = w.reshape(kh * kw * cin_pad, cout_pad)
    Kp = _round_up(w2d.shape[0], 128)
    w2d = jnp.pad(w2d, ((0, Kp - w2d.shape[0]), (0, 0))).astype(jnp.bfloat16)
    b = jnp.pad(bias.astype(jnp.float32), (0, cout_pad - cout)).reshape(1, cout_pad)
    return w2d, b


def _init_block(kit, cin, cout, stride):
    p = {}
    w1 = _init_conv(kit.next(), 3, 3, cin, cout)
    s1, b1 = _init_bn(kit.next(), cout)
    p["conv1_w"], p["conv1_b"] = _prep_conv(w1, s1, b1, CP, CP)
    w2 = _init_conv(kit.next(), 3, 3, cout, cout)
    s2, b2 = _init_bn(kit.next(), cout)
    p["conv2_w"], p["conv2_b"] = _prep_conv(w2, s2, b2, CP, CP)
    if stride != 1 or cin != cout:
        wd = _init_conv(kit.next(), 1, 1, cin, cout)
        sd, bd = _init_bn(kit.next(), cout)
        p["down_w"], p["down_b"] = _prep_conv(wd, sd, bd, CP, CP)
    return p


def _init_backbone(kit):
    p = {}
    w = _init_conv(kit.next(), 7, 7, 1, 16)
    s, b = _init_bn(kit.next(), 16)
    p["stem_w"], p["stem_b"] = _prep_conv(w, s, b, cin_pad=1, cout_pad=CP)  # K 49->128
    for name, cin, cout, stride in (("layer1", 16, 32, 1),
                                    ("layer2", 32, 64, 2),
                                    ("layer3", 64, 128, 2)):
        p[name] = [_init_block(kit, cin, cout, stride),
                   _init_block(kit, cout, cout, 1)]
    return p


def init_encoder_params(key):
    kit = _KeyIter(key)
    params = {"AE": _init_backbone(kit), "VAE": _init_backbone(kit)}
    v = params["VAE"]
    mu_w = (0.05 * jax.random.normal(kit.next(), (128 * 2 * 2, LATENT))).astype(jnp.float32)
    mu_b = (0.05 * jax.random.normal(kit.next(), (LATENT,))).astype(jnp.float32)
    lv_w = (0.05 * jax.random.normal(kit.next(), (128 * 2 * 2, LATENT))).astype(jnp.float32)
    lv_b = (0.05 * jax.random.normal(kit.next(), (LATENT,))).astype(jnp.float32)
    fc_w = jnp.concatenate([mu_w, lv_w], axis=1)                  # [512, 8]
    fc_b = jnp.concatenate([mu_b, lv_b], axis=0)                  # [8]
    Np = _round_up(2 * LATENT, 128)
    v["fc_w"] = jnp.pad(fc_w, ((0, 0), (0, Np - 2 * LATENT))).astype(jnp.bfloat16)
    v["fc_b"] = jnp.pad(fc_b, (0, Np - 2 * LATENT)).astype(jnp.float32).reshape(1, Np)
    return params


# ----------------------------------------------------------------------------
# Forward pass (activations: NHWC, C carried padded to 128, bf16)
# ----------------------------------------------------------------------------
def residual_block(x, p, stride):
    B, H, W, C = x.shape
    # conv1 + bn1 + relu  (one pallas_call)
    patches1, _, Ho, Wo = _conv_patches(x, 3, 3, stride, 1, p["conv1_w"].shape[0])
    out = fused_matmul(patches1, p["conv1_w"], p["conv1_b"], relu=True)
    out = out.reshape(B, Ho, Wo, CP)
    # conv2 + bn2 + (identity | fused 1x1 downsample) residual + relu
    # (one pallas_call — second matmul runs inside the same kernel body)
    patches2, _, Ho2, Wo2 = _conv_patches(out, 3, 3, 1, 1, p["conv2_w"].shape[0])
    if "down_w" in p:
        xd = x[:, ::stride, ::stride, :].reshape(-1, C)           # bf16, K=128
        y = fused_matmul(patches2, p["conv2_w"], p["conv2_b"], relu=True,
                         down=(xd, p["down_w"], p["down_b"]))
    else:
        y = fused_matmul(patches2, p["conv2_w"], p["conv2_b"], relu=True,
                         residual=x.reshape(-1, C))
    return y.reshape(B, Ho2, Wo2, CP)


def backbone_forward(p, x_nhwc):
    # stem: conv 7x7 s2 p3 + BN + relu; output channels carried padded to 128.
    patches, B, Ho, Wo = _conv_patches(x_nhwc.astype(jnp.bfloat16), 7, 7, 2, 3,
                                       p["stem_w"].shape[0])
    x = fused_matmul(patches, p["stem_w"], p["stem_b"], relu=True)
    x = x.reshape(B, Ho, Wo, CP)
    x = maxpool2d_3x3_s2_p1(x)
    for name, stride in (("layer1", 1), ("layer2", 2), ("layer3", 2)):
        b0, b1 = p[name]
        x = residual_block(x, b0, stride)
        x = residual_block(x, b1, 1)
    return x  # [B, 2, 2, 128] bf16 for 32x32 input


def encoder_forward(params, x_nchw, mode):
    """Matches Encoder.forward.  mode in {'AE','VAE',''}; '' returns None."""
    x = jnp.transpose(x_nchw, (0, 2, 3, 1)).astype(jnp.float32)   # NCHW -> NHWC
    if mode == "AE":
        feat = backbone_forward(params["AE"], x)
        return jnp.transpose(feat, (0, 3, 1, 2)).astype(jnp.float32)  # [B,128,2,2]
    if mode == "VAE":
        p = params["VAE"]
        feat = backbone_forward(p, x)
        # Flatten in the same (C,H,W) order as PyTorch's x.view(-1, 512).
        flat = jnp.transpose(feat, (0, 3, 1, 2)).reshape(-1, 128 * 2 * 2)
        # Both FC heads fused into one Pallas matmul (N=8, padded to 128).
        out = fused_matmul(flat, p["fc_w"], p["fc_b"], relu=False,
                           out_dtype=jnp.float32)
        return out[:, :LATENT], out[:, LATENT:2 * LATENT]
    return None  # Encoder.__init__ sets self.type = '' -> forward returns None


# ----------------------------------------------------------------------------
# Main
# ----------------------------------------------------------------------------
if __name__ == "__main__":
    key = jax.random.PRNGKey(0)
    pkey, xkey = jax.random.split(key)
    params = init_encoder_params(pkey)

    # Input (PyTorch NCHW): 128*2*2 flatten implies 32x32 spatial, in_channels=1.
    x = jax.random.normal(xkey, (2, 1, 32, 32), dtype=jnp.float32)

    fwd = jax.jit(encoder_forward, static_argnums=(2,))
    mu, logvar = fwd(params, x, "VAE")
    ae_feat = fwd(params, x, "AE")
    jax.block_until_ready((mu, logvar, ae_feat))

    assert mu.shape == (2, LATENT) and logvar.shape == (2, LATENT)
    assert ae_feat.shape == (2, 128, 2, 2)
    assert bool(jnp.all(jnp.isfinite(mu))) and bool(jnp.all(jnp.isfinite(logvar)))
    print("KERNEL_OK")
</pallas_src>

<mosaic_0001>
module attributes {stable_mosaic.version = 11 : i64} {
  func.func @kernel(%arg0: i32, %arg1: memref<256x128xbf16, #tpu.memory_space<vmem>>, %arg2: memref<128x128xbf16, #tpu.memory_space<vmem>>, %arg3: memref<1x128xf32, #tpu.memory_space<vmem>>, %arg4: memref<256x128xbf16, #tpu.memory_space<vmem>>) attributes {dimension_semantics = [#tpu.dimension_semantics<parallel>], iteration_bounds = array<i64: 2>, scalar_prefetch = 0 : i64, scratch_operands = 0 : i64, tpu.core_type = #tpu.core_type<tc>, window_params = [{transform_indices = @transform_0, window_bounds = array<i64: 256, 128>}, {pipeline_mode = #tpu.pipeline_mode<synchronous>, transform_indices = @transform_1, window_bounds = array<i64: 128, 128>}, {pipeline_mode = #tpu.pipeline_mode<synchronous>, transform_indices = @transform_2, window_bounds = array<i64: 1, 128>}, {transform_indices = @transform_3, window_bounds = array<i64: 256, 128>}]} {
    %c0 = arith.constant 0 : index
    %c0_0 = arith.constant 0 : index
    %0 = vector.load %arg1[%c0, %c0_0] : memref<256x128xbf16, #tpu.memory_space<vmem>>, vector<256x128xbf16>
    %c0_1 = arith.constant 0 : index
    %c0_2 = arith.constant 0 : index
    %1 = vector.load %arg2[%c0_1, %c0_2] : memref<128x128xbf16, #tpu.memory_space<vmem>>, vector<128x128xbf16>
    %cst = arith.constant dense<0.000000e+00> : vector<256x128xf32>
    %2 = tpu.matmul %0, %1, %cst {dimension_numbers = #tpu.dot_dimension_numbers<[1], [0], [0], [1], [0, 0, 1, 1], [], []>} : vector<256x128xbf16>, vector<128x128xbf16>, vector<256x128xf32> -> vector<256x128xf32>
    %c0_3 = arith.constant 0 : index
    %c0_4 = arith.constant 0 : index
    %3 = vector.load %arg3[%c0_3, %c0_4] : memref<1x128xf32, #tpu.memory_space<vmem>>, vector<1x128xf32>
    %4 = vector.broadcast %3 : vector<1x128xf32> to vector<256x128xf32>
    %5 = arith.addf %2, %4 : vector<256x128xf32>
    %cst_5 = arith.constant 0.000000e+00 : f32
    %6 = vector.broadcast %cst_5 : f32 to vector<256x128xf32>
    %7 = arith.maximumf %5, %6 : vector<256x128xf32>
    %8 = arith.truncf %7 : vector<256x128xf32> to vector<256x128xbf16>
    %c0_6 = arith.constant 0 : index
    %c0_7 = arith.constant 0 : index
    %9 = vector.load %arg4[%c0_6, %c0_7] : memref<256x128xbf16, #tpu.memory_space<vmem>>, vector<256x128xbf16>
    tpu.vector_store %arg4[%c0_6, %c0_7], %8 {strides = array<i32>} : memref<256x128xbf16, #tpu.memory_space<vmem>>, vector<256x128xbf16>,
    return
  }
  func.func @transform_0(%arg0: i32) -> (i32, i32) {
    %c0_i32 = arith.constant 0 : i32
    %c0_i32_0 = arith.constant 0 : i32
    return %arg0, %c0_i32 : i32, i32
  }
  func.func @transform_1(%arg0: i32) -> (i32, i32) {
    %c0_i32 = arith.constant 0 : i32
    %c0_i32_0 = arith.constant 0 : i32
    %c0_i32_1 = arith.constant 0 : i32
    return %c0_i32, %c0_i32_0 : i32, i32
  }
  func.func @transform_2(%arg0: i32) -> (i32, i32) {
    %c0_i32 = arith.constant 0 : i32
    %c0_i32_0 = arith.constant 0 : i32
    %c0_i32_1 = arith.constant 0 : i32
    return %c0_i32, %c0_i32_0 : i32, i32
  }
  func.func @transform_3(%arg0: i32) -> (i32, i32) {
    %c0_i32 = arith.constant 0 : i32
    %c0_i32_0 = arith.constant 0 : i32
    return %arg0, %c0_i32 : i32, i32
  }
}

module attributes {stable_mosaic.version = 11 : i64} {
  func.func @kernel(%arg0: i32, %arg1: memref<128x1152xbf16, #tpu.memory_space<vmem>>, %arg2: memref<1152x128xbf16, #tpu.memory_space<vmem>>, %arg3: memref<1x128xf32, #tpu.memory_space<vmem>>, %arg4: memref<128x128xbf16, #tpu.memory_space<vmem>>) attributes {dimension_semantics = [#tpu.dimension_semantics<parallel>], iteration_bounds = array<i64: 1>, scalar_prefetch = 0 : i64, scratch_operands = 0 : i64, tpu.core_type = #tpu.core_type<tc>, window_params = [{transform_indices = @transform_0, window_bounds = array<i64: 128, 1152>}, {pipeline_mode = #tpu.pipeline_mode<synchronous>, transform_indices = @transform_1, window_bounds = array<i64: 1152, 128>}, {pipeline_mode = #tpu.pipeline_mode<synchronous>, transform_indices = @transform_2, window_bounds = array<i64: 1, 128>}, {transform_indices = @transform_3, window_bounds = array<i64: 128, 128>}]} {
    %c0 = arith.constant 0 : index
    %c0_0 = arith.constant 0 : index
    %0 = vector.load %arg1[%c0, %c0_0] : memref<128x1152xbf16, #tpu.memory_space<vmem>>, vector<128x1152xbf16>
    %c0_1 = arith.constant 0 : index
    %c0_2 = arith.constant 0 : index
    %1 = vector.load %arg2[%c0_1, %c0_2] : memref<1152x128xbf16, #tpu.memory_space<vmem>>, vector<1152x128xbf16>
    %cst = arith.constant dense<0.000000e+00> : vector<128x128xf32>
    %2 = tpu.matmul %0, %1, %cst {dimension_numbers = #tpu.dot_dimension_numbers<[1], [0], [0], [1], [0, 0, 1, 1], [], []>} : vector<128x1152xbf16>, vector<1152x128xbf16>, vector<128x128xf32> -> vector<128x128xf32>
    %c0_3 = arith.constant 0 : index
    %c0_4 = arith.constant 0 : index
    %3 = vector.load %arg3[%c0_3, %c0_4] : memref<1x128xf32, #tpu.memory_space<vmem>>, vector<1x128xf32>
    %4 = vector.broadcast %3 : vector<1x128xf32> to vector<128x128xf32>
    %5 = arith.addf %2, %4 : vector<128x128xf32>
    %cst_5 = arith.constant 0.000000e+00 : f32
    %6 = vector.broadcast %cst_5 : f32 to vector<128x128xf32>
    %7 = arith.maximumf %5, %6 : vector<128x128xf32>
    %8 = arith.truncf %7 : vector<128x128xf32> to vector<128x128xbf16>
    %c0_6 = arith.constant 0 : index
    %c0_7 = arith.constant 0 : index
    %9 = vector.load %arg4[%c0_6, %c0_7] : memref<128x128xbf16, #tpu.memory_space<vmem>>, vector<128x128xbf16>
    tpu.vector_store %arg4[%c0_6, %c0_7], %8 {strides = array<i32>} : memref<128x128xbf16, #tpu.memory_space<vmem>>, vector<128x128xbf16>,
    return
  }
  func.func @transform_0(%arg0: i32) -> (i32, i32) {
    %c0_i32 = arith.constant 0 : i32
    %c0_i32_0 = arith.constant 0 : i32
    return %arg0, %c0_i32 : i32, i32
  }
  func.func @transform_1(%arg0: i32) -> (i32, i32) {
    %c0_i32 = arith.constant 0 : i32
    %c0_i32_0 = arith.constant 0 : i32
    %c0_i32_1 = arith.constant 0 : i32
    return %c0_i32, %c0_i32_0 : i32, i32
  }
  func.func @transform_2(%arg0: i32) -> (i32, i32) {
    %c0_i32 = arith.constant 0 : i32
    %c0_i32_0 = arith.constant 0 : i32
    %c0_i32_1 = arith.constant 0 : i32
    return %c0_i32, %c0_i32_0 : i32, i32
  }
  func.func @transform_3(%arg0: i32) -> (i32, i32) {
    %c0_i32 = arith.constant 0 : i32
    %c0_i32_0 = arith.constant 0 : i32
    return %arg0, %c0_i32 : i32, i32
  }
}

module attributes {stable_mosaic.version = 11 : i64} {
  func.func @kernel(%arg0: i32, %arg1: memref<128x1152xbf16, #tpu.memory_space<vmem>>, %arg2: memref<1152x128xbf16, #tpu.memory_space<vmem>>, %arg3: memref<1x128xf32, #tpu.memory_space<vmem>>, %arg4: memref<128x128xbf16, #tpu.memory_space<vmem>>, %arg5: memref<128x128xbf16, #tpu.memory_space<vmem>>) attributes {dimension_semantics = [#tpu.dimension_semantics<parallel>], iteration_bounds = array<i64: 1>, scalar_prefetch = 0 : i64, scratch_operands = 0 : i64, tpu.core_type = #tpu.core_type<tc>, window_params = [{transform_indices = @transform_0, window_bounds = array<i64: 128, 1152>}, {pipeline_mode = #tpu.pipeline_mode<synchronous>, transform_indices = @transform_1, window_bounds = array<i64: 1152, 128>}, {pipeline_mode = #tpu.pipeline_mode<synchronous>, transform_indices = @transform_2, window_bounds = array<i64: 1, 128>}, {transform_indices = @transform_3, window_bounds = array<i64: 128, 128>}, {transform_indices = @transform_4, window_bounds = array<i64: 128, 128>}]} {
    %c0 = arith.constant 0 : index
    %c0_0 = arith.constant 0 : index
    %0 = vector.load %arg1[%c0, %c0_0] : memref<128x1152xbf16, #tpu.memory_space<vmem>>, vector<128x1152xbf16>
    %c0_1 = arith.constant 0 : index
    %c0_2 = arith.constant 0 : index
    %1 = vector.load %arg2[%c0_1, %c0_2] : memref<1152x128xbf16, #tpu.memory_space<vmem>>, vector<1152x128xbf16>
    %cst = arith.constant dense<0.000000e+00> : vector<128x128xf32>
    %2 = tpu.matmul %0, %1, %cst {dimension_numbers = #tpu.dot_dimension_numbers<[1], [0], [0], [1], [0, 0, 1, 1], [], []>} : vector<128x1152xbf16>, vector<1152x128xbf16>, vector<128x128xf32> -> vector<128x128xf32>
    %c0_3 = arith.constant 0 : index
    %c0_4 = arith.constant 0 : index
    %3 = vector.load %arg3[%c0_3, %c0_4] : memref<1x128xf32, #tpu.memory_space<vmem>>, vector<1x128xf32>
    %4 = vector.broadcast %3 : vector<1x128xf32> to vector<128x128xf32>
    %5 = arith.addf %2, %4 : vector<128x128xf32>
    %c0_5 = arith.constant 0 : index
    %c0_6 = arith.constant 0 : index
    %6 = vector.load %arg4[%c0_5, %c0_6] : memref<128x128xbf16, #tpu.memory_space<vmem>>, vector<128x128xbf16>
    %7 = arith.extf %6 : vector<128x128xbf16> to vector<128x128xf32>
    %8 = arith.addf %5, %7 : vector<128x128xf32>
    %cst_7 = arith.constant 0.000000e+00 : f32
    %9 = vector.broadcast %cst_7 : f32 to vector<128x128xf32>
    %10 = arith.maximumf %8, %9 : vector<128x128xf32>
    %11 = arith.truncf %10 : vector<128x128xf32> to vector<128x128xbf16>
    %c0_8 = arith.constant 0 : index
    %c0_9 = arith.constant 0 : index
    %12 = vector.load %arg5[%c0_8, %c0_9] : memref<128x128xbf16, #tpu.memory_space<vmem>>, vector<128x128xbf16>
    tpu.vector_store %arg5[%c0_8, %c0_9], %11 {strides = array<i32>} : memref<128x128xbf16, #tpu.memory_space<vmem>>, vector<128x128xbf16>,
    return
  }
  func.func @transform_0(%arg0: i32) -> (i32, i32) {
    %c0_i32 = arith.constant 0 : i32
    %c0_i32_0 = arith.constant 0 : i32
    return %arg0, %c0_i32 : i32, i32
  }
  func.func @transform_1(%arg0: i32) -> (i32, i32) {
    %c0_i32 = arith.constant 0 : i32
    %c0_i32_0 = arith.constant 0 : i32
    %c0_i32_1 = arith.constant 0 : i32
    return %c0_i32, %c0_i32_0 : i32, i32
  }
  func.func @transform_2(%arg0: i32) -> (i32, i32) {
    %c0_i32 = arith.constant 0 : i32
    %c0_i32_0 = arith.constant 0 : i32
    %c0_i32_1 = arith.constant 0 : i32
    return %c0_i32, %c0_i32_0 : i32, i32
  }
  func.func @transform_3(%arg0: i32) -> (i32, i32) {
    %c0_i32 = arith.constant 0 : i32
    %c0_i32_0 = arith.constant 0 : i32
    return %arg0, %c0_i32 : i32, i32
  }
  func.func @transform_4(%arg0: i32) -> (i32, i32) {
    %c0_i32 = arith.constant 0 : i32
    %c0_i32_0 = arith.constant 0 : i32
    return %arg0, %c0_i32 : i32, i32
  }
}

module attributes {stable_mosaic.version = 11 : i64} {
  func.func @kernel(%arg0: i32, %arg1: memref<128x1152xbf16, #tpu.memory_space<vmem>>, %arg2: memref<1152x128xbf16, #tpu.memory_space<vmem>>, %arg3: memref<1x128xf32, #tpu.memory_space<vmem>>, %arg4: memref<128x128xbf16, #tpu.memory_space<vmem>>, %arg5: memref<128x128xbf16, #tpu.memory_space<vmem>>, %arg6: memref<1x128xf32, #tpu.memory_space<vmem>>, %arg7: memref<128x128xbf16, #tpu.memory_space<vmem>>) attributes {dimension_semantics = [#tpu.dimension_semantics<parallel>], iteration_bounds = array<i64: 1>, scalar_prefetch = 0 : i64, scratch_operands = 0 : i64, tpu.core_type = #tpu.core_type<tc>, window_params = [{transform_indices = @transform_0, window_bounds = array<i64: 128, 1152>}, {pipeline_mode = #tpu.pipeline_mode<synchronous>, transform_indices = @transform_1, window_bounds = array<i64: 1152, 128>}, {pipeline_mode = #tpu.pipeline_mode<synchronous>, transform_indices = @transform_2, window_bounds = array<i64: 1, 128>}, {transform_indices = @transform_3, window_bounds = array<i64: 128, 128>}, {pipeline_mode = #tpu.pipeline_mode<synchronous>, transform_indices = @transform_4, window_bounds = array<i64: 128, 128>}, {pipeline_mode = #tpu.pipeline_mode<synchronous>, transform_indices = @transform_5, window_bounds = array<i64: 1, 128>}, {transform_indices = @transform_6, window_bounds = array<i64: 128, 128>}]} {
    %c0 = arith.constant 0 : index
    %c0_0 = arith.constant 0 : index
    %0 = vector.load %arg1[%c0, %c0_0] : memref<128x1152xbf16, #tpu.memory_space<vmem>>, vector<128x1152xbf16>
    %c0_1 = arith.constant 0 : index
    %c0_2 = arith.constant 0 : index
    %1 = vector.load %arg2[%c0_1, %c0_2] : memref<1152x128xbf16, #tpu.memory_space<vmem>>, vector<1152x128xbf16>
    %cst = arith.constant dense<0.000000e+00> : vector<128x128xf32>
    %2 = tpu.matmul %0, %1, %cst {dimension_numbers = #tpu.dot_dimension_numbers<[1], [0], [0], [1], [0, 0, 1, 1], [], []>} : vector<128x1152xbf16>, vector<1152x128xbf16>, vector<128x128xf32> -> vector<128x128xf32>
    %c0_3 = arith.constant 0 : index
    %c0_4 = arith.constant 0 : index
    %3 = vector.load %arg3[%c0_3, %c0_4] : memref<1x128xf32, #tpu.memory_space<vmem>>, vector<1x128xf32>
    %4 = vector.broadcast %3 : vector<1x128xf32> to vector<128x128xf32>
    %5 = arith.addf %2, %4 : vector<128x128xf32>
    %c0_5 = arith.constant 0 : index
    %c0_6 = arith.constant 0 : index
    %6 = vector.load %arg4[%c0_5, %c0_6] : memref<128x128xbf16, #tpu.memory_space<vmem>>, vector<128x128xbf16>
    %c0_7 = arith.constant 0 : index
    %c0_8 = arith.constant 0 : index
    %7 = vector.load %arg5[%c0_7, %c0_8] : memref<128x128xbf16, #tpu.memory_space<vmem>>, vector<128x128xbf16>
    %cst_9 = arith.constant dense<0.000000e+00> : vector<128x128xf32>
    %8 = tpu.matmul %6, %7, %cst_9 {dimension_numbers = #tpu.dot_dimension_numbers<[1], [0], [0], [1], [0, 0, 1, 1], [], []>} : vector<128x128xbf16>, vector<128x128xbf16>, vector<128x128xf32> -> vector<128x128xf32>
    %c0_10 = arith.constant 0 : index
    %c0_11 = arith.constant 0 : index
    %9 = vector.load %arg6[%c0_10, %c0_11] : memref<1x128xf32, #tpu.memory_space<vmem>>, vector<1x128xf32>
    %10 = vector.broadcast %9 : vector<1x128xf32> to vector<128x128xf32>
    %11 = arith.addf %8, %10 : vector<128x128xf32>
    %12 = arith.addf %5, %11 : vector<128x128xf32>
    %cst_12 = arith.constant 0.000000e+00 : f32
    %13 = vector.broadcast %cst_12 : f32 to vector<128x128xf32>
    %14 = arith.maximumf %12, %13 : vector<128x128xf32>
    %15 = arith.truncf %14 : vector<128x128xf32> to vector<128x128xbf16>
    %c0_13 = arith.constant 0 : index
    %c0_14 = arith.constant 0 : index
    %16 = vector.load %arg7[%c0_13, %c0_14] : memref<128x128xbf16, #tpu.memory_space<vmem>>, vector<128x128xbf16>
    tpu.vector_store %arg7[%c0_13, %c0_14], %15 {strides = array<i32>} : memref<128x128xbf16, #tpu.memory_space<vmem>>, vector<128x128xbf16>,
    return
  }
  func.func @transform_0(%arg0: i32) -> (i32, i32) {
    %c0_i32 = arith.constant 0 : i32
    %c0_i32_0 = arith.constant 0 : i32
    return %arg0, %c0_i32 : i32, i32
  }
  func.func @transform_1(%arg0: i32) -> (i32, i32) {
    %c0_i32 = arith.constant 0 : i32
    %c0_i32_0 = arith.constant 0 : i32
    %c0_i32_1 = arith.constant 0 : i32
    return %c0_i32, %c0_i32_0 : i32, i32
  }
  func.func @transform_2(%arg0: i32) -> (i32, i32) {
    %c0_i32 = arith.constant 0 : i32
    %c0_i32_0 = arith.constant 0 : i32
    %c0_i32_1 = arith.constant 0 : i32
    return %c0_i32, %c0_i32_0 : i32, i32
  }
  func.func @transform_3(%arg0: i32) -> (i32, i32) {
    %c0_i32 = arith.constant 0 : i32
    %c0_i32_0 = arith.constant 0 : i32
    return %arg0, %c0_i32 : i32, i32
  }
  func.func @transform_4(%arg0: i32) -> (i32, i32) {
    %c0_i32 = arith.constant 0 : i32
    %c0_i32_0 = arith.constant 0 : i32
    %c0_i32_1 = arith.constant 0 : i32
    return %c0_i32, %c0_i32_0 : i32, i32
  }
  func.func @transform_5(%arg0: i32) -> (i32, i32) {
    %c0_i32 = arith.constant 0 : i32
    %c0_i32_0 = arith.constant 0 : i32
    %c0_i32_1 = arith.constant 0 : i32
    return %c0_i32, %c0_i32_0 : i32, i32
  }
  func.func @transform_6(%arg0: i32) -> (i32, i32) {
    %c0_i32 = arith.constant 0 : i32
    %c0_i32_0 = arith.constant 0 : i32
    return %arg0, %c0_i32 : i32, i32
  }
}

module attributes {stable_mosaic.version = 11 : i64} {
  func.func @kernel(%arg0: i32, %arg1: memref<32x1152xbf16, #tpu.memory_space<vmem>>, %arg2: memref<1152x128xbf16, #tpu.memory_space<vmem>>, %arg3: memref<1x128xf32, #tpu.memory_space<vmem>>, %arg4: memref<32x128xbf16, #tpu.memory_space<vmem>>) attributes {dimension_semantics = [#tpu.dimension_semantics<parallel>], iteration_bounds = array<i64: 1>, scalar_prefetch = 0 : i64, scratch_operands = 0 : i64, tpu.core_type = #tpu.core_type<tc>, window_params = [{transform_indices = @transform_0, window_bounds = array<i64: 32, 1152>}, {pipeline_mode = #tpu.pipeline_mode<synchronous>, transform_indices = @transform_1, window_bounds = array<i64: 1152, 128>}, {pipeline_mode = #tpu.pipeline_mode<synchronous>, transform_indices = @transform_2, window_bounds = array<i64: 1, 128>}, {transform_indices = @transform_3, window_bounds = array<i64: 32, 128>}]} {
    %c0 = arith.constant 0 : index
    %c0_0 = arith.constant 0 : index
    %0 = vector.load %arg1[%c0, %c0_0] : memref<32x1152xbf16, #tpu.memory_space<vmem>>, vector<32x1152xbf16>
    %c0_1 = arith.constant 0 : index
    %c0_2 = arith.constant 0 : index
    %1 = vector.load %arg2[%c0_1, %c0_2] : memref<1152x128xbf16, #tpu.memory_space<vmem>>, vector<1152x128xbf16>
    %cst = arith.constant dense<0.000000e+00> : vector<32x128xf32>
    %2 = tpu.matmul %0, %1, %cst {dimension_numbers = #tpu.dot_dimension_numbers<[1], [0], [0], [1], [0, 0, 1, 1], [], []>} : vector<32x1152xbf16>, vector<1152x128xbf16>, vector<32x128xf32> -> vector<32x128xf32>
    %c0_3 = arith.constant 0 : index
    %c0_4 = arith.constant 0 : index
    %3 = vector.load %arg3[%c0_3, %c0_4] : memref<1x128xf32, #tpu.memory_space<vmem>>, vector<1x128xf32>
    %4 = vector.broadcast %3 : vector<1x128xf32> to vector<32x128xf32>
    %5 = arith.addf %2, %4 : vector<32x128xf32>
    %cst_5 = arith.constant 0.000000e+00 : f32
    %6 = vector.broadcast %cst_5 : f32 to vector<32x128xf32>
    %7 = arith.maximumf %5, %6 : vector<32x128xf32>
    %8 = arith.truncf %7 : vector<32x128xf32> to vector<32x128xbf16>
    %c0_6 = arith.constant 0 : index
    %c0_7 = arith.constant 0 : index
    %9 = vector.load %arg4[%c0_6, %c0_7] : memref<32x128xbf16, #tpu.memory_space<vmem>>, vector<32x128xbf16>
    tpu.vector_store %arg4[%c0_6, %c0_7], %8 {strides = array<i32>} : memref<32x128xbf16, #tpu.memory_space<vmem>>, vector<32x128xbf16>,
    return
  }
  func.func @transform_0(%arg0: i32) -> (i32, i32) {
    %c0_i32 = arith.constant 0 : i32
    %c0_i32_0 = arith.constant 0 : i32
    return %arg0, %c0_i32 : i32, i32
  }
  func.func @transform_1(%arg0: i32) -> (i32, i32) {
    %c0_i32 = arith.constant 0 : i32
    %c0_i32_0 = arith.constant 0 : i32
    %c0_i32_1 = arith.constant 0 : i32
    return %c0_i32, %c0_i32_0 : i32, i32
  }
  func.func @transform_2(%arg0: i32) -> (i32, i32) {
    %c0_i32 = arith.constant 0 : i32
    %c0_i32_0 = arith.constant 0 : i32
    %c0_i32_1 = arith.constant 0 : i32
    return %c0_i32, %c0_i32_0 : i32, i32
  }
  func.func @transform_3(%arg0: i32) -> (i32, i32) {
    %c0_i32 = arith.constant 0 : i32
    %c0_i32_0 = arith.constant 0 : i32
    return %arg0, %c0_i32 : i32, i32
  }
}

module attributes {stable_mosaic.version = 11 : i64} {
  func.func @kernel(%arg0: i32, %arg1: memref<32x1152xbf16, #tpu.memory_space<vmem>>, %arg2: memref<1152x128xbf16, #tpu.memory_space<vmem>>, %arg3: memref<1x128xf32, #tpu.memory_space<vmem>>, %arg4: memref<32x128xbf16, #tpu.memory_space<vmem>>, %arg5: memref<32x128xbf16, #tpu.memory_space<vmem>>) attributes {dimension_semantics = [#tpu.dimension_semantics<parallel>], iteration_bounds = array<i64: 1>, scalar_prefetch = 0 : i64, scratch_operands = 0 : i64, tpu.core_type = #tpu.core_type<tc>, window_params = [{transform_indices = @transform_0, window_bounds = array<i64: 32, 1152>}, {pipeline_mode = #tpu.pipeline_mode<synchronous>, transform_indices = @transform_1, window_bounds = array<i64: 1152, 128>}, {pipeline_mode = #tpu.pipeline_mode<synchronous>, transform_indices = @transform_2, window_bounds = array<i64: 1, 128>}, {transform_indices = @transform_3, window_bounds = array<i64: 32, 128>}, {transform_indices = @transform_4, window_bounds = array<i64: 32, 128>}]} {
    %c0 = arith.constant 0 : index
    %c0_0 = arith.constant 0 : index
    %0 = vector.load %arg1[%c0, %c0_0] : memref<32x1152xbf16, #tpu.memory_space<vmem>>, vector<32x1152xbf16>
    %c0_1 = arith.constant 0 : index
    %c0_2 = arith.constant 0 : index
    %1 = vector.load %arg2[%c0_1, %c0_2] : memref<1152x128xbf16, #tpu.memory_space<vmem>>, vector<1152x128xbf16>
    %cst = arith.constant dense<0.000000e+00> : vector<32x128xf32>
    %2 = tpu.matmul %0, %1, %cst {dimension_numbers = #tpu.dot_dimension_numbers<[1], [0], [0], [1], [0, 0, 1, 1], [], []>} : vector<32x1152xbf16>, vector<1152x128xbf16>, vector<32x128xf32> -> vector<32x128xf32>
    %c0_3 = arith.constant 0 : index
    %c0_4 = arith.constant 0 : index
    %3 = vector.load %arg3[%c0_3, %c0_4] : memref<1x128xf32, #tpu.memory_space<vmem>>, vector<1x128xf32>
    %4 = vector.broadcast %3 : vector<1x128xf32> to vector<32x128xf32>
    %5 = arith.addf %2, %4 : vector<32x128xf32>
    %c0_5 = arith.constant 0 : index
    %c0_6 = arith.constant 0 : index
    %6 = vector.load %arg4[%c0_5, %c0_6] : memref<32x128xbf16, #tpu.memory_space<vmem>>, vector<32x128xbf16>
    %7 = arith.extf %6 : vector<32x128xbf16> to vector<32x128xf32>
    %8 = arith.addf %5, %7 : vector<32x128xf32>
    %cst_7 = arith.constant 0.000000e+00 : f32
    %9 = vector.broadcast %cst_7 : f32 to vector<32x128xf32>
    %10 = arith.maximumf %8, %9 : vector<32x128xf32>
    %11 = arith.truncf %10 : vector<32x128xf32> to vector<32x128xbf16>
    %c0_8 = arith.constant 0 : index
    %c0_9 = arith.constant 0 : index
    %12 = vector.load %arg5[%c0_8, %c0_9] : memref<32x128xbf16, #tpu.memory_space<vmem>>, vector<32x128xbf16>
    tpu.vector_store %arg5[%c0_8, %c0_9], %11 {strides = array<i32>} : memref<32x128xbf16, #tpu.memory_space<vmem>>, vector<32x128xbf16>,
    return
  }
  func.func @transform_0(%arg0: i32) -> (i32, i32) {
    %c0_i32 = arith.constant 0 : i32
    %c0_i32_0 = arith.constant 0 : i32
    return %arg0, %c0_i32 : i32, i32
  }
  func.func @transform_1(%arg0: i32) -> (i32, i32) {
    %c0_i32 = arith.constant 0 : i32
    %c0_i32_0 = arith.constant 0 : i32
    %c0_i32_1 = arith.constant 0 : i32
    return %c0_i32, %c0_i32_0 : i32, i32
  }
  func.func @transform_2(%arg0: i32) -> (i32, i32) {
    %c0_i32 = arith.constant 0 : i32
    %c0_i32_0 = arith.constant 0 : i32
    %c0_i32_1 = arith.constant 0 : i32
    return %c0_i32, %c0_i32_0 : i32, i32
  }
  func.func @transform_3(%arg0: i32) -> (i32, i32) {
    %c0_i32 = arith.constant 0 : i32
    %c0_i32_0 = arith.constant 0 : i32
    return %arg0, %c0_i32 : i32, i32
  }
  func.func @transform_4(%arg0: i32) -> (i32, i32) {
    %c0_i32 = arith.constant 0 : i32
    %c0_i32_0 = arith.constant 0 : i32
    return %arg0, %c0_i32 : i32, i32
  }
}

module attributes {stable_mosaic.version = 11 : i64} {
  func.func @kernel(%arg0: i32, %arg1: memref<32x1152xbf16, #tpu.memory_space<vmem>>, %arg2: memref<1152x128xbf16, #tpu.memory_space<vmem>>, %arg3: memref<1x128xf32, #tpu.memory_space<vmem>>, %arg4: memref<32x128xbf16, #tpu.memory_space<vmem>>, %arg5: memref<128x128xbf16, #tpu.memory_space<vmem>>, %arg6: memref<1x128xf32, #tpu.memory_space<vmem>>, %arg7: memref<32x128xbf16, #tpu.memory_space<vmem>>) attributes {dimension_semantics = [#tpu.dimension_semantics<parallel>], iteration_bounds = array<i64: 1>, scalar_prefetch = 0 : i64, scratch_operands = 0 : i64, tpu.core_type = #tpu.core_type<tc>, window_params = [{transform_indices = @transform_0, window_bounds = array<i64: 32, 1152>}, {pipeline_mode = #tpu.pipeline_mode<synchronous>, transform_indices = @transform_1, window_bounds = array<i64: 1152, 128>}, {pipeline_mode = #tpu.pipeline_mode<synchronous>, transform_indices = @transform_2, window_bounds = array<i64: 1, 128>}, {transform_indices = @transform_3, window_bounds = array<i64: 32, 128>}, {pipeline_mode = #tpu.pipeline_mode<synchronous>, transform_indices = @transform_4, window_bounds = array<i64: 128, 128>}, {pipeline_mode = #tpu.pipeline_mode<synchronous>, transform_indices = @transform_5, window_bounds = array<i64: 1, 128>}, {transform_indices = @transform_6, window_bounds = array<i64: 32, 128>}]} {
    %c0 = arith.constant 0 : index
    %c0_0 = arith.constant 0 : index
    %0 = vector.load %arg1[%c0, %c0_0] : memref<32x1152xbf16, #tpu.memory_space<vmem>>, vector<32x1152xbf16>
    %c0_1 = arith.constant 0 : index
    %c0_2 = arith.constant 0 : index
    %1 = vector.load %arg2[%c0_1, %c0_2] : memref<1152x128xbf16, #tpu.memory_space<vmem>>, vector<1152x128xbf16>
    %cst = arith.constant dense<0.000000e+00> : vector<32x128xf32>
    %2 = tpu.matmul %0, %1, %cst {dimension_numbers = #tpu.dot_dimension_numbers<[1], [0], [0], [1], [0, 0, 1, 1], [], []>} : vector<32x1152xbf16>, vector<1152x128xbf16>, vector<32x128xf32> -> vector<32x128xf32>
    %c0_3 = arith.constant 0 : index
    %c0_4 = arith.constant 0 : index
    %3 = vector.load %arg3[%c0_3, %c0_4] : memref<1x128xf32, #tpu.memory_space<vmem>>, vector<1x128xf32>
    %4 = vector.broadcast %3 : vector<1x128xf32> to vector<32x128xf32>
    %5 = arith.addf %2, %4 : vector<32x128xf32>
    %c0_5 = arith.constant 0 : index
    %c0_6 = arith.constant 0 : index
    %6 = vector.load %arg4[%c0_5, %c0_6] : memref<32x128xbf16, #tpu.memory_space<vmem>>, vector<32x128xbf16>
    %c0_7 = arith.constant 0 : index
    %c0_8 = arith.constant 0 : index
    %7 = vector.load %arg5[%c0_7, %c0_8] : memref<128x128xbf16, #tpu.memory_space<vmem>>, vector<128x128xbf16>
    %cst_9 = arith.constant dense<0.000000e+00> : vector<32x128xf32>
    %8 = tpu.matmul %6, %7, %cst_9 {dimension_numbers = #tpu.dot_dimension_numbers<[1], [0], [0], [1], [0, 0, 1, 1], [], []>} : vector<32x128xbf16>, vector<128x128xbf16>, vector<32x128xf32> -> vector<32x128xf32>
    %c0_10 = arith.constant 0 : index
    %c0_11 = arith.constant 0 : index
    %9 = vector.load %arg6[%c0_10, %c0_11] : memref<1x128xf32, #tpu.memory_space<vmem>>, vector<1x128xf32>
    %10 = vector.broadcast %9 : vector<1x128xf32> to vector<32x128xf32>
    %11 = arith.addf %8, %10 : vector<32x128xf32>
    %12 = arith.addf %5, %11 : vector<32x128xf32>
    %cst_12 = arith.constant 0.000000e+00 : f32
    %13 = vector.broadcast %cst_12 : f32 to vector<32x128xf32>
    %14 = arith.maximumf %12, %13 : vector<32x128xf32>
    %15 = arith.truncf %14 : vector<32x128xf32> to vector<32x128xbf16>
    %c0_13 = arith.constant 0 : index
    %c0_14 = arith.constant 0 : index
    %16 = vector.load %arg7[%c0_13, %c0_14] : memref<32x128xbf16, #tpu.memory_space<vmem>>, vector<32x128xbf16>
    tpu.vector_store %arg7[%c0_13, %c0_14], %15 {strides = array<i32>} : memref<32x128xbf16, #tpu.memory_space<vmem>>, vector<32x128xbf16>,
    return
  }
  func.func @transform_0(%arg0: i32) -> (i32, i32) {
    %c0_i32 = arith.constant 0 : i32
    %c0_i32_0 = arith.constant 0 : i32
    return %arg0, %c0_i32 : i32, i32
  }
  func.func @transform_1(%arg0: i32) -> (i32, i32) {
    %c0_i32 = arith.constant 0 : i32
    %c0_i32_0 = arith.constant 0 : i32
    %c0_i32_1 = arith.constant 0 : i32
    return %c0_i32, %c0_i32_0 : i32, i32
  }
  func.func @transform_2(%arg0: i32) -> (i32, i32) {
    %c0_i32 = arith.constant 0 : i32
    %c0_i32_0 = arith.constant 0 : i32
    %c0_i32_1 = arith.constant 0 : i32
    return %c0_i32, %c0_i32_0 : i32, i32
  }
  func.func @transform_3(%arg0: i32) -> (i32, i32) {
    %c0_i32 = arith.constant 0 : i32
    %c0_i32_0 = arith.constant 0 : i32
    return %arg0, %c0_i32 : i32, i32
  }
  func.func @transform_4(%arg0: i32) -> (i32, i32) {
    %c0_i32 = arith.constant 0 : i32
    %c0_i32_0 = arith.constant 0 : i32
    %c0_i32_1 = arith.constant 0 : i32
    return %c0_i32, %c0_i32_0 : i32, i32
  }
  func.func @transform_5(%arg0: i32) -> (i32, i32) {
    %c0_i32 = arith.constant 0 : i32
    %c0_i32_0 = arith.constant 0 : i32
    %c0_i32_1 = arith.constant 0 : i32
    return %c0_i32, %c0_i32_0 : i32, i32
  }
  func.func @transform_6(%arg0: i32) -> (i32, i32) {
    %c0_i32 = arith.constant 0 : i32
    %c0_i32_0 = arith.constant 0 : i32
    return %arg0, %c0_i32 : i32, i32
  }
}

module attributes {stable_mosaic.version = 11 : i64} {
  func.func @kernel(%arg0: i32, %arg1: memref<16x1152xbf16, #tpu.memory_space<vmem>>, %arg2: memref<1152x128xbf16, #tpu.memory_space<vmem>>, %arg3: memref<1x128xf32, #tpu.memory_space<vmem>>, %arg4: memref<16x128xbf16, #tpu.memory_space<vmem>>) attributes {dimension_semantics = [#tpu.dimension_semantics<parallel>], iteration_bounds = array<i64: 1>, scalar_prefetch = 0 : i64, scratch_operands = 0 : i64, tpu.core_type = #tpu.core_type<tc>, window_params = [{transform_indices = @transform_0, window_bounds = array<i64: 16, 1152>}, {pipeline_mode = #tpu.pipeline_mode<synchronous>, transform_indices = @transform_1, window_bounds = array<i64: 1152, 128>}, {pipeline_mode = #tpu.pipeline_mode<synchronous>, transform_indices = @transform_2, window_bounds = array<i64: 1, 128>}, {transform_indices = @transform_3, window_bounds = array<i64: 16, 128>}]} {
    %c0 = arith.constant 0 : index
    %c0_0 = arith.constant 0 : index
    %0 = vector.load %arg1[%c0, %c0_0] : memref<16x1152xbf16, #tpu.memory_space<vmem>>, vector<16x1152xbf16>
    %c0_1 = arith.constant 0 : index
    %c0_2 = arith.constant 0 : index
    %1 = vector.load %arg2[%c0_1, %c0_2] : memref<1152x128xbf16, #tpu.memory_space<vmem>>, vector<1152x128xbf16>
    %cst = arith.constant dense<0.000000e+00> : vector<16x128xf32>
    %2 = tpu.matmul %0, %1, %cst {dimension_numbers = #tpu.dot_dimension_numbers<[1], [0], [0], [1], [0, 0, 1, 1], [], []>} : vector<16x1152xbf16>, vector<1152x128xbf16>, vector<16x128xf32> -> vector<16x128xf32>
    %c0_3 = arith.constant 0 : index
    %c0_4 = arith.constant 0 : index
    %3 = vector.load %arg3[%c0_3, %c0_4] : memref<1x128xf32, #tpu.memory_space<vmem>>, vector<1x128xf32>
    %4 = vector.broadcast %3 : vector<1x128xf32> to vector<16x128xf32>
    %5 = arith.addf %2, %4 : vector<16x128xf32>
    %cst_5 = arith.constant 0.000000e+00 : f32
    %6 = vector.broadcast %cst_5 : f32 to vector<16x128xf32>
    %7 = arith.maximumf %5, %6 : vector<16x128xf32>
    %8 = arith.truncf %7 : vector<16x128xf32> to vector<16x128xbf16>
    %c0_6 = arith.constant 0 : index
    %c0_7 = arith.constant 0 : index
    %9 = vector.load %arg4[%c0_6, %c0_7] : memref<16x128xbf16, #tpu.memory_space<vmem>>, vector<16x128xbf16>
    tpu.vector_store %arg4[%c0_6, %c0_7], %8 {strides = array<i32>} : memref<16x128xbf16, #tpu.memory_space<vmem>>, vector<16x128xbf16>,
    return
  }
  func.func @transform_0(%arg0: i32) -> (i32, i32) {
    %c0_i32 = arith.constant 0 : i32
    %c0_i32_0 = arith.constant 0 : i32
    return %arg0, %c0_i32 : i32, i32
  }
  func.func @transform_1(%arg0: i32) -> (i32, i32) {
    %c0_i32 = arith.constant 0 : i32
    %c0_i32_0 = arith.constant 0 : i32
    %c0_i32_1 = arith.constant 0 : i32
    return %c0_i32, %c0_i32_0 : i32, i32
  }
  func.func @transform_2(%arg0: i32) -> (i32, i32) {
    %c0_i32 = arith.constant 0 : i32
    %c0_i32_0 = arith.constant 0 : i32
    %c0_i32_1 = arith.constant 0 : i32
    return %c0_i32, %c0_i32_0 : i32, i32
  }
  func.func @transform_3(%arg0: i32) -> (i32, i32) {
    %c0_i32 = arith.constant 0 : i32
    %c0_i32_0 = arith.constant 0 : i32
    return %arg0, %c0_i32 : i32, i32
  }
}

module attributes {stable_mosaic.version = 11 : i64} {
  func.func @kernel(%arg0: i32, %arg1: memref<16x1152xbf16, #tpu.memory_space<vmem>>, %arg2: memref<1152x128xbf16, #tpu.memory_space<vmem>>, %arg3: memref<1x128xf32, #tpu.memory_space<vmem>>, %arg4: memref<16x128xbf16, #tpu.memory_space<vmem>>, %arg5: memref<16x128xbf16, #tpu.memory_space<vmem>>) attributes {dimension_semantics = [#tpu.dimension_semantics<parallel>], iteration_bounds = array<i64: 1>, scalar_prefetch = 0 : i64, scratch_operands = 0 : i64, tpu.core_type = #tpu.core_type<tc>, window_params = [{transform_indices = @transform_0, window_bounds = array<i64: 16, 1152>}, {pipeline_mode = #tpu.pipeline_mode<synchronous>, transform_indices = @transform_1, window_bounds = array<i64: 1152, 128>}, {pipeline_mode = #tpu.pipeline_mode<synchronous>, transform_indices = @transform_2, window_bounds = array<i64: 1, 128>}, {transform_indices = @transform_3, window_bounds = array<i64: 16, 128>}, {transform_indices = @transform_4, window_bounds = array<i64: 16, 128>}]} {
    %c0 = arith.constant 0 : index
    %c0_0 = arith.constant 0 : index
    %0 = vector.load %arg1[%c0, %c0_0] : memref<16x1152xbf16, #tpu.memory_space<vmem>>, vector<16x1152xbf16>
    %c0_1 = arith.constant 0 : index
    %c0_2 = arith.constant 0 : index
    %1 = vector.load %arg2[%c0_1, %c0_2] : memref<1152x128xbf16, #tpu.memory_space<vmem>>, vector<1152x128xbf16>
    %cst = arith.constant dense<0.000000e+00> : vector<16x128xf32>
    %2 = tpu.matmul %0, %1, %cst {dimension_numbers = #tpu.dot_dimension_numbers<[1], [0], [0], [1], [0, 0, 1, 1], [], []>} : vector<16x1152xbf16>, vector<1152x128xbf16>, vector<16x128xf32> -> vector<16x128xf32>
    %c0_3 = arith.constant 0 : index
    %c0_4 = arith.constant 0 : index
    %3 = vector.load %arg3[%c0_3, %c0_4] : memref<1x128xf32, #tpu.memory_space<vmem>>, vector<1x128xf32>
    %4 = vector.broadcast %3 : vector<1x128xf32> to vector<16x128xf32>
    %5 = arith.addf %2, %4 : vector<16x128xf32>
    %c0_5 = arith.constant 0 : index
    %c0_6 = arith.constant 0 : index
    %6 = vector.load %arg4[%c0_5, %c0_6] : memref<16x128xbf16, #tpu.memory_space<vmem>>, vector<16x128xbf16>
    %7 = arith.extf %6 : vector<16x128xbf16> to vector<16x128xf32>
    %8 = arith.addf %5, %7 : vector<16x128xf32>
    %cst_7 = arith.constant 0.000000e+00 : f32
    %9 = vector.broadcast %cst_7 : f32 to vector<16x128xf32>
    %10 = arith.maximumf %8, %9 : vector<16x128xf32>
    %11 = arith.truncf %10 : vector<16x128xf32> to vector<16x128xbf16>
    %c0_8 = arith.constant 0 : index
    %c0_9 = arith.constant 0 : index
    %12 = vector.load %arg5[%c0_8, %c0_9] : memref<16x128xbf16, #tpu.memory_space<vmem>>, vector<16x128xbf16>
    tpu.vector_store %arg5[%c0_8, %c0_9], %11 {strides = array<i32>} : memref<16x128xbf16, #tpu.memory_space<vmem>>, vector<16x128xbf16>,
    return
  }
  func.func @transform_0(%arg0: i32) -> (i32, i32) {
    %c0_i32 = arith.constant 0 : i32
    %c0_i32_0 = arith.constant 0 : i32
    return %arg0, %c0_i32 : i32, i32
  }
  func.func @transform_1(%arg0: i32) -> (i32, i32) {
    %c0_i32 = arith.constant 0 : i32
    %c0_i32_0 = arith.constant 0 : i32
    %c0_i32_1 = arith.constant 0 : i32
    return %c0_i32, %c0_i32_0 : i32, i32
  }
  func.func @transform_2(%arg0: i32) -> (i32, i32) {
    %c0_i32 = arith.constant 0 : i32
    %c0_i32_0 = arith.constant 0 : i32
    %c0_i32_1 = arith.constant 0 : i32
    return %c0_i32, %c0_i32_0 : i32, i32
  }
  func.func @transform_3(%arg0: i32) -> (i32, i32) {
    %c0_i32 = arith.constant 0 : i32
    %c0_i32_0 = arith.constant 0 : i32
    return %arg0, %c0_i32 : i32, i32
  }
  func.func @transform_4(%arg0: i32) -> (i32, i32) {
    %c0_i32 = arith.constant 0 : i32
    %c0_i32_0 = arith.constant 0 : i32
    return %arg0, %c0_i32 : i32, i32
  }
}

module attributes {stable_mosaic.version = 11 : i64} {
  func.func @kernel(%arg0: i32, %arg1: memref<16x1152xbf16, #tpu.memory_space<vmem>>, %arg2: memref<1152x128xbf16, #tpu.memory_space<vmem>>, %arg3: memref<1x128xf32, #tpu.memory_space<vmem>>, %arg4: memref<16x128xbf16, #tpu.memory_space<vmem>>, %arg5: memref<128x128xbf16, #tpu.memory_space<vmem>>, %arg6: memref<1x128xf32, #tpu.memory_space<vmem>>, %arg7: memref<16x128xbf16, #tpu.memory_space<vmem>>) attributes {dimension_semantics = [#tpu.dimension_semantics<parallel>], iteration_bounds = array<i64: 1>, scalar_prefetch = 0 : i64, scratch_operands = 0 : i64, tpu.core_type = #tpu.core_type<tc>, window_params = [{transform_indices = @transform_0, window_bounds = array<i64: 16, 1152>}, {pipeline_mode = #tpu.pipeline_mode<synchronous>, transform_indices = @transform_1, window_bounds = array<i64: 1152, 128>}, {pipeline_mode = #tpu.pipeline_mode<synchronous>, transform_indices = @transform_2, window_bounds = array<i64: 1, 128>}, {transform_indices = @transform_3, window_bounds = array<i64: 16, 128>}, {pipeline_mode = #tpu.pipeline_mode<synchronous>, transform_indices = @transform_4, window_bounds = array<i64: 128, 128>}, {pipeline_mode = #tpu.pipeline_mode<synchronous>, transform_indices = @transform_5, window_bounds = array<i64: 1, 128>}, {transform_indices = @transform_6, window_bounds = array<i64: 16, 128>}]} {
    %c0 = arith.constant 0 : index
    %c0_0 = arith.constant 0 : index
    %0 = vector.load %arg1[%c0, %c0_0] : memref<16x1152xbf16, #tpu.memory_space<vmem>>, vector<16x1152xbf16>
    %c0_1 = arith.constant 0 : index
    %c0_2 = arith.constant 0 : index
    %1 = vector.load %arg2[%c0_1, %c0_2] : memref<1152x128xbf16, #tpu.memory_space<vmem>>, vector<1152x128xbf16>
    %cst = arith.constant dense<0.000000e+00> : vector<16x128xf32>
    %2 = tpu.matmul %0, %1, %cst {dimension_numbers = #tpu.dot_dimension_numbers<[1], [0], [0], [1], [0, 0, 1, 1], [], []>} : vector<16x1152xbf16>, vector<1152x128xbf16>, vector<16x128xf32> -> vector<16x128xf32>
    %c0_3 = arith.constant 0 : index
    %c0_4 = arith.constant 0 : index
    %3 = vector.load %arg3[%c0_3, %c0_4] : memref<1x128xf32, #tpu.memory_space<vmem>>, vector<1x128xf32>
    %4 = vector.broadcast %3 : vector<1x128xf32> to vector<16x128xf32>
    %5 = arith.addf %2, %4 : vector<16x128xf32>
    %c0_5 = arith.constant 0 : index
    %c0_6 = arith.constant 0 : index
    %6 = vector.load %arg4[%c0_5, %c0_6] : memref<16x128xbf16, #tpu.memory_space<vmem>>, vector<16x128xbf16>
    %c0_7 = arith.constant 0 : index
    %c0_8 = arith.constant 0 : index
    %7 = vector.load %arg5[%c0_7, %c0_8] : memref<128x128xbf16, #tpu.memory_space<vmem>>, vector<128x128xbf16>
    %cst_9 = arith.constant dense<0.000000e+00> : vector<16x128xf32>
    %8 = tpu.matmul %6, %7, %cst_9 {dimension_numbers = #tpu.dot_dimension_numbers<[1], [0], [0], [1], [0, 0, 1, 1], [], []>} : vector<16x128xbf16>, vector<128x128xbf16>, vector<16x128xf32> -> vector<16x128xf32>
    %c0_10 = arith.constant 0 : index
    %c0_11 = arith.constant 0 : index
    %9 = vector.load %arg6[%c0_10, %c0_11] : memref<1x128xf32, #tpu.memory_space<vmem>>, vector<1x128xf32>
    %10 = vector.broadcast %9 : vector<1x128xf32> to vector<16x128xf32>
    %11 = arith.addf %8, %10 : vector<16x128xf32>
    %12 = arith.addf %5, %11 : vector<16x128xf32>
    %cst_12 = arith.constant 0.000000e+00 : f32
    %13 = vector.broadcast %cst_12 : f32 to vector<16x128xf32>
    %14 = arith.maximumf %12, %13 : vector<16x128xf32>
    %15 = arith.truncf %14 : vector<16x128xf32> to vector<16x128xbf16>
    %c0_13 = arith.constant 0 : index
    %c0_14 = arith.constant 0 : index
    %16 = vector.load %arg7[%c0_13, %c0_14] : memref<16x128xbf16, #tpu.memory_space<vmem>>, vector<16x128xbf16>
    tpu.vector_store %arg7[%c0_13, %c0_14], %15 {strides = array<i32>} : memref<16x128xbf16, #tpu.memory_space<vmem>>, vector<16x128xbf16>,
    return
  }
  func.func @transform_0(%arg0: i32) -> (i32, i32) {
    %c0_i32 = arith.constant 0 : i32
    %c0_i32_0 = arith.constant 0 : i32
    return %arg0, %c0_i32 : i32, i32
  }
  func.func @transform_1(%arg0: i32) -> (i32, i32) {
    %c0_i32 = arith.constant 0 : i32
    %c0_i32_0 = arith.constant 0 : i32
    %c0_i32_1 = arith.constant 0 : i32
    return %c0_i32, %c0_i32_0 : i32, i32
  }
  func.func @transform_2(%arg0: i32) -> (i32, i32) {
    %c0_i32 = arith.constant 0 : i32
    %c0_i32_0 = arith.constant 0 : i32
    %c0_i32_1 = arith.constant 0 : i32
    return %c0_i32, %c0_i32_0 : i32, i32
  }
  func.func @transform_3(%arg0: i32) -> (i32, i32) {
    %c0_i32 = arith.constant 0 : i32
    %c0_i32_0 = arith.constant 0 : i32
    return %arg0, %c0_i32 : i32, i32
  }
  func.func @transform_4(%arg0: i32) -> (i32, i32) {
    %c0_i32 = arith.constant 0 : i32
    %c0_i32_0 = arith.constant 0 : i32
    %c0_i32_1 = arith.constant 0 : i32
    return %c0_i32, %c0_i32_0 : i32, i32
  }
  func.func @transform_5(%arg0: i32) -> (i32, i32) {
    %c0_i32 = arith.constant 0 : i32
    %c0_i32_0 = arith.constant 0 : i32
    %c0_i32_1 = arith.constant 0 : i32
    return %c0_i32, %c0_i32_0 : i32, i32
  }
  func.func @transform_6(%arg0: i32) -> (i32, i32) {
    %c0_i32 = arith.constant 0 : i32
    %c0_i32_0 = arith.constant 0 : i32
    return %arg0, %c0_i32 : i32, i32
  }
}

module attributes {stable_mosaic.version = 11 : i64} {
  func.func @kernel(%arg0: i32, %arg1: memref<16x512xbf16, #tpu.memory_space<vmem>>, %arg2: memref<512x128xbf16, #tpu.memory_space<vmem>>, %arg3: memref<1x128xf32, #tpu.memory_space<vmem>>, %arg4: memref<16x128xf32, #tpu.memory_space<vmem>>) attributes {dimension_semantics = [#tpu.dimension_semantics<parallel>], iteration_bounds = array<i64: 1>, scalar_prefetch = 0 : i64, scratch_operands = 0 : i64, tpu.core_type = #tpu.core_type<tc>, window_params = [{transform_indices = @transform_0, window_bounds = array<i64: 16, 512>}, {pipeline_mode = #tpu.pipeline_mode<synchronous>, transform_indices = @transform_1, window_bounds = array<i64: 512, 128>}, {pipeline_mode = #tpu.pipeline_mode<synchronous>, transform_indices = @transform_2, window_bounds = array<i64: 1, 128>}, {transform_indices = @transform_3, window_bounds = array<i64: 16, 128>}]} {
    %c0 = arith.constant 0 : index
    %c0_0 = arith.constant 0 : index
    %0 = vector.load %arg1[%c0, %c0_0] : memref<16x512xbf16, #tpu.memory_space<vmem>>, vector<16x512xbf16>
    %c0_1 = arith.constant 0 : index
    %c0_2 = arith.constant 0 : index
    %1 = vector.load %arg2[%c0_1, %c0_2] : memref<512x128xbf16, #tpu.memory_space<vmem>>, vector<512x128xbf16>
    %cst = arith.constant dense<0.000000e+00> : vector<16x128xf32>
    %2 = tpu.matmul %0, %1, %cst {dimension_numbers = #tpu.dot_dimension_numbers<[1], [0], [0], [1], [0, 0, 1, 1], [], []>} : vector<16x512xbf16>, vector<512x128xbf16>, vector<16x128xf32> -> vector<16x128xf32>
    %c0_3 = arith.constant 0 : index
    %c0_4 = arith.constant 0 : index
    %3 = vector.load %arg3[%c0_3, %c0_4] : memref<1x128xf32, #tpu.memory_space<vmem>>, vector<1x128xf32>
    %4 = vector.broadcast %3 : vector<1x128xf32> to vector<16x128xf32>
    %5 = arith.addf %2, %4 : vector<16x128xf32>
    %c0_5 = arith.constant 0 : index
    %c0_6 = arith.constant 0 : index
    %6 = vector.load %arg4[%c0_5, %c0_6] : memref<16x128xf32, #tpu.memory_space<vmem>>, vector<16x128xf32>
    tpu.vector_store %arg4[%c0_5, %c0_6], %5 {strides = array<i32>} : memref<16x128xf32, #tpu.memory_space<vmem>>, vector<16x128xf32>,
    return
  }
  func.func @transform_0(%arg0: i32) -> (i32, i32) {
    %c0_i32 = arith.constant 0 : i32
    %c0_i32_0 = arith.constant 0 : i32
    return %arg0, %c0_i32 : i32, i32
  }
  func.func @transform_1(%arg0: i32) -> (i32, i32) {
    %c0_i32 = arith.constant 0 : i32
    %c0_i32_0 = arith.constant 0 : i32
    %c0_i32_1 = arith.constant 0 : i32
    return %c0_i32, %c0_i32_0 : i32, i32
  }
  func.func @transform_2(%arg0: i32) -> (i32, i32) {
    %c0_i32 = arith.constant 0 : i32
    %c0_i32_0 = arith.constant 0 : i32
    %c0_i32_1 = arith.constant 0 : i32
    return %c0_i32, %c0_i32_0 : i32, i32
  }
  func.func @transform_3(%arg0: i32) -> (i32, i32) {
    %c0_i32 = arith.constant 0 : i32
    %c0_i32_0 = arith.constant 0 : i32
    return %arg0, %c0_i32 : i32, i32
  }
}

</mosaic_0001>

<llo_original>
// kernel: encoder_forward.14
$region0: #{encoder_forward.14}
  #allocation0 [shape = 'u32[]', space=smem, size = 0x4, offset = 0x4, fixed_abs, tag = 'smem constant byte address 0x4 - core index']
  #allocation1 [shape = 'u32[72,128]{1,0:T(1,128)}', space=vmem, size = 0x9000, scoped, tag = 'internal scratch']
  %s0 = inlined_call_operand.vmem [shape: bf16[512,128], index: 0, kind: input, shape index: {}]
  %s1 = inlined_call_operand.vmem [shape: bf16[128,128], index: 1, kind: input, shape index: {}]
  %s2 = inlined_call_operand.vmem [shape: f32[1,128], index: 2, kind: input, shape index: {}]
  %s3 = inlined_call_operand.vmem [shape: bf16[512,128], index: 3, kind: output, shape index: {}]
  %s4 = sld [smem:[#allocation0]]
  $region45: #{encoder_forward.14} parent=0
    _
  %s6 = ssub.s32 1, %s4
  %s7 = scalar_select 0, %s6, %s4
  loop: start=0, step=1, limit=4
  $region2: #{encoder_forward.14} parent=0 // loop_pre_header
    _
  $region3: #{encoder_forward.14} parent=0 // loop_header
    %s9 = sphi 0, %s13
    %p10 = scmp.ge.s32.totalorder %s9, 4
    %s19 = sphi 0, %s21
    %s22 = sphi 0, %s19
    %s23 = sphi 0, %s22
    %s39 = sphi 0, %s23
    %s43 = sphi 0, %s43
    %s45 = sphi 0, %s43
    %s46 = sphi 0, %s45
    %s60 = sphi 0, %s46
    %s64 = sphi 0, %s64
    %s66 = sphi 0, %s64
    %s67 = sphi 0, %s66
    %s81 = sphi 0, %s67
    %s87 = sphi 0, %s89
    %s90 = sphi 0, %s87
    %s91 = sphi 0, %s90
    %s107 = sphi 0, %s91
  $region4: #{encoder_forward.14} parent=0 // loop_header_branch
    %12 = sbr.rel (%p10) target = $region8
  $region5: #{encoder_forward.14} parent=0 // loop_body
    %s14 = ssub.s32 %s9, 1
    %s15 = ssub.s32 %s9, 2
    %s16 = sadd.s32 %s9, 1
    %s17 = ssub.s32 %s9, %s16
    %p18 = scmp.eq.s32.totalorder %s17, 0
    %s20 = sadd.s32 %s19, 1
    %s21 = scalar_select %p18, %s19, %s20
    %p24 = pneg %p18
    %p25 = scmp.eq.s32.totalorder %s9, 1
    %p26 = por %p24, %p25
    %p27 = scmp.ne.s32.totalorder %s19, %s22
    %p28 = scmp.eq.s32.totalorder %s9, 0
    %p29 = por %p27, %p28
    %p30 = scmp.ne.s32.totalorder %s19, %s22
    %p31 = scmp.eq.s32.totalorder %s14, 1
    %p32 = por %p30, %p31
    %p33 = scmp.ne.s32.totalorder %s22, %s23
    %p34 = scmp.eq.s32.totalorder %s14, 0
    %p35 = por %p33, %p34
    %p36 = scmp.ne.s32.totalorder %s22, %s23
    %p37 = scmp.eq.s32.totalorder %s15, 1
    %p38 = por %p36, %p37
    %p40 = scmp.ne.s32.totalorder %s23, %s39
    %p41 = scmp.eq.s32.totalorder %s15, 0
    %p42 = por %p40, %p41
    %s44 = sadd.s32 %s43, 1
    %p47 = scmp.eq.s32.totalorder %s9, 1
    %p48 = scmp.ne.s32.totalorder %s43, %s45
    %p49 = scmp.eq.s32.totalorder %s9, 0
    %p50 = por %p48, %p49
    %p51 = scmp.ne.s32.totalorder %s43, %s45
    %p52 = scmp.eq.s32.totalorder %s14, 1
    %p53 = por %p51, %p52
    %p54 = scmp.ne.s32.totalorder %s45, %s46
    %p55 = scmp.eq.s32.totalorder %s14, 0
    %p56 = por %p54, %p55
    %p57 = scmp.ne.s32.totalorder %s45, %s46
    %p58 = scmp.eq.s32.totalorder %s15, 1
    %p59 = por %p57, %p58
    %p61 = scmp.ne.s32.totalorder %s46, %s60
    %p62 = scmp.eq.s32.totalorder %s15, 0
    %p63 = por %p61, %p62
    %s65 = sadd.s32 %s64, 1
    %p68 = scmp.eq.s32.totalorder %s9, 1
    %p69 = scmp.ne.s32.totalorder %s64, %s66
    %p70 = scmp.eq.s32.totalorder %s9, 0
    %p71 = por %p69, %p70
    %p72 = scmp.ne.s32.totalorder %s64, %s66
    %p73 = scmp.eq.s32.totalorder %s14, 1
    %p74 = por %p72, %p73
    %p75 = scmp.ne.s32.totalorder %s66, %s67
    %p76 = scmp.eq.s32.totalorder %s14, 0
    %p77 = por %p75, %p76
    %p78 = scmp.ne.s32.totalorder %s66, %s67
    %p79 = scmp.eq.s32.totalorder %s15, 1
    %p80 = por %p78, %p79
    %p82 = scmp.ne.s32.totalorder %s67, %s81
    %p83 = scmp.eq.s32.totalorder %s15, 0
    %p84 = por %p82, %p83
    %s85 = ssub.s32 %s9, %s16
    %p86 = scmp.eq.s32.totalorder %s85, 0
    %s88 = sadd.s32 %s87, 1
    %s89 = scalar_select %p86, %s87, %s88
    %p92 = pneg %p86
    %p93 = scmp.eq.s32.totalorder %s9, 1
    %p94 = por %p92, %p93
    %p95 = scmp.ne.s32.totalorder %s87, %s90
    %p96 = scmp.eq.s32.totalorder %s9, 0
    %p97 = por %p95, %p96
    %p98 = scmp.ne.s32.totalorder %s87, %s90
    %p99 = scmp.eq.s32.totalorder %s14, 1
    %p100 = por %p98, %p99
    %p101 = scmp.ne.s32.totalorder %s90, %s91
    %p102 = scmp.eq.s32.totalorder %s14, 0
    %p103 = por %p101, %p102
    %p104 = scmp.ne.s32.totalorder %s90, %s91
    %p105 = scmp.eq.s32.totalorder %s15, 1
    %p106 = por %p104, %p105
    %p108 = scmp.ne.s32.totalorder %s91, %s107
    %p109 = scmp.eq.s32.totalorder %s15, 0
    %p110 = por %p108, %p109
    %p111 = scmp.le.s32.totalorder 1, %s9
    %p112 = scmp.lt.s32.totalorder %s9, 3
    %p113 = pnand %p111, %p112
    %p114 = pneg %p113
    // Predicated region
    $region9: #{encoder_forward.14} parent=5 // pred_check
      _
    $region10: #{encoder_forward.14} parent=5 // pred_check_branch
      %116 = sbr.rel (%p113) target = $region12
    $region11: #{encoder_forward.14} parent=5 // pred_region
      %s117 = ssub.s32 %s9, 1
      // Predicated region
      $region13: #{encoder_forward.14} parent=11 // pred_check
        %p118 = pneg %p56
      $region14: #{encoder_forward.14} parent=11 // pred_check_branch
        %120 = sbr.rel (%p118) target = $region16
      $region15: #{encoder_forward.14} parent=11 // pred_region
        _
      $region16: #{encoder_forward.14} parent=11 // pred_fallthru
        _
      // Predicated region
      $region17: #{encoder_forward.14} parent=11 // pred_check
        %p121 = pneg %p77
      $region18: #{encoder_forward.14} parent=11 // pred_check_branch
        %123 = sbr.rel (%p121) target = $region20
      $region19: #{encoder_forward.14} parent=11 // pred_region
        _
      $region20: #{encoder_forward.14} parent=11 // pred_fallthru
        _
    $region12: #{encoder_forward.14} parent=5 // pred_fallthru
      _
    %p124 = scmp.lt.s32.totalorder %s9, 2
    // Predicated region
    $region21: #{encoder_forward.14} parent=5 // pred_check
      %p125 = pneg %p124
    $region22: #{encoder_forward.14} parent=5 // pred_check_branch
      %127 = sbr.rel (%p125) target = $region24
    $region23: #{encoder_forward.14} parent=5 // pred_region
      // Predicated region
      $region25: #{encoder_forward.14} parent=23 // pred_check
        %p128 = pneg %p29
      $region26: #{encoder_forward.14} parent=23 // pred_check_branch
        %130 = sbr.rel (%p128) target = $region28
      $region27: #{encoder_forward.14} parent=23 // pred_region
        %s131 = smul.u32 32, %s9
        %p132 = scmp.lt.s32.totalorder %s131, 63
        %s133 = scalar_select %p132, %s131, 63
        %s134 = smul.addr %s133, 4
        %s135 = scalar_lea.vmem %s0, %s134
        %s136 = smul.u32 32, %s9
      $region28: #{encoder_forward.14} parent=23 // pred_fallthru
        _
    $region24: #{encoder_forward.14} parent=5 // pred_fallthru
      _
    %p137 = scmp.le.s32.totalorder 1, %s9
    %p138 = scmp.lt.s32.totalorder %s9, 3
    %p139 = pnand %p137, %p138
    %p140 = pneg %p139
    // Predicated region
    $region29: #{encoder_forward.14} parent=5 // pred_check
      _
    $region30: #{encoder_forward.14} parent=5 // pred_check_branch
      %142 = sbr.rel (%p139) target = $region32
    $region31: #{encoder_forward.14} parent=5 // pred_region
      %s143 = ssub.s32 %s9, 1
      %s144 = smul.u32 32, %s14
      %p145 = scmp.lt.s32.totalorder %s144, 63
      %s146 = scalar_select %p145, %s144, 63
      %s147 = smul.addr %s146, 4
      %s148 = scalar_lea.vmem %s0, %s147
      %p149 = pneg %p35
      %p150 = pneg %p32
      %p151 = pneg %p56
      %p152 = pneg %p53
      %p153 = pneg %p77
      %p154 = pneg %p74
      %p155 = pneg %p103
      %p156 = pneg %p100
      %s157 = smul.u32 32, %s14
      %p158 = scmp.lt.s32.totalorder %s157, 63
      %s159 = scalar_select %p158, %s157, 63
      %s160 = smul.addr %s159, 4
      %s161 = scalar_lea.vmem %s3, %s160
      %s162 = smul.u32 32, %s14
      %p163 = scmp.lt.s32.totalorder %s162, 63
      %s164 = scalar_select %p163, %s162, 63
      %s165 = smul.addr %s164, 4
      %s166 = scalar_lea.vmem %s0, %s165
      %s167 = smul.u32 32, %s14
      %s168 = smul.u32 32, %s14
      %p169 = scmp.lt.s32.totalorder %s168, 63
      %s170 = scalar_select %p169, %s168, 63
      %s171 = smul.addr %s170, 4
      %s172 = scalar_lea.vmem %s3, %s171
      %s173 = smul.u32 32, %s14
      %v174 = vld [vmem:[%s166] sm:$0xf]
      %v175 = vld [vmem:[%s166 + $0x4] sm:$0xf]
      %v176 = vld [vmem:[%s166 + $0x8] sm:$0xf]
      %v177 = vld [vmem:[%s166 + $0xc] sm:$0xf]
      %v178 = vld [vmem:[%s166 + $0x10] sm:$0xf]
      %v179 = vld [vmem:[%s166 + $0x14] sm:$0xf]
      %v180 = vld [vmem:[%s166 + $0x18] sm:$0xf]
      %v181 = vld [vmem:[%s166 + $0x1c] sm:$0xf]
      %v182 = vld [vmem:[%s166 + $0x20] sm:$0xf]
      %v183 = vld [vmem:[%s166 + $0x24] sm:$0xf]
      %v184 = vld [vmem:[%s166 + $0x28] sm:$0xf]
      %v185 = vld [vmem:[%s166 + $0x2c] sm:$0xf]
      %v186 = vld [vmem:[%s166 + $0x30] sm:$0xf]
      %v187 = vld [vmem:[%s166 + $0x34] sm:$0xf]
      %v188 = vld [vmem:[%s166 + $0x38] sm:$0xf]
      %v189 = vld [vmem:[%s166 + $0x3c] sm:$0xf]
      %v190 = vld [vmem:[%s166 + $0x40] sm:$0xf]
      %v191 = vld [vmem:[%s166 + $0x44] sm:$0xf]
      %v192 = vld [vmem:[%s166 + $0x48] sm:$0xf]
      %v193 = vld [vmem:[%s166 + $0x4c] sm:$0xf]
      %v194 = vld [vmem:[%s166 + $0x50] sm:$0xf]
      %v195 = vld [vmem:[%s166 + $0x54] sm:$0xf]
      %v196 = vld [vmem:[%s166 + $0x58] sm:$0xf]
      %v197 = vld [vmem:[%s166 + $0x5c] sm:$0xf]
      %v198 = vld [vmem:[%s166 + $0x60] sm:$0xf]
      %v199 = vld [vmem:[%s166 + $0x64] sm:$0xf]
      %v200 = vld [vmem:[%s166 + $0x68] sm:$0xf]
      %v201 = vld [vmem:[%s166 + $0x6c] sm:$0xf]
      %v202 = vld [vmem:[%s166 + $0x70] sm:$0xf]
      %v203 = vld [vmem:[%s166 + $0x74] sm:$0xf]
      %v204 = vld [vmem:[%s166 + $0x78] sm:$0xf]
      %v205 = vld [vmem:[%s166 + $0x7c] sm:$0xf]
      %v206 = vld [vmem:[%s1] sm:$0xf]
      %v207 = vld [vmem:[%s1 + $0x4] sm:$0xf]
      %v208 = vld [vmem:[%s1 + $0x8] sm:$0xf]
      %v209 = vld [vmem:[%s1 + $0xc] sm:$0xf]
      %v210 = vld [vmem:[%s1 + $0x10] sm:$0xf]
      %v211 = vld [vmem:[%s1 + $0x14] sm:$0xf]
      %v212 = vld [vmem:[%s1 + $0x18] sm:$0xf]
      %v213 = vld [vmem:[%s1 + $0x1c] sm:$0xf]
      %v214 = vld [vmem:[%s1 + $0x20] sm:$0xf]
      %v215 = vld [vmem:[%s1 + $0x24] sm:$0xf]
      %v216 = vld [vmem:[%s1 + $0x28] sm:$0xf]
      %v217 = vld [vmem:[%s1 + $0x2c] sm:$0xf]
      %v218 = vld [vmem:[%s1 + $0x30] sm:$0xf]
      %v219 = vld [vmem:[%s1 + $0x34] sm:$0xf]
      %v220 = vld [vmem:[%s1 + $0x38] sm:$0xf]
      %v221 = vld [vmem:[%s1 + $0x3c] sm:$0xf]
      %v222 = vld [vmem:[%s2] sm:$0x1]
      %v224 = vperm.slane %v222, 0
      %v258 = vunpack.c.l.b16 %v174
      %v259 = vunpack.c.l.b16 %v175
      %v260 = vunpack.c.l.b16 %v176
      %v261 = vunpack.c.l.b16 %v177
      %v262 = vunpack.c.l.b16 %v178
      %v263 = vunpack.c.l.b16 %v179
      %v264 = vunpack.c.l.b16 %v180
      %v265 = vunpack.c.l.b16 %v181
      %v266 = vunpack.c.l.b16 %v182
      %v267 = vunpack.c.l.b16 %v183
      %v268 = vunpack.c.l.b16 %v184
      %v269 = vunpack.c.l.b16 %v185
      %v270 = vunpack.c.l.b16 %v186
      %v271 = vunpack.c.l.b16 %v187
      %v272 = vunpack.c.l.b16 %v188
      %v273 = vunpack.c.l.b16 %v189
      %v274 = vunpack.c.l.b16 %v190
      %v275 = vunpack.c.l.b16 %v191
      %v276 = vunpack.c.l.b16 %v192
      %v277 = vunpack.c.l.b16 %v193
      %v278 = vunpack.c.l.b16 %v194
      %v279 = vunpack.c.l.b16 %v195
      %v280 = vunpack.c.l.b16 %v196
      %v281 = vunpack.c.l.b16 %v197
      %v282 = vunpack.c.l.b16 %v198
      %v283 = vunpack.c.l.b16 %v199
      %v284 = vunpack.c.l.b16 %v200
      %v285 = vunpack.c.l.b16 %v201
      %v286 = vunpack.c.l.b16 %v202
      %v287 = vunpack.c.l.b16 %v203
      %v288 = vunpack.c.l.b16 %v204
      %v289 = vunpack.c.l.b16 %v205
      %v290 = vpack.c.b16 %v259, %v258
      %v291 = vpack.c.b16 %v261, %v260
      %v292 = vpack.c.b16 %v263, %v262
      %v293 = vpack.c.b16 %v265, %v264
      %v294 = vpack.c.b16 %v267, %v266
      %v295 = vpack.c.b16 %v269, %v268
      %v296 = vpack.c.b16 %v271, %v270
      %v297 = vpack.c.b16 %v273, %v272
      %v298 = vpack.c.b16 %v275, %v274
      %v299 = vpack.c.b16 %v277, %v276
      %v300 = vpack.c.b16 %v279, %v278
      %v301 = vpack.c.b16 %v281, %v280
      %v302 = vpack.c.b16 %v283, %v282
      %v303 = vpack.c.b16 %v285, %v284
      %v304 = vpack.c.b16 %v287, %v286
      %v305 = vpack.c.b16 %v289, %v288
      %v338 = vunpack.c.l.b16 %v206
      %v339 = vunpack.c.l.b16 %v207
      %v340 = vunpack.c.l.b16 %v208
      %v341 = vunpack.c.l.b16 %v209
      %v342 = vunpack.c.l.b16 %v210
      %v343 = vunpack.c.l.b16 %v211
      %v344 = vunpack.c.l.b16 %v212
      %v345 = vunpack.c.l.b16 %v213
      %v346 = vunpack.c.l.b16 %v214
      %v347 = vunpack.c.l.b16 %v215
      %v348 = vunpack.c.l.b16 %v216
      %v349 = vunpack.c.l.b16 %v217
      %v350 = vunpack.c.l.b16 %v218
      %v351 = vunpack.c.l.b16 %v219
      %v352 = vunpack.c.l.b16 %v220
      %v353 = vunpack.c.l.b16 %v221
      %v354 = vpack.c.b16 %v339, %v338
      %v355 = vpack.c.b16 %v341, %v340
      %v356 = vpack.c.b16 %v343, %v342
      %v357 = vpack.c.b16 %v345, %v344
      %v358 = vpack.c.b16 %v347, %v346
      %v359 = vpack.c.b16 %v349, %v348
      %v360 = vpack.c.b16 %v351, %v350
      %v361 = vpack.c.b16 %v353, %v352
      %370 = vmatpush.bf16.msra.mxu0 %v361
      %371 = vmatpush.bf16.msra.mxu0 %v360
      %372 = vmatpush.bf16.msra.mxu0 %v359
      %373 = vmatpush.bf16.msra.mxu0 %v358
      %374 = vmatpush.bf16.msra.mxu0 %v357
      %375 = vmatpush.bf16.msra.mxu0 %v356
      %376 = vmatpush.bf16.msra.mxu0 %v355
      %377 = vmatpush.bf16.msra.mxu0 %v354
      %378 = vmatmul.bf16.gmra.mxu0 %v290
      %v379 = vpop.f32.mrf.mxu0
      %v380 = vadd.f32 %v224, %v379
      %v381 = vpop.f32.mrf.mxu0
      %v382 = vadd.f32 %v224, %v381
      %383 = vmatmul.bf16.gmra.mxu0 %v291
      %v384 = vpop.f32.mrf.mxu0
      %v385 = vadd.f32 %v224, %v384
      %v386 = vpop.f32.mrf.mxu0
      %v387 = vadd.f32 %v224, %v386
      %388 = vmatmul.bf16.gmra.mxu0 %v292
      %v389 = vpop.f32.mrf.mxu0
      %v390 = vadd.f32 %v224, %v389
      %v391 = vpop.f32.mrf.mxu0
      %v392 = vadd.f32 %v224, %v391
      %393 = vmatmul.bf16.gmra.mxu0 %v293
      %v394 = vpop.f32.mrf.mxu0
      %v395 = vadd.f32 %v224, %v394
      %v396 = vpop.f32.mrf.mxu0
      %v397 = vadd.f32 %v224, %v396
      %398 = vmatmul.bf16.gmra.mxu0 %v294
      %v399 = vpop.f32.mrf.mxu0
      %v400 = vadd.f32 %v224, %v399
      %v401 = vpop.f32.mrf.mxu0
      %v402 = vadd.f32 %v224, %v401
      %403 = vmatmul.bf16.gmra.mxu0 %v295
      %v404 = vpop.f32.mrf.mxu0
      %v405 = vadd.f32 %v224, %v404
      %v406 = vpop.f32.mrf.mxu0
      %v407 = vadd.f32 %v224, %v406
      %408 = vmatmul.bf16.gmra.mxu0 %v296
      %v409 = vpop.f32.mrf.mxu0
      %v410 = vadd.f32 %v224, %v409
      %v411 = vpop.f32.mrf.mxu0
      %v412 = vadd.f32 %v224, %v411
      %413 = vmatmul.bf16.gmra.mxu0 %v297
      %v414 = vpop.f32.mrf.mxu0
      %v415 = vadd.f32 %v224, %v414
      %v416 = vpop.f32.mrf.mxu0
      %v417 = vadd.f32 %v224, %v416
      %418 = vmatmul.bf16.gmra.mxu0 %v298
      %v419 = vpop.f32.mrf.mxu0
      %v420 = vadd.f32 %v224, %v419
      %v421 = vpop.f32.mrf.mxu0
      %v422 = vadd.f32 %v224, %v421
      %423 = vmatmul.bf16.gmra.mxu0 %v299
      %v424 = vpop.f32.mrf.mxu0
      %v425 = vadd.f32 %v224, %v424
      %v426 = vpop.f32.mrf.mxu0
      %v427 = vadd.f32 %v224, %v426
      %428 = vmatmul.bf16.gmra.mxu0 %v300
      %v429 = vpop.f32.mrf.mxu0
      %v430 = vadd.f32 %v224, %v429
      %v431 = vpop.f32.mrf.mxu0
      %v432 = vadd.f32 %v224, %v431
      %433 = vmatmul.bf16.gmra.mxu0 %v301
      %v434 = vpop.f32.mrf.mxu0
      %v435 = vadd.f32 %v224, %v434
      %v436 = vpop.f32.mrf.mxu0
      %v437 = vadd.f32 %v224, %v436
      %438 = vmatmul.bf16.gmra.mxu0 %v302
      %v439 = vpop.f32.mrf.mxu0
      %v440 = vadd.f32 %v224, %v439
      %v441 = vpop.f32.mrf.mxu0
      %v442 = vadd.f32 %v224, %v441
      %443 = vmatmul.bf16.gmra.mxu0 %v303
      %v444 = vpop.f32.mrf.mxu0
      %v445 = vadd.f32 %v224, %v444
      %v446 = vpop.f32.mrf.mxu0
      %v447 = vadd.f32 %v224, %v446
      %448 = vmatmul.bf16.gmra.mxu0 %v304
      %v449 = vpop.f32.mrf.mxu0
      %v450 = vadd.f32 %v224, %v449
      %v451 = vpop.f32.mrf.mxu0
      %v452 = vadd.f32 %v224, %v451
      %453 = vmatmul.bf16.gmra.mxu0 %v305
      %v454 = vpop.f32.mrf.mxu0
      %v455 = vadd.f32 %v224, %v454
      %v456 = vpop.f32.mrf.mxu0
      %v457 = vadd.f32 %v224, %v456
      %458 = vdwg.mxu0
      %v459 = vmax.f32 %v380, 0.0
      %v460 = vmax.f32 %v382, 0.0
      %v461 = vmax.f32 %v385, 0.0
      %v462 = vmax.f32 %v387, 0.0
      %v463 = vmax.f32 %v390, 0.0
      %v464 = vmax.f32 %v392, 0.0
      %v465 = vmax.f32 %v395, 0.0
      %v466 = vmax.f32 %v397, 0.0
      %v467 = vmax.f32 %v400, 0.0
      %v468 = vmax.f32 %v402, 0.0
      %v469 = vmax.f32 %v405, 0.0
      %v470 = vmax.f32 %v407, 0.0
      %v471 = vmax.f32 %v410, 0.0
      %v472 = vmax.f32 %v412, 0.0
      %v473 = vmax.f32 %v415, 0.0
      %v474 = vmax.f32 %v417, 0.0
      %v475 = vmax.f32 %v420, 0.0
      %v476 = vmax.f32 %v422, 0.0
      %v477 = vmax.f32 %v425, 0.0
      %v478 = vmax.f32 %v427, 0.0
      %v479 = vmax.f32 %v430, 0.0
      %v480 = vmax.f32 %v432, 0.0
      %v481 = vmax.f32 %v435, 0.0
      %v482 = vmax.f32 %v437, 0.0
      %v483 = vmax.f32 %v440, 0.0
      %v484 = vmax.f32 %v442, 0.0
      %v485 = vmax.f32 %v445, 0.0
      %v486 = vmax.f32 %v447, 0.0
      %v487 = vmax.f32 %v450, 0.0
      %v488 = vmax.f32 %v452, 0.0
      %v489 = vmax.f32 %v455, 0.0
      %v490 = vmax.f32 %v457, 0.0
      %v491 = vpack.c.bf16 %v459, %v459
      %v492 = vpack.c.bf16 %v460, %v460
      %v493 = vpack.c.bf16 %v461, %v461
      %v494 = vpack.c.bf16 %v462, %v462
      %v495 = vpack.c.bf16 %v463, %v463
      %v496 = vpack.c.bf16 %v464, %v464
      %v497 = vpack.c.bf16 %v465, %v465
      %v498 = vpack.c.bf16 %v466, %v466
      %v499 = vpack.c.bf16 %v467, %v467
      %v500 = vpack.c.bf16 %v468, %v468
      %v501 = vpack.c.bf16 %v469, %v469
      %v502 = vpack.c.bf16 %v470, %v470
      %v503 = vpack.c.bf16 %v471, %v471
      %v504 = vpack.c.bf16 %v472, %v472
      %v505 = vpack.c.bf16 %v473, %v473
      %v506 = vpack.c.bf16 %v474, %v474
      %v507 = vpack.c.bf16 %v475, %v475
      %v508 = vpack.c.bf16 %v476, %v476
      %v509 = vpack.c.bf16 %v477, %v477
      %v510 = vpack.c.bf16 %v478, %v478
      %v511 = vpack.c.bf16 %v479, %v479
      %v512 = vpack.c.bf16 %v480, %v480
      %v513 = vpack.c.bf16 %v481, %v481
      %v514 = vpack.c.bf16 %v482, %v482
      %v515 = vpack.c.bf16 %v483, %v483
      %v516 = vpack.c.bf16 %v484, %v484
      %v517 = vpack.c.bf16 %v485, %v485
      %v518 = vpack.c.bf16 %v486, %v486
      %v519 = vpack.c.bf16 %v487, %v487
      %v520 = vpack.c.bf16 %v488, %v488
      %v521 = vpack.c.bf16 %v489, %v489
      %v522 = vpack.c.bf16 %v490, %v490
      %523 = vst [vmem:[%s172] sm:$0xf] %v491
      %524 = vst [vmem:[%s172 + $0x4] sm:$0xf] %v492
      %525 = vst [vmem:[%s172 + $0x8] sm:$0xf] %v493
      %526 = vst [vmem:[%s172 + $0xc] sm:$0xf] %v494
      %527 = vst [vmem:[%s172 + $0x10] sm:$0xf] %v495
      %528 = vst [vmem:[%s172 + $0x14] sm:$0xf] %v496
      %529 = vst [vmem:[%s172 + $0x18] sm:$0xf] %v497
      %530 = vst [vmem:[%s172 + $0x1c] sm:$0xf] %v498
      %531 = vst [vmem:[%s172 + $0x20] sm:$0xf] %v499
      %532 = vst [vmem:[%s172 + $0x24] sm:$0xf] %v500
      %533 = vst [vmem:[%s172 + $0x28] sm:$0xf] %v501
      %534 = vst [vmem:[%s172 + $0x2c] sm:$0xf] %v502
      %535 = vst [vmem:[%s172 + $0x30] sm:$0xf] %v503
      %536 = vst [vmem:[%s172 + $0x34] sm:$0xf] %v504
      %537 = vst [vmem:[%s172 + $0x38] sm:$0xf] %v505
      %538 = vst [vmem:[%s172 + $0x3c] sm:$0xf] %v506
      %539 = vst [vmem:[%s172 + $0x40] sm:$0xf] %v507
      %540 = vst [vmem:[%s172 + $0x44] sm:$0xf] %v508
      %541 = vst [vmem:[%s172 + $0x48] sm:$0xf] %v509
      %542 = vst [vmem:[%s172 + $0x4c] sm:$0xf] %v510
      %543 = vst [vmem:[%s172 + $0x50] sm:$0xf] %v511
      %544 = vst [vmem:[%s172 + $0x54] sm:$0xf] %v512
      %545 = vst [vmem:[%s172 + $0x58] sm:$0xf] %v513
      %546 = vst [vmem:[%s172 + $0x5c] sm:$0xf] %v514
      %547 = vst [vmem:[%s172 + $0x60] sm:$0xf] %v515
      %548 = vst [vmem:[%s172 + $0x64] sm:$0xf] %v516
      %549 = vst [vmem:[%s172 + $0x68] sm:$0xf] %v517
      %550 = vst [vmem:[%s172 + $0x6c] sm:$0xf] %v518
      %551 = vst [vmem:[%s172 + $0x70] sm:$0xf] %v519
      %552 = vst [vmem:[%s172 + $0x74] sm:$0xf] %v520
      %553 = vst [vmem:[%s172 + $0x78] sm:$0xf] %v521
      %554 = vst [vmem:[%s172 + $0x7c] sm:$0xf] %v522
      %s555 = smul.u32 32, %s14
      %p556 = scmp.lt.s32.totalorder %s555, 63
      %s557 = scalar_select %p556, %s555, 63
      %s558 = smul.addr %s557, 4
      %s559 = scalar_lea.vmem %s3, %s558
      // Predicated region
      $region33: #{encoder_forward.14} parent=31 // pred_check
        %p560 = pneg %p100
      $region34: #{encoder_forward.14} parent=31 // pred_check_branch
        %562 = sbr.rel (%p560) target = $region36
      $region35: #{encoder_forward.14} parent=31 // pred_region
        %s563 = smul.u32 32, %s14
      $region36: #{encoder_forward.14} parent=31 // pred_fallthru
        _
    $region32: #{encoder_forward.14} parent=5 // pred_fallthru
      _
    %p564 = scmp.le.s32.totalorder 2, %s9
    // Predicated region
    $region37: #{encoder_forward.14} parent=5 // pred_check
      %p565 = pneg %p564
    $region38: #{encoder_forward.14} parent=5 // pred_check_branch
      %567 = sbr.rel (%p565) target = $region40
    $region39: #{encoder_forward.14} parent=5 // pred_region
      %s568 = ssub.s32 %s9, 2
      // Predicated region
      $region41: #{encoder_forward.14} parent=39 // pred_check
        %p569 = pneg %p106
      $region42: #{encoder_forward.14} parent=39 // pred_check_branch
        %571 = sbr.rel (%p569) target = $region44
      $region43: #{encoder_forward.14} parent=39 // pred_region
        %s572 = smul.u32 32, %s15
        %p573 = scmp.lt.s32.totalorder %s572, 63
        %s574 = scalar_select %p573, %s572, 63
        %s575 = smul.addr %s574, 4
        %s576 = scalar_lea.vmem %s3, %s575
      $region44: #{encoder_forward.14} parent=39 // pred_fallthru
        _
    $region40: #{encoder_forward.14} parent=5 // pred_fallthru
      _
  $region6: #{encoder_forward.14} parent=0 // loop_footer
    %s13 = sadd.s32 1, %s9
  $region7: #{encoder_forward.14} parent=0 // loop_footer_branch
    %8 = sbr.rel target = $region3
  $region8: #{encoder_forward.14} parent=0 // loop_exit
    _

// kernel: encoder_forward.15
$region0: #{encoder_forward.15}
  #allocation0 [shape = 'u32[]', space=smem, size = 0x4, offset = 0x4, fixed_abs, tag = 'smem constant byte address 0x4 - core index']
  #allocation1 [shape = 'u32[72,128]{1,0:T(1,128)}', space=vmem, size = 0x9000, scoped, tag = 'internal scratch']
  %s0 = inlined_call_operand.vmem [shape: bf16[128,1152], index: 0, kind: input, shape index: {}]
  %s1 = inlined_call_operand.vmem [shape: bf16[1152,128], index: 1, kind: input, shape index: {}]
  %s2 = inlined_call_operand.vmem [shape: f32[1,128], index: 2, kind: input, shape index: {}]
  %s3 = inlined_call_operand.vmem [shape: bf16[128,128], index: 3, kind: output, shape index: {}]
  %s4 = sld [smem:[#allocation0]]
  $region22: #{encoder_forward.15} parent=0
    _
  %s6 = ssub.s32 1, %s4
  %s7 = scalar_select 0, %s6, %s4
  // Predicated region
  $region2: #{encoder_forward.15} parent=0 // pred_check
    _
  $region3: #{encoder_forward.15} parent=0 // pred_check_branch
    %9 = sbr.rel (0) target = $region5
  $region4: #{encoder_forward.15} parent=0 // pred_region
    _
  $region5: #{encoder_forward.15} parent=0 // pred_fallthru
    _
  // Predicated region
  $region6: #{encoder_forward.15} parent=0 // pred_check
    _
  $region7: #{encoder_forward.15} parent=0 // pred_check_branch
    %11 = sbr.rel (0) target = $region9
  $region8: #{encoder_forward.15} parent=0 // pred_region
    _
  $region9: #{encoder_forward.15} parent=0 // pred_fallthru
    _
  // Predicated region
  $region10: #{encoder_forward.15} parent=0 // pred_check
    _
  $region11: #{encoder_forward.15} parent=0 // pred_check_branch
    %13 = sbr.rel (0) target = $region13
  $region12: #{encoder_forward.15} parent=0 // pred_region
    _
  $region13: #{encoder_forward.15} parent=0 // pred_fallthru
    _
  %v14 = vld [vmem:[%s0] sm:$0xff]
  %v15 = vld [vmem:[%s0 + $0x8] sm:$0xff]
  %v16 = vld [vmem:[%s0 + $0x10] sm:$0xff]
  %v17 = vld [vmem:[%s0 + $0x18] sm:$0xff]
  %v18 = vld [vmem:[%s0 + $0x20] sm:$0xf]
  %v19 = vld [vmem:[%s0 + $0x24] sm:$0xff]
  %v20 = vld [vmem:[%s0 + $0x2c] sm:$0xff]
  %v21 = vld [vmem:[%s0 + $0x34] sm:$0xff]
  %v22 = vld [vmem:[%s0 + $0x3c] sm:$0xff]
  %v23 = vld [vmem:[%s0 + $0x44] sm:$0xf]
  %v24 = vld [vmem:[%s0 + $0x48] sm:$0xff]
  %v25 = vld [vmem:[%s0 + $0x50] sm:$0xff]
  %v26 = vld [vmem:[%s0 + $0x58] sm:$0xff]
  %v27 = vld [vmem:[%s0 + $0x60] sm:$0xff]
  %v28 = vld [vmem:[%s0 + $0x68] sm:$0xf]
  %v29 = vld [vmem:[%s0 + $0x6c] sm:$0xff]
  %v30 = vld [vmem:[%s0 + $0x74] sm:$0xff]
  %v31 = vld [vmem:[%s0 + $0x7c] sm:$0xff]
  %v32 = vld [vmem:[%s0 + $0x84] sm:$0xff]
  %v33 = vld [vmem:[%s0 + $0x8c] sm:$0xf]
  %v34 = vld [vmem:[%s0 + $0x90] sm:$0xff]
  %v35 = vld [vmem:[%s0 + $0x98] sm:$0xff]
  %v36 = vld [vmem:[%s0 + $0xa0] sm:$0xff]
  %v37 = vld [vmem:[%s0 + $0xa8] sm:$0xff]
  %v38 = vld [vmem:[%s0 + $0xb0] sm:$0xf]
  %v39 = vld [vmem:[%s0 + $0xb4] sm:$0xff]
  %v40 = vld [vmem:[%s0 + $0xbc] sm:$0xff]
  %v41 = vld [vmem:[%s0 + $0xc4] sm:$0xff]
  %v42 = vld [vmem:[%s0 + $0xcc] sm:$0xff]
  %v43 = vld [vmem:[%s0 + $0xd4] sm:$0xf]
  %v44 = vld [vmem:[%s0 + $0xd8] sm:$0xff]
  %v45 = vld [vmem:[%s0 + $0xe0] sm:$0xff]
  %v46 = vld [vmem:[%s0 + $0xe8] sm:$0xff]
  %v47 = vld [vmem:[%s0 + $0xf0] sm:$0xff]
  %v48 = vld [vmem:[%s0 + $0xf8] sm:$0xf]
  %v49 = vld [vmem:[%s0 + $0xfc] sm:$0xff]
  %v50 = vld [vmem:[%s0 + $0x104] sm:$0xff]
  %v51 = vld [vmem:[%s0 + $0x10c] sm:$0xff]
  %v52 = vld [vmem:[%s0 + $0x114] sm:$0xff]
  %v53 = vld [vmem:[%s0 + $0x11c] sm:$0xf]
  %v54 = vld [vmem:[%s0 + $0x120] sm:$0xff]
  %v55 = vld [vmem:[%s0 + $0x128] sm:$0xff]
  %v56 = vld [vmem:[%s0 + $0x130] sm:$0xff]
  %v57 = vld [vmem:[%s0 + $0x138] sm:$0xff]
  %v58 = vld [vmem:[%s0 + $0x140] sm:$0xf]
  %v59 = vld [vmem:[%s0 + $0x144] sm:$0xff]
  %v60 = vld [vmem:[%s0 + $0x14c] sm:$0xff]
  %v61 = vld [vmem:[%s0 + $0x154] sm:$0xff]
  %v62 = vld [vmem:[%s0 + $0x15c] sm:$0xff]
  %v63 = vld [vmem:[%s0 + $0x164] sm:$0xf]
  %v64 = vld [vmem:[%s0 + $0x168] sm:$0xff]
  %v65 = vld [vmem:[%s0 + $0x170] sm:$0xff]
  %v66 = vld [vmem:[%s0 + $0x178] sm:$0xff]
  %v67 = vld [vmem:[%s0 + $0x180] sm:$0xff]
  %v68 = vld [vmem:[%s0 + $0x188] sm:$0xf]
  %v69 = vld [vmem:[%s0 + $0x18c] sm:$0xff]
  %v70 = vld [vmem:[%s0 + $0x194] sm:$0xff]
  %v71 = vld [vmem:[%s0 + $0x19c] sm:$0xff]
  %v72 = vld [vmem:[%s0 + $0x1a4] sm:$0xff]
  %v73 = vld [vmem:[%s0 + $0x1ac] sm:$0xf]
  %v74 = vld [vmem:[%s0 + $0x1b0] sm:$0xff]
  %v75 = vld [vmem:[%s0 + $0x1b8] sm:$0xff]
  %v76 = vld [vmem:[%s0 + $0x1c0] sm:$0xff]
  %v77 = vld [vmem:[%s0 + $0x1c8] sm:$0xff]
  %v78 = vld [vmem:[%s0 + $0x1d0] sm:$0xf]
  %v79 = vld [vmem:[%s0 + $0x1d4] sm:$0xff]
  %v80 = vld [vmem:[%s0 + $0x1dc] sm:$0xff]
  %v81 = vld [vmem:[%s0 + $0x1e4] sm:$0xff]
  %v82 = vld [vmem:[%s0 + $0x1ec] sm:$0xff]
  %v83 = vld [vmem:[%s0 + $0x1f4] sm:$0xf]
  %v84 = vld [vmem:[%s0 + $0x1f8] sm:$0xff]
  %v85 = vld [vmem:[%s0 + $0x200] sm:$0xff]
  %v86 = vld [vmem:[%s0 + $0x208] sm:$0xff]
  %v87 = vld [vmem:[%s0 + $0x210] sm:$0xff]
  %v88 = vld [vmem:[%s0 + $0x218] sm:$0xf]
  %v89 = vld [vmem:[%s0 + $0x21c] sm:$0xff]
  %v90 = vld [vmem:[%s0 + $0x224] sm:$0xff]
  %v91 = vld [vmem:[%s0 + $0x22c] sm:$0xff]
  %v92 = vld [vmem:[%s0 + $0x234] sm:$0xff]
  %v93 = vld [vmem:[%s0 + $0x23c] sm:$0xf]
  %v94 = vld [vmem:[%s1] sm:$0xf]
  %v95 = vld [vmem:[%s1 + $0x4] sm:$0xf]
  %v96 = vld [vmem:[%s1 + $0x8] sm:$0xf]
  %v97 = vld [vmem:[%s1 + $0xc] sm:$0xf]
  %v98 = vld [vmem:[%s1 + $0x10] sm:$0xf]
  %v99 = vld [vmem:[%s1 + $0x14] sm:$0xf]
  %v100 = vld [vmem:[%s1 + $0x18] sm:$0xf]
  %v101 = vld [vmem:[%s1 + $0x1c] sm:$0xf]
  %v102 = vld [vmem:[%s1 + $0x20] sm:$0xf]
  %v103 = vld [vmem:[%s1 + $0x24] sm:$0xf]
  %v104 = vld [vmem:[%s1 + $0x28] sm:$0xf]
  %v105 = vld [vmem:[%s1 + $0x2c] sm:$0xf]
  %v106 = vld [vmem:[%s1 + $0x30] sm:$0xf]
  %v107 = vld [vmem:[%s1 + $0x34] sm:$0xf]
  %v108 = vld [vmem:[%s1 + $0x38] sm:$0xf]
  %v109 = vld [vmem:[%s1 + $0x3c] sm:$0xf]
  %v110 = vld [vmem:[%s1 + $0x40] sm:$0xf]
  %v111 = vld [vmem:[%s1 + $0x44] sm:$0xf]
  %v112 = vld [vmem:[%s1 + $0x48] sm:$0xf]
  %v113 = vld [vmem:[%s1 + $0x4c] sm:$0xf]
  %v114 = vld [vmem:[%s1 + $0x50] sm:$0xf]
  %v115 = vld [vmem:[%s1 + $0x54] sm:$0xf]
  %v116 = vld [vmem:[%s1 + $0x58] sm:$0xf]
  %v117 = vld [vmem:[%s1 + $0x5c] sm:$0xf]
  %v118 = vld [vmem:[%s1 + $0x60] sm:$0xf]
  %v119 = vld [vmem:[%s1 + $0x64] sm:$0xf]
  %v120 = vld [vmem:[%s1 + $0x68] sm:$0xf]
  %v121 = vld [vmem:[%s1 + $0x6c] sm:$0xf]
  %v122 = vld [vmem:[%s1 + $0x70] sm:$0xf]
  %v123 = vld [vmem:[%s1 + $0x74] sm:$0xf]
  %v124 = vld [vmem:[%s1 + $0x78] sm:$0xf]
  %v125 = vld [vmem:[%s1 + $0x7c] sm:$0xf]
  %v126 = vld [vmem:[%s1 + $0x80] sm:$0xf]
  %v127 = vld [vmem:[%s1 + $0x84] sm:$0xf]
  %v128 = vld [vmem:[%s1 + $0x88] sm:$0xf]
  %v129 = vld [vmem:[%s1 + $0x8c] sm:$0xf]
  %v130 = vld [vmem:[%s1 + $0x90] sm:$0xf]
  %v131 = vld [vmem:[%s1 + $0x94] sm:$0xf]
  %v132 = vld [vmem:[%s1 + $0x98] sm:$0xf]
  %v133 = vld [vmem:[%s1 + $0x9c] sm:$0xf]
  %v134 = vld [vmem:[%s1 + $0xa0] sm:$0xf]
  %v135 = vld [vmem:[%s1 + $0xa4] sm:$0xf]
  %v136 = vld [vmem:[%s1 + $0xa8] sm:$0xf]
  %v137 = vld [vmem:[%s1 + $0xac] sm:$0xf]
  %v138 = vld [vmem:[%s1 + $0xb0] sm:$0xf]
  %v139 = vld [vmem:[%s1 + $0xb4] sm:$0xf]
  %v140 = vld [vmem:[%s1 + $0xb8] sm:$0xf]
  %v141 = vld [vmem:[%s1 + $0xbc] sm:$0xf]
  %v142 = vld [vmem:[%s1 + $0xc0] sm:$0xf]
  %v143 = vld [vmem:[%s1 + $0xc4] sm:$0xf]
  %v144 = vld [vmem:[%s1 + $0xc8] sm:$0xf]
  %v145 = vld [vmem:[%s1 + $0xcc] sm:$0xf]
  %v146 = vld [vmem:[%s1 + $0xd0] sm:$0xf]
  %v147 = vld [vmem:[%s1 + $0xd4] sm:$0xf]
  %v148 = vld [vmem:[%s1 + $0xd8] sm:$0xf]
  %v149 = vld [vmem:[%s1 + $0xdc] sm:$0xf]
  %v150 = vld [vmem:[%s1 + $0xe0] sm:$0xf]
  %v151 = vld [vmem:[%s1 + $0xe4] sm:$0xf]
  %v152 = vld [vmem:[%s1 + $0xe8] sm:$0xf]
  %v153 = vld [vmem:[%s1 + $0xec] sm:$0xf]
  %v154 = vld [vmem:[%s1 + $0xf0] sm:$0xf]
  %v155 = vld [vmem:[%s1 + $0xf4] sm:$0xf]
  %v156 = vld [vmem:[%s1 + $0xf8] sm:$0xf]
  %v157 = vld [vmem:[%s1 + $0xfc] sm:$0xf]
  %v158 = vld [vmem:[%s1 + $0x100] sm:$0xf]
  %v159 = vld [vmem:[%s1 + $0x104] sm:$0xf]
  %v160 = vld [vmem:[%s1 + $0x108] sm:$0xf]
  %v161 = vld [vmem:[%s1 + $0x10c] sm:$0xf]
  %v162 = vld [vmem:[%s1 + $0x110] sm:$0xf]
  %v163 = vld [vmem:[%s1 + $0x114] sm:$0xf]
  %v164 = vld [vmem:[%s1 + $0x118] sm:$0xf]
  %v165 = vld [vmem:[%s1 + $0x11c] sm:$0xf]
  %v166 = vld [vmem:[%s1 + $0x120] sm:$0xf]
  %v167 = vld [vmem:[%s1 + $0x124] sm:$0xf]
  %v168 = vld [vmem:[%s1 + $0x128] sm:$0xf]
  %v169 = vld [vmem:[%s1 + $0x12c] sm:$0xf]
  %v170 = vld [vmem:[%s1 + $0x130] sm:$0xf]
  %v171 = vld [vmem:[%s1 + $0x134] sm:$0xf]
  %v172 = vld [vmem:[%s1 + $0x138] sm:$0xf]
  %v173 = vld [vmem:[%s1 + $0x13c] sm:$0xf]
  %v174 = vld [vmem:[%s1 + $0x140] sm:$0xf]
  %v175 = vld [vmem:[%s1 + $0x144] sm:$0xf]
  %v176 = vld [vmem:[%s1 + $0x148] sm:$0xf]
  %v177 = vld [vmem:[%s1 + $0x14c] sm:$0xf]
  %v178 = vld [vmem:[%s1 + $0x150] sm:$0xf]
  %v179 = vld [vmem:[%s1 + $0x154] sm:$0xf]
  %v180 = vld [vmem:[%s1 + $0x158] sm:$0xf]
  %v181 = vld [vmem:[%s1 + $0x15c] sm:$0xf]
  %v182 = vld [vmem:[%s1 + $0x160] sm:$0xf]
  %v183 = vld [vmem:[%s1 + $0x164] sm:$0xf]
  %v184 = vld [vmem:[%s1 + $0x168] sm:$0xf]
  %v185 = vld [vmem:[%s1 + $0x16c] sm:$0xf]
  %v186 = vld [vmem:[%s1 + $0x170] sm:$0xf]
  %v187 = vld [vmem:[%s1 + $0x174] sm:$0xf]
  %v188 = vld [vmem:[%s1 + $0x178] sm:$0xf]
  %v189 = vld [vmem:[%s1 + $0x17c] sm:$0xf]
  %v190 = vld [vmem:[%s1 + $0x180] sm:$0xf]
  %v191 = vld [vmem:[%s1 + $0x184] sm:$0xf]
  %v192 = vld [vmem:[%s1 + $0x188] sm:$0xf]
  %v193 = vld [vmem:[%s1 + $0x18c] sm:$0xf]
  %v194 = vld [vmem:[%s1 + $0x190] sm:$0xf]
  %v195 = vld [vmem:[%s1 + $0x194] sm:$0xf]
  %v196 = vld [vmem:[%s1 + $0x198] sm:$0xf]
  %v197 = vld [vmem:[%s1 + $0x19c] sm:$0xf]
  %v198 = vld [vmem:[%s1 + $0x1a0] sm:$0xf]
  %v199 = vld [vmem:[%s1 + $0x1a4] sm:$0xf]
  %v200 = vld [vmem:[%s1 + $0x1a8] sm:$0xf]
  %v201 = vld [vmem:[%s1 + $0x1ac] sm:$0xf]
  %v202 = vld [vmem:[%s1 + $0x1b0] sm:$0xf]
  %v203 = vld [vmem:[%s1 + $0x1b4] sm:$0xf]
  %v204 = vld [vmem:[%s1 + $0x1b8] sm:$0xf]
  %v205 = vld [vmem:[%s1 + $0x1bc] sm:$0xf]
  %v206 = vld [vmem:[%s1 + $0x1c0] sm:$0xf]
  %v207 = vld [vmem:[%s1 + $0x1c4] sm:$0xf]
  %v208 = vld [vmem:[%s1 + $0x1c8] sm:$0xf]
  %v209 = vld [vmem:[%s1 + $0x1cc] sm:$0xf]
  %v210 = vld [vmem:[%s1 + $0x1d0] sm:$0xf]
  %v211 = vld [vmem:[%s1 + $0x1d4] sm:$0xf]
  %v212 = vld [vmem:[%s1 + $0x1d8] sm:$0xf]
  %v213 = vld [vmem:[%s1 + $0x1dc] sm:$0xf]
  %v214 = vld [vmem:[%s1 + $0x1e0] sm:$0xf]
  %v215 = vld [vmem:[%s1 + $0x1e4] sm:$0xf]
  %v216 = vld [vmem:[%s1 + $0x1e8] sm:$0xf]
  %v217 = vld [vmem:[%s1 + $0x1ec] sm:$0xf]
  %v218 = vld [vmem:[%s1 + $0x1f0] sm:$0xf]
  %v219 = vld [vmem:[%s1 + $0x1f4] sm:$0xf]
  %v220 = vld [vmem:[%s1 + $0x1f8] sm:$0xf]
  %v221 = vld [vmem:[%s1 + $0x1fc] sm:$0xf]
  %v222 = vld [vmem:[%s1 + $0x200] sm:$0xf]
  %v223 = vld [vmem:[%s1 + $0x204] sm:$0xf]
  %v224 = vld [vmem:[%s1 + $0x208] sm:$0xf]
  %v225 = vld [vmem:[%s1 + $0x20c] sm:$0xf]
  %v226 = vld [vmem:[%s1 + $0x210] sm:$0xf]
  %v227 = vld [vmem:[%s1 + $0x214] sm:$0xf]
  %v228 = vld [vmem:[%s1 + $0x218] sm:$0xf]
  %v229 = vld [vmem:[%s1 + $0x21c] sm:$0xf]
  %v230 = vld [vmem:[%s1 + $0x220] sm:$0xf]
  %v231 = vld [vmem:[%s1 + $0x224] sm:$0xf]
  %v232 = vld [vmem:[%s1 + $0x228] sm:$0xf]
  %v233 = vld [vmem:[%s1 + $0x22c] sm:$0xf]
  %v234 = vld [vmem:[%s1 + $0x230] sm:$0xf]
  %v235 = vld [vmem:[%s1 + $0x234] sm:$0xf]
  %v236 = vld [vmem:[%s1 + $0x238] sm:$0xf]
  %v237 = vld [vmem:[%s1 + $0x23c] sm:$0xf]
  %v238 = vld [vmem:[%s2] sm:$0x1]
  %v240 = vperm.slane %v238, 0
  %v322 = vunpack.c.l.b16 %v14
  %v323 = vunpack.c.h.b16 %v14
  %v324 = vunpack.c.l.b16 %v15
  %v325 = vunpack.c.h.b16 %v15
  %v326 = vunpack.c.l.b16 %v16
  %v327 = vunpack.c.h.b16 %v16
  %v328 = vunpack.c.l.b16 %v17
  %v329 = vunpack.c.h.b16 %v17
  %v330 = vunpack.c.l.b16 %v18
  %v331 = vunpack.c.l.b16 %v19
  %v332 = vunpack.c.h.b16 %v19
  %v333 = vunpack.c.l.b16 %v20
  %v334 = vunpack.c.h.b16 %v20
  %v335 = vunpack.c.l.b16 %v21
  %v336 = vunpack.c.h.b16 %v21
  %v337 = vunpack.c.l.b16 %v22
  %v338 = vunpack.c.h.b16 %v22
  %v339 = vunpack.c.l.b16 %v23
  %v340 = vunpack.c.l.b16 %v24
  %v341 = vunpack.c.h.b16 %v24
  %v342 = vunpack.c.l.b16 %v25
  %v343 = vunpack.c.h.b16 %v25
  %v344 = vunpack.c.l.b16 %v26
  %v345 = vunpack.c.h.b16 %v26
  %v346 = vunpack.c.l.b16 %v27
  %v347 = vunpack.c.h.b16 %v27
  %v348 = vunpack.c.l.b16 %v28
  %v349 = vunpack.c.l.b16 %v29
  %v350 = vunpack.c.h.b16 %v29
  %v351 = vunpack.c.l.b16 %v30
  %v352 = vunpack.c.h.b16 %v30
  %v353 = vunpack.c.l.b16 %v31
  %v354 = vunpack.c.h.b16 %v31
  %v355 = vunpack.c.l.b16 %v32
  %v356 = vunpack.c.h.b16 %v32
  %v357 = vunpack.c.l.b16 %v33
  %v358 = vunpack.c.l.b16 %v34
  %v359 = vunpack.c.h.b16 %v34
  %v360 = vunpack.c.l.b16 %v35
  %v361 = vunpack.c.h.b16 %v35
  %v362 = vunpack.c.l.b16 %v36
  %v363 = vunpack.c.h.b16 %v36
  %v364 = vunpack.c.l.b16 %v37
  %v365 = vunpack.c.h.b16 %v37
  %v366 = vunpack.c.l.b16 %v38
  %v367 = vunpack.c.l.b16 %v39
  %v368 = vunpack.c.h.b16 %v39
  %v369 = vunpack.c.l.b16 %v40
  %v370 = vunpack.c.h.b16 %v40
  %v371 = vunpack.c.l.b16 %v41
  %v372 = vunpack.c.h.b16 %v41
  %v373 = vunpack.c.l.b16 %v42
  %v374 = vunpack.c.h.b16 %v42
  %v375 = vunpack.c.l.b16 %v43
  %v376 = vunpack.c.l.b16 %v44
  %v377 = vunpack.c.h.b16 %v44
  %v378 = vunpack.c.l.b16 %v45
  %v379 = vunpack.c.h.b16 %v45
  %v380 = vunpack.c.l.b16 %v46
  %v381 = vunpack.c.h.b16 %v46
  %v382 = vunpack.c.l.b16 %v47
  %v383 = vunpack.c.h.b16 %v47
  %v384 = vunpack.c.l.b16 %v48
  %v385 = vunpack.c.l.b16 %v49
  %v386 = vunpack.c.h.b16 %v49
  %v387 = vunpack.c.l.b16 %v50
  %v388 = vunpack.c.h.b16 %v50
  %v389 = vunpack.c.l.b16 %v51
  %v390 = vunpack.c.h.b16 %v51
  %v391 = vunpack.c.l.b16 %v52
  %v392 = vunpack.c.h.b16 %v52
  %v393 = vunpack.c.l.b16 %v53
  %v394 = vunpack.c.l.b16 %v54
  %v395 = vunpack.c.h.b16 %v54
  %v396 = vunpack.c.l.b16 %v55
  %v397 = vunpack.c.h.b16 %v55
  %v398 = vunpack.c.l.b16 %v56
  %v399 = vunpack.c.h.b16 %v56
  %v400 = vunpack.c.l.b16 %v57
  %v401 = vunpack.c.h.b16 %v57
  %v402 = vunpack.c.l.b16 %v58
  %v403 = vunpack.c.l.b16 %v59
  %v404 = vunpack.c.h.b16 %v59
  %v405 = vunpack.c.l.b16 %v60
  %v406 = vunpack.c.h.b16 %v60
  %v407 = vunpack.c.l.b16 %v61
  %v408 = vunpack.c.h.b16 %v61
  %v409 = vunpack.c.l.b16 %v62
  %v410 = vunpack.c.h.b16 %v62
  %v411 = vunpack.c.l.b16 %v63
  %v412 = vunpack.c.l.b16 %v64
  %v413 = vunpack.c.h.b16 %v64
  %v414 = vunpack.c.l.b16 %v65
  %v415 = vunpack.c.h.b16 %v65
  %v416 = vunpack.c.l.b16 %v66
  %v417 = vunpack.c.h.b16 %v66
  %v418 = vunpack.c.l.b16 %v67
  %v419 = vunpack.c.h.b16 %v67
  %v420 = vunpack.c.l.b16 %v68
  %v421 = vunpack.c.l.b16 %v69
  %v422 = vunpack.c.h.b16 %v69
  %v423 = vunpack.c.l.b16 %v70
  %v424 = vunpack.c.h.b16 %v70
  %v425 = vunpack.c.l.b16 %v71
  %v426 = vunpack.c.h.b16 %v71
  %v427 = vunpack.c.l.b16 %v72
  %v428 = vunpack.c.h.b16 %v72
  %v429 = vunpack.c.l.b16 %v73
  %v430 = vunpack.c.l.b16 %v74
  %v431 = vunpack.c.h.b16 %v74
  %v432 = vunpack.c.l.b16 %v75
  %v433 = vunpack.c.h.b16 %v75
  %v434 = vunpack.c.l.b16 %v76
  %v435 = vunpack.c.h.b16 %v76
  %v436 = vunpack.c.l.b16 %v77
  %v437 = vunpack.c.h.b16 %v77
  %v438 = vunpack.c.l.b16 %v78
  %v439 = vunpack.c.l.b16 %v79
  %v440 = vunpack.c.h.b16 %v79
  %v441 = vunpack.c.l.b16 %v80
  %v442 = vunpack.c.h.b16 %v80
  %v443 = vunpack.c.l.b16 %v81
  %v444 = vunpack.c.h.b16 %v81
  %v445 = vunpack.c.l.b16 %v82
  %v446 = vunpack.c.h.b16 %v82
  %v447 = vunpack.c.l.b16 %v83
  %v448 = vunpack.c.l.b16 %v84
  %v449 = vunpack.c.h.b16 %v84
  %v450 = vunpack.c.l.b16 %v85
  %v451 = vunpack.c.h.b16 %v85
  %v452 = vunpack.c.l.b16 %v86
  %v453 = vunpack.c.h.b16 %v86
  %v454 = vunpack.c.l.b16 %v87
  %v455 = vunpack.c.h.b16 %v87
  %v456 = vunpack.c.l.b16 %v88
  %v457 = vunpack.c.l.b16 %v89
  %v458 = vunpack.c.h.b16 %v89
  %v459 = vunpack.c.l.b16 %v90
  %v460 = vunpack.c.h.b16 %v90
  %v461 = vunpack.c.l.b16 %v91
  %v462 = vunpack.c.h.b16 %v91
  %v463 = vunpack.c.l.b16 %v92
  %v464 = vunpack.c.h.b16 %v92
  %v465 = vunpack.c.l.b16 %v93
  %v466 = vpack.c.b16 %v331, %v322
  %v467 = vpack.c.b16 %v332, %v323
  %v468 = vpack.c.b16 %v333, %v324
  %v469 = vpack.c.b16 %v334, %v325
  %v470 = vpack.c.b16 %v335, %v326
  %v471 = vpack.c.b16 %v336, %v327
  %v472 = vpack.c.b16 %v337, %v328
  %v473 = vpack.c.b16 %v338, %v329
  %v474 = vpack.c.b16 %v339, %v330
  %v475 = vpack.c.b16 %v349, %v340
  %v476 = vpack.c.b16 %v350, %v341
  %v477 = vpack.c.b16 %v351, %v342
  %v478 = vpack.c.b16 %v352, %v343
  %v479 = vpack.c.b16 %v353, %v344
  %v480 = vpack.c.b16 %v354, %v345
  %v481 = vpack.c.b16 %v355, %v346
  %v482 = vpack.c.b16 %v356, %v347
  %v483 = vpack.c.b16 %v357, %v348
  %v484 = vpack.c.b16 %v367, %v358
  %v485 = vpack.c.b16 %v368, %v359
  %v486 = vpack.c.b16 %v369, %v360
  %v487 = vpack.c.b16 %v370, %v361
  %v488 = vpack.c.b16 %v371, %v362
  %v489 = vpack.c.b16 %v372, %v363
  %v490 = vpack.c.b16 %v373, %v364
  %v491 = vpack.c.b16 %v374, %v365
  %v492 = vpack.c.b16 %v375, %v366
  %v493 = vpack.c.b16 %v385, %v376
  %v494 = vpack.c.b16 %v386, %v377
  %v495 = vpack.c.b16 %v387, %v378
  %v496 = vpack.c.b16 %v388, %v379
  %v497 = vpack.c.b16 %v389, %v380
  %v498 = vpack.c.b16 %v390, %v381
  %v499 = vpack.c.b16 %v391, %v382
  %v500 = vpack.c.b16 %v392, %v383
  %v501 = vpack.c.b16 %v393, %v384
  %v502 = vpack.c.b16 %v403, %v394
  %v503 = vpack.c.b16 %v404, %v395
  %v504 = vpack.c.b16 %v405, %v396
  %v505 = vpack.c.b16 %v406, %v397
  %v506 = vpack.c.b16 %v407, %v398
  %v507 = vpack.c.b16 %v408, %v399
  %v508 = vpack.c.b16 %v409, %v400
  %v509 = vpack.c.b16 %v410, %v401
  %v510 = vpack.c.b16 %v411, %v402
  %v511 = vpack.c.b16 %v421, %v412
  %v512 = vpack.c.b16 %v422, %v413
  %v513 = vpack.c.b16 %v423, %v414
  %v514 = vpack.c.b16 %v424, %v415
  %v515 = vpack.c.b16 %v425, %v416
  %v516 = vpack.c.b16 %v426, %v417
  %v517 = vpack.c.b16 %v427, %v418
  %v518 = vpack.c.b16 %v428, %v419
  %v519 = vpack.c.b16 %v429, %v420
  %v520 = vpack.c.b16 %v439, %v430
  %v521 = vpack.c.b16 %v440, %v431
  %v522 = vpack.c.b16 %v441, %v432
  %v523 = vpack.c.b16 %v442, %v433
  %v524 = vpack.c.b16 %v443, %v434
  %v525 = vpack.c.b16 %v444, %v435
  %v526 = vpack.c.b16 %v445, %v436
  %v527 = vpack.c.b16 %v446, %v437
  %v528 = vpack.c.b16 %v447, %v438
  %v529 = vpack.c.b16 %v457, %v448
  %v530 = vpack.c.b16 %v458, %v449
  %v531 = vpack.c.b16 %v459, %v450
  %v532 = vpack.c.b16 %v460, %v451
  %v533 = vpack.c.b16 %v461, %v452
  %v534 = vpack.c.b16 %v462, %v453
  %v535 = vpack.c.b16 %v463, %v454
  %v536 = vpack.c.b16 %v464, %v455
  %v537 = vpack.c.b16 %v465, %v456
  %v754 = vunpack.c.l.b16 %v94
  %v755 = vunpack.c.l.b16 %v95
  %v756 = vunpack.c.l.b16 %v96
  %v757 = vunpack.c.l.b16 %v97
  %v758 = vunpack.c.l.b16 %v98
  %v759 = vunpack.c.l.b16 %v99
  %v760 = vunpack.c.l.b16 %v100
  %v761 = vunpack.c.l.b16 %v101
  %v762 = vunpack.c.l.b16 %v102
  %v763 = vunpack.c.l.b16 %v103
  %v764 = vunpack.c.l.b16 %v104
  %v765 = vunpack.c.l.b16 %v105
  %v766 = vunpack.c.l.b16 %v106
  %v767 = vunpack.c.l.b16 %v107
  %v768 = vunpack.c.l.b16 %v108
  %v769 = vunpack.c.l.b16 %v109
  %v770 = vunpack.c.l.b16 %v110
  %v771 = vunpack.c.l.b16 %v111
  %v772 = vunpack.c.l.b16 %v112
  %v773 = vunpack.c.l.b16 %v113
  %v774 = vunpack.c.l.b16 %v114
  %v775 = vunpack.c.l.b16 %v115
  %v776 = vunpack.c.l.b16 %v116
  %v777 = vunpack.c.l.b16 %v117
  %v778 = vunpack.c.l.b16 %v118
  %v779 = vunpack.c.l.b16 %v119
  %v780 = vunpack.c.l.b16 %v120
  %v781 = vunpack.c.l.b16 %v121
  %v782 = vunpack.c.l.b16 %v122
  %v783 = vunpack.c.l.b16 %v123
  %v784 = vunpack.c.l.b16 %v124
  %v785 = vunpack.c.l.b16 %v125
  %v786 = vunpack.c.l.b16 %v126
  %v787 = vunpack.c.l.b16 %v127
  %v788 = vunpack.c.l.b16 %v128
  %v789 = vunpack.c.l.b16 %v129
  %v790 = vunpack.c.l.b16 %v130
  %v791 = vunpack.c.l.b16 %v131
  %v792 = vunpack.c.l.b16 %v132
  %v793 = vunpack.c.l.b16 %v133
  %v794 = vunpack.c.l.b16 %v134
  %v795 = vunpack.c.l.b16 %v135
  %v796 = vunpack.c.l.b16 %v136
  %v797 = vunpack.c.l.b16 %v137
  %v798 = vunpack.c.l.b16 %v138
  %v799 = vunpack.c.l.b16 %v139
  %v800 = vunpack.c.l.b16 %v140
  %v801 = vunpack.c.l.b16 %v141
  %v802 = vunpack.c.l.b16 %v142
  %v803 = vunpack.c.l.b16 %v143
  %v804 = vunpack.c.l.b16 %v144
  %v805 = vunpack.c.l.b16 %v145
  %v806 = vunpack.c.l.b16 %v146
  %v807 = vunpack.c.l.b16 %v147
  %v808 = vunpack.c.l.b16 %v148
  %v809 = vunpack.c.l.b16 %v149
  %v810 = vunpack.c.l.b16 %v150
  %v811 = vunpack.c.l.b16 %v151
  %v812 = vunpack.c.l.b16 %v152
  %v813 = vunpack.c.l.b16 %v153
  %v814 = vunpack.c.l.b16 %v154
  %v815 = vunpack.c.l.b16 %v155
  %v816 = vunpack.c.l.b16 %v156
  %v817 = vunpack.c.l.b16 %v157
  %v818 = vunpack.c.l.b16 %v158
  %v819 = vunpack.c.l.b16 %v159
  %v820 = vunpack.c.l.b16 %v160
  %v821 = vunpack.c.l.b16 %v161
  %v822 = vunpack.c.l.b16 %v162
  %v823 = vunpack.c.l.b16 %v163
  %v824 = vunpack.c.l.b16 %v164
  %v825 = vunpack.c.l.b16 %v165
  %v826 = vunpack.c.l.b16 %v166
  %v827 = vunpack.c.l.b16 %v167
  %v828 = vunpack.c.l.b16 %v168
  %v829 = vunpack.c.l.b16 %v169
  %v830 = vunpack.c.l.b16 %v170
  %v831 = vunpack.c.l.b16 %v171
  %v832 = vunpack.c.l.b16 %v172
  %v833 = vunpack.c.l.b16 %v173
  %v834 = vunpack.c.l.b16 %v174
  %v835 = vunpack.c.l.b16 %v175
  %v836 = vunpack.c.l.b16 %v176
  %v837 = vunpack.c.l.b16 %v177
  %v838 = vunpack.c.l.b16 %v178
  %v839 = vunpack.c.l.b16 %v179
  %v840 = vunpack.c.l.b16 %v180
  %v841 = vunpack.c.l.b16 %v181
  %v842 = vunpack.c.l.b16 %v182
  %v843 = vunpack.c.l.b16 %v183
  %v844 = vunpack.c.l.b16 %v184
  %v845 = vunpack.c.l.b16 %v185
  %v846 = vunpack.c.l.b16 %v186
  %v847 = vunpack.c.l.b16 %v187
  %v848 = vunpack.c.l.b16 %v188
  %v849 = vunpack.c.l.b16 %v189
  %v850 = vunpack.c.l.b16 %v190
  %v851 = vunpack.c.l.b16 %v191
  %v852 = vunpack.c.l.b16 %v192
  %v853 = vunpack.c.l.b16 %v193
  %v854 = vunpack.c.l.b16 %v194
  %v855 = vunpack.c.l.b16 %v195
  %v856 = vunpack.c.l.b16 %v196
  %v857 = vunpack.c.l.b16 %v197
  %v858 = vunpack.c.l.b16 %v198
  %v859 = vunpack.c.l.b16 %v199
  %v860 = vunpack.c.l.b16 %v200
  %v861 = vunpack.c.l.b16 %v201
  %v862 = vunpack.c.l.b16 %v202
  %v863 = vunpack.c.l.b16 %v203
  %v864 = vunpack.c.l.b16 %v204
  %v865 = vunpack.c.l.b16 %v205
  %v866 = vunpack.c.l.b16 %v206
  %v867 = vunpack.c.l.b16 %v207
  %v868 = vunpack.c.l.b16 %v208
  %v869 = vunpack.c.l.b16 %v209
  %v870 = vunpack.c.l.b16 %v210
  %v871 = vunpack.c.l.b16 %v211
  %v872 = vunpack.c.l.b16 %v212
  %v873 = vunpack.c.l.b16 %v213
  %v874 = vunpack.c.l.b16 %v214
  %v875 = vunpack.c.l.b16 %v215
  %v876 = vunpack.c.l.b16 %v216
  %v877 = vunpack.c.l.b16 %v217
  %v878 = vunpack.c.l.b16 %v218
  %v879 = vunpack.c.l.b16 %v219
  %v880 = vunpack.c.l.b16 %v220
  %v881 = vunpack.c.l.b16 %v221
  %v882 = vunpack.c.l.b16 %v222
  %v883 = vunpack.c.l.b16 %v223
  %v884 = vunpack.c.l.b16 %v224
  %v885 = vunpack.c.l.b16 %v225
  %v886 = vunpack.c.l.b16 %v226
  %v887 = vunpack.c.l.b16 %v227
  %v888 = vunpack.c.l.b16 %v228
  %v889 = vunpack.c.l.b16 %v229
  %v890 = vunpack.c.l.b16 %v230
  %v891 = vunpack.c.l.b16 %v231
  %v892 = vunpack.c.l.b16 %v232
  %v893 = vunpack.c.l.b16 %v233
  %v894 = vunpack.c.l.b16 %v234
  %v895 = vunpack.c.l.b16 %v235
  %v896 = vunpack.c.l.b16 %v236
  %v897 = vunpack.c.l.b16 %v237
  %v898 = vpack.c.b16 %v755, %v754
  %v899 = vpack.c.b16 %v757, %v756
  %v900 = vpack.c.b16 %v759, %v758
  %v901 = vpack.c.b16 %v761, %v760
  %v902 = vpack.c.b16 %v763, %v762
  %v903 = vpack.c.b16 %v765, %v764
  %v904 = vpack.c.b16 %v767, %v766
  %v905 = vpack.c.b16 %v769, %v768
  %v906 = vpack.c.b16 %v771, %v770
  %v907 = vpack.c.b16 %v773, %v772
  %v908 = vpack.c.b16 %v775, %v774
  %v909 = vpack.c.b16 %v777, %v776
  %v910 = vpack.c.b16 %v779, %v778
  %v911 = vpack.c.b16 %v781, %v780
  %v912 = vpack.c.b16 %v783, %v782
  %v913 = vpack.c.b16 %v785, %v784
  %v914 = vpack.c.b16 %v787, %v786
  %v915 = vpack.c.b16 %v789, %v788
  %v916 = vpack.c.b16 %v791, %v790
  %v917 = vpack.c.b16 %v793, %v792
  %v918 = vpack.c.b16 %v795, %v794
  %v919 = vpack.c.b16 %v797, %v796
  %v920 = vpack.c.b16 %v799, %v798
  %v921 = vpack.c.b16 %v801, %v800
  %v922 = vpack.c.b16 %v803, %v802
  %v923 = vpack.c.b16 %v805, %v804
  %v924 = vpack.c.b16 %v807, %v806
  %v925 = vpack.c.b16 %v809, %v808
  %v926 = vpack.c.b16 %v811, %v810
  %v927 = vpack.c.b16 %v813, %v812
  %v928 = vpack.c.b16 %v815, %v814
  %v929 = vpack.c.b16 %v817, %v816
  %v930 = vpack.c.b16 %v819, %v818
  %v931 = vpack.c.b16 %v821, %v820
  %v932 = vpack.c.b16 %v823, %v822
  %v933 = vpack.c.b16 %v825, %v824
  %v934 = vpack.c.b16 %v827, %v826
  %v935 = vpack.c.b16 %v829, %v828
  %v936 = vpack.c.b16 %v831, %v830
  %v937 = vpack.c.b16 %v833, %v832
  %v938 = vpack.c.b16 %v835, %v834
  %v939 = vpack.c.b16 %v837, %v836
  %v940 = vpack.c.b16 %v839, %v838
  %v941 = vpack.c.b16 %v841, %v840
  %v942 = vpack.c.b16 %v843, %v842
  %v943 = vpack.c.b16 %v845, %v844
  %v944 = vpack.c.b16 %v847, %v846
  %v945 = vpack.c.b16 %v849, %v848
  %v946 = vpack.c.b16 %v851, %v850
  %v947 = vpack.c.b16 %v853, %v852
  %v948 = vpack.c.b16 %v855, %v854
  %v949 = vpack.c.b16 %v857, %v856
  %v950 = vpack.c.b16 %v859, %v858
  %v951 = vpack.c.b16 %v861, %v860
  %v952 = vpack.c.b16 %v863, %v862
  %v953 = vpack.c.b16 %v865, %v864
  %v954 = vpack.c.b16 %v867, %v866
  %v955 = vpack.c.b16 %v869, %v868
  %v956 = vpack.c.b16 %v871, %v870
  %v957 = vpack.c.b16 %v873, %v872
  %v958 = vpack.c.b16 %v875, %v874
  %v959 = vpack.c.b16 %v877, %v876
  %v960 = vpack.c.b16 %v879, %v878
  %v961 = vpack.c.b16 %v881, %v880
  %v962 = vpack.c.b16 %v883, %v882
  %v963 = vpack.c.b16 %v885, %v884
  %v964 = vpack.c.b16 %v887, %v886
  %v965 = vpack.c.b16 %v889, %v888
  %v966 = vpack.c.b16 %v891, %v890
  %v967 = vpack.c.b16 %v893, %v892
  %v968 = vpack.c.b16 %v895, %v894
  %v969 = vpack.c.b16 %v897, %v896
  %1042 = vmatpush.bf16.msra.mxu0 %v905
  %1043 = vmatpush.bf16.msra.mxu0 %v904
  %1044 = vmatpush.bf16.msra.mxu0 %v903
  %1045 = vmatpush.bf16.msra.mxu0 %v902
  %1046 = vmatpush.bf16.msra.mxu0 %v901
  %1047 = vmatpush.bf16.msra.mxu0 %v900
  %1048 = vmatpush.bf16.msra.mxu0 %v899
  %1049 = vmatpush.bf16.msra.mxu0 %v898
  %1050 = vmatmul.bf16.gmra.mxu0 %v466
  %v1051 = vpop.f32.mrf.mxu0
  %v1052 = vadd.f32 %v240, %v1051
  %v1053 = vpop.f32.mrf.mxu0
  %v1054 = vadd.f32 %v240, %v1053
  %1055 = vmatmul.bf16.gmra.mxu0 %v475
  %v1056 = vpop.f32.mrf.mxu0
  %v1057 = vadd.f32 %v240, %v1056
  %v1058 = vpop.f32.mrf.mxu0
  %v1059 = vadd.f32 %v240, %v1058
  %1060 = vmatmul.bf16.gmra.mxu0 %v484
  %v1061 = vpop.f32.mrf.mxu0
  %v1062 = vadd.f32 %v240, %v1061
  %v1063 = vpop.f32.mrf.mxu0
  %v1064 = vadd.f32 %v240, %v1063
  %1065 = vmatmul.bf16.gmra.mxu0 %v493
  %v1066 = vpop.f32.mrf.mxu0
  %v1067 = vadd.f32 %v240, %v1066
  %v1068 = vpop.f32.mrf.mxu0
  %v1069 = vadd.f32 %v240, %v1068
  %1070 = vmatmul.bf16.gmra.mxu0 %v502
  %v1071 = vpop.f32.mrf.mxu0
  %v1072 = vadd.f32 %v240, %v1071
  %v1073 = vpop.f32.mrf.mxu0
  %v1074 = vadd.f32 %v240, %v1073
  %1075 = vmatmul.bf16.gmra.mxu0 %v511
  %v1076 = vpop.f32.mrf.mxu0
  %v1077 = vadd.f32 %v240, %v1076
  %v1078 = vpop.f32.mrf.mxu0
  %v1079 = vadd.f32 %v240, %v1078
  %1080 = vmatmul.bf16.gmra.mxu0 %v520
  %v1081 = vpop.f32.mrf.mxu0
  %v1082 = vadd.f32 %v240, %v1081
  %v1083 = vpop.f32.mrf.mxu0
  %v1084 = vadd.f32 %v240, %v1083
  %1085 = vmatmul.bf16.gmra.mxu0 %v529
  %v1086 = vpop.f32.mrf.mxu0
  %v1087 = vadd.f32 %v240, %v1086
  %v1088 = vpop.f32.mrf.mxu0
  %v1089 = vadd.f32 %v240, %v1088
  %1090 = vdwg.mxu0
  %1091 = vmatpush.bf16.msra.mxu0 %v913
  %1092 = vmatpush.bf16.msra.mxu0 %v912
  %1093 = vmatpush.bf16.msra.mxu0 %v911
  %1094 = vmatpush.bf16.msra.mxu0 %v910
  %1095 = vmatpush.bf16.msra.mxu0 %v909
  %1096 = vmatpush.bf16.msra.mxu0 %v908
  %1097 = vmatpush.bf16.msra.mxu0 %v907
  %1098 = vmatpush.bf16.msra.mxu0 %v906
  %1099 = vmatmul.bf16.gmra.mxu0 %v467
  %v1100 = vpop.f32.mrf.mxu0
  %v1101 = vadd.f32 %v1052, %v1100
  %v1102 = vpop.f32.mrf.mxu0
  %v1103 = vadd.f32 %v1054, %v1102
  %1104 = vmatmul.bf16.gmra.mxu0 %v476
  %v1105 = vpop.f32.mrf.mxu0
  %v1106 = vadd.f32 %v1057, %v1105
  %v1107 = vpop.f32.mrf.mxu0
  %v1108 = vadd.f32 %v1059, %v1107
  %1109 = vmatmul.bf16.gmra.mxu0 %v485
  %v1110 = vpop.f32.mrf.mxu0
  %v1111 = vadd.f32 %v1062, %v1110
  %v1112 = vpop.f32.mrf.mxu0
  %v1113 = vadd.f32 %v1064, %v1112
  %1114 = vmatmul.bf16.gmra.mxu0 %v494
  %v1115 = vpop.f32.mrf.mxu0
  %v1116 = vadd.f32 %v1067, %v1115
  %v1117 = vpop.f32.mrf.mxu0
  %v1118 = vadd.f32 %v1069, %v1117
  %1119 = vmatmul.bf16.gmra.mxu0 %v503
  %v1120 = vpop.f32.mrf.mxu0
  %v1121 = vadd.f32 %v1072, %v1120
  %v1122 = vpop.f32.mrf.mxu0
  %v1123 = vadd.f32 %v1074, %v1122
  %1124 = vmatmul.bf16.gmra.mxu0 %v512
  %v1125 = vpop.f32.mrf.mxu0
  %v1126 = vadd.f32 %v1077, %v1125
  %v1127 = vpop.f32.mrf.mxu0
  %v1128 = vadd.f32 %v1079, %v1127
  %1129 = vmatmul.bf16.gmra.mxu0 %v521
  %v1130 = vpop.f32.mrf.mxu0
  %v1131 = vadd.f32 %v1082, %v1130
  %v1132 = vpop.f32.mrf.mxu0
  %v1133 = vadd.f32 %v1084, %v1132
  %1134 = vmatmul.bf16.gmra.mxu0 %v530
  %v1135 = vpop.f32.mrf.mxu0
  %v1136 = vadd.f32 %v1087, %v1135
  %v1137 = vpop.f32.mrf.mxu0
  %v1138 = vadd.f32 %v1089, %v1137
  %1139 = vdwg.mxu0
  %1140 = vmatpush.bf16.msra.mxu0 %v921
  %1141 = vmatpush.bf16.msra.mxu0 %v920
  %1142 = vmatpush.bf16.msra.mxu0 %v919
  %1143 = vmatpush.bf16.msra.mxu0 %v918
  %1144 = vmatpush.bf16.msra.mxu0 %v917
  %1145 = vmatpush.bf16.msra.mxu0 %v916
  %1146 = vmatpush.bf16.msra.mxu0 %v915
  %1147 = vmatpush.bf16.msra.mxu0 %v914
  %1148 = vmatmul.bf16.gmra.mxu0 %v468
  %v1149 = vpop.f32.mrf.mxu0
  %v1150 = vadd.f32 %v1101, %v1149
  %v1151 = vpop.f32.mrf.mxu0
  %v1152 = vadd.f32 %v1103, %v1151
  %1153 = vmatmul.bf16.gmra.mxu0 %v477
  %v1154 = vpop.f32.mrf.mxu0
  %v1155 = vadd.f32 %v1106, %v1154
  %v1156 = vpop.f32.mrf.mxu0
  %v1157 = vadd.f32 %v1108, %v1156
  %1158 = vmatmul.bf16.gmra.mxu0 %v486
  %v1159 = vpop.f32.mrf.mxu0
  %v1160 = vadd.f32 %v1111, %v1159
  %v1161 = vpop.f32.mrf.mxu0
  %v1162 = vadd.f32 %v1113, %v1161
  %1163 = vmatmul.bf16.gmra.mxu0 %v495
  %v1164 = vpop.f32.mrf.mxu0
  %v1165 = vadd.f32 %v1116, %v1164
  %v1166 = vpop.f32.mrf.mxu0
  %v1167 = vadd.f32 %v1118, %v1166
  %1168 = vmatmul.bf16.gmra.mxu0 %v504
  %v1169 = vpop.f32.mrf.mxu0
  %v1170 = vadd.f32 %v1121, %v1169
  %v1171 = vpop.f32.mrf.mxu0
  %v1172 = vadd.f32 %v1123, %v1171
  %1173 = vmatmul.bf16.gmra.mxu0 %v513
  %v1174 = vpop.f32.mrf.mxu0
  %v1175 = vadd.f32 %v1126, %v1174
  %v1176 = vpop.f32.mrf.mxu0
  %v1177 = vadd.f32 %v1128, %v1176
  %1178 = vmatmul.bf16.gmra.mxu0 %v522
  %v1179 = vpop.f32.mrf.mxu0
  %v1180 = vadd.f32 %v1131, %v1179
  %v1181 = vpop.f32.mrf.mxu0
  %v1182 = vadd.f32 %v1133, %v1181
  %1183 = vmatmul.bf16.gmra.mxu0 %v531
  %v1184 = vpop.f32.mrf.mxu0
  %v1185 = vadd.f32 %v1136, %v1184
  %v1186 = vpop.f32.mrf.mxu0
  %v1187 = vadd.f32 %v1138, %v1186
  %1188 = vdwg.mxu0
  %1189 = vmatpush.bf16.msra.mxu0 %v929
  %1190 = vmatpush.bf16.msra.mxu0 %v928
  %1191 = vmatpush.bf16.msra.mxu0 %v927
  %1192 = vmatpush.bf16.msra.mxu0 %v926
  %1193 = vmatpush.bf16.msra.mxu0 %v925
  %1194 = vmatpush.bf16.msra.mxu0 %v924
  %1195 = vmatpush.bf16.msra.mxu0 %v923
  %1196 = vmatpush.bf16.msra.mxu0 %v922
  %1197 = vmatmul.bf16.gmra.mxu0 %v469
  %v1198 = vpop.f32.mrf.mxu0
  %v1199 = vadd.f32 %v1150, %v1198
  %v1200 = vpop.f32.mrf.mxu0
  %v1201 = vadd.f32 %v1152, %v1200
  %1202 = vmatmul.bf16.gmra.mxu0 %v478
  %v1203 = vpop.f32.mrf.mxu0
  %v1204 = vadd.f32 %v1155, %v1203
  %v1205 = vpop.f32.mrf.mxu0
  %v1206 = vadd.f32 %v1157, %v1205
  %1207 = vmatmul.bf16.gmra.mxu0 %v487
  %v1208 = vpop.f32.mrf.mxu0
  %v1209 = vadd.f32 %v1160, %v1208
  %v1210 = vpop.f32.mrf.mxu0
  %v1211 = vadd.f32 %v1162, %v1210
  %1212 = vmatmul.bf16.gmra.mxu0 %v496
  %v1213 = vpop.f32.mrf.mxu0
  %v1214 = vadd.f32 %v1165, %v1213
  %v1215 = vpop.f32.mrf.mxu0
  %v1216 = vadd.f32 %v1167, %v1215
  %1217 = vmatmul.bf16.gmra.mxu0 %v505
  %v1218 = vpop.f32.mrf.mxu0
  %v1219 = vadd.f32 %v1170, %v1218
  %v1220 = vpop.f32.mrf.mxu0
  %v1221 = vadd.f32 %v1172, %v1220
  %1222 = vmatmul.bf16.gmra.mxu0 %v514
  %v1223 = vpop.f32.mrf.mxu0
  %v1224 = vadd.f32 %v1175, %v1223
  %v1225 = vpop.f32.mrf.mxu0
  %v1226 = vadd.f32 %v1177, %v1225
  %1227 = vmatmul.bf16.gmra.mxu0 %v523
  %v1228 = vpop.f32.mrf.mxu0
  %v1229 = vadd.f32 %v1180, %v1228
  %v1230 = vpop.f32.mrf.mxu0
  %v1231 = vadd.f32 %v1182, %v1230
  %1232 = vmatmul.bf16.gmra.mxu0 %v532
  %v1233 = vpop.f32.mrf.mxu0
  %v1234 = vadd.f32 %v1185, %v1233
  %v1235 = vpop.f32.mrf.mxu0
  %v1236 = vadd.f32 %v1187, %v1235
  %1237 = vdwg.mxu0
  %1238 = vmatpush.bf16.msra.mxu0 %v937
  %1239 = vmatpush.bf16.msra.mxu0 %v936
  %1240 = vmatpush.bf16.msra.mxu0 %v935
  %1241 = vmatpush.bf16.msra.mxu0 %v934
  %1242 = vmatpush.bf16.msra.mxu0 %v933
  %1243 = vmatpush.bf16.msra.mxu0 %v932
  %1244 = vmatpush.bf16.msra.mxu0 %v931
  %1245 = vmatpush.bf16.msra.mxu0 %v930
  %1246 = vmatmul.bf16.gmra.mxu0 %v470
  %v1247 = vpop.f32.mrf.mxu0
  %v1248 = vadd.f32 %v1199, %v1247
  %v1249 = vpop.f32.mrf.mxu0
  %v1250 = vadd.f32 %v1201, %v1249
  %1251 = vmatmul.bf16.gmra.mxu0 %v479
  %v1252 = vpop.f32.mrf.mxu0
  %v1253 = vadd.f32 %v1204, %v1252
  %v1254 = vpop.f32.mrf.mxu0
  %v1255 = vadd.f32 %v1206, %v1254
  %1256 = vmatmul.bf16.gmra.mxu0 %v488
  %v1257 = vpop.f32.mrf.mxu0
  %v1258 = vadd.f32 %v1209, %v1257
  %v1259 = vpop.f32.mrf.mxu0
  %v1260 = vadd.f32 %v1211, %v1259
  %1261 = vmatmul.bf16.gmra.mxu0 %v497
  %v1262 = vpop.f32.mrf.mxu0
  %v1263 = vadd.f32 %v1214, %v1262
  %v1264 = vpop.f32.mrf.mxu0
  %v1265 = vadd.f32 %v1216, %v1264
  %1266 = vmatmul.bf16.gmra.mxu0 %v506
  %v1267 = vpop.f32.mrf.mxu0
  %v1268 = vadd.f32 %v1219, %v1267
  %v1269 = vpop.f32.mrf.mxu0
  %v1270 = vadd.f32 %v1221, %v1269
  %1271 = vmatmul.bf16.gmra.mxu0 %v515
  %v1272 = vpop.f32.mrf.mxu0
  %v1273 = vadd.f32 %v1224, %v1272
  %v1274 = vpop.f32.mrf.mxu0
  %v1275 = vadd.f32 %v1226, %v1274
  %1276 = vmatmul.bf16.gmra.mxu0 %v524
  %v1277 = vpop.f32.mrf.mxu0
  %v1278 = vadd.f32 %v1229, %v1277
  %v1279 = vpop.f32.mrf.mxu0
  %v1280 = vadd.f32 %v1231, %v1279
  %1281 = vmatmul.bf16.gmra.mxu0 %v533
  %v1282 = vpop.f32.mrf.mxu0
  %v1283 = vadd.f32 %v1234, %v1282
  %v1284 = vpop.f32.mrf.mxu0
  %v1285 = vadd.f32 %v1236, %v1284
  %1286 = vdwg.mxu0
  %1287 = vmatpush.bf16.msra.mxu0 %v945
  %1288 = vmatpush.bf16.msra.mxu0 %v944
  %1289 = vmatpush.bf16.msra.mxu0 %v943
  %1290 = vmatpush.bf16.msra.mxu0 %v942
  %1291 = vmatpush.bf16.msra.mxu0 %v941
  %1292 = vmatpush.bf16.msra.mxu0 %v940
  %1293 = vmatpush.bf16.msra.mxu0 %v939
  %1294 = vmatpush.bf16.msra.mxu0 %v938
  %1295 = vmatmul.bf16.gmra.mxu0 %v471
  %v1296 = vpop.f32.mrf.mxu0
  %v1297 = vadd.f32 %v1248, %v1296
  %v1298 = vpop.f32.mrf.mxu0
  %v1299 = vadd.f32 %v1250, %v1298
  %1300 = vmatmul.bf16.gmra.mxu0 %v480
  %v1301 = vpop.f32.mrf.mxu0
  %v1302 = vadd.f32 %v1253, %v1301
  %v1303 = vpop.f32.mrf.mxu0
  %v1304 = vadd.f32 %v1255, %v1303
  %1305 = vmatmul.bf16.gmra.mxu0 %v489
  %v1306 = vpop.f32.mrf.mxu0
  %v1307 = vadd.f32 %v1258, %v1306
  %v1308 = vpop.f32.mrf.mxu0
  %v1309 = vadd.f32 %v1260, %v1308
  %1310 = vmatmul.bf16.gmra.mxu0 %v498
  %v1311 = vpop.f32.mrf.mxu0
  %v1312 = vadd.f32 %v1263, %v1311
  %v1313 = vpop.f32.mrf.mxu0
  %v1314 = vadd.f32 %v1265, %v1313
  %1315 = vmatmul.bf16.gmra.mxu0 %v507
  %v1316 = vpop.f32.mrf.mxu0
  %v1317 = vadd.f32 %v1268, %v1316
  %v1318 = vpop.f32.mrf.mxu0
  %v1319 = vadd.f32 %v1270, %v1318
  %1320 = vmatmul.bf16.gmra.mxu0 %v516
  %v1321 = vpop.f32.mrf.mxu0
  %v1322 = vadd.f32 %v1273, %v1321
  %v1323 = vpop.f32.mrf.mxu0
  %v1324 = vadd.f32 %v1275, %v1323
  %1325 = vmatmul.bf16.gmra.mxu0 %v525
  %v1326 = vpop.f32.mrf.mxu0
  %v1327 = vadd.f32 %v1278, %v1326
  %v1328 = vpop.f32.mrf.mxu0
  %v1329 = vadd.f32 %v1280, %v1328
  %1330 = vmatmul.bf16.gmra.mxu0 %v534
  %v1331 = vpop.f32.mrf.mxu0
  %v1332 = vadd.f32 %v1283, %v1331
  %v1333 = vpop.f32.mrf.mxu0
  %v1334 = vadd.f32 %v1285, %v1333
  %1335 = vdwg.mxu0
  %1336 = vmatpush.bf16.msra.mxu0 %v953
  %1337 = vmatpush.bf16.msra.mxu0 %v952
  %1338 = vmatpush.bf16.msra.mxu0 %v951
  %1339 = vmatpush.bf16.msra.mxu0 %v950
  %1340 = vmatpush.bf16.msra.mxu0 %v949
  %1341 = vmatpush.bf16.msra.mxu0 %v948
  %1342 = vmatpush.bf16.msra.mxu0 %v947
  %1343 = vmatpush.bf16.msra.mxu0 %v946
  %1344 = vmatmul.bf16.gmra.mxu0 %v472
  %v1345 = vpop.f32.mrf.mxu0
  %v1346 = vadd.f32 %v1297, %v1345
  %v1347 = vpop.f32.mrf.mxu0
  %v1348 = vadd.f32 %v1299, %v1347
  %1349 = vmatmul.bf16.gmra.mxu0 %v481
  %v1350 = vpop.f32.mrf.mxu0
  %v1351 = vadd.f32 %v1302, %v1350
  %v1352 = vpop.f32.mrf.mxu0
  %v1353 = vadd.f32 %v1304, %v1352
  %1354 = vmatmul.bf16.gmra.mxu0 %v490
  %v1355 = vpop.f32.mrf.mxu0
  %v1356 = vadd.f32 %v1307, %v1355
  %v1357 = vpop.f32.mrf.mxu0
  %v1358 = vadd.f32 %v1309, %v1357
  %1359 = vmatmul.bf16.gmra.mxu0 %v499
  %v1360 = vpop.f32.mrf.mxu0
  %v1361 = vadd.f32 %v1312, %v1360
  %v1362 = vpop.f32.mrf.mxu0
  %v1363 = vadd.f32 %v1314, %v1362
  %1364 = vmatmul.bf16.gmra.mxu0 %v508
  %v1365 = vpop.f32.mrf.mxu0
  %v1366 = vadd.f32 %v1317, %v1365
  %v1367 = vpop.f32.mrf.mxu0
  %v1368 = vadd.f32 %v1319, %v1367
  %1369 = vmatmul.bf16.gmra.mxu0 %v517
  %v1370 = vpop.f32.mrf.mxu0
  %v1371 = vadd.f32 %v1322, %v1370
  %v1372 = vpop.f32.mrf.mxu0
  %v1373 = vadd.f32 %v1324, %v1372
  %1374 = vmatmul.bf16.gmra.mxu0 %v526
  %v1375 = vpop.f32.mrf.mxu0
  %v1376 = vadd.f32 %v1327, %v1375
  %v1377 = vpop.f32.mrf.mxu0
  %v1378 = vadd.f32 %v1329, %v1377
  %1379 = vmatmul.bf16.gmra.mxu0 %v535
  %v1380 = vpop.f32.mrf.mxu0
  %v1381 = vadd.f32 %v1332, %v1380
  %v1382 = vpop.f32.mrf.mxu0
  %v1383 = vadd.f32 %v1334, %v1382
  %1384 = vdwg.mxu0
  %1385 = vmatpush.bf16.msra.mxu0 %v961
  %1386 = vmatpush.bf16.msra.mxu0 %v960
  %1387 = vmatpush.bf16.msra.mxu0 %v959
  %1388 = vmatpush.bf16.msra.mxu0 %v958
  %1389 = vmatpush.bf16.msra.mxu0 %v957
  %1390 = vmatpush.bf16.msra.mxu0 %v956
  %1391 = vmatpush.bf16.msra.mxu0 %v955
  %1392 = vmatpush.bf16.msra.mxu0 %v954
  %1393 = vmatmul.bf16.gmra.mxu0 %v473
  %v1394 = vpop.f32.mrf.mxu0
  %v1395 = vadd.f32 %v1346, %v1394
  %v1396 = vpop.f32.mrf.mxu0
  %v1397 = vadd.f32 %v1348, %v1396
  %1398 = vmatmul.bf16.gmra.mxu0 %v482
  %v1399 = vpop.f32.mrf.mxu0
  %v1400 = vadd.f32 %v1351, %v1399
  %v1401 = vpop.f32.mrf.mxu0
  %v1402 = vadd.f32 %v1353, %v1401
  %1403 = vmatmul.bf16.gmra.mxu0 %v491
  %v1404 = vpop.f32.mrf.mxu0
  %v1405 = vadd.f32 %v1356, %v1404
  %v1406 = vpop.f32.mrf.mxu0
  %v1407 = vadd.f32 %v1358, %v1406
  %1408 = vmatmul.bf16.gmra.mxu0 %v500
  %v1409 = vpop.f32.mrf.mxu0
  %v1410 = vadd.f32 %v1361, %v1409
  %v1411 = vpop.f32.mrf.mxu0
  %v1412 = vadd.f32 %v1363, %v1411
  %1413 = vmatmul.bf16.gmra.mxu0 %v509
  %v1414 = vpop.f32.mrf.mxu0
  %v1415 = vadd.f32 %v1366, %v1414
  %v1416 = vpop.f32.mrf.mxu0
  %v1417 = vadd.f32 %v1368, %v1416
  %1418 = vmatmul.bf16.gmra.mxu0 %v518
  %v1419 = vpop.f32.mrf.mxu0
  %v1420 = vadd.f32 %v1371, %v1419
  %v1421 = vpop.f32.mrf.mxu0
  %v1422 = vadd.f32 %v1373, %v1421
  %1423 = vmatmul.bf16.gmra.mxu0 %v527
  %v1424 = vpop.f32.mrf.mxu0
  %v1425 = vadd.f32 %v1376, %v1424
  %v1426 = vpop.f32.mrf.mxu0
  %v1427 = vadd.f32 %v1378, %v1426
  %1428 = vmatmul.bf16.gmra.mxu0 %v536
  %v1429 = vpop.f32.mrf.mxu0
  %v1430 = vadd.f32 %v1381, %v1429
  %v1431 = vpop.f32.mrf.mxu0
  %v1432 = vadd.f32 %v1383, %v1431
  %1433 = vdwg.mxu0
  %1434 = vmatpush.bf16.msra.mxu0 %v969
  %1435 = vmatpush.bf16.msra.mxu0 %v968
  %1436 = vmatpush.bf16.msra.mxu0 %v967
  %1437 = vmatpush.bf16.msra.mxu0 %v966
  %1438 = vmatpush.bf16.msra.mxu0 %v965
  %1439 = vmatpush.bf16.msra.mxu0 %v964
  %1440 = vmatpush.bf16.msra.mxu0 %v963
  %1441 = vmatpush.bf16.msra.mxu0 %v962
  %1442 = vmatmul.bf16.gmra.mxu0 %v474
  %v1443 = vpop.f32.mrf.mxu0
  %v1444 = vadd.f32 %v1395, %v1443
  %v1445 = vpop.f32.mrf.mxu0
  %v1446 = vadd.f32 %v1397, %v1445
  %1447 = vmatmul.bf16.gmra.mxu0 %v483
  %v1448 = vpop.f32.mrf.mxu0
  %v1449 = vadd.f32 %v1400, %v1448
  %v1450 = vpop.f32.mrf.mxu0
  %v1451 = vadd.f32 %v1402, %v1450
  %1452 = vmatmul.bf16.gmra.mxu0 %v492
  %v1453 = vpop.f32.mrf.mxu0
  %v1454 = vadd.f32 %v1405, %v1453
  %v1455 = vpop.f32.mrf.mxu0
  %v1456 = vadd.f32 %v1407, %v1455
  %1457 = vmatmul.bf16.gmra.mxu0 %v501
  %v1458 = vpop.f32.mrf.mxu0
  %v1459 = vadd.f32 %v1410, %v1458
  %v1460 = vpop.f32.mrf.mxu0
  %v1461 = vadd.f32 %v1412, %v1460
  %1462 = vmatmul.bf16.gmra.mxu0 %v510
  %v1463 = vpop.f32.mrf.mxu0
  %v1464 = vadd.f32 %v1415, %v1463
  %v1465 = vpop.f32.mrf.mxu0
  %v1466 = vadd.f32 %v1417, %v1465
  %1467 = vmatmul.bf16.gmra.mxu0 %v519
  %v1468 = vpop.f32.mrf.mxu0
  %v1469 = vadd.f32 %v1420, %v1468
  %v1470 = vpop.f32.mrf.mxu0
  %v1471 = vadd.f32 %v1422, %v1470
  %1472 = vmatmul.bf16.gmra.mxu0 %v528
  %v1473 = vpop.f32.mrf.mxu0
  %v1474 = vadd.f32 %v1425, %v1473
  %v1475 = vpop.f32.mrf.mxu0
  %v1476 = vadd.f32 %v1427, %v1475
  %1477 = vmatmul.bf16.gmra.mxu0 %v537
  %v1478 = vpop.f32.mrf.mxu0
  %v1479 = vadd.f32 %v1430, %v1478
  %v1480 = vpop.f32.mrf.mxu0
  %v1481 = vadd.f32 %v1432, %v1480
  %1482 = vdwg.mxu0
  %v1483 = vmax.f32 %v1444, 0.0
  %v1484 = vmax.f32 %v1446, 0.0
  %v1485 = vmax.f32 %v1449, 0.0
  %v1486 = vmax.f32 %v1451, 0.0
  %v1487 = vmax.f32 %v1454, 0.0
  %v1488 = vmax.f32 %v1456, 0.0
  %v1489 = vmax.f32 %v1459, 0.0
  %v1490 = vmax.f32 %v1461, 0.0
  %v1491 = vmax.f32 %v1464, 0.0
  %v1492 = vmax.f32 %v1466, 0.0
  %v1493 = vmax.f32 %v1469, 0.0
  %v1494 = vmax.f32 %v1471, 0.0
  %v1495 = vmax.f32 %v1474, 0.0
  %v1496 = vmax.f32 %v1476, 0.0
  %v1497 = vmax.f32 %v1479, 0.0
  %v1498 = vmax.f32 %v1481, 0.0
  %v1499 = vpack.c.bf16 %v1483, %v1483
  %v1500 = vpack.c.bf16 %v1484, %v1484
  %v1501 = vpack.c.bf16 %v1485, %v1485
  %v1502 = vpack.c.bf16 %v1486, %v1486
  %v1503 = vpack.c.bf16 %v1487, %v1487
  %v1504 = vpack.c.bf16 %v1488, %v1488
  %v1505 = vpack.c.bf16 %v1489, %v1489
  %v1506 = vpack.c.bf16 %v1490, %v1490
  %v1507 = vpack.c.bf16 %v1491, %v1491
  %v1508 = vpack.c.bf16 %v1492, %v1492
  %v1509 = vpack.c.bf16 %v1493, %v1493
  %v1510 = vpack.c.bf16 %v1494, %v1494
  %v1511 = vpack.c.bf16 %v1495, %v1495
  %v1512 = vpack.c.bf16 %v1496, %v1496
  %v1513 = vpack.c.bf16 %v1497, %v1497
  %v1514 = vpack.c.bf16 %v1498, %v1498
  %1515 = vst [vmem:[%s3] sm:$0xf] %v1499
  %1516 = vst [vmem:[%s3 + $0x4] sm:$0xf] %v1500
  %1517 = vst [vmem:[%s3 + $0x8] sm:$0xf] %v1501
  %1518 = vst [vmem:[%s3 + $0xc] sm:$0xf] %v1502
  %1519 = vst [vmem:[%s3 + $0x10] sm:$0xf] %v1503
  %1520 = vst [vmem:[%s3 + $0x14] sm:$0xf] %v1504
  %1521 = vst [vmem:[%s3 + $0x18] sm:$0xf] %v1505
  %1522 = vst [vmem:[%s3 + $0x1c] sm:$0xf] %v1506
  %1523 = vst [vmem:[%s3 + $0x20] sm:$0xf] %v1507
  %1524 = vst [vmem:[%s3 + $0x24] sm:$0xf] %v1508
  %1525 = vst [vmem:[%s3 + $0x28] sm:$0xf] %v1509
  %1526 = vst [vmem:[%s3 + $0x2c] sm:$0xf] %v1510
  %1527 = vst [vmem:[%s3 + $0x30] sm:$0xf] %v1511
  %1528 = vst [vmem:[%s3 + $0x34] sm:$0xf] %v1512
  %1529 = vst [vmem:[%s3 + $0x38] sm:$0xf] %v1513
  %1530 = vst [vmem:[%s3 + $0x3c] sm:$0xf] %v1514
  // Predicated region
  $region14: #{encoder_forward.15} parent=0 // pred_check
    _
  $region15: #{encoder_forward.15} parent=0 // pred_check_branch
    %1532 = sbr.rel (0) target = $region17
  $region16: #{encoder_forward.15} parent=0 // pred_region
    _
  $region17: #{encoder_forward.15} parent=0 // pred_fallthru
    _
  // Predicated region
  $region18: #{encoder_forward.15} parent=0 // pred_check
    _
  $region19: #{encoder_forward.15} parent=0 // pred_check_branch
    %1534 = sbr.rel (0) target = $region21
  $region20: #{encoder_forward.15} parent=0 // pred_region
    _
  $region21: #{encoder_forward.15} parent=0 // pred_fallthru
    _

// kernel: encoder_forward.18
$region0: #{encoder_forward.18}
  #allocation0 [shape = 'u32[]', space=smem, size = 0x4, offset = 0x4, fixed_abs, tag = 'smem constant byte address 0x4 - core index']
  #allocation1 [shape = 'u32[72,128]{1,0:T(1,128)}', space=vmem, size = 0x9000, scoped, tag = 'internal scratch']
  %s0 = inlined_call_operand.vmem [shape: bf16[128,1152], index: 0, kind: input, shape index: {}]
  %s1 = inlined_call_operand.vmem [shape: bf16[1152,128], index: 1, kind: input, shape index: {}]
  %s2 = inlined_call_operand.vmem [shape: f32[1,128], index: 2, kind: input, shape index: {}]
  %s3 = inlined_call_operand.vmem [shape: bf16[128,128], index: 3, kind: input, shape index: {}]
  %s4 = inlined_call_operand.vmem [shape: bf16[128,128], index: 4, kind: output, shape index: {}]
  %s5 = sld [smem:[#allocation0]]
  $region26: #{encoder_forward.18} parent=0
    _
  %s7 = ssub.s32 1, %s5
  %s8 = scalar_select 0, %s7, %s5
  // Predicated region
  $region2: #{encoder_forward.18} parent=0 // pred_check
    _
  $region3: #{encoder_forward.18} parent=0 // pred_check_branch
    %10 = sbr.rel (0) target = $region5
  $region4: #{encoder_forward.18} parent=0 // pred_region
    _
  $region5: #{encoder_forward.18} parent=0 // pred_fallthru
    _
  // Predicated region
  $region6: #{encoder_forward.18} parent=0 // pred_check
    _
  $region7: #{encoder_forward.18} parent=0 // pred_check_branch
    %12 = sbr.rel (0) target = $region9
  $region8: #{encoder_forward.18} parent=0 // pred_region
    _
  $region9: #{encoder_forward.18} parent=0 // pred_fallthru
    _
  // Predicated region
  $region10: #{encoder_forward.18} parent=0 // pred_check
    _
  $region11: #{encoder_forward.18} parent=0 // pred_check_branch
    %14 = sbr.rel (0) target = $region13
  $region12: #{encoder_forward.18} parent=0 // pred_region
    _
  $region13: #{encoder_forward.18} parent=0 // pred_fallthru
    _
  // Predicated region
  $region14: #{encoder_forward.18} parent=0 // pred_check
    _
  $region15: #{encoder_forward.18} parent=0 // pred_check_branch
    %16 = sbr.rel (0) target = $region17
  $region16: #{encoder_forward.18} parent=0 // pred_region
    _
  $region17: #{encoder_forward.18} parent=0 // pred_fallthru
    _
  %v17 = vld [vmem:[%s0] sm:$0xff]
  %v18 = vld [vmem:[%s0 + $0x8] sm:$0xff]
  %v19 = vld [vmem:[%s0 + $0x10] sm:$0xff]
  %v20 = vld [vmem:[%s0 + $0x18] sm:$0xff]
  %v21 = vld [vmem:[%s0 + $0x20] sm:$0xf]
  %v22 = vld [vmem:[%s0 + $0x24] sm:$0xff]
  %v23 = vld [vmem:[%s0 + $0x2c] sm:$0xff]
  %v24 = vld [vmem:[%s0 + $0x34] sm:$0xff]
  %v25 = vld [vmem:[%s0 + $0x3c] sm:$0xff]
  %v26 = vld [vmem:[%s0 + $0x44] sm:$0xf]
  %v27 = vld [vmem:[%s0 + $0x48] sm:$0xff]
  %v28 = vld [vmem:[%s0 + $0x50] sm:$0xff]
  %v29 = vld [vmem:[%s0 + $0x58] sm:$0xff]
  %v30 = vld [vmem:[%s0 + $0x60] sm:$0xff]
  %v31 = vld [vmem:[%s0 + $0x68] sm:$0xf]
  %v32 = vld [vmem:[%s0 + $0x6c] sm:$0xff]
  %v33 = vld [vmem:[%s0 + $0x74] sm:$0xff]
  %v34 = vld [vmem:[%s0 + $0x7c] sm:$0xff]
  %v35 = vld [vmem:[%s0 + $0x84] sm:$0xff]
  %v36 = vld [vmem:[%s0 + $0x8c] sm:$0xf]
  %v37 = vld [vmem:[%s0 + $0x90] sm:$0xff]
  %v38 = vld [vmem:[%s0 + $0x98] sm:$0xff]
  %v39 = vld [vmem:[%s0 + $0xa0] sm:$0xff]
  %v40 = vld [vmem:[%s0 + $0xa8] sm:$0xff]
  %v41 = vld [vmem:[%s0 + $0xb0] sm:$0xf]
  %v42 = vld [vmem:[%s0 + $0xb4] sm:$0xff]
  %v43 = vld [vmem:[%s0 + $0xbc] sm:$0xff]
  %v44 = vld [vmem:[%s0 + $0xc4] sm:$0xff]
  %v45 = vld [vmem:[%s0 + $0xcc] sm:$0xff]
  %v46 = vld [vmem:[%s0 + $0xd4] sm:$0xf]
  %v47 = vld [vmem:[%s0 + $0xd8] sm:$0xff]
  %v48 = vld [vmem:[%s0 + $0xe0] sm:$0xff]
  %v49 = vld [vmem:[%s0 + $0xe8] sm:$0xff]
  %v50 = vld [vmem:[%s0 + $0xf0] sm:$0xff]
  %v51 = vld [vmem:[%s0 + $0xf8] sm:$0xf]
  %v52 = vld [vmem:[%s0 + $0xfc] sm:$0xff]
  %v53 = vld [vmem:[%s0 + $0x104] sm:$0xff]
  %v54 = vld [vmem:[%s0 + $0x10c] sm:$0xff]
  %v55 = vld [vmem:[%s0 + $0x114] sm:$0xff]
  %v56 = vld [vmem:[%s0 + $0x11c] sm:$0xf]
  %v57 = vld [vmem:[%s0 + $0x120] sm:$0xff]
  %v58 = vld [vmem:[%s0 + $0x128] sm:$0xff]
  %v59 = vld [vmem:[%s0 + $0x130] sm:$0xff]
  %v60 = vld [vmem:[%s0 + $0x138] sm:$0xff]
  %v61 = vld [vmem:[%s0 + $0x140] sm:$0xf]
  %v62 = vld [vmem:[%s0 + $0x144] sm:$0xff]
  %v63 = vld [vmem:[%s0 + $0x14c] sm:$0xff]
  %v64 = vld [vmem:[%s0 + $0x154] sm:$0xff]
  %v65 = vld [vmem:[%s0 + $0x15c] sm:$0xff]
  %v66 = vld [vmem:[%s0 + $0x164] sm:$0xf]
  %v67 = vld [vmem:[%s0 + $0x168] sm:$0xff]
  %v68 = vld [vmem:[%s0 + $0x170] sm:$0xff]
  %v69 = vld [vmem:[%s0 + $0x178] sm:$0xff]
  %v70 = vld [vmem:[%s0 + $0x180] sm:$0xff]
  %v71 = vld [vmem:[%s0 + $0x188] sm:$0xf]
  %v72 = vld [vmem:[%s0 + $0x18c] sm:$0xff]
  %v73 = vld [vmem:[%s0 + $0x194] sm:$0xff]
  %v74 = vld [vmem:[%s0 + $0x19c] sm:$0xff]
  %v75 = vld [vmem:[%s0 + $0x1a4] sm:$0xff]
  %v76 = vld [vmem:[%s0 + $0x1ac] sm:$0xf]
  %v77 = vld [vmem:[%s0 + $0x1b0] sm:$0xff]
  %v78 = vld [vmem:[%s0 + $0x1b8] sm:$0xff]
  %v79 = vld [vmem:[%s0 + $0x1c0] sm:$0xff]
  %v80 = vld [vmem:[%s0 + $0x1c8] sm:$0xff]
  %v81 = vld [vmem:[%s0 + $0x1d0] sm:$0xf]
  %v82 = vld [vmem:[%s0 + $0x1d4] sm:$0xff]
  %v83 = vld [vmem:[%s0 + $0x1dc] sm:$0xff]
  %v84 = vld [vmem:[%s0 + $0x1e4] sm:$0xff]
  %v85 = vld [vmem:[%s0 + $0x1ec] sm:$0xff]
  %v86 = vld [vmem:[%s0 + $0x1f4] sm:$0xf]
  %v87 = vld [vmem:[%s0 + $0x1f8] sm:$0xff]
  %v88 = vld [vmem:[%s0 + $0x200] sm:$0xff]
  %v89 = vld [vmem:[%s0 + $0x208] sm:$0xff]
  %v90 = vld [vmem:[%s0 + $0x210] sm:$0xff]
  %v91 = vld [vmem:[%s0 + $0x218] sm:$0xf]
  %v92 = vld [vmem:[%s0 + $0x21c] sm:$0xff]
  %v93 = vld [vmem:[%s0 + $0x224] sm:$0xff]
  %v94 = vld [vmem:[%s0 + $0x22c] sm:$0xff]
  %v95 = vld [vmem:[%s0 + $0x234] sm:$0xff]
  %v96 = vld [vmem:[%s0 + $0x23c] sm:$0xf]
  %v97 = vld [vmem:[%s1] sm:$0xf]
  %v98 = vld [vmem:[%s1 + $0x4] sm:$0xf]
  %v99 = vld [vmem:[%s1 + $0x8] sm:$0xf]
  %v100 = vld [vmem:[%s1 + $0xc] sm:$0xf]
  %v101 = vld [vmem:[%s1 + $0x10] sm:$0xf]
  %v102 = vld [vmem:[%s1 + $0x14] sm:$0xf]
  %v103 = vld [vmem:[%s1 + $0x18] sm:$0xf]
  %v104 = vld [vmem:[%s1 + $0x1c] sm:$0xf]
  %v105 = vld [vmem:[%s1 + $0x20] sm:$0xf]
  %v106 = vld [vmem:[%s1 + $0x24] sm:$0xf]
  %v107 = vld [vmem:[%s1 + $0x28] sm:$0xf]
  %v108 = vld [vmem:[%s1 + $0x2c] sm:$0xf]
  %v109 = vld [vmem:[%s1 + $0x30] sm:$0xf]
  %v110 = vld [vmem:[%s1 + $0x34] sm:$0xf]
  %v111 = vld [vmem:[%s1 + $0x38] sm:$0xf]
  %v112 = vld [vmem:[%s1 + $0x3c] sm:$0xf]
  %v113 = vld [vmem:[%s1 + $0x40] sm:$0xf]
  %v114 = vld [vmem:[%s1 + $0x44] sm:$0xf]
  %v115 = vld [vmem:[%s1 + $0x48] sm:$0xf]
  %v116 = vld [vmem:[%s1 + $0x4c] sm:$0xf]
  %v117 = vld [vmem:[%s1 + $0x50] sm:$0xf]
  %v118 = vld [vmem:[%s1 + $0x54] sm:$0xf]
  %v119 = vld [vmem:[%s1 + $0x58] sm:$0xf]
  %v120 = vld [vmem:[%s1 + $0x5c] sm:$0xf]
  %v121 = vld [vmem:[%s1 + $0x60] sm:$0xf]
  %v122 = vld [vmem:[%s1 + $0x64] sm:$0xf]
  %v123 = vld [vmem:[%s1 + $0x68] sm:$0xf]
  %v124 = vld [vmem:[%s1 + $0x6c] sm:$0xf]
  %v125 = vld [vmem:[%s1 + $0x70] sm:$0xf]
  %v126 = vld [vmem:[%s1 + $0x74] sm:$0xf]
  %v127 = vld [vmem:[%s1 + $0x78] sm:$0xf]
  %v128 = vld [vmem:[%s1 + $0x7c] sm:$0xf]
  %v129 = vld [vmem:[%s1 + $0x80] sm:$0xf]
  %v130 = vld [vmem:[%s1 + $0x84] sm:$0xf]
  %v131 = vld [vmem:[%s1 + $0x88] sm:$0xf]
  %v132 = vld [vmem:[%s1 + $0x8c] sm:$0xf]
  %v133 = vld [vmem:[%s1 + $0x90] sm:$0xf]
  %v134 = vld [vmem:[%s1 + $0x94] sm:$0xf]
  %v135 = vld [vmem:[%s1 + $0x98] sm:$0xf]
  %v136 = vld [vmem:[%s1 + $0x9c] sm:$0xf]
  %v137 = vld [vmem:[%s1 + $0xa0] sm:$0xf]
  %v138 = vld [vmem:[%s1 + $0xa4] sm:$0xf]
  %v139 = vld [vmem:[%s1 + $0xa8] sm:$0xf]
  %v140 = vld [vmem:[%s1 + $0xac] sm:$0xf]
  %v141 = vld [vmem:[%s1 + $0xb0] sm:$0xf]
  %v142 = vld [vmem:[%s1 + $0xb4] sm:$0xf]
  %v143 = vld [vmem:[%s1 + $0xb8] sm:$0xf]
  %v144 = vld [vmem:[%s1 + $0xbc] sm:$0xf]
  %v145 = vld [vmem:[%s1 + $0xc0] sm:$0xf]
  %v146 = vld [vmem:[%s1 + $0xc4] sm:$0xf]
  %v147 = vld [vmem:[%s1 + $0xc8] sm:$0xf]
  %v148 = vld [vmem:[%s1 + $0xcc] sm:$0xf]
  %v149 = vld [vmem:[%s1 + $0xd0] sm:$0xf]
  %v150 = vld [vmem:[%s1 + $0xd4] sm:$0xf]
  %v151 = vld [vmem:[%s1 + $0xd8] sm:$0xf]
  %v152 = vld [vmem:[%s1 + $0xdc] sm:$0xf]
  %v153 = vld [vmem:[%s1 + $0xe0] sm:$0xf]
  %v154 = vld [vmem:[%s1 + $0xe4] sm:$0xf]
  %v155 = vld [vmem:[%s1 + $0xe8] sm:$0xf]
  %v156 = vld [vmem:[%s1 + $0xec] sm:$0xf]
  %v157 = vld [vmem:[%s1 + $0xf0] sm:$0xf]
  %v158 = vld [vmem:[%s1 + $0xf4] sm:$0xf]
  %v159 = vld [vmem:[%s1 + $0xf8] sm:$0xf]
  %v160 = vld [vmem:[%s1 + $0xfc] sm:$0xf]
  %v161 = vld [vmem:[%s1 + $0x100] sm:$0xf]
  %v162 = vld [vmem:[%s1 + $0x104] sm:$0xf]
  %v163 = vld [vmem:[%s1 + $0x108] sm:$0xf]
  %v164 = vld [vmem:[%s1 + $0x10c] sm:$0xf]
  %v165 = vld [vmem:[%s1 + $0x110] sm:$0xf]
  %v166 = vld [vmem:[%s1 + $0x114] sm:$0xf]
  %v167 = vld [vmem:[%s1 + $0x118] sm:$0xf]
  %v168 = vld [vmem:[%s1 + $0x11c] sm:$0xf]
  %v169 = vld [vmem:[%s1 + $0x120] sm:$0xf]
  %v170 = vld [vmem:[%s1 + $0x124] sm:$0xf]
  %v171 = vld [vmem:[%s1 + $0x128] sm:$0xf]
  %v172 = vld [vmem:[%s1 + $0x12c] sm:$0xf]
  %v173 = vld [vmem:[%s1 + $0x130] sm:$0xf]
  %v174 = vld [vmem:[%s1 + $0x134] sm:$0xf]
  %v175 = vld [vmem:[%s1 + $0x138] sm:$0xf]
  %v176 = vld [vmem:[%s1 + $0x13c] sm:$0xf]
  %v177 = vld [vmem:[%s1 + $0x140] sm:$0xf]
  %v178 = vld [vmem:[%s1 + $0x144] sm:$0xf]
  %v179 = vld [vmem:[%s1 + $0x148] sm:$0xf]
  %v180 = vld [vmem:[%s1 + $0x14c] sm:$0xf]
  %v181 = vld [vmem:[%s1 + $0x150] sm:$0xf]
  %v182 = vld [vmem:[%s1 + $0x154] sm:$0xf]
  %v183 = vld [vmem:[%s1 + $0x158] sm:$0xf]
  %v184 = vld [vmem:[%s1 + $0x15c] sm:$0xf]
  %v185 = vld [vmem:[%s1 + $0x160] sm:$0xf]
  %v186 = vld [vmem:[%s1 + $0x164] sm:$0xf]
  %v187 = vld [vmem:[%s1 + $0x168] sm:$0xf]
  %v188 = vld [vmem:[%s1 + $0x16c] sm:$0xf]
  %v189 = vld [vmem:[%s1 + $0x170] sm:$0xf]
  %v190 = vld [vmem:[%s1 + $0x174] sm:$0xf]
  %v191 = vld [vmem:[%s1 + $0x178] sm:$0xf]
  %v192 = vld [vmem:[%s1 + $0x17c] sm:$0xf]
  %v193 = vld [vmem:[%s1 + $0x180] sm:$0xf]
  %v194 = vld [vmem:[%s1 + $0x184] sm:$0xf]
  %v195 = vld [vmem:[%s1 + $0x188] sm:$0xf]
  %v196 = vld [vmem:[%s1 + $0x18c] sm:$0xf]
  %v197 = vld [vmem:[%s1 + $0x190] sm:$0xf]
  %v198 = vld [vmem:[%s1 + $0x194] sm:$0xf]
  %v199 = vld [vmem:[%s1 + $0x198] sm:$0xf]
  %v200 = vld [vmem:[%s1 + $0x19c] sm:$0xf]
  %v201 = vld [vmem:[%s1 + $0x1a0] sm:$0xf]
  %v202 = vld [vmem:[%s1 + $0x1a4] sm:$0xf]
  %v203 = vld [vmem:[%s1 + $0x1a8] sm:$0xf]
  %v204 = vld [vmem:[%s1 + $0x1ac] sm:$0xf]
  %v205 = vld [vmem:[%s1 + $0x1b0] sm:$0xf]
  %v206 = vld [vmem:[%s1 + $0x1b4] sm:$0xf]
  %v207 = vld [vmem:[%s1 + $0x1b8] sm:$0xf]
  %v208 = vld [vmem:[%s1 + $0x1bc] sm:$0xf]
  %v209 = vld [vmem:[%s1 + $0x1c0] sm:$0xf]
  %v210 = vld [vmem:[%s1 + $0x1c4] sm:$0xf]
  %v211 = vld [vmem:[%s1 + $0x1c8] sm:$0xf]
  %v212 = vld [vmem:[%s1 + $0x1cc] sm:$0xf]
  %v213 = vld [vmem:[%s1 + $0x1d0] sm:$0xf]
  %v214 = vld [vmem:[%s1 + $0x1d4] sm:$0xf]
  %v215 = vld [vmem:[%s1 + $0x1d8] sm:$0xf]
  %v216 = vld [vmem:[%s1 + $0x1dc] sm:$0xf]
  %v217 = vld [vmem:[%s1 + $0x1e0] sm:$0xf]
  %v218 = vld [vmem:[%s1 + $0x1e4] sm:$0xf]
  %v219 = vld [vmem:[%s1 + $0x1e8] sm:$0xf]
  %v220 = vld [vmem:[%s1 + $0x1ec] sm:$0xf]
  %v221 = vld [vmem:[%s1 + $0x1f0] sm:$0xf]
  %v222 = vld [vmem:[%s1 + $0x1f4] sm:$0xf]
  %v223 = vld [vmem:[%s1 + $0x1f8] sm:$0xf]
  %v224 = vld [vmem:[%s1 + $0x1fc] sm:$0xf]
  %v225 = vld [vmem:[%s1 + $0x200] sm:$0xf]
  %v226 = vld [vmem:[%s1 + $0x204] sm:$0xf]
  %v227 = vld [vmem:[%s1 + $0x208] sm:$0xf]
  %v228 = vld [vmem:[%s1 + $0x20c] sm:$0xf]
  %v229 = vld [vmem:[%s1 + $0x210] sm:$0xf]
  %v230 = vld [vmem:[%s1 + $0x214] sm:$0xf]
  %v231 = vld [vmem:[%s1 + $0x218] sm:$0xf]
  %v232 = vld [vmem:[%s1 + $0x21c] sm:$0xf]
  %v233 = vld [vmem:[%s1 + $0x220] sm:$0xf]
  %v234 = vld [vmem:[%s1 + $0x224] sm:$0xf]
  %v235 = vld [vmem:[%s1 + $0x228] sm:$0xf]
  %v236 = vld [vmem:[%s1 + $0x22c] sm:$0xf]
  %v237 = vld [vmem:[%s1 + $0x230] sm:$0xf]
  %v238 = vld [vmem:[%s1 + $0x234] sm:$0xf]
  %v239 = vld [vmem:[%s1 + $0x238] sm:$0xf]
  %v240 = vld [vmem:[%s1 + $0x23c] sm:$0xf]
  %v241 = vld [vmem:[%s2] sm:$0x1]
  %v243 = vperm.slane %v241, 0
  %v325 = vunpack.c.l.b16 %v17
  %v326 = vunpack.c.h.b16 %v17
  %v327 = vunpack.c.l.b16 %v18
  %v328 = vunpack.c.h.b16 %v18
  %v329 = vunpack.c.l.b16 %v19
  %v330 = vunpack.c.h.b16 %v19
  %v331 = vunpack.c.l.b16 %v20
  %v332 = vunpack.c.h.b16 %v20
  %v333 = vunpack.c.l.b16 %v21
  %v334 = vunpack.c.l.b16 %v22
  %v335 = vunpack.c.h.b16 %v22
  %v336 = vunpack.c.l.b16 %v23
  %v337 = vunpack.c.h.b16 %v23
  %v338 = vunpack.c.l.b16 %v24
  %v339 = vunpack.c.h.b16 %v24
  %v340 = vunpack.c.l.b16 %v25
  %v341 = vunpack.c.h.b16 %v25
  %v342 = vunpack.c.l.b16 %v26
  %v343 = vunpack.c.l.b16 %v27
  %v344 = vunpack.c.h.b16 %v27
  %v345 = vunpack.c.l.b16 %v28
  %v346 = vunpack.c.h.b16 %v28
  %v347 = vunpack.c.l.b16 %v29
  %v348 = vunpack.c.h.b16 %v29
  %v349 = vunpack.c.l.b16 %v30
  %v350 = vunpack.c.h.b16 %v30
  %v351 = vunpack.c.l.b16 %v31
  %v352 = vunpack.c.l.b16 %v32
  %v353 = vunpack.c.h.b16 %v32
  %v354 = vunpack.c.l.b16 %v33
  %v355 = vunpack.c.h.b16 %v33
  %v356 = vunpack.c.l.b16 %v34
  %v357 = vunpack.c.h.b16 %v34
  %v358 = vunpack.c.l.b16 %v35
  %v359 = vunpack.c.h.b16 %v35
  %v360 = vunpack.c.l.b16 %v36
  %v361 = vunpack.c.l.b16 %v37
  %v362 = vunpack.c.h.b16 %v37
  %v363 = vunpack.c.l.b16 %v38
  %v364 = vunpack.c.h.b16 %v38
  %v365 = vunpack.c.l.b16 %v39
  %v366 = vunpack.c.h.b16 %v39
  %v367 = vunpack.c.l.b16 %v40
  %v368 = vunpack.c.h.b16 %v40
  %v369 = vunpack.c.l.b16 %v41
  %v370 = vunpack.c.l.b16 %v42
  %v371 = vunpack.c.h.b16 %v42
  %v372 = vunpack.c.l.b16 %v43
  %v373 = vunpack.c.h.b16 %v43
  %v374 = vunpack.c.l.b16 %v44
  %v375 = vunpack.c.h.b16 %v44
  %v376 = vunpack.c.l.b16 %v45
  %v377 = vunpack.c.h.b16 %v45
  %v378 = vunpack.c.l.b16 %v46
  %v379 = vunpack.c.l.b16 %v47
  %v380 = vunpack.c.h.b16 %v47
  %v381 = vunpack.c.l.b16 %v48
  %v382 = vunpack.c.h.b16 %v48
  %v383 = vunpack.c.l.b16 %v49
  %v384 = vunpack.c.h.b16 %v49
  %v385 = vunpack.c.l.b16 %v50
  %v386 = vunpack.c.h.b16 %v50
  %v387 = vunpack.c.l.b16 %v51
  %v388 = vunpack.c.l.b16 %v52
  %v389 = vunpack.c.h.b16 %v52
  %v390 = vunpack.c.l.b16 %v53
  %v391 = vunpack.c.h.b16 %v53
  %v392 = vunpack.c.l.b16 %v54
  %v393 = vunpack.c.h.b16 %v54
  %v394 = vunpack.c.l.b16 %v55
  %v395 = vunpack.c.h.b16 %v55
  %v396 = vunpack.c.l.b16 %v56
  %v397 = vunpack.c.l.b16 %v57
  %v398 = vunpack.c.h.b16 %v57
  %v399 = vunpack.c.l.b16 %v58
  %v400 = vunpack.c.h.b16 %v58
  %v401 = vunpack.c.l.b16 %v59
  %v402 = vunpack.c.h.b16 %v59
  %v403 = vunpack.c.l.b16 %v60
  %v404 = vunpack.c.h.b16 %v60
  %v405 = vunpack.c.l.b16 %v61
  %v406 = vunpack.c.l.b16 %v62
  %v407 = vunpack.c.h.b16 %v62
  %v408 = vunpack.c.l.b16 %v63
  %v409 = vunpack.c.h.b16 %v63
  %v410 = vunpack.c.l.b16 %v64
  %v411 = vunpack.c.h.b16 %v64
  %v412 = vunpack.c.l.b16 %v65
  %v413 = vunpack.c.h.b16 %v65
  %v414 = vunpack.c.l.b16 %v66
  %v415 = vunpack.c.l.b16 %v67
  %v416 = vunpack.c.h.b16 %v67
  %v417 = vunpack.c.l.b16 %v68
  %v418 = vunpack.c.h.b16 %v68
  %v419 = vunpack.c.l.b16 %v69
  %v420 = vunpack.c.h.b16 %v69
  %v421 = vunpack.c.l.b16 %v70
  %v422 = vunpack.c.h.b16 %v70
  %v423 = vunpack.c.l.b16 %v71
  %v424 = vunpack.c.l.b16 %v72
  %v425 = vunpack.c.h.b16 %v72
  %v426 = vunpack.c.l.b16 %v73
  %v427 = vunpack.c.h.b16 %v73
  %v428 = vunpack.c.l.b16 %v74
  %v429 = vunpack.c.h.b16 %v74
  %v430 = vunpack.c.l.b16 %v75
  %v431 = vunpack.c.h.b16 %v75
  %v432 = vunpack.c.l.b16 %v76
  %v433 = vunpack.c.l.b16 %v77
  %v434 = vunpack.c.h.b16 %v77
  %v435 = vunpack.c.l.b16 %v78
  %v436 = vunpack.c.h.b16 %v78
  %v437 = vunpack.c.l.b16 %v79
  %v438 = vunpack.c.h.b16 %v79
  %v439 = vunpack.c.l.b16 %v80
  %v440 = vunpack.c.h.b16 %v80
  %v441 = vunpack.c.l.b16 %v81
  %v442 = vunpack.c.l.b16 %v82
  %v443 = vunpack.c.h.b16 %v82
  %v444 = vunpack.c.l.b16 %v83
  %v445 = vunpack.c.h.b16 %v83
  %v446 = vunpack.c.l.b16 %v84
  %v447 = vunpack.c.h.b16 %v84
  %v448 = vunpack.c.l.b16 %v85
  %v449 = vunpack.c.h.b16 %v85
  %v450 = vunpack.c.l.b16 %v86
  %v451 = vunpack.c.l.b16 %v87
  %v452 = vunpack.c.h.b16 %v87
  %v453 = vunpack.c.l.b16 %v88
  %v454 = vunpack.c.h.b16 %v88
  %v455 = vunpack.c.l.b16 %v89
  %v456 = vunpack.c.h.b16 %v89
  %v457 = vunpack.c.l.b16 %v90
  %v458 = vunpack.c.h.b16 %v90
  %v459 = vunpack.c.l.b16 %v91
  %v460 = vunpack.c.l.b16 %v92
  %v461 = vunpack.c.h.b16 %v92
  %v462 = vunpack.c.l.b16 %v93
  %v463 = vunpack.c.h.b16 %v93
  %v464 = vunpack.c.l.b16 %v94
  %v465 = vunpack.c.h.b16 %v94
  %v466 = vunpack.c.l.b16 %v95
  %v467 = vunpack.c.h.b16 %v95
  %v468 = vunpack.c.l.b16 %v96
  %v469 = vpack.c.b16 %v334, %v325
  %v470 = vpack.c.b16 %v335, %v326
  %v471 = vpack.c.b16 %v336, %v327
  %v472 = vpack.c.b16 %v337, %v328
  %v473 = vpack.c.b16 %v338, %v329
  %v474 = vpack.c.b16 %v339, %v330
  %v475 = vpack.c.b16 %v340, %v331
  %v476 = vpack.c.b16 %v341, %v332
  %v477 = vpack.c.b16 %v342, %v333
  %v478 = vpack.c.b16 %v352, %v343
  %v479 = vpack.c.b16 %v353, %v344
  %v480 = vpack.c.b16 %v354, %v345
  %v481 = vpack.c.b16 %v355, %v346
  %v482 = vpack.c.b16 %v356, %v347
  %v483 = vpack.c.b16 %v357, %v348
  %v484 = vpack.c.b16 %v358, %v349
  %v485 = vpack.c.b16 %v359, %v350
  %v486 = vpack.c.b16 %v360, %v351
  %v487 = vpack.c.b16 %v370, %v361
  %v488 = vpack.c.b16 %v371, %v362
  %v489 = vpack.c.b16 %v372, %v363
  %v490 = vpack.c.b16 %v373, %v364
  %v491 = vpack.c.b16 %v374, %v365
  %v492 = vpack.c.b16 %v375, %v366
  %v493 = vpack.c.b16 %v376, %v367
  %v494 = vpack.c.b16 %v377, %v368
  %v495 = vpack.c.b16 %v378, %v369
  %v496 = vpack.c.b16 %v388, %v379
  %v497 = vpack.c.b16 %v389, %v380
  %v498 = vpack.c.b16 %v390, %v381
  %v499 = vpack.c.b16 %v391, %v382
  %v500 = vpack.c.b16 %v392, %v383
  %v501 = vpack.c.b16 %v393, %v384
  %v502 = vpack.c.b16 %v394, %v385
  %v503 = vpack.c.b16 %v395, %v386
  %v504 = vpack.c.b16 %v396, %v387
  %v505 = vpack.c.b16 %v406, %v397
  %v506 = vpack.c.b16 %v407, %v398
  %v507 = vpack.c.b16 %v408, %v399
  %v508 = vpack.c.b16 %v409, %v400
  %v509 = vpack.c.b16 %v410, %v401
  %v510 = vpack.c.b16 %v411, %v402
  %v511 = vpack.c.b16 %v412, %v403
  %v512 = vpack.c.b16 %v413, %v404
  %v513 = vpack.c.b16 %v414, %v405
  %v514 = vpack.c.b16 %v424, %v415
  %v515 = vpack.c.b16 %v425, %v416
  %v516 = vpack.c.b16 %v426, %v417
  %v517 = vpack.c.b16 %v427, %v418
  %v518 = vpack.c.b16 %v428, %v419
  %v519 = vpack.c.b16 %v429, %v420
  %v520 = vpack.c.b16 %v430, %v421
  %v521 = vpack.c.b16 %v431, %v422
  %v522 = vpack.c.b16 %v432, %v423
  %v523 = vpack.c.b16 %v442, %v433
  %v524 = vpack.c.b16 %v443, %v434
  %v525 = vpack.c.b16 %v444, %v435
  %v526 = vpack.c.b16 %v445, %v436
  %v527 = vpack.c.b16 %v446, %v437
  %v528 = vpack.c.b16 %v447, %v438
  %v529 = vpack.c.b16 %v448, %v439
  %v530 = vpack.c.b16 %v449, %v440
  %v531 = vpack.c.b16 %v450, %v441
  %v532 = vpack.c.b16 %v460, %v451
  %v533 = vpack.c.b16 %v461, %v452
  %v534 = vpack.c.b16 %v462, %v453
  %v535 = vpack.c.b16 %v463, %v454
  %v536 = vpack.c.b16 %v464, %v455
  %v537 = vpack.c.b16 %v465, %v456
  %v538 = vpack.c.b16 %v466, %v457
  %v539 = vpack.c.b16 %v467, %v458
  %v540 = vpack.c.b16 %v468, %v459
  %v757 = vunpack.c.l.b16 %v97
  %v758 = vunpack.c.l.b16 %v98
  %v759 = vunpack.c.l.b16 %v99
  %v760 = vunpack.c.l.b16 %v100
  %v761 = vunpack.c.l.b16 %v101
  %v762 = vunpack.c.l.b16 %v102
  %v763 = vunpack.c.l.b16 %v103
  %v764 = vunpack.c.l.b16 %v104
  %v765 = vunpack.c.l.b16 %v105
  %v766 = vunpack.c.l.b16 %v106
  %v767 = vunpack.c.l.b16 %v107
  %v768 = vunpack.c.l.b16 %v108
  %v769 = vunpack.c.l.b16 %v109
  %v770 = vunpack.c.l.b16 %v110
  %v771 = vunpack.c.l.b16 %v111
  %v772 = vunpack.c.l.b16 %v112
  %v773 = vunpack.c.l.b16 %v113
  %v774 = vunpack.c.l.b16 %v114
  %v775 = vunpack.c.l.b16 %v115
  %v776 = vunpack.c.l.b16 %v116
  %v777 = vunpack.c.l.b16 %v117
  %v778 = vunpack.c.l.b16 %v118
  %v779 = vunpack.c.l.b16 %v119
  %v780 = vunpack.c.l.b16 %v120
  %v781 = vunpack.c.l.b16 %v121
  %v782 = vunpack.c.l.b16 %v122
  %v783 = vunpack.c.l.b16 %v123
  %v784 = vunpack.c.l.b16 %v124
  %v785 = vunpack.c.l.b16 %v125
  %v786 = vunpack.c.l.b16 %v126
  %v787 = vunpack.c.l.b16 %v127
  %v788 = vunpack.c.l.b16 %v128
  %v789 = vunpack.c.l.b16 %v129
  %v790 = vunpack.c.l.b16 %v130
  %v791 = vunpack.c.l.b16 %v131
  %v792 = vunpack.c.l.b16 %v132
  %v793 = vunpack.c.l.b16 %v133
  %v794 = vunpack.c.l.b16 %v134
  %v795 = vunpack.c.l.b16 %v135
  %v796 = vunpack.c.l.b16 %v136
  %v797 = vunpack.c.l.b16 %v137
  %v798 = vunpack.c.l.b16 %v138
  %v799 = vunpack.c.l.b16 %v139
  %v800 = vunpack.c.l.b16 %v140
  %v801 = vunpack.c.l.b16 %v141
  %v802 = vunpack.c.l.b16 %v142
  %v803 = vunpack.c.l.b16 %v143
  %v804 = vunpack.c.l.b16 %v144
  %v805 = vunpack.c.l.b16 %v145
  %v806 = vunpack.c.l.b16 %v146
  %v807 = vunpack.c.l.b16 %v147
  %v808 = vunpack.c.l.b16 %v148
  %v809 = vunpack.c.l.b16 %v149
  %v810 = vunpack.c.l.b16 %v150
  %v811 = vunpack.c.l.b16 %v151
  %v812 = vunpack.c.l.b16 %v152
  %v813 = vunpack.c.l.b16 %v153
  %v814 = vunpack.c.l.b16 %v154
  %v815 = vunpack.c.l.b16 %v155
  %v816 = vunpack.c.l.b16 %v156
  %v817 = vunpack.c.l.b16 %v157
  %v818 = vunpack.c.l.b16 %v158
  %v819 = vunpack.c.l.b16 %v159
  %v820 = vunpack.c.l.b16 %v160
  %v821 = vunpack.c.l.b16 %v161
  %v822 = vunpack.c.l.b16 %v162
  %v823 = vunpack.c.l.b16 %v163
  %v824 = vunpack.c.l.b16 %v164
  %v825 = vunpack.c.l.b16 %v165
  %v826 = vunpack.c.l.b16 %v166
  %v827 = vunpack.c.l.b16 %v167
  %v828 = vunpack.c.l.b16 %v168
  %v829 = vunpack.c.l.b16 %v169
  %v830 = vunpack.c.l.b16 %v170
  %v831 = vunpack.c.l.b16 %v171
  %v832 = vunpack.c.l.b16 %v172
  %v833 = vunpack.c.l.b16 %v173
  %v834 = vunpack.c.l.b16 %v174
  %v835 = vunpack.c.l.b16 %v175
  %v836 = vunpack.c.l.b16 %v176
  %v837 = vunpack.c.l.b16 %v177
  %v838 = vunpack.c.l.b16 %v178
  %v839 = vunpack.c.l.b16 %v179
  %v840 = vunpack.c.l.b16 %v180
  %v841 = vunpack.c.l.b16 %v181
  %v842 = vunpack.c.l.b16 %v182
  %v843 = vunpack.c.l.b16 %v183
  %v844 = vunpack.c.l.b16 %v184
  %v845 = vunpack.c.l.b16 %v185
  %v846 = vunpack.c.l.b16 %v186
  %v847 = vunpack.c.l.b16 %v187
  %v848 = vunpack.c.l.b16 %v188
  %v849 = vunpack.c.l.b16 %v189
  %v850 = vunpack.c.l.b16 %v190
  %v851 = vunpack.c.l.b16 %v191
  %v852 = vunpack.c.l.b16 %v192
  %v853 = vunpack.c.l.b16 %v193
  %v854 = vunpack.c.l.b16 %v194
  %v855 = vunpack.c.l.b16 %v195
  %v856 = vunpack.c.l.b16 %v196
  %v857 = vunpack.c.l.b16 %v197
  %v858 = vunpack.c.l.b16 %v198
  %v859 = vunpack.c.l.b16 %v199
  %v860 = vunpack.c.l.b16 %v200
  %v861 = vunpack.c.l.b16 %v201
  %v862 = vunpack.c.l.b16 %v202
  %v863 = vunpack.c.l.b16 %v203
  %v864 = vunpack.c.l.b16 %v204
  %v865 = vunpack.c.l.b16 %v205
  %v866 = vunpack.c.l.b16 %v206
  %v867 = vunpack.c.l.b16 %v207
  %v868 = vunpack.c.l.b16 %v208
  %v869 = vunpack.c.l.b16 %v209
  %v870 = vunpack.c.l.b16 %v210
  %v871 = vunpack.c.l.b16 %v211
  %v872 = vunpack.c.l.b16 %v212
  %v873 = vunpack.c.l.b16 %v213
  %v874 = vunpack.c.l.b16 %v214
  %v875 = vunpack.c.l.b16 %v215
  %v876 = vunpack.c.l.b16 %v216
  %v877 = vunpack.c.l.b16 %v217
  %v878 = vunpack.c.l.b16 %v218
  %v879 = vunpack.c.l.b16 %v219
  %v880 = vunpack.c.l.b16 %v220
  %v881 = vunpack.c.l.b16 %v221
  %v882 = vunpack.c.l.b16 %v222
  %v883 = vunpack.c.l.b16 %v223
  %v884 = vunpack.c.l.b16 %v224
  %v885 = vunpack.c.l.b16 %v225
  %v886 = vunpack.c.l.b16 %v226
  %v887 = vunpack.c.l.b16 %v227
  %v888 = vunpack.c.l.b16 %v228
  %v889 = vunpack.c.l.b16 %v229
  %v890 = vunpack.c.l.b16 %v230
  %v891 = vunpack.c.l.b16 %v231
  %v892 = vunpack.c.l.b16 %v232
  %v893 = vunpack.c.l.b16 %v233
  %v894 = vunpack.c.l.b16 %v234
  %v895 = vunpack.c.l.b16 %v235
  %v896 = vunpack.c.l.b16 %v236
  %v897 = vunpack.c.l.b16 %v237
  %v898 = vunpack.c.l.b16 %v238
  %v899 = vunpack.c.l.b16 %v239
  %v900 = vunpack.c.l.b16 %v240
  %v901 = vpack.c.b16 %v758, %v757
  %v902 = vpack.c.b16 %v760, %v759
  %v903 = vpack.c.b16 %v762, %v761
  %v904 = vpack.c.b16 %v764, %v763
  %v905 = vpack.c.b16 %v766, %v765
  %v906 = vpack.c.b16 %v768, %v767
  %v907 = vpack.c.b16 %v770, %v769
  %v908 = vpack.c.b16 %v772, %v771
  %v909 = vpack.c.b16 %v774, %v773
  %v910 = vpack.c.b16 %v776, %v775
  %v911 = vpack.c.b16 %v778, %v777
  %v912 = vpack.c.b16 %v780, %v779
  %v913 = vpack.c.b16 %v782, %v781
  %v914 = vpack.c.b16 %v784, %v783
  %v915 = vpack.c.b16 %v786, %v785
  %v916 = vpack.c.b16 %v788, %v787
  %v917 = vpack.c.b16 %v790, %v789
  %v918 = vpack.c.b16 %v792, %v791
  %v919 = vpack.c.b16 %v794, %v793
  %v920 = vpack.c.b16 %v796, %v795
  %v921 = vpack.c.b16 %v798, %v797
  %v922 = vpack.c.b16 %v800, %v799
  %v923 = vpack.c.b16 %v802, %v801
  %v924 = vpack.c.b16 %v804, %v803
  %v925 = vpack.c.b16 %v806, %v805
  %v926 = vpack.c.b16 %v808, %v807
  %v927 = vpack.c.b16 %v810, %v809
  %v928 = vpack.c.b16 %v812, %v811
  %v929 = vpack.c.b16 %v814, %v813
  %v930 = vpack.c.b16 %v816, %v815
  %v931 = vpack.c.b16 %v818, %v817
  %v932 = vpack.c.b16 %v820, %v819
  %v933 = vpack.c.b16 %v822, %v821
  %v934 = vpack.c.b16 %v824, %v823
  %v935 = vpack.c.b16 %v826, %v825
  %v936 = vpack.c.b16 %v828, %v827
  %v937 = vpack.c.b16 %v830, %v829
  %v938 = vpack.c.b16 %v832, %v831
  %v939 = vpack.c.b16 %v834, %v833
  %v940 = vpack.c.b16 %v836, %v835
  %v941 = vpack.c.b16 %v838, %v837
  %v942 = vpack.c.b16 %v840, %v839
  %v943 = vpack.c.b16 %v842, %v841
  %v944 = vpack.c.b16 %v844, %v843
  %v945 = vpack.c.b16 %v846, %v845
  %v946 = vpack.c.b16 %v848, %v847
  %v947 = vpack.c.b16 %v850, %v849
  %v948 = vpack.c.b16 %v852, %v851
  %v949 = vpack.c.b16 %v854, %v853
  %v950 = vpack.c.b16 %v856, %v855
  %v951 = vpack.c.b16 %v858, %v857
  %v952 = vpack.c.b16 %v860, %v859
  %v953 = vpack.c.b16 %v862, %v861
  %v954 = vpack.c.b16 %v864, %v863
  %v955 = vpack.c.b16 %v866, %v865
  %v956 = vpack.c.b16 %v868, %v867
  %v957 = vpack.c.b16 %v870, %v869
  %v958 = vpack.c.b16 %v872, %v871
  %v959 = vpack.c.b16 %v874, %v873
  %v960 = vpack.c.b16 %v876, %v875
  %v961 = vpack.c.b16 %v878, %v877
  %v962 = vpack.c.b16 %v880, %v879
  %v963 = vpack.c.b16 %v882, %v881
  %v964 = vpack.c.b16 %v884, %v883
  %v965 = vpack.c.b16 %v886, %v885
  %v966 = vpack.c.b16 %v888, %v887
  %v967 = vpack.c.b16 %v890, %v889
  %v968 = vpack.c.b16 %v892, %v891
  %v969 = vpack.c.b16 %v894, %v893
  %v970 = vpack.c.b16 %v896, %v895
  %v971 = vpack.c.b16 %v898, %v897
  %v972 = vpack.c.b16 %v900, %v899
  %1045 = vmatpush.bf16.msra.mxu0 %v908
  %1046 = vmatpush.bf16.msra.mxu0 %v907
  %1047 = vmatpush.bf16.msra.mxu0 %v906
  %1048 = vmatpush.bf16.msra.mxu0 %v905
  %1049 = vmatpush.bf16.msra.mxu0 %v904
  %1050 = vmatpush.bf16.msra.mxu0 %v903
  %1051 = vmatpush.bf16.msra.mxu0 %v902
  %1052 = vmatpush.bf16.msra.mxu0 %v901
  %1053 = vmatmul.bf16.gmra.mxu0 %v469
  %v1054 = vpop.f32.mrf.mxu0
  %v1055 = vadd.f32 %v243, %v1054
  %v1056 = vpop.f32.mrf.mxu0
  %v1057 = vadd.f32 %v243, %v1056
  %1058 = vmatmul.bf16.gmra.mxu0 %v478
  %v1059 = vpop.f32.mrf.mxu0
  %v1060 = vadd.f32 %v243, %v1059
  %v1061 = vpop.f32.mrf.mxu0
  %v1062 = vadd.f32 %v243, %v1061
  %1063 = vmatmul.bf16.gmra.mxu0 %v487
  %v1064 = vpop.f32.mrf.mxu0
  %v1065 = vadd.f32 %v243, %v1064
  %v1066 = vpop.f32.mrf.mxu0
  %v1067 = vadd.f32 %v243, %v1066
  %1068 = vmatmul.bf16.gmra.mxu0 %v496
  %v1069 = vpop.f32.mrf.mxu0
  %v1070 = vadd.f32 %v243, %v1069
  %v1071 = vpop.f32.mrf.mxu0
  %v1072 = vadd.f32 %v243, %v1071
  %1073 = vmatmul.bf16.gmra.mxu0 %v505
  %v1074 = vpop.f32.mrf.mxu0
  %v1075 = vadd.f32 %v243, %v1074
  %v1076 = vpop.f32.mrf.mxu0
  %v1077 = vadd.f32 %v243, %v1076
  %1078 = vmatmul.bf16.gmra.mxu0 %v514
  %v1079 = vpop.f32.mrf.mxu0
  %v1080 = vadd.f32 %v243, %v1079
  %v1081 = vpop.f32.mrf.mxu0
  %v1082 = vadd.f32 %v243, %v1081
  %1083 = vmatmul.bf16.gmra.mxu0 %v523
  %v1084 = vpop.f32.mrf.mxu0
  %v1085 = vadd.f32 %v243, %v1084
  %v1086 = vpop.f32.mrf.mxu0
  %v1087 = vadd.f32 %v243, %v1086
  %1088 = vmatmul.bf16.gmra.mxu0 %v532
  %v1089 = vpop.f32.mrf.mxu0
  %v1090 = vadd.f32 %v243, %v1089
  %v1091 = vpop.f32.mrf.mxu0
  %v1092 = vadd.f32 %v243, %v1091
  %1093 = vdwg.mxu0
  %1094 = vmatpush.bf16.msra.mxu0 %v916
  %1095 = vmatpush.bf16.msra.mxu0 %v915
  %1096 = vmatpush.bf16.msra.mxu0 %v914
  %1097 = vmatpush.bf16.msra.mxu0 %v913
  %1098 = vmatpush.bf16.msra.mxu0 %v912
  %1099 = vmatpush.bf16.msra.mxu0 %v911
  %1100 = vmatpush.bf16.msra.mxu0 %v910
  %1101 = vmatpush.bf16.msra.mxu0 %v909
  %1102 = vmatmul.bf16.gmra.mxu0 %v470
  %v1103 = vpop.f32.mrf.mxu0
  %v1104 = vadd.f32 %v1055, %v1103
  %v1105 = vpop.f32.mrf.mxu0
  %v1106 = vadd.f32 %v1057, %v1105
  %1107 = vmatmul.bf16.gmra.mxu0 %v479
  %v1108 = vpop.f32.mrf.mxu0
  %v1109 = vadd.f32 %v1060, %v1108
  %v1110 = vpop.f32.mrf.mxu0
  %v1111 = vadd.f32 %v1062, %v1110
  %1112 = vmatmul.bf16.gmra.mxu0 %v488
  %v1113 = vpop.f32.mrf.mxu0
  %v1114 = vadd.f32 %v1065, %v1113
  %v1115 = vpop.f32.mrf.mxu0
  %v1116 = vadd.f32 %v1067, %v1115
  %1117 = vmatmul.bf16.gmra.mxu0 %v497
  %v1118 = vpop.f32.mrf.mxu0
  %v1119 = vadd.f32 %v1070, %v1118
  %v1120 = vpop.f32.mrf.mxu0
  %v1121 = vadd.f32 %v1072, %v1120
  %1122 = vmatmul.bf16.gmra.mxu0 %v506
  %v1123 = vpop.f32.mrf.mxu0
  %v1124 = vadd.f32 %v1075, %v1123
  %v1125 = vpop.f32.mrf.mxu0
  %v1126 = vadd.f32 %v1077, %v1125
  %1127 = vmatmul.bf16.gmra.mxu0 %v515
  %v1128 = vpop.f32.mrf.mxu0
  %v1129 = vadd.f32 %v1080, %v1128
  %v1130 = vpop.f32.mrf.mxu0
  %v1131 = vadd.f32 %v1082, %v1130
  %1132 = vmatmul.bf16.gmra.mxu0 %v524
  %v1133 = vpop.f32.mrf.mxu0
  %v1134 = vadd.f32 %v1085, %v1133
  %v1135 = vpop.f32.mrf.mxu0
  %v1136 = vadd.f32 %v1087, %v1135
  %1137 = vmatmul.bf16.gmra.mxu0 %v533
  %v1138 = vpop.f32.mrf.mxu0
  %v1139 = vadd.f32 %v1090, %v1138
  %v1140 = vpop.f32.mrf.mxu0
  %v1141 = vadd.f32 %v1092, %v1140
  %1142 = vdwg.mxu0
  %1143 = vmatpush.bf16.msra.mxu0 %v924
  %1144 = vmatpush.bf16.msra.mxu0 %v923
  %1145 = vmatpush.bf16.msra.mxu0 %v922
  %1146 = vmatpush.bf16.msra.mxu0 %v921
  %1147 = vmatpush.bf16.msra.mxu0 %v920
  %1148 = vmatpush.bf16.msra.mxu0 %v919
  %1149 = vmatpush.bf16.msra.mxu0 %v918
  %1150 = vmatpush.bf16.msra.mxu0 %v917
  %1151 = vmatmul.bf16.gmra.mxu0 %v471
  %v1152 = vpop.f32.mrf.mxu0
  %v1153 = vadd.f32 %v1104, %v1152
  %v1154 = vpop.f32.mrf.mxu0
  %v1155 = vadd.f32 %v1106, %v1154
  %1156 = vmatmul.bf16.gmra.mxu0 %v480
  %v1157 = vpop.f32.mrf.mxu0
  %v1158 = vadd.f32 %v1109, %v1157
  %v1159 = vpop.f32.mrf.mxu0
  %v1160 = vadd.f32 %v1111, %v1159
  %1161 = vmatmul.bf16.gmra.mxu0 %v489
  %v1162 = vpop.f32.mrf.mxu0
  %v1163 = vadd.f32 %v1114, %v1162
  %v1164 = vpop.f32.mrf.mxu0
  %v1165 = vadd.f32 %v1116, %v1164
  %1166 = vmatmul.bf16.gmra.mxu0 %v498
  %v1167 = vpop.f32.mrf.mxu0
  %v1168 = vadd.f32 %v1119, %v1167
  %v1169 = vpop.f32.mrf.mxu0
  %v1170 = vadd.f32 %v1121, %v1169
  %1171 = vmatmul.bf16.gmra.mxu0 %v507
  %v1172 = vpop.f32.mrf.mxu0
  %v1173 = vadd.f32 %v1124, %v1172
  %v1174 = vpop.f32.mrf.mxu0
  %v1175 = vadd.f32 %v1126, %v1174
  %1176 = vmatmul.bf16.gmra.mxu0 %v516
  %v1177 = vpop.f32.mrf.mxu0
  %v1178 = vadd.f32 %v1129, %v1177
  %v1179 = vpop.f32.mrf.mxu0
  %v1180 = vadd.f32 %v1131, %v1179
  %1181 = vmatmul.bf16.gmra.mxu0 %v525
  %v1182 = vpop.f32.mrf.mxu0
  %v1183 = vadd.f32 %v1134, %v1182
  %v1184 = vpop.f32.mrf.mxu0
  %v1185 = vadd.f32 %v1136, %v1184
  %1186 = vmatmul.bf16.gmra.mxu0 %v534
  %v1187 = vpop.f32.mrf.mxu0
  %v1188 = vadd.f32 %v1139, %v1187
  %v1189 = vpop.f32.mrf.mxu0
  %v1190 = vadd.f32 %v1141, %v1189
  %1191 = vdwg.mxu0
  %1192 = vmatpush.bf16.msra.mxu0 %v932
  %1193 = vmatpush.bf16.msra.mxu0 %v931
  %1194 = vmatpush.bf16.msra.mxu0 %v930
  %1195 = vmatpush.bf16.msra.mxu0 %v929
  %1196 = vmatpush.bf16.msra.mxu0 %v928
  %1197 = vmatpush.bf16.msra.mxu0 %v927
  %1198 = vmatpush.bf16.msra.mxu0 %v926
  %1199 = vmatpush.bf16.msra.mxu0 %v925
  %1200 = vmatmul.bf16.gmra.mxu0 %v472
  %v1201 = vpop.f32.mrf.mxu0
  %v1202 = vadd.f32 %v1153, %v1201
  %v1203 = vpop.f32.mrf.mxu0
  %v1204 = vadd.f32 %v1155, %v1203
  %1205 = vmatmul.bf16.gmra.mxu0 %v481
  %v1206 = vpop.f32.mrf.mxu0
  %v1207 = vadd.f32 %v1158, %v1206
  %v1208 = vpop.f32.mrf.mxu0
  %v1209 = vadd.f32 %v1160, %v1208
  %1210 = vmatmul.bf16.gmra.mxu0 %v490
  %v1211 = vpop.f32.mrf.mxu0
  %v1212 = vadd.f32 %v1163, %v1211
  %v1213 = vpop.f32.mrf.mxu0
  %v1214 = vadd.f32 %v1165, %v1213
  %1215 = vmatmul.bf16.gmra.mxu0 %v499
  %v1216 = vpop.f32.mrf.mxu0
  %v1217 = vadd.f32 %v1168, %v1216
  %v1218 = vpop.f32.mrf.mxu0
  %v1219 = vadd.f32 %v1170, %v1218
  %1220 = vmatmul.bf16.gmra.mxu0 %v508
  %v1221 = vpop.f32.mrf.mxu0
  %v1222 = vadd.f32 %v1173, %v1221
  %v1223 = vpop.f32.mrf.mxu0
  %v1224 = vadd.f32 %v1175, %v1223
  %1225 = vmatmul.bf16.gmra.mxu0 %v517
  %v1226 = vpop.f32.mrf.mxu0
  %v1227 = vadd.f32 %v1178, %v1226
  %v1228 = vpop.f32.mrf.mxu0
  %v1229 = vadd.f32 %v1180, %v1228
  %1230 = vmatmul.bf16.gmra.mxu0 %v526
  %v1231 = vpop.f32.mrf.mxu0
  %v1232 = vadd.f32 %v1183, %v1231
  %v1233 = vpop.f32.mrf.mxu0
  %v1234 = vadd.f32 %v1185, %v1233
  %1235 = vmatmul.bf16.gmra.mxu0 %v535
  %v1236 = vpop.f32.mrf.mxu0
  %v1237 = vadd.f32 %v1188, %v1236
  %v1238 = vpop.f32.mrf.mxu0
  %v1239 = vadd.f32 %v1190, %v1238
  %1240 = vdwg.mxu0
  %1241 = vmatpush.bf16.msra.mxu0 %v940
  %1242 = vmatpush.bf16.msra.mxu0 %v939
  %1243 = vmatpush.bf16.msra.mxu0 %v938
  %1244 = vmatpush.bf16.msra.mxu0 %v937
  %1245 = vmatpush.bf16.msra.mxu0 %v936
  %1246 = vmatpush.bf16.msra.mxu0 %v935
  %1247 = vmatpush.bf16.msra.mxu0 %v934
  %1248 = vmatpush.bf16.msra.mxu0 %v933
  %1249 = vmatmul.bf16.gmra.mxu0 %v473
  %v1250 = vpop.f32.mrf.mxu0
  %v1251 = vadd.f32 %v1202, %v1250
  %v1252 = vpop.f32.mrf.mxu0
  %v1253 = vadd.f32 %v1204, %v1252
  %1254 = vmatmul.bf16.gmra.mxu0 %v482
  %v1255 = vpop.f32.mrf.mxu0
  %v1256 = vadd.f32 %v1207, %v1255
  %v1257 = vpop.f32.mrf.mxu0
  %v1258 = vadd.f32 %v1209, %v1257
  %1259 = vmatmul.bf16.gmra.mxu0 %v491
  %v1260 = vpop.f32.mrf.mxu0
  %v1261 = vadd.f32 %v1212, %v1260
  %v1262 = vpop.f32.mrf.mxu0
  %v1263 = vadd.f32 %v1214, %v1262
  %1264 = vmatmul.bf16.gmra.mxu0 %v500
  %v1265 = vpop.f32.mrf.mxu0
  %v1266 = vadd.f32 %v1217, %v1265
  %v1267 = vpop.f32.mrf.mxu0
  %v1268 = vadd.f32 %v1219, %v1267
  %1269 = vmatmul.bf16.gmra.mxu0 %v509
  %v1270 = vpop.f32.mrf.mxu0
  %v1271 = vadd.f32 %v1222, %v1270
  %v1272 = vpop.f32.mrf.mxu0
  %v1273 = vadd.f32 %v1224, %v1272
  %1274 = vmatmul.bf16.gmra.mxu0 %v518
  %v1275 = vpop.f32.mrf.mxu0
  %v1276 = vadd.f32 %v1227, %v1275
  %v1277 = vpop.f32.mrf.mxu0
  %v1278 = vadd.f32 %v1229, %v1277
  %1279 = vmatmul.bf16.gmra.mxu0 %v527
  %v1280 = vpop.f32.mrf.mxu0
  %v1281 = vadd.f32 %v1232, %v1280
  %v1282 = vpop.f32.mrf.mxu0
  %v1283 = vadd.f32 %v1234, %v1282
  %1284 = vmatmul.bf16.gmra.mxu0 %v536
  %v1285 = vpop.f32.mrf.mxu0
  %v1286 = vadd.f32 %v1237, %v1285
  %v1287 = vpop.f32.mrf.mxu0
  %v1288 = vadd.f32 %v1239, %v1287
  %1289 = vdwg.mxu0
  %1290 = vmatpush.bf16.msra.mxu0 %v948
  %1291 = vmatpush.bf16.msra.mxu0 %v947
  %1292 = vmatpush.bf16.msra.mxu0 %v946
  %1293 = vmatpush.bf16.msra.mxu0 %v945
  %1294 = vmatpush.bf16.msra.mxu0 %v944
  %1295 = vmatpush.bf16.msra.mxu0 %v943
  %1296 = vmatpush.bf16.msra.mxu0 %v942
  %1297 = vmatpush.bf16.msra.mxu0 %v941
  %1298 = vmatmul.bf16.gmra.mxu0 %v474
  %v1299 = vpop.f32.mrf.mxu0
  %v1300 = vadd.f32 %v1251, %v1299
  %v1301 = vpop.f32.mrf.mxu0
  %v1302 = vadd.f32 %v1253, %v1301
  %1303 = vmatmul.bf16.gmra.mxu0 %v483
  %v1304 = vpop.f32.mrf.mxu0
  %v1305 = vadd.f32 %v1256, %v1304
  %v1306 = vpop.f32.mrf.mxu0
  %v1307 = vadd.f32 %v1258, %v1306
  %1308 = vmatmul.bf16.gmra.mxu0 %v492
  %v1309 = vpop.f32.mrf.mxu0
  %v1310 = vadd.f32 %v1261, %v1309
  %v1311 = vpop.f32.mrf.mxu0
  %v1312 = vadd.f32 %v1263, %v1311
  %1313 = vmatmul.bf16.gmra.mxu0 %v501
  %v1314 = vpop.f32.mrf.mxu0
  %v1315 = vadd.f32 %v1266, %v1314
  %v1316 = vpop.f32.mrf.mxu0
  %v1317 = vadd.f32 %v1268, %v1316
  %1318 = vmatmul.bf16.gmra.mxu0 %v510
  %v1319 = vpop.f32.mrf.mxu0
  %v1320 = vadd.f32 %v1271, %v1319
  %v1321 = vpop.f32.mrf.mxu0
  %v1322 = vadd.f32 %v1273, %v1321
  %1323 = vmatmul.bf16.gmra.mxu0 %v519
  %v1324 = vpop.f32.mrf.mxu0
  %v1325 = vadd.f32 %v1276, %v1324
  %v1326 = vpop.f32.mrf.mxu0
  %v1327 = vadd.f32 %v1278, %v1326
  %1328 = vmatmul.bf16.gmra.mxu0 %v528
  %v1329 = vpop.f32.mrf.mxu0
  %v1330 = vadd.f32 %v1281, %v1329
  %v1331 = vpop.f32.mrf.mxu0
  %v1332 = vadd.f32 %v1283, %v1331
  %1333 = vmatmul.bf16.gmra.mxu0 %v537
  %v1334 = vpop.f32.mrf.mxu0
  %v1335 = vadd.f32 %v1286, %v1334
  %v1336 = vpop.f32.mrf.mxu0
  %v1337 = vadd.f32 %v1288, %v1336
  %1338 = vdwg.mxu0
  %1339 = vmatpush.bf16.msra.mxu0 %v956
  %1340 = vmatpush.bf16.msra.mxu0 %v955
  %1341 = vmatpush.bf16.msra.mxu0 %v954
  %1342 = vmatpush.bf16.msra.mxu0 %v953
  %1343 = vmatpush.bf16.msra.mxu0 %v952
  %1344 = vmatpush.bf16.msra.mxu0 %v951
  %1345 = vmatpush.bf16.msra.mxu0 %v950
  %1346 = vmatpush.bf16.msra.mxu0 %v949
  %1347 = vmatmul.bf16.gmra.mxu0 %v475
  %v1348 = vpop.f32.mrf.mxu0
  %v1349 = vadd.f32 %v1300, %v1348
  %v1350 = vpop.f32.mrf.mxu0
  %v1351 = vadd.f32 %v1302, %v1350
  %1352 = vmatmul.bf16.gmra.mxu0 %v484
  %v1353 = vpop.f32.mrf.mxu0
  %v1354 = vadd.f32 %v1305, %v1353
  %v1355 = vpop.f32.mrf.mxu0
  %v1356 = vadd.f32 %v1307, %v1355
  %1357 = vmatmul.bf16.gmra.mxu0 %v493
  %v1358 = vpop.f32.mrf.mxu0
  %v1359 = vadd.f32 %v1310, %v1358
  %v1360 = vpop.f32.mrf.mxu0
  %v1361 = vadd.f32 %v1312, %v1360
  %1362 = vmatmul.bf16.gmra.mxu0 %v502
  %v1363 = vpop.f32.mrf.mxu0
  %v1364 = vadd.f32 %v1315, %v1363
  %v1365 = vpop.f32.mrf.mxu0
  %v1366 = vadd.f32 %v1317, %v1365
  %1367 = vmatmul.bf16.gmra.mxu0 %v511
  %v1368 = vpop.f32.mrf.mxu0
  %v1369 = vadd.f32 %v1320, %v1368
  %v1370 = vpop.f32.mrf.mxu0
  %v1371 = vadd.f32 %v1322, %v1370
  %1372 = vmatmul.bf16.gmra.mxu0 %v520
  %v1373 = vpop.f32.mrf.mxu0
  %v1374 = vadd.f32 %v1325, %v1373
  %v1375 = vpop.f32.mrf.mxu0
  %v1376 = vadd.f32 %v1327, %v1375
  %1377 = vmatmul.bf16.gmra.mxu0 %v529
  %v1378 = vpop.f32.mrf.mxu0
  %v1379 = vadd.f32 %v1330, %v1378
  %v1380 = vpop.f32.mrf.mxu0
  %v1381 = vadd.f32 %v1332, %v1380
  %1382 = vmatmul.bf16.gmra.mxu0 %v538
  %v1383 = vpop.f32.mrf.mxu0
  %v1384 = vadd.f32 %v1335, %v1383
  %v1385 = vpop.f32.mrf.mxu0
  %v1386 = vadd.f32 %v1337, %v1385
  %1387 = vdwg.mxu0
  %1388 = vmatpush.bf16.msra.mxu0 %v964
  %1389 = vmatpush.bf16.msra.mxu0 %v963
  %1390 = vmatpush.bf16.msra.mxu0 %v962
  %1391 = vmatpush.bf16.msra.mxu0 %v961
  %1392 = vmatpush.bf16.msra.mxu0 %v960
  %1393 = vmatpush.bf16.msra.mxu0 %v959
  %1394 = vmatpush.bf16.msra.mxu0 %v958
  %1395 = vmatpush.bf16.msra.mxu0 %v957
  %1396 = vmatmul.bf16.gmra.mxu0 %v476
  %v1397 = vpop.f32.mrf.mxu0
  %v1398 = vadd.f32 %v1349, %v1397
  %v1399 = vpop.f32.mrf.mxu0
  %v1400 = vadd.f32 %v1351, %v1399
  %1401 = vmatmul.bf16.gmra.mxu0 %v485
  %v1402 = vpop.f32.mrf.mxu0
  %v1403 = vadd.f32 %v1354, %v1402
  %v1404 = vpop.f32.mrf.mxu0
  %v1405 = vadd.f32 %v1356, %v1404
  %1406 = vmatmul.bf16.gmra.mxu0 %v494
  %v1407 = vpop.f32.mrf.mxu0
  %v1408 = vadd.f32 %v1359, %v1407
  %v1409 = vpop.f32.mrf.mxu0
  %v1410 = vadd.f32 %v1361, %v1409
  %1411 = vmatmul.bf16.gmra.mxu0 %v503
  %v1412 = vpop.f32.mrf.mxu0
  %v1413 = vadd.f32 %v1364, %v1412
  %v1414 = vpop.f32.mrf.mxu0
  %v1415 = vadd.f32 %v1366, %v1414
  %1416 = vmatmul.bf16.gmra.mxu0 %v512
  %v1417 = vpop.f32.mrf.mxu0
  %v1418 = vadd.f32 %v1369, %v1417
  %v1419 = vpop.f32.mrf.mxu0
  %v1420 = vadd.f32 %v1371, %v1419
  %1421 = vmatmul.bf16.gmra.mxu0 %v521
  %v1422 = vpop.f32.mrf.mxu0
  %v1423 = vadd.f32 %v1374, %v1422
  %v1424 = vpop.f32.mrf.mxu0
  %v1425 = vadd.f32 %v1376, %v1424
  %1426 = vmatmul.bf16.gmra.mxu0 %v530
  %v1427 = vpop.f32.mrf.mxu0
  %v1428 = vadd.f32 %v1379, %v1427
  %v1429 = vpop.f32.mrf.mxu0
  %v1430 = vadd.f32 %v1381, %v1429
  %1431 = vmatmul.bf16.gmra.mxu0 %v539
  %v1432 = vpop.f32.mrf.mxu0
  %v1433 = vadd.f32 %v1384, %v1432
  %v1434 = vpop.f32.mrf.mxu0
  %v1435 = vadd.f32 %v1386, %v1434
  %1436 = vdwg.mxu0
  %1437 = vmatpush.bf16.msra.mxu0 %v972
  %1438 = vmatpush.bf16.msra.mxu0 %v971
  %1439 = vmatpush.bf16.msra.mxu0 %v970
  %1440 = vmatpush.bf16.msra.mxu0 %v969
  %1441 = vmatpush.bf16.msra.mxu0 %v968
  %1442 = vmatpush.bf16.msra.mxu0 %v967
  %1443 = vmatpush.bf16.msra.mxu0 %v966
  %1444 = vmatpush.bf16.msra.mxu0 %v965
  %1445 = vmatmul.bf16.gmra.mxu0 %v477
  %v1446 = vpop.f32.mrf.mxu0
  %v1447 = vadd.f32 %v1398, %v1446
  %v1448 = vpop.f32.mrf.mxu0
  %v1449 = vadd.f32 %v1400, %v1448
  %1450 = vmatmul.bf16.gmra.mxu0 %v486
  %v1451 = vpop.f32.mrf.mxu0
  %v1452 = vadd.f32 %v1403, %v1451
  %v1453 = vpop.f32.mrf.mxu0
  %v1454 = vadd.f32 %v1405, %v1453
  %1455 = vmatmul.bf16.gmra.mxu0 %v495
  %v1456 = vpop.f32.mrf.mxu0
  %v1457 = vadd.f32 %v1408, %v1456
  %v1458 = vpop.f32.mrf.mxu0
  %v1459 = vadd.f32 %v1410, %v1458
  %1460 = vmatmul.bf16.gmra.mxu0 %v504
  %v1461 = vpop.f32.mrf.mxu0
  %v1462 = vadd.f32 %v1413, %v1461
  %v1463 = vpop.f32.mrf.mxu0
  %v1464 = vadd.f32 %v1415, %v1463
  %1465 = vmatmul.bf16.gmra.mxu0 %v513
  %v1466 = vpop.f32.mrf.mxu0
  %v1467 = vadd.f32 %v1418, %v1466
  %v1468 = vpop.f32.mrf.mxu0
  %v1469 = vadd.f32 %v1420, %v1468
  %1470 = vmatmul.bf16.gmra.mxu0 %v522
  %v1471 = vpop.f32.mrf.mxu0
  %v1472 = vadd.f32 %v1423, %v1471
  %v1473 = vpop.f32.mrf.mxu0
  %v1474 = vadd.f32 %v1425, %v1473
  %1475 = vmatmul.bf16.gmra.mxu0 %v531
  %v1476 = vpop.f32.mrf.mxu0
  %v1477 = vadd.f32 %v1428, %v1476
  %v1478 = vpop.f32.mrf.mxu0
  %v1479 = vadd.f32 %v1430, %v1478
  %1480 = vmatmul.bf16.gmra.mxu0 %v540
  %v1481 = vpop.f32.mrf.mxu0
  %v1482 = vadd.f32 %v1433, %v1481
  %v1483 = vpop.f32.mrf.mxu0
  %v1484 = vadd.f32 %v1435, %v1483
  %1485 = vdwg.mxu0
  %v1486 = vld [vmem:[%s3] sm:$0xf]
  %v1487 = vld [vmem:[%s3 + $0x4] sm:$0xf]
  %v1488 = vld [vmem:[%s3 + $0x8] sm:$0xf]
  %v1489 = vld [vmem:[%s3 + $0xc] sm:$0xf]
  %v1490 = vld [vmem:[%s3 + $0x10] sm:$0xf]
  %v1491 = vld [vmem:[%s3 + $0x14] sm:$0xf]
  %v1492 = vld [vmem:[%s3 + $0x18] sm:$0xf]
  %v1493 = vld [vmem:[%s3 + $0x1c] sm:$0xf]
  %v1494 = vld [vmem:[%s3 + $0x20] sm:$0xf]
  %v1495 = vld [vmem:[%s3 + $0x24] sm:$0xf]
  %v1496 = vld [vmem:[%s3 + $0x28] sm:$0xf]
  %v1497 = vld [vmem:[%s3 + $0x2c] sm:$0xf]
  %v1498 = vld [vmem:[%s3 + $0x30] sm:$0xf]
  %v1499 = vld [vmem:[%s3 + $0x34] sm:$0xf]
  %v1500 = vld [vmem:[%s3 + $0x38] sm:$0xf]
  %v1501 = vld [vmem:[%s3 + $0x3c] sm:$0xf]
  %v1502 = vunpack.c.l.bf16 %v1486
  %v1503 = vunpack.c.l.bf16 %v1487
  %v1504 = vunpack.c.l.bf16 %v1488
  %v1505 = vunpack.c.l.bf16 %v1489
  %v1506 = vunpack.c.l.bf16 %v1490
  %v1507 = vunpack.c.l.bf16 %v1491
  %v1508 = vunpack.c.l.bf16 %v1492
  %v1509 = vunpack.c.l.bf16 %v1493
  %v1510 = vunpack.c.l.bf16 %v1494
  %v1511 = vunpack.c.l.bf16 %v1495
  %v1512 = vunpack.c.l.bf16 %v1496
  %v1513 = vunpack.c.l.bf16 %v1497
  %v1514 = vunpack.c.l.bf16 %v1498
  %v1515 = vunpack.c.l.bf16 %v1499
  %v1516 = vunpack.c.l.bf16 %v1500
  %v1517 = vunpack.c.l.bf16 %v1501
  %v1518 = vadd.f32 %v1447, %v1502
  %v1519 = vadd.f32 %v1449, %v1503
  %v1520 = vadd.f32 %v1452, %v1504
  %v1521 = vadd.f32 %v1454, %v1505
  %v1522 = vadd.f32 %v1457, %v1506
  %v1523 = vadd.f32 %v1459, %v1507
  %v1524 = vadd.f32 %v1462, %v1508
  %v1525 = vadd.f32 %v1464, %v1509
  %v1526 = vadd.f32 %v1467, %v1510
  %v1527 = vadd.f32 %v1469, %v1511
  %v1528 = vadd.f32 %v1472, %v1512
  %v1529 = vadd.f32 %v1474, %v1513
  %v1530 = vadd.f32 %v1477, %v1514
  %v1531 = vadd.f32 %v1479, %v1515
  %v1532 = vadd.f32 %v1482, %v1516
  %v1533 = vadd.f32 %v1484, %v1517
  %v1534 = vmax.f32 %v1518, 0.0
  %v1535 = vmax.f32 %v1519, 0.0
  %v1536 = vmax.f32 %v1520, 0.0
  %v1537 = vmax.f32 %v1521, 0.0
  %v1538 = vmax.f32 %v1522, 0.0
  %v1539 = vmax.f32 %v1523, 0.0
  %v1540 = vmax.f32 %v1524, 0.0
  %v1541 = vmax.f32 %v1525, 0.0
  %v1542 = vmax.f32 %v1526, 0.0
  %v1543 = vmax.f32 %v1527, 0.0
  %v1544 = vmax.f32 %v1528, 0.0
  %v1545 = vmax.f32 %v1529, 0.0
  %v1546 = vmax.f32 %v1530, 0.0
  %v1547 = vmax.f32 %v1531, 0.0
  %v1548 = vmax.f32 %v1532, 0.0
  %v1549 = vmax.f32 %v1533, 0.0
  %v1550 = vpack.c.bf16 %v1534, %v1534
  %v1551 = vpack.c.bf16 %v1535, %v1535
  %v1552 = vpack.c.bf16 %v1536, %v1536
  %v1553 = vpack.c.bf16 %v1537, %v1537
  %v1554 = vpack.c.bf16 %v1538, %v1538
  %v1555 = vpack.c.bf16 %v1539, %v1539
  %v1556 = vpack.c.bf16 %v1540, %v1540
  %v1557 = vpack.c.bf16 %v1541, %v1541
  %v1558 = vpack.c.bf16 %v1542, %v1542
  %v1559 = vpack.c.bf16 %v1543, %v1543
  %v1560 = vpack.c.bf16 %v1544, %v1544
  %v1561 = vpack.c.bf16 %v1545, %v1545
  %v1562 = vpack.c.bf16 %v1546, %v1546
  %v1563 = vpack.c.bf16 %v1547, %v1547
  %v1564 = vpack.c.bf16 %v1548, %v1548
  %v1565 = vpack.c.bf16 %v1549, %v1549
  %1566 = vst [vmem:[%s4] sm:$0xf] %v1550
  %1567 = vst [vmem:[%s4 + $0x4] sm:$0xf] %v1551
  %1568 = vst [vmem:[%s4 + $0x8] sm:$0xf] %v1552
  %1569 = vst [vmem:[%s4 + $0xc] sm:$0xf] %v1553
  %1570 = vst [vmem:[%s4 + $0x10] sm:$0xf] %v1554
  %1571 = vst [vmem:[%s4 + $0x14] sm:$0xf] %v1555
  %1572 = vst [vmem:[%s4 + $0x18] sm:$0xf] %v1556
  %1573 = vst [vmem:[%s4 + $0x1c] sm:$0xf] %v1557
  %1574 = vst [vmem:[%s4 + $0x20] sm:$0xf] %v1558
  %1575 = vst [vmem:[%s4 + $0x24] sm:$0xf] %v1559
  %1576 = vst [vmem:[%s4 + $0x28] sm:$0xf] %v1560
  %1577 = vst [vmem:[%s4 + $0x2c] sm:$0xf] %v1561
  %1578 = vst [vmem:[%s4 + $0x30] sm:$0xf] %v1562
  %1579 = vst [vmem:[%s4 + $0x34] sm:$0xf] %v1563
  %1580 = vst [vmem:[%s4 + $0x38] sm:$0xf] %v1564
  %1581 = vst [vmem:[%s4 + $0x3c] sm:$0xf] %v1565
  // Predicated region
  $region18: #{encoder_forward.18} parent=0 // pred_check
    _
  $region19: #{encoder_forward.18} parent=0 // pred_check_branch
    %1583 = sbr.rel (0) target = $region21
  $region20: #{encoder_forward.18} parent=0 // pred_region
    _
  $region21: #{encoder_forward.18} parent=0 // pred_fallthru
    _
  // Predicated region
  $region22: #{encoder_forward.18} parent=0 // pred_check
    _
  $region23: #{encoder_forward.18} parent=0 // pred_check_branch
    %1585 = sbr.rel (0) target = $region25
  $region24: #{encoder_forward.18} parent=0 // pred_region
    _
  $region25: #{encoder_forward.18} parent=0 // pred_fallthru
    _

// kernel: encoder_forward.16
$region0: #{encoder_forward.16}
  #allocation0 [shape = 'u32[]', space=smem, size = 0x4, offset = 0x4, fixed_abs, tag = 'smem constant byte address 0x4 - core index']
  #allocation1 [shape = 'u32[72,128]{1,0:T(1,128)}', space=vmem, size = 0x9000, scoped, tag = 'internal scratch']
  %s0 = inlined_call_operand.vmem [shape: bf16[128,1152], index: 0, kind: input, shape index: {}]
  %s1 = inlined_call_operand.vmem [shape: bf16[1152,128], index: 1, kind: input, shape index: {}]
  %s2 = inlined_call_operand.vmem [shape: f32[1,128], index: 2, kind: input, shape index: {}]
  %s3 = inlined_call_operand.vmem [shape: bf16[128,128], index: 3, kind: input, shape index: {}]
  %s4 = inlined_call_operand.vmem [shape: bf16[128,128], index: 4, kind: input, shape index: {}]
  %s5 = inlined_call_operand.vmem [shape: f32[1,128], index: 5, kind: input, shape index: {}]
  %s6 = inlined_call_operand.vmem [shape: bf16[128,128], index: 6, kind: output, shape index: {}]
  %s7 = sld [smem:[#allocation0]]
  $region34: #{encoder_forward.16} parent=0
    _
  %s9 = ssub.s32 1, %s7
  %s10 = scalar_select 0, %s9, %s7
  // Predicated region
  $region2: #{encoder_forward.16} parent=0 // pred_check
    _
  $region3: #{encoder_forward.16} parent=0 // pred_check_branch
    %12 = sbr.rel (0) target = $region5
  $region4: #{encoder_forward.16} parent=0 // pred_region
    _
  $region5: #{encoder_forward.16} parent=0 // pred_fallthru
    _
  // Predicated region
  $region6: #{encoder_forward.16} parent=0 // pred_check
    _
  $region7: #{encoder_forward.16} parent=0 // pred_check_branch
    %14 = sbr.rel (0) target = $region9
  $region8: #{encoder_forward.16} parent=0 // pred_region
    _
  $region9: #{encoder_forward.16} parent=0 // pred_fallthru
    _
  // Predicated region
  $region10: #{encoder_forward.16} parent=0 // pred_check
    _
  $region11: #{encoder_forward.16} parent=0 // pred_check_branch
    %16 = sbr.rel (0) target = $region13
  $region12: #{encoder_forward.16} parent=0 // pred_region
    _
  $region13: #{encoder_forward.16} parent=0 // pred_fallthru
    _
  // Predicated region
  $region14: #{encoder_forward.16} parent=0 // pred_check
    _
  $region15: #{encoder_forward.16} parent=0 // pred_check_branch
    %18 = sbr.rel (0) target = $region17
  $region16: #{encoder_forward.16} parent=0 // pred_region
    _
  $region17: #{encoder_forward.16} parent=0 // pred_fallthru
    _
  // Predicated region
  $region18: #{encoder_forward.16} parent=0 // pred_check
    _
  $region19: #{encoder_forward.16} parent=0 // pred_check_branch
    %20 = sbr.rel (0) target = $region21
  $region20: #{encoder_forward.16} parent=0 // pred_region
    _
  $region21: #{encoder_forward.16} parent=0 // pred_fallthru
    _
  // Predicated region
  $region22: #{encoder_forward.16} parent=0 // pred_check
    _
  $region23: #{encoder_forward.16} parent=0 // pred_check_branch
    %22 = sbr.rel (0) target = $region25
  $region24: #{encoder_forward.16} parent=0 // pred_region
    _
  $region25: #{encoder_forward.16} parent=0 // pred_fallthru
    _
  %v23 = vld [vmem:[%s0] sm:$0xff]
  %v24 = vld [vmem:[%s0 + $0x8] sm:$0xff]
  %v25 = vld [vmem:[%s0 + $0x10] sm:$0xff]
  %v26 = vld [vmem:[%s0 + $0x18] sm:$0xff]
  %v27 = vld [vmem:[%s0 + $0x20] sm:$0xf]
  %v28 = vld [vmem:[%s0 + $0x24] sm:$0xff]
  %v29 = vld [vmem:[%s0 + $0x2c] sm:$0xff]
  %v30 = vld [vmem:[%s0 + $0x34] sm:$0xff]
  %v31 = vld [vmem:[%s0 + $0x3c] sm:$0xff]
  %v32 = vld [vmem:[%s0 + $0x44] sm:$0xf]
  %v33 = vld [vmem:[%s0 + $0x48] sm:$0xff]
  %v34 = vld [vmem:[%s0 + $0x50] sm:$0xff]
  %v35 = vld [vmem:[%s0 + $0x58] sm:$0xff]
  %v36 = vld [vmem:[%s0 + $0x60] sm:$0xff]
  %v37 = vld [vmem:[%s0 + $0x68] sm:$0xf]
  %v38 = vld [vmem:[%s0 + $0x6c] sm:$0xff]
  %v39 = vld [vmem:[%s0 + $0x74] sm:$0xff]
  %v40 = vld [vmem:[%s0 + $0x7c] sm:$0xff]
  %v41 = vld [vmem:[%s0 + $0x84] sm:$0xff]
  %v42 = vld [vmem:[%s0 + $0x8c] sm:$0xf]
  %v43 = vld [vmem:[%s0 + $0x90] sm:$0xff]
  %v44 = vld [vmem:[%s0 + $0x98] sm:$0xff]
  %v45 = vld [vmem:[%s0 + $0xa0] sm:$0xff]
  %v46 = vld [vmem:[%s0 + $0xa8] sm:$0xff]
  %v47 = vld [vmem:[%s0 + $0xb0] sm:$0xf]
  %v48 = vld [vmem:[%s0 + $0xb4] sm:$0xff]
  %v49 = vld [vmem:[%s0 + $0xbc] sm:$0xff]
  %v50 = vld [vmem:[%s0 + $0xc4] sm:$0xff]
  %v51 = vld [vmem:[%s0 + $0xcc] sm:$0xff]
  %v52 = vld [vmem:[%s0 + $0xd4] sm:$0xf]
  %v53 = vld [vmem:[%s0 + $0xd8] sm:$0xff]
  %v54 = vld [vmem:[%s0 + $0xe0] sm:$0xff]
  %v55 = vld [vmem:[%s0 + $0xe8] sm:$0xff]
  %v56 = vld [vmem:[%s0 + $0xf0] sm:$0xff]
  %v57 = vld [vmem:[%s0 + $0xf8] sm:$0xf]
  %v58 = vld [vmem:[%s0 + $0xfc] sm:$0xff]
  %v59 = vld [vmem:[%s0 + $0x104] sm:$0xff]
  %v60 = vld [vmem:[%s0 + $0x10c] sm:$0xff]
  %v61 = vld [vmem:[%s0 + $0x114] sm:$0xff]
  %v62 = vld [vmem:[%s0 + $0x11c] sm:$0xf]
  %v63 = vld [vmem:[%s0 + $0x120] sm:$0xff]
  %v64 = vld [vmem:[%s0 + $0x128] sm:$0xff]
  %v65 = vld [vmem:[%s0 + $0x130] sm:$0xff]
  %v66 = vld [vmem:[%s0 + $0x138] sm:$0xff]
  %v67 = vld [vmem:[%s0 + $0x140] sm:$0xf]
  %v68 = vld [vmem:[%s0 + $0x144] sm:$0xff]
  %v69 = vld [vmem:[%s0 + $0x14c] sm:$0xff]
  %v70 = vld [vmem:[%s0 + $0x154] sm:$0xff]
  %v71 = vld [vmem:[%s0 + $0x15c] sm:$0xff]
  %v72 = vld [vmem:[%s0 + $0x164] sm:$0xf]
  %v73 = vld [vmem:[%s0 + $0x168] sm:$0xff]
  %v74 = vld [vmem:[%s0 + $0x170] sm:$0xff]
  %v75 = vld [vmem:[%s0 + $0x178] sm:$0xff]
  %v76 = vld [vmem:[%s0 + $0x180] sm:$0xff]
  %v77 = vld [vmem:[%s0 + $0x188] sm:$0xf]
  %v78 = vld [vmem:[%s0 + $0x18c] sm:$0xff]
  %v79 = vld [vmem:[%s0 + $0x194] sm:$0xff]
  %v80 = vld [vmem:[%s0 + $0x19c] sm:$0xff]
  %v81 = vld [vmem:[%s0 + $0x1a4] sm:$0xff]
  %v82 = vld [vmem:[%s0 + $0x1ac] sm:$0xf]
  %v83 = vld [vmem:[%s0 + $0x1b0] sm:$0xff]
  %v84 = vld [vmem:[%s0 + $0x1b8] sm:$0xff]
  %v85 = vld [vmem:[%s0 + $0x1c0] sm:$0xff]
  %v86 = vld [vmem:[%s0 + $0x1c8] sm:$0xff]
  %v87 = vld [vmem:[%s0 + $0x1d0] sm:$0xf]
  %v88 = vld [vmem:[%s0 + $0x1d4] sm:$0xff]
  %v89 = vld [vmem:[%s0 + $0x1dc] sm:$0xff]
  %v90 = vld [vmem:[%s0 + $0x1e4] sm:$0xff]
  %v91 = vld [vmem:[%s0 + $0x1ec] sm:$0xff]
  %v92 = vld [vmem:[%s0 + $0x1f4] sm:$0xf]
  %v93 = vld [vmem:[%s0 + $0x1f8] sm:$0xff]
  %v94 = vld [vmem:[%s0 + $0x200] sm:$0xff]
  %v95 = vld [vmem:[%s0 + $0x208] sm:$0xff]
  %v96 = vld [vmem:[%s0 + $0x210] sm:$0xff]
  %v97 = vld [vmem:[%s0 + $0x218] sm:$0xf]
  %v98 = vld [vmem:[%s0 + $0x21c] sm:$0xff]
  %v99 = vld [vmem:[%s0 + $0x224] sm:$0xff]
  %v100 = vld [vmem:[%s0 + $0x22c] sm:$0xff]
  %v101 = vld [vmem:[%s0 + $0x234] sm:$0xff]
  %v102 = vld [vmem:[%s0 + $0x23c] sm:$0xf]
  %v103 = vld [vmem:[%s1] sm:$0xf]
  %v104 = vld [vmem:[%s1 + $0x4] sm:$0xf]
  %v105 = vld [vmem:[%s1 + $0x8] sm:$0xf]
  %v106 = vld [vmem:[%s1 + $0xc] sm:$0xf]
  %v107 = vld [vmem:[%s1 + $0x10] sm:$0xf]
  %v108 = vld [vmem:[%s1 + $0x14] sm:$0xf]
  %v109 = vld [vmem:[%s1 + $0x18] sm:$0xf]
  %v110 = vld [vmem:[%s1 + $0x1c] sm:$0xf]
  %v111 = vld [vmem:[%s1 + $0x20] sm:$0xf]
  %v112 = vld [vmem:[%s1 + $0x24] sm:$0xf]
  %v113 = vld [vmem:[%s1 + $0x28] sm:$0xf]
  %v114 = vld [vmem:[%s1 + $0x2c] sm:$0xf]
  %v115 = vld [vmem:[%s1 + $0x30] sm:$0xf]
  %v116 = vld [vmem:[%s1 + $0x34] sm:$0xf]
  %v117 = vld [vmem:[%s1 + $0x38] sm:$0xf]
  %v118 = vld [vmem:[%s1 + $0x3c] sm:$0xf]
  %v119 = vld [vmem:[%s1 + $0x40] sm:$0xf]
  %v120 = vld [vmem:[%s1 + $0x44] sm:$0xf]
  %v121 = vld [vmem:[%s1 + $0x48] sm:$0xf]
  %v122 = vld [vmem:[%s1 + $0x4c] sm:$0xf]
  %v123 = vld [vmem:[%s1 + $0x50] sm:$0xf]
  %v124 = vld [vmem:[%s1 + $0x54] sm:$0xf]
  %v125 = vld [vmem:[%s1 + $0x58] sm:$0xf]
  %v126 = vld [vmem:[%s1 + $0x5c] sm:$0xf]
  %v127 = vld [vmem:[%s1 + $0x60] sm:$0xf]
  %v128 = vld [vmem:[%s1 + $0x64] sm:$0xf]
  %v129 = vld [vmem:[%s1 + $0x68] sm:$0xf]
  %v130 = vld [vmem:[%s1 + $0x6c] sm:$0xf]
  %v131 = vld [vmem:[%s1 + $0x70] sm:$0xf]
  %v132 = vld [vmem:[%s1 + $0x74] sm:$0xf]
  %v133 = vld [vmem:[%s1 + $0x78] sm:$0xf]
  %v134 = vld [vmem:[%s1 + $0x7c] sm:$0xf]
  %v135 = vld [vmem:[%s1 + $0x80] sm:$0xf]
  %v136 = vld [vmem:[%s1 + $0x84] sm:$0xf]
  %v137 = vld [vmem:[%s1 + $0x88] sm:$0xf]
  %v138 = vld [vmem:[%s1 + $0x8c] sm:$0xf]
  %v139 = vld [vmem:[%s1 + $0x90] sm:$0xf]
  %v140 = vld [vmem:[%s1 + $0x94] sm:$0xf]
  %v141 = vld [vmem:[%s1 + $0x98] sm:$0xf]
  %v142 = vld [vmem:[%s1 + $0x9c] sm:$0xf]
  %v143 = vld [vmem:[%s1 + $0xa0] sm:$0xf]
  %v144 = vld [vmem:[%s1 + $0xa4] sm:$0xf]
  %v145 = vld [vmem:[%s1 + $0xa8] sm:$0xf]
  %v146 = vld [vmem:[%s1 + $0xac] sm:$0xf]
  %v147 = vld [vmem:[%s1 + $0xb0] sm:$0xf]
  %v148 = vld [vmem:[%s1 + $0xb4] sm:$0xf]
  %v149 = vld [vmem:[%s1 + $0xb8] sm:$0xf]
  %v150 = vld [vmem:[%s1 + $0xbc] sm:$0xf]
  %v151 = vld [vmem:[%s1 + $0xc0] sm:$0xf]
  %v152 = vld [vmem:[%s1 + $0xc4] sm:$0xf]
  %v153 = vld [vmem:[%s1 + $0xc8] sm:$0xf]
  %v154 = vld [vmem:[%s1 + $0xcc] sm:$0xf]
  %v155 = vld [vmem:[%s1 + $0xd0] sm:$0xf]
  %v156 = vld [vmem:[%s1 + $0xd4] sm:$0xf]
  %v157 = vld [vmem:[%s1 + $0xd8] sm:$0xf]
  %v158 = vld [vmem:[%s1 + $0xdc] sm:$0xf]
  %v159 = vld [vmem:[%s1 + $0xe0] sm:$0xf]
  %v160 = vld [vmem:[%s1 + $0xe4] sm:$0xf]
  %v161 = vld [vmem:[%s1 + $0xe8] sm:$0xf]
  %v162 = vld [vmem:[%s1 + $0xec] sm:$0xf]
  %v163 = vld [vmem:[%s1 + $0xf0] sm:$0xf]
  %v164 = vld [vmem:[%s1 + $0xf4] sm:$0xf]
  %v165 = vld [vmem:[%s1 + $0xf8] sm:$0xf]
  %v166 = vld [vmem:[%s1 + $0xfc] sm:$0xf]
  %v167 = vld [vmem:[%s1 + $0x100] sm:$0xf]
  %v168 = vld [vmem:[%s1 + $0x104] sm:$0xf]
  %v169 = vld [vmem:[%s1 + $0x108] sm:$0xf]
  %v170 = vld [vmem:[%s1 + $0x10c] sm:$0xf]
  %v171 = vld [vmem:[%s1 + $0x110] sm:$0xf]
  %v172 = vld [vmem:[%s1 + $0x114] sm:$0xf]
  %v173 = vld [vmem:[%s1 + $0x118] sm:$0xf]
  %v174 = vld [vmem:[%s1 + $0x11c] sm:$0xf]
  %v175 = vld [vmem:[%s1 + $0x120] sm:$0xf]
  %v176 = vld [vmem:[%s1 + $0x124] sm:$0xf]
  %v177 = vld [vmem:[%s1 + $0x128] sm:$0xf]
  %v178 = vld [vmem:[%s1 + $0x12c] sm:$0xf]
  %v179 = vld [vmem:[%s1 + $0x130] sm:$0xf]
  %v180 = vld [vmem:[%s1 + $0x134] sm:$0xf]
  %v181 = vld [vmem:[%s1 + $0x138] sm:$0xf]
  %v182 = vld [vmem:[%s1 + $0x13c] sm:$0xf]
  %v183 = vld [vmem:[%s1 + $0x140] sm:$0xf]
  %v184 = vld [vmem:[%s1 + $0x144] sm:$0xf]
  %v185 = vld [vmem:[%s1 + $0x148] sm:$0xf]
  %v186 = vld [vmem:[%s1 + $0x14c] sm:$0xf]
  %v187 = vld [vmem:[%s1 + $0x150] sm:$0xf]
  %v188 = vld [vmem:[%s1 + $0x154] sm:$0xf]
  %v189 = vld [vmem:[%s1 + $0x158] sm:$0xf]
  %v190 = vld [vmem:[%s1 + $0x15c] sm:$0xf]
  %v191 = vld [vmem:[%s1 + $0x160] sm:$0xf]
  %v192 = vld [vmem:[%s1 + $0x164] sm:$0xf]
  %v193 = vld [vmem:[%s1 + $0x168] sm:$0xf]
  %v194 = vld [vmem:[%s1 + $0x16c] sm:$0xf]
  %v195 = vld [vmem:[%s1 + $0x170] sm:$0xf]
  %v196 = vld [vmem:[%s1 + $0x174] sm:$0xf]
  %v197 = vld [vmem:[%s1 + $0x178] sm:$0xf]
  %v198 = vld [vmem:[%s1 + $0x17c] sm:$0xf]
  %v199 = vld [vmem:[%s1 + $0x180] sm:$0xf]
  %v200 = vld [vmem:[%s1 + $0x184] sm:$0xf]
  %v201 = vld [vmem:[%s1 + $0x188] sm:$0xf]
  %v202 = vld [vmem:[%s1 + $0x18c] sm:$0xf]
  %v203 = vld [vmem:[%s1 + $0x190] sm:$0xf]
  %v204 = vld [vmem:[%s1 + $0x194] sm:$0xf]
  %v205 = vld [vmem:[%s1 + $0x198] sm:$0xf]
  %v206 = vld [vmem:[%s1 + $0x19c] sm:$0xf]
  %v207 = vld [vmem:[%s1 + $0x1a0] sm:$0xf]
  %v208 = vld [vmem:[%s1 + $0x1a4] sm:$0xf]
  %v209 = vld [vmem:[%s1 + $0x1a8] sm:$0xf]
  %v210 = vld [vmem:[%s1 + $0x1ac] sm:$0xf]
  %v211 = vld [vmem:[%s1 + $0x1b0] sm:$0xf]
  %v212 = vld [vmem:[%s1 + $0x1b4] sm:$0xf]
  %v213 = vld [vmem:[%s1 + $0x1b8] sm:$0xf]
  %v214 = vld [vmem:[%s1 + $0x1bc] sm:$0xf]
  %v215 = vld [vmem:[%s1 + $0x1c0] sm:$0xf]
  %v216 = vld [vmem:[%s1 + $0x1c4] sm:$0xf]
  %v217 = vld [vmem:[%s1 + $0x1c8] sm:$0xf]
  %v218 = vld [vmem:[%s1 + $0x1cc] sm:$0xf]
  %v219 = vld [vmem:[%s1 + $0x1d0] sm:$0xf]
  %v220 = vld [vmem:[%s1 + $0x1d4] sm:$0xf]
  %v221 = vld [vmem:[%s1 + $0x1d8] sm:$0xf]
  %v222 = vld [vmem:[%s1 + $0x1dc] sm:$0xf]
  %v223 = vld [vmem:[%s1 + $0x1e0] sm:$0xf]
  %v224 = vld [vmem:[%s1 + $0x1e4] sm:$0xf]
  %v225 = vld [vmem:[%s1 + $0x1e8] sm:$0xf]
  %v226 = vld [vmem:[%s1 + $0x1ec] sm:$0xf]
  %v227 = vld [vmem:[%s1 + $0x1f0] sm:$0xf]
  %v228 = vld [vmem:[%s1 + $0x1f4] sm:$0xf]
  %v229 = vld [vmem:[%s1 + $0x1f8] sm:$0xf]
  %v230 = vld [vmem:[%s1 + $0x1fc] sm:$0xf]
  %v231 = vld [vmem:[%s1 + $0x200] sm:$0xf]
  %v232 = vld [vmem:[%s1 + $0x204] sm:$0xf]
  %v233 = vld [vmem:[%s1 + $0x208] sm:$0xf]
  %v234 = vld [vmem:[%s1 + $0x20c] sm:$0xf]
  %v235 = vld [vmem:[%s1 + $0x210] sm:$0xf]
  %v236 = vld [vmem:[%s1 + $0x214] sm:$0xf]
  %v237 = vld [vmem:[%s1 + $0x218] sm:$0xf]
  %v238 = vld [vmem:[%s1 + $0x21c] sm:$0xf]
  %v239 = vld [vmem:[%s1 + $0x220] sm:$0xf]
  %v240 = vld [vmem:[%s1 + $0x224] sm:$0xf]
  %v241 = vld [vmem:[%s1 + $0x228] sm:$0xf]
  %v242 = vld [vmem:[%s1 + $0x22c] sm:$0xf]
  %v243 = vld [vmem:[%s1 + $0x230] sm:$0xf]
  %v244 = vld [vmem:[%s1 + $0x234] sm:$0xf]
  %v245 = vld [vmem:[%s1 + $0x238] sm:$0xf]
  %v246 = vld [vmem:[%s1 + $0x23c] sm:$0xf]
  %v247 = vld [vmem:[%s2] sm:$0x1]
  %v249 = vperm.slane %v247, 0
  %v331 = vunpack.c.l.b16 %v23
  %v332 = vunpack.c.h.b16 %v23
  %v333 = vunpack.c.l.b16 %v24
  %v334 = vunpack.c.h.b16 %v24
  %v335 = vunpack.c.l.b16 %v25
  %v336 = vunpack.c.h.b16 %v25
  %v337 = vunpack.c.l.b16 %v26
  %v338 = vunpack.c.h.b16 %v26
  %v339 = vunpack.c.l.b16 %v27
  %v340 = vunpack.c.l.b16 %v28
  %v341 = vunpack.c.h.b16 %v28
  %v342 = vunpack.c.l.b16 %v29
  %v343 = vunpack.c.h.b16 %v29
  %v344 = vunpack.c.l.b16 %v30
  %v345 = vunpack.c.h.b16 %v30
  %v346 = vunpack.c.l.b16 %v31
  %v347 = vunpack.c.h.b16 %v31
  %v348 = vunpack.c.l.b16 %v32
  %v349 = vunpack.c.l.b16 %v33
  %v350 = vunpack.c.h.b16 %v33
  %v351 = vunpack.c.l.b16 %v34
  %v352 = vunpack.c.h.b16 %v34
  %v353 = vunpack.c.l.b16 %v35
  %v354 = vunpack.c.h.b16 %v35
  %v355 = vunpack.c.l.b16 %v36
  %v356 = vunpack.c.h.b16 %v36
  %v357 = vunpack.c.l.b16 %v37
  %v358 = vunpack.c.l.b16 %v38
  %v359 = vunpack.c.h.b16 %v38
  %v360 = vunpack.c.l.b16 %v39
  %v361 = vunpack.c.h.b16 %v39
  %v362 = vunpack.c.l.b16 %v40
  %v363 = vunpack.c.h.b16 %v40
  %v364 = vunpack.c.l.b16 %v41
  %v365 = vunpack.c.h.b16 %v41
  %v366 = vunpack.c.l.b16 %v42
  %v367 = vunpack.c.l.b16 %v43
  %v368 = vunpack.c.h.b16 %v43
  %v369 = vunpack.c.l.b16 %v44
  %v370 = vunpack.c.h.b16 %v44
  %v371 = vunpack.c.l.b16 %v45
  %v372 = vunpack.c.h.b16 %v45
  %v373 = vunpack.c.l.b16 %v46
  %v374 = vunpack.c.h.b16 %v46
  %v375 = vunpack.c.l.b16 %v47
  %v376 = vunpack.c.l.b16 %v48
  %v377 = vunpack.c.h.b16 %v48
  %v378 = vunpack.c.l.b16 %v49
  %v379 = vunpack.c.h.b16 %v49
  %v380 = vunpack.c.l.b16 %v50
  %v381 = vunpack.c.h.b16 %v50
  %v382 = vunpack.c.l.b16 %v51
  %v383 = vunpack.c.h.b16 %v51
  %v384 = vunpack.c.l.b16 %v52
  %v385 = vunpack.c.l.b16 %v53
  %v386 = vunpack.c.h.b16 %v53
  %v387 = vunpack.c.l.b16 %v54
  %v388 = vunpack.c.h.b16 %v54
  %v389 = vunpack.c.l.b16 %v55
  %v390 = vunpack.c.h.b16 %v55
  %v391 = vunpack.c.l.b16 %v56
  %v392 = vunpack.c.h.b16 %v56
  %v393 = vunpack.c.l.b16 %v57
  %v394 = vunpack.c.l.b16 %v58
  %v395 = vunpack.c.h.b16 %v58
  %v396 = vunpack.c.l.b16 %v59
  %v397 = vunpack.c.h.b16 %v59
  %v398 = vunpack.c.l.b16 %v60
  %v399 = vunpack.c.h.b16 %v60
  %v400 = vunpack.c.l.b16 %v61
  %v401 = vunpack.c.h.b16 %v61
  %v402 = vunpack.c.l.b16 %v62
  %v403 = vunpack.c.l.b16 %v63
  %v404 = vunpack.c.h.b16 %v63
  %v405 = vunpack.c.l.b16 %v64
  %v406 = vunpack.c.h.b16 %v64
  %v407 = vunpack.c.l.b16 %v65
  %v408 = vunpack.c.h.b16 %v65
  %v409 = vunpack.c.l.b16 %v66
  %v410 = vunpack.c.h.b16 %v66
  %v411 = vunpack.c.l.b16 %v67
  %v412 = vunpack.c.l.b16 %v68
  %v413 = vunpack.c.h.b16 %v68
  %v414 = vunpack.c.l.b16 %v69
  %v415 = vunpack.c.h.b16 %v69
  %v416 = vunpack.c.l.b16 %v70
  %v417 = vunpack.c.h.b16 %v70
  %v418 = vunpack.c.l.b16 %v71
  %v419 = vunpack.c.h.b16 %v71
  %v420 = vunpack.c.l.b16 %v72
  %v421 = vunpack.c.l.b16 %v73
  %v422 = vunpack.c.h.b16 %v73
  %v423 = vunpack.c.l.b16 %v74
  %v424 = vunpack.c.h.b16 %v74
  %v425 = vunpack.c.l.b16 %v75
  %v426 = vunpack.c.h.b16 %v75
  %v427 = vunpack.c.l.b16 %v76
  %v428 = vunpack.c.h.b16 %v76
  %v429 = vunpack.c.l.b16 %v77
  %v430 = vunpack.c.l.b16 %v78
  %v431 = vunpack.c.h.b16 %v78
  %v432 = vunpack.c.l.b16 %v79
  %v433 = vunpack.c.h.b16 %v79
  %v434 = vunpack.c.l.b16 %v80
  %v435 = vunpack.c.h.b16 %v80
  %v436 = vunpack.c.l.b16 %v81
  %v437 = vunpack.c.h.b16 %v81
  %v438 = vunpack.c.l.b16 %v82
  %v439 = vunpack.c.l.b16 %v83
  %v440 = vunpack.c.h.b16 %v83
  %v441 = vunpack.c.l.b16 %v84
  %v442 = vunpack.c.h.b16 %v84
  %v443 = vunpack.c.l.b16 %v85
  %v444 = vunpack.c.h.b16 %v85
  %v445 = vunpack.c.l.b16 %v86
  %v446 = vunpack.c.h.b16 %v86
  %v447 = vunpack.c.l.b16 %v87
  %v448 = vunpack.c.l.b16 %v88
  %v449 = vunpack.c.h.b16 %v88
  %v450 = vunpack.c.l.b16 %v89
  %v451 = vunpack.c.h.b16 %v89
  %v452 = vunpack.c.l.b16 %v90
  %v453 = vunpack.c.h.b16 %v90
  %v454 = vunpack.c.l.b16 %v91
  %v455 = vunpack.c.h.b16 %v91
  %v456 = vunpack.c.l.b16 %v92
  %v457 = vunpack.c.l.b16 %v93
  %v458 = vunpack.c.h.b16 %v93
  %v459 = vunpack.c.l.b16 %v94
  %v460 = vunpack.c.h.b16 %v94
  %v461 = vunpack.c.l.b16 %v95
  %v462 = vunpack.c.h.b16 %v95
  %v463 = vunpack.c.l.b16 %v96
  %v464 = vunpack.c.h.b16 %v96
  %v465 = vunpack.c.l.b16 %v97
  %v466 = vunpack.c.l.b16 %v98
  %v467 = vunpack.c.h.b16 %v98
  %v468 = vunpack.c.l.b16 %v99
  %v469 = vunpack.c.h.b16 %v99
  %v470 = vunpack.c.l.b16 %v100
  %v471 = vunpack.c.h.b16 %v100
  %v472 = vunpack.c.l.b16 %v101
  %v473 = vunpack.c.h.b16 %v101
  %v474 = vunpack.c.l.b16 %v102
  %v475 = vpack.c.b16 %v340, %v331
  %v476 = vpack.c.b16 %v341, %v332
  %v477 = vpack.c.b16 %v342, %v333
  %v478 = vpack.c.b16 %v343, %v334
  %v479 = vpack.c.b16 %v344, %v335
  %v480 = vpack.c.b16 %v345, %v336
  %v481 = vpack.c.b16 %v346, %v337
  %v482 = vpack.c.b16 %v347, %v338
  %v483 = vpack.c.b16 %v348, %v339
  %v484 = vpack.c.b16 %v358, %v349
  %v485 = vpack.c.b16 %v359, %v350
  %v486 = vpack.c.b16 %v360, %v351
  %v487 = vpack.c.b16 %v361, %v352
  %v488 = vpack.c.b16 %v362, %v353
  %v489 = vpack.c.b16 %v363, %v354
  %v490 = vpack.c.b16 %v364, %v355
  %v491 = vpack.c.b16 %v365, %v356
  %v492 = vpack.c.b16 %v366, %v357
  %v493 = vpack.c.b16 %v376, %v367
  %v494 = vpack.c.b16 %v377, %v368
  %v495 = vpack.c.b16 %v378, %v369
  %v496 = vpack.c.b16 %v379, %v370
  %v497 = vpack.c.b16 %v380, %v371
  %v498 = vpack.c.b16 %v381, %v372
  %v499 = vpack.c.b16 %v382, %v373
  %v500 = vpack.c.b16 %v383, %v374
  %v501 = vpack.c.b16 %v384, %v375
  %v502 = vpack.c.b16 %v394, %v385
  %v503 = vpack.c.b16 %v395, %v386
  %v504 = vpack.c.b16 %v396, %v387
  %v505 = vpack.c.b16 %v397, %v388
  %v506 = vpack.c.b16 %v398, %v389
  %v507 = vpack.c.b16 %v399, %v390
  %v508 = vpack.c.b16 %v400, %v391
  %v509 = vpack.c.b16 %v401, %v392
  %v510 = vpack.c.b16 %v402, %v393
  %v511 = vpack.c.b16 %v412, %v403
  %v512 = vpack.c.b16 %v413, %v404
  %v513 = vpack.c.b16 %v414, %v405
  %v514 = vpack.c.b16 %v415, %v406
  %v515 = vpack.c.b16 %v416, %v407
  %v516 = vpack.c.b16 %v417, %v408
  %v517 = vpack.c.b16 %v418, %v409
  %v518 = vpack.c.b16 %v419, %v410
  %v519 = vpack.c.b16 %v420, %v411
  %v520 = vpack.c.b16 %v430, %v421
  %v521 = vpack.c.b16 %v431, %v422
  %v522 = vpack.c.b16 %v432, %v423
  %v523 = vpack.c.b16 %v433, %v424
  %v524 = vpack.c.b16 %v434, %v425
  %v525 = vpack.c.b16 %v435, %v426
  %v526 = vpack.c.b16 %v436, %v427
  %v527 = vpack.c.b16 %v437, %v428
  %v528 = vpack.c.b16 %v438, %v429
  %v529 = vpack.c.b16 %v448, %v439
  %v530 = vpack.c.b16 %v449, %v440
  %v531 = vpack.c.b16 %v450, %v441
  %v532 = vpack.c.b16 %v451, %v442
  %v533 = vpack.c.b16 %v452, %v443
  %v534 = vpack.c.b16 %v453, %v444
  %v535 = vpack.c.b16 %v454, %v445
  %v536 = vpack.c.b16 %v455, %v446
  %v537 = vpack.c.b16 %v456, %v447
  %v538 = vpack.c.b16 %v466, %v457
  %v539 = vpack.c.b16 %v467, %v458
  %v540 = vpack.c.b16 %v468, %v459
  %v541 = vpack.c.b16 %v469, %v460
  %v542 = vpack.c.b16 %v470, %v461
  %v543 = vpack.c.b16 %v471, %v462
  %v544 = vpack.c.b16 %v472, %v463
  %v545 = vpack.c.b16 %v473, %v464
  %v546 = vpack.c.b16 %v474, %v465
  %v763 = vunpack.c.l.b16 %v103
  %v764 = vunpack.c.l.b16 %v104
  %v765 = vunpack.c.l.b16 %v105
  %v766 = vunpack.c.l.b16 %v106
  %v767 = vunpack.c.l.b16 %v107
  %v768 = vunpack.c.l.b16 %v108
  %v769 = vunpack.c.l.b16 %v109
  %v770 = vunpack.c.l.b16 %v110
  %v771 = vunpack.c.l.b16 %v111
  %v772 = vunpack.c.l.b16 %v112
  %v773 = vunpack.c.l.b16 %v113
  %v774 = vunpack.c.l.b16 %v114
  %v775 = vunpack.c.l.b16 %v115
  %v776 = vunpack.c.l.b16 %v116
  %v777 = vunpack.c.l.b16 %v117
  %v778 = vunpack.c.l.b16 %v118
  %v779 = vunpack.c.l.b16 %v119
  %v780 = vunpack.c.l.b16 %v120
  %v781 = vunpack.c.l.b16 %v121
  %v782 = vunpack.c.l.b16 %v122
  %v783 = vunpack.c.l.b16 %v123
  %v784 = vunpack.c.l.b16 %v124
  %v785 = vunpack.c.l.b16 %v125
  %v786 = vunpack.c.l.b16 %v126
  %v787 = vunpack.c.l.b16 %v127
  %v788 = vunpack.c.l.b16 %v128
  %v789 = vunpack.c.l.b16 %v129
  %v790 = vunpack.c.l.b16 %v130
  %v791 = vunpack.c.l.b16 %v131
  %v792 = vunpack.c.l.b16 %v132
  %v793 = vunpack.c.l.b16 %v133
  %v794 = vunpack.c.l.b16 %v134
  %v795 = vunpack.c.l.b16 %v135
  %v796 = vunpack.c.l.b16 %v136
  %v797 = vunpack.c.l.b16 %v137
  %v798 = vunpack.c.l.b16 %v138
  %v799 = vunpack.c.l.b16 %v139
  %v800 = vunpack.c.l.b16 %v140
  %v801 = vunpack.c.l.b16 %v141
  %v802 = vunpack.c.l.b16 %v142
  %v803 = vunpack.c.l.b16 %v143
  %v804 = vunpack.c.l.b16 %v144
  %v805 = vunpack.c.l.b16 %v145
  %v806 = vunpack.c.l.b16 %v146
  %v807 = vunpack.c.l.b16 %v147
  %v808 = vunpack.c.l.b16 %v148
  %v809 = vunpack.c.l.b16 %v149
  %v810 = vunpack.c.l.b16 %v150
  %v811 = vunpack.c.l.b16 %v151
  %v812 = vunpack.c.l.b16 %v152
  %v813 = vunpack.c.l.b16 %v153
  %v814 = vunpack.c.l.b16 %v154
  %v815 = vunpack.c.l.b16 %v155
  %v816 = vunpack.c.l.b16 %v156
  %v817 = vunpack.c.l.b16 %v157
  %v818 = vunpack.c.l.b16 %v158
  %v819 = vunpack.c.l.b16 %v159
  %v820 = vunpack.c.l.b16 %v160
  %v821 = vunpack.c.l.b16 %v161
  %v822 = vunpack.c.l.b16 %v162
  %v823 = vunpack.c.l.b16 %v163
  %v824 = vunpack.c.l.b16 %v164
  %v825 = vunpack.c.l.b16 %v165
  %v826 = vunpack.c.l.b16 %v166
  %v827 = vunpack.c.l.b16 %v167
  %v828 = vunpack.c.l.b16 %v168
  %v829 = vunpack.c.l.b16 %v169
  %v830 = vunpack.c.l.b16 %v170
  %v831 = vunpack.c.l.b16 %v171
  %v832 = vunpack.c.l.b16 %v172
  %v833 = vunpack.c.l.b16 %v173
  %v834 = vunpack.c.l.b16 %v174
  %v835 = vunpack.c.l.b16 %v175
  %v836 = vunpack.c.l.b16 %v176
  %v837 = vunpack.c.l.b16 %v177
  %v838 = vunpack.c.l.b16 %v178
  %v839 = vunpack.c.l.b16 %v179
  %v840 = vunpack.c.l.b16 %v180
  %v841 = vunpack.c.l.b16 %v181
  %v842 = vunpack.c.l.b16 %v182
  %v843 = vunpack.c.l.b16 %v183
  %v844 = vunpack.c.l.b16 %v184
  %v845 = vunpack.c.l.b16 %v185
  %v846 = vunpack.c.l.b16 %v186
  %v847 = vunpack.c.l.b16 %v187
  %v848 = vunpack.c.l.b16 %v188
  %v849 = vunpack.c.l.b16 %v189
  %v850 = vunpack.c.l.b16 %v190
  %v851 = vunpack.c.l.b16 %v191
  %v852 = vunpack.c.l.b16 %v192
  %v853 = vunpack.c.l.b16 %v193
  %v854 = vunpack.c.l.b16 %v194
  %v855 = vunpack.c.l.b16 %v195
  %v856 = vunpack.c.l.b16 %v196
  %v857 = vunpack.c.l.b16 %v197
  %v858 = vunpack.c.l.b16 %v198
  %v859 = vunpack.c.l.b16 %v199
  %v860 = vunpack.c.l.b16 %v200
  %v861 = vunpack.c.l.b16 %v201
  %v862 = vunpack.c.l.b16 %v202
  %v863 = vunpack.c.l.b16 %v203
  %v864 = vunpack.c.l.b16 %v204
  %v865 = vunpack.c.l.b16 %v205
  %v866 = vunpack.c.l.b16 %v206
  %v867 = vunpack.c.l.b16 %v207
  %v868 = vunpack.c.l.b16 %v208
  %v869 = vunpack.c.l.b16 %v209
  %v870 = vunpack.c.l.b16 %v210
  %v871 = vunpack.c.l.b16 %v211
  %v872 = vunpack.c.l.b16 %v212
  %v873 = vunpack.c.l.b16 %v213
  %v874 = vunpack.c.l.b16 %v214
  %v875 = vunpack.c.l.b16 %v215
  %v876 = vunpack.c.l.b16 %v216
  %v877 = vunpack.c.l.b16 %v217
  %v878 = vunpack.c.l.b16 %v218
  %v879 = vunpack.c.l.b16 %v219
  %v880 = vunpack.c.l.b16 %v220
  %v881 = vunpack.c.l.b16 %v221
  %v882 = vunpack.c.l.b16 %v222
  %v883 = vunpack.c.l.b16 %v223
  %v884 = vunpack.c.l.b16 %v224
  %v885 = vunpack.c.l.b16 %v225
  %v886 = vunpack.c.l.b16 %v226
  %v887 = vunpack.c.l.b16 %v227
  %v888 = vunpack.c.l.b16 %v228
  %v889 = vunpack.c.l.b16 %v229
  %v890 = vunpack.c.l.b16 %v230
  %v891 = vunpack.c.l.b16 %v231
  %v892 = vunpack.c.l.b16 %v232
  %v893 = vunpack.c.l.b16 %v233
  %v894 = vunpack.c.l.b16 %v234
  %v895 = vunpack.c.l.b16 %v235
  %v896 = vunpack.c.l.b16 %v236
  %v897 = vunpack.c.l.b16 %v237
  %v898 = vunpack.c.l.b16 %v238
  %v899 = vunpack.c.l.b16 %v239
  %v900 = vunpack.c.l.b16 %v240
  %v901 = vunpack.c.l.b16 %v241
  %v902 = vunpack.c.l.b16 %v242
  %v903 = vunpack.c.l.b16 %v243
  %v904 = vunpack.c.l.b16 %v244
  %v905 = vunpack.c.l.b16 %v245
  %v906 = vunpack.c.l.b16 %v246
  %v907 = vpack.c.b16 %v764, %v763
  %v908 = vpack.c.b16 %v766, %v765
  %v909 = vpack.c.b16 %v768, %v767
  %v910 = vpack.c.b16 %v770, %v769
  %v911 = vpack.c.b16 %v772, %v771
  %v912 = vpack.c.b16 %v774, %v773
  %v913 = vpack.c.b16 %v776, %v775
  %v914 = vpack.c.b16 %v778, %v777
  %v915 = vpack.c.b16 %v780, %v779
  %v916 = vpack.c.b16 %v782, %v781
  %v917 = vpack.c.b16 %v784, %v783
  %v918 = vpack.c.b16 %v786, %v785
  %v919 = vpack.c.b16 %v788, %v787
  %v920 = vpack.c.b16 %v790, %v789
  %v921 = vpack.c.b16 %v792, %v791
  %v922 = vpack.c.b16 %v794, %v793
  %v923 = vpack.c.b16 %v796, %v795
  %v924 = vpack.c.b16 %v798, %v797
  %v925 = vpack.c.b16 %v800, %v799
  %v926 = vpack.c.b16 %v802, %v801
  %v927 = vpack.c.b16 %v804, %v803
  %v928 = vpack.c.b16 %v806, %v805
  %v929 = vpack.c.b16 %v808, %v807
  %v930 = vpack.c.b16 %v810, %v809
  %v931 = vpack.c.b16 %v812, %v811
  %v932 = vpack.c.b16 %v814, %v813
  %v933 = vpack.c.b16 %v816, %v815
  %v934 = vpack.c.b16 %v818, %v817
  %v935 = vpack.c.b16 %v820, %v819
  %v936 = vpack.c.b16 %v822, %v821
  %v937 = vpack.c.b16 %v824, %v823
  %v938 = vpack.c.b16 %v826, %v825
  %v939 = vpack.c.b16 %v828, %v827
  %v940 = vpack.c.b16 %v830, %v829
  %v941 = vpack.c.b16 %v832, %v831
  %v942 = vpack.c.b16 %v834, %v833
  %v943 = vpack.c.b16 %v836, %v835
  %v944 = vpack.c.b16 %v838, %v837
  %v945 = vpack.c.b16 %v840, %v839
  %v946 = vpack.c.b16 %v842, %v841
  %v947 = vpack.c.b16 %v844, %v843
  %v948 = vpack.c.b16 %v846, %v845
  %v949 = vpack.c.b16 %v848, %v847
  %v950 = vpack.c.b16 %v850, %v849
  %v951 = vpack.c.b16 %v852, %v851
  %v952 = vpack.c.b16 %v854, %v853
  %v953 = vpack.c.b16 %v856, %v855
  %v954 = vpack.c.b16 %v858, %v857
  %v955 = vpack.c.b16 %v860, %v859
  %v956 = vpack.c.b16 %v862, %v861
  %v957 = vpack.c.b16 %v864, %v863
  %v958 = vpack.c.b16 %v866, %v865
  %v959 = vpack.c.b16 %v868, %v867
  %v960 = vpack.c.b16 %v870, %v869
  %v961 = vpack.c.b16 %v872, %v871
  %v962 = vpack.c.b16 %v874, %v873
  %v963 = vpack.c.b16 %v876, %v875
  %v964 = vpack.c.b16 %v878, %v877
  %v965 = vpack.c.b16 %v880, %v879
  %v966 = vpack.c.b16 %v882, %v881
  %v967 = vpack.c.b16 %v884, %v883
  %v968 = vpack.c.b16 %v886, %v885
  %v969 = vpack.c.b16 %v888, %v887
  %v970 = vpack.c.b16 %v890, %v889
  %v971 = vpack.c.b16 %v892, %v891
  %v972 = vpack.c.b16 %v894, %v893
  %v973 = vpack.c.b16 %v896, %v895
  %v974 = vpack.c.b16 %v898, %v897
  %v975 = vpack.c.b16 %v900, %v899
  %v976 = vpack.c.b16 %v902, %v901
  %v977 = vpack.c.b16 %v904, %v903
  %v978 = vpack.c.b16 %v906, %v905
  %1051 = vmatpush.bf16.msra.mxu0 %v914
  %1052 = vmatpush.bf16.msra.mxu0 %v913
  %1053 = vmatpush.bf16.msra.mxu0 %v912
  %1054 = vmatpush.bf16.msra.mxu0 %v911
  %1055 = vmatpush.bf16.msra.mxu0 %v910
  %1056 = vmatpush.bf16.msra.mxu0 %v909
  %1057 = vmatpush.bf16.msra.mxu0 %v908
  %1058 = vmatpush.bf16.msra.mxu0 %v907
  %1059 = vmatmul.bf16.gmra.mxu0 %v475
  %v1060 = vpop.f32.mrf.mxu0
  %v1061 = vadd.f32 %v249, %v1060
  %v1062 = vpop.f32.mrf.mxu0
  %v1063 = vadd.f32 %v249, %v1062
  %1064 = vmatmul.bf16.gmra.mxu0 %v484
  %v1065 = vpop.f32.mrf.mxu0
  %v1066 = vadd.f32 %v249, %v1065
  %v1067 = vpop.f32.mrf.mxu0
  %v1068 = vadd.f32 %v249, %v1067
  %1069 = vmatmul.bf16.gmra.mxu0 %v493
  %v1070 = vpop.f32.mrf.mxu0
  %v1071 = vadd.f32 %v249, %v1070
  %v1072 = vpop.f32.mrf.mxu0
  %v1073 = vadd.f32 %v249, %v1072
  %1074 = vmatmul.bf16.gmra.mxu0 %v502
  %v1075 = vpop.f32.mrf.mxu0
  %v1076 = vadd.f32 %v249, %v1075
  %v1077 = vpop.f32.mrf.mxu0
  %v1078 = vadd.f32 %v249, %v1077
  %1079 = vmatmul.bf16.gmra.mxu0 %v511
  %v1080 = vpop.f32.mrf.mxu0
  %v1081 = vadd.f32 %v249, %v1080
  %v1082 = vpop.f32.mrf.mxu0
  %v1083 = vadd.f32 %v249, %v1082
  %1084 = vmatmul.bf16.gmra.mxu0 %v520
  %v1085 = vpop.f32.mrf.mxu0
  %v1086 = vadd.f32 %v249, %v1085
  %v1087 = vpop.f32.mrf.mxu0
  %v1088 = vadd.f32 %v249, %v1087
  %1089 = vmatmul.bf16.gmra.mxu0 %v529
  %v1090 = vpop.f32.mrf.mxu0
  %v1091 = vadd.f32 %v249, %v1090
  %v1092 = vpop.f32.mrf.mxu0
  %v1093 = vadd.f32 %v249, %v1092
  %1094 = vmatmul.bf16.gmra.mxu0 %v538
  %v1095 = vpop.f32.mrf.mxu0
  %v1096 = vadd.f32 %v249, %v1095
  %v1097 = vpop.f32.mrf.mxu0
  %v1098 = vadd.f32 %v249, %v1097
  %1099 = vdwg.mxu0
  %1100 = vmatpush.bf16.msra.mxu0 %v922
  %1101 = vmatpush.bf16.msra.mxu0 %v921
  %1102 = vmatpush.bf16.msra.mxu0 %v920
  %1103 = vmatpush.bf16.msra.mxu0 %v919
  %1104 = vmatpush.bf16.msra.mxu0 %v918
  %1105 = vmatpush.bf16.msra.mxu0 %v917
  %1106 = vmatpush.bf16.msra.mxu0 %v916
  %1107 = vmatpush.bf16.msra.mxu0 %v915
  %1108 = vmatmul.bf16.gmra.mxu0 %v476
  %v1109 = vpop.f32.mrf.mxu0
  %v1110 = vadd.f32 %v1061, %v1109
  %v1111 = vpop.f32.mrf.mxu0
  %v1112 = vadd.f32 %v1063, %v1111
  %1113 = vmatmul.bf16.gmra.mxu0 %v485
  %v1114 = vpop.f32.mrf.mxu0
  %v1115 = vadd.f32 %v1066, %v1114
  %v1116 = vpop.f32.mrf.mxu0
  %v1117 = vadd.f32 %v1068, %v1116
  %1118 = vmatmul.bf16.gmra.mxu0 %v494
  %v1119 = vpop.f32.mrf.mxu0
  %v1120 = vadd.f32 %v1071, %v1119
  %v1121 = vpop.f32.mrf.mxu0
  %v1122 = vadd.f32 %v1073, %v1121
  %1123 = vmatmul.bf16.gmra.mxu0 %v503
  %v1124 = vpop.f32.mrf.mxu0
  %v1125 = vadd.f32 %v1076, %v1124
  %v1126 = vpop.f32.mrf.mxu0
  %v1127 = vadd.f32 %v1078, %v1126
  %1128 = vmatmul.bf16.gmra.mxu0 %v512
  %v1129 = vpop.f32.mrf.mxu0
  %v1130 = vadd.f32 %v1081, %v1129
  %v1131 = vpop.f32.mrf.mxu0
  %v1132 = vadd.f32 %v1083, %v1131
  %1133 = vmatmul.bf16.gmra.mxu0 %v521
  %v1134 = vpop.f32.mrf.mxu0
  %v1135 = vadd.f32 %v1086, %v1134
  %v1136 = vpop.f32.mrf.mxu0
  %v1137 = vadd.f32 %v1088, %v1136
  %1138 = vmatmul.bf16.gmra.mxu0 %v530
  %v1139 = vpop.f32.mrf.mxu0
  %v1140 = vadd.f32 %v1091, %v1139
  %v1141 = vpop.f32.mrf.mxu0
  %v1142 = vadd.f32 %v1093, %v1141
  %1143 = vmatmul.bf16.gmra.mxu0 %v539
  %v1144 = vpop.f32.mrf.mxu0
  %v1145 = vadd.f32 %v1096, %v1144
  %v1146 = vpop.f32.mrf.mxu0
  %v1147 = vadd.f32 %v1098, %v1146
  %1148 = vdwg.mxu0
  %1149 = vmatpush.bf16.msra.mxu0 %v930
  %1150 = vmatpush.bf16.msra.mxu0 %v929
  %1151 = vmatpush.bf16.msra.mxu0 %v928
  %1152 = vmatpush.bf16.msra.mxu0 %v927
  %1153 = vmatpush.bf16.msra.mxu0 %v926
  %1154 = vmatpush.bf16.msra.mxu0 %v925
  %1155 = vmatpush.bf16.msra.mxu0 %v924
  %1156 = vmatpush.bf16.msra.mxu0 %v923
  %1157 = vmatmul.bf16.gmra.mxu0 %v477
  %v1158 = vpop.f32.mrf.mxu0
  %v1159 = vadd.f32 %v1110, %v1158
  %v1160 = vpop.f32.mrf.mxu0
  %v1161 = vadd.f32 %v1112, %v1160
  %1162 = vmatmul.bf16.gmra.mxu0 %v486
  %v1163 = vpop.f32.mrf.mxu0
  %v1164 = vadd.f32 %v1115, %v1163
  %v1165 = vpop.f32.mrf.mxu0
  %v1166 = vadd.f32 %v1117, %v1165
  %1167 = vmatmul.bf16.gmra.mxu0 %v495
  %v1168 = vpop.f32.mrf.mxu0
  %v1169 = vadd.f32 %v1120, %v1168
  %v1170 = vpop.f32.mrf.mxu0
  %v1171 = vadd.f32 %v1122, %v1170
  %1172 = vmatmul.bf16.gmra.mxu0 %v504
  %v1173 = vpop.f32.mrf.mxu0
  %v1174 = vadd.f32 %v1125, %v1173
  %v1175 = vpop.f32.mrf.mxu0
  %v1176 = vadd.f32 %v1127, %v1175
  %1177 = vmatmul.bf16.gmra.mxu0 %v513
  %v1178 = vpop.f32.mrf.mxu0
  %v1179 = vadd.f32 %v1130, %v1178
  %v1180 = vpop.f32.mrf.mxu0
  %v1181 = vadd.f32 %v1132, %v1180
  %1182 = vmatmul.bf16.gmra.mxu0 %v522
  %v1183 = vpop.f32.mrf.mxu0
  %v1184 = vadd.f32 %v1135, %v1183
  %v1185 = vpop.f32.mrf.mxu0
  %v1186 = vadd.f32 %v1137, %v1185
  %1187 = vmatmul.bf16.gmra.mxu0 %v531
  %v1188 = vpop.f32.mrf.mxu0
  %v1189 = vadd.f32 %v1140, %v1188
  %v1190 = vpop.f32.mrf.mxu0
  %v1191 = vadd.f32 %v1142, %v1190
  %1192 = vmatmul.bf16.gmra.mxu0 %v540
  %v1193 = vpop.f32.mrf.mxu0
  %v1194 = vadd.f32 %v1145, %v1193
  %v1195 = vpop.f32.mrf.mxu0
  %v1196 = vadd.f32 %v1147, %v1195
  %1197 = vdwg.mxu0
  %1198 = vmatpush.bf16.msra.mxu0 %v938
  %1199 = vmatpush.bf16.msra.mxu0 %v937
  %1200 = vmatpush.bf16.msra.mxu0 %v936
  %1201 = vmatpush.bf16.msra.mxu0 %v935
  %1202 = vmatpush.bf16.msra.mxu0 %v934
  %1203 = vmatpush.bf16.msra.mxu0 %v933
  %1204 = vmatpush.bf16.msra.mxu0 %v932
  %1205 = vmatpush.bf16.msra.mxu0 %v931
  %1206 = vmatmul.bf16.gmra.mxu0 %v478
  %v1207 = vpop.f32.mrf.mxu0
  %v1208 = vadd.f32 %v1159, %v1207
  %v1209 = vpop.f32.mrf.mxu0
  %v1210 = vadd.f32 %v1161, %v1209
  %1211 = vmatmul.bf16.gmra.mxu0 %v487
  %v1212 = vpop.f32.mrf.mxu0
  %v1213 = vadd.f32 %v1164, %v1212
  %v1214 = vpop.f32.mrf.mxu0
  %v1215 = vadd.f32 %v1166, %v1214
  %1216 = vmatmul.bf16.gmra.mxu0 %v496
  %v1217 = vpop.f32.mrf.mxu0
  %v1218 = vadd.f32 %v1169, %v1217
  %v1219 = vpop.f32.mrf.mxu0
  %v1220 = vadd.f32 %v1171, %v1219
  %1221 = vmatmul.bf16.gmra.mxu0 %v505
  %v1222 = vpop.f32.mrf.mxu0
  %v1223 = vadd.f32 %v1174, %v1222
  %v1224 = vpop.f32.mrf.mxu0
  %v1225 = vadd.f32 %v1176, %v1224
  %1226 = vmatmul.bf16.gmra.mxu0 %v514
  %v1227 = vpop.f32.mrf.mxu0
  %v1228 = vadd.f32 %v1179, %v1227
  %v1229 = vpop.f32.mrf.mxu0
  %v1230 = vadd.f32 %v1181, %v1229
  %1231 = vmatmul.bf16.gmra.mxu0 %v523
  %v1232 = vpop.f32.mrf.mxu0
  %v1233 = vadd.f32 %v1184, %v1232
  %v1234 = vpop.f32.mrf.mxu0
  %v1235 = vadd.f32 %v1186, %v1234
  %1236 = vmatmul.bf16.gmra.mxu0 %v532
  %v1237 = vpop.f32.mrf.mxu0
  %v1238 = vadd.f32 %v1189, %v1237
  %v1239 = vpop.f32.mrf.mxu0
  %v1240 = vadd.f32 %v1191, %v1239
  %1241 = vmatmul.bf16.gmra.mxu0 %v541
  %v1242 = vpop.f32.mrf.mxu0
  %v1243 = vadd.f32 %v1194, %v1242
  %v1244 = vpop.f32.mrf.mxu0
  %v1245 = vadd.f32 %v1196, %v1244
  %1246 = vdwg.mxu0
  %1247 = vmatpush.bf16.msra.mxu0 %v946
  %1248 = vmatpush.bf16.msra.mxu0 %v945
  %1249 = vmatpush.bf16.msra.mxu0 %v944
  %1250 = vmatpush.bf16.msra.mxu0 %v943
  %1251 = vmatpush.bf16.msra.mxu0 %v942
  %1252 = vmatpush.bf16.msra.mxu0 %v941
  %1253 = vmatpush.bf16.msra.mxu0 %v940
  %1254 = vmatpush.bf16.msra.mxu0 %v939
  %1255 = vmatmul.bf16.gmra.mxu0 %v479
  %v1256 = vpop.f32.mrf.mxu0
  %v1257 = vadd.f32 %v1208, %v1256
  %v1258 = vpop.f32.mrf.mxu0
  %v1259 = vadd.f32 %v1210, %v1258
  %1260 = vmatmul.bf16.gmra.mxu0 %v488
  %v1261 = vpop.f32.mrf.mxu0
  %v1262 = vadd.f32 %v1213, %v1261
  %v1263 = vpop.f32.mrf.mxu0
  %v1264 = vadd.f32 %v1215, %v1263
  %1265 = vmatmul.bf16.gmra.mxu0 %v497
  %v1266 = vpop.f32.mrf.mxu0
  %v1267 = vadd.f32 %v1218, %v1266
  %v1268 = vpop.f32.mrf.mxu0
  %v1269 = vadd.f32 %v1220, %v1268
  %1270 = vmatmul.bf16.gmra.mxu0 %v506
  %v1271 = vpop.f32.mrf.mxu0
  %v1272 = vadd.f32 %v1223, %v1271
  %v1273 = vpop.f32.mrf.mxu0
  %v1274 = vadd.f32 %v1225, %v1273
  %1275 = vmatmul.bf16.gmra.mxu0 %v515
  %v1276 = vpop.f32.mrf.mxu0
  %v1277 = vadd.f32 %v1228, %v1276
  %v1278 = vpop.f32.mrf.mxu0
  %v1279 = vadd.f32 %v1230, %v1278
  %1280 = vmatmul.bf16.gmra.mxu0 %v524
  %v1281 = vpop.f32.mrf.mxu0
  %v1282 = vadd.f32 %v1233, %v1281
  %v1283 = vpop.f32.mrf.mxu0
  %v1284 = vadd.f32 %v1235, %v1283
  %1285 = vmatmul.bf16.gmra.mxu0 %v533
  %v1286 = vpop.f32.mrf.mxu0
  %v1287 = vadd.f32 %v1238, %v1286
  %v1288 = vpop.f32.mrf.mxu0
  %v1289 = vadd.f32 %v1240, %v1288
  %1290 = vmatmul.bf16.gmra.mxu0 %v542
  %v1291 = vpop.f32.mrf.mxu0
  %v1292 = vadd.f32 %v1243, %v1291
  %v1293 = vpop.f32.mrf.mxu0
  %v1294 = vadd.f32 %v1245, %v1293
  %1295 = vdwg.mxu0
  %1296 = vmatpush.bf16.msra.mxu0 %v954
  %1297 = vmatpush.bf16.msra.mxu0 %v953
  %1298 = vmatpush.bf16.msra.mxu0 %v952
  %1299 = vmatpush.bf16.msra.mxu0 %v951
  %1300 = vmatpush.bf16.msra.mxu0 %v950
  %1301 = vmatpush.bf16.msra.mxu0 %v949
  %1302 = vmatpush.bf16.msra.mxu0 %v948
  %1303 = vmatpush.bf16.msra.mxu0 %v947
  %1304 = vmatmul.bf16.gmra.mxu0 %v480
  %v1305 = vpop.f32.mrf.mxu0
  %v1306 = vadd.f32 %v1257, %v1305
  %v1307 = vpop.f32.mrf.mxu0
  %v1308 = vadd.f32 %v1259, %v1307
  %1309 = vmatmul.bf16.gmra.mxu0 %v489
  %v1310 = vpop.f32.mrf.mxu0
  %v1311 = vadd.f32 %v1262, %v1310
  %v1312 = vpop.f32.mrf.mxu0
  %v1313 = vadd.f32 %v1264, %v1312
  %1314 = vmatmul.bf16.gmra.mxu0 %v498
  %v1315 = vpop.f32.mrf.mxu0
  %v1316 = vadd.f32 %v1267, %v1315
  %v1317 = vpop.f32.mrf.mxu0
  %v1318 = vadd.f32 %v1269, %v1317
  %1319 = vmatmul.bf16.gmra.mxu0 %v507
  %v1320 = vpop.f32.mrf.mxu0
  %v1321 = vadd.f32 %v1272, %v1320
  %v1322 = vpop.f32.mrf.mxu0
  %v1323 = vadd.f32 %v1274, %v1322
  %1324 = vmatmul.bf16.gmra.mxu0 %v516
  %v1325 = vpop.f32.mrf.mxu0
  %v1326 = vadd.f32 %v1277, %v1325
  %v1327 = vpop.f32.mrf.mxu0
  %v1328 = vadd.f32 %v1279, %v1327
  %1329 = vmatmul.bf16.gmra.mxu0 %v525
  %v1330 = vpop.f32.mrf.mxu0
  %v1331 = vadd.f32 %v1282, %v1330
  %v1332 = vpop.f32.mrf.mxu0
  %v1333 = vadd.f32 %v1284, %v1332
  %1334 = vmatmul.bf16.gmra.mxu0 %v534
  %v1335 = vpop.f32.mrf.mxu0
  %v1336 = vadd.f32 %v1287, %v1335
  %v1337 = vpop.f32.mrf.mxu0
  %v1338 = vadd.f32 %v1289, %v1337
  %1339 = vmatmul.bf16.gmra.mxu0 %v543
  %v1340 = vpop.f32.mrf.mxu0
  %v1341 = vadd.f32 %v1292, %v1340
  %v1342 = vpop.f32.mrf.mxu0
  %v1343 = vadd.f32 %v1294, %v1342
  %1344 = vdwg.mxu0
  %1345 = vmatpush.bf16.msra.mxu0 %v962
  %1346 = vmatpush.bf16.msra.mxu0 %v961
  %1347 = vmatpush.bf16.msra.mxu0 %v960
  %1348 = vmatpush.bf16.msra.mxu0 %v959
  %1349 = vmatpush.bf16.msra.mxu0 %v958
  %1350 = vmatpush.bf16.msra.mxu0 %v957
  %1351 = vmatpush.bf16.msra.mxu0 %v956
  %1352 = vmatpush.bf16.msra.mxu0 %v955
  %1353 = vmatmul.bf16.gmra.mxu0 %v481
  %v1354 = vpop.f32.mrf.mxu0
  %v1355 = vadd.f32 %v1306, %v1354
  %v1356 = vpop.f32.mrf.mxu0
  %v1357 = vadd.f32 %v1308, %v1356
  %1358 = vmatmul.bf16.gmra.mxu0 %v490
  %v1359 = vpop.f32.mrf.mxu0
  %v1360 = vadd.f32 %v1311, %v1359
  %v1361 = vpop.f32.mrf.mxu0
  %v1362 = vadd.f32 %v1313, %v1361
  %1363 = vmatmul.bf16.gmra.mxu0 %v499
  %v1364 = vpop.f32.mrf.mxu0
  %v1365 = vadd.f32 %v1316, %v1364
  %v1366 = vpop.f32.mrf.mxu0
  %v1367 = vadd.f32 %v1318, %v1366
  %1368 = vmatmul.bf16.gmra.mxu0 %v508
  %v1369 = vpop.f32.mrf.mxu0
  %v1370 = vadd.f32 %v1321, %v1369
  %v1371 = vpop.f32.mrf.mxu0
  %v1372 = vadd.f32 %v1323, %v1371
  %1373 = vmatmul.bf16.gmra.mxu0 %v517
  %v1374 = vpop.f32.mrf.mxu0
  %v1375 = vadd.f32 %v1326, %v1374
  %v1376 = vpop.f32.mrf.mxu0
  %v1377 = vadd.f32 %v1328, %v1376
  %1378 = vmatmul.bf16.gmra.mxu0 %v526
  %v1379 = vpop.f32.mrf.mxu0
  %v1380 = vadd.f32 %v1331, %v1379
  %v1381 = vpop.f32.mrf.mxu0
  %v1382 = vadd.f32 %v1333, %v1381
  %1383 = vmatmul.bf16.gmra.mxu0 %v535
  %v1384 = vpop.f32.mrf.mxu0
  %v1385 = vadd.f32 %v1336, %v1384
  %v1386 = vpop.f32.mrf.mxu0
  %v1387 = vadd.f32 %v1338, %v1386
  %1388 = vmatmul.bf16.gmra.mxu0 %v544
  %v1389 = vpop.f32.mrf.mxu0
  %v1390 = vadd.f32 %v1341, %v1389
  %v1391 = vpop.f32.mrf.mxu0
  %v1392 = vadd.f32 %v1343, %v1391
  %1393 = vdwg.mxu0
  %1394 = vmatpush.bf16.msra.mxu0 %v970
  %1395 = vmatpush.bf16.msra.mxu0 %v969
  %1396 = vmatpush.bf16.msra.mxu0 %v968
  %1397 = vmatpush.bf16.msra.mxu0 %v967
  %1398 = vmatpush.bf16.msra.mxu0 %v966
  %1399 = vmatpush.bf16.msra.mxu0 %v965
  %1400 = vmatpush.bf16.msra.mxu0 %v964
  %1401 = vmatpush.bf16.msra.mxu0 %v963
  %1402 = vmatmul.bf16.gmra.mxu0 %v482
  %v1403 = vpop.f32.mrf.mxu0
  %v1404 = vadd.f32 %v1355, %v1403
  %v1405 = vpop.f32.mrf.mxu0
  %v1406 = vadd.f32 %v1357, %v1405
  %1407 = vmatmul.bf16.gmra.mxu0 %v491
  %v1408 = vpop.f32.mrf.mxu0
  %v1409 = vadd.f32 %v1360, %v1408
  %v1410 = vpop.f32.mrf.mxu0
  %v1411 = vadd.f32 %v1362, %v1410
  %1412 = vmatmul.bf16.gmra.mxu0 %v500
  %v1413 = vpop.f32.mrf.mxu0
  %v1414 = vadd.f32 %v1365, %v1413
  %v1415 = vpop.f32.mrf.mxu0
  %v1416 = vadd.f32 %v1367, %v1415
  %1417 = vmatmul.bf16.gmra.mxu0 %v509
  %v1418 = vpop.f32.mrf.mxu0
  %v1419 = vadd.f32 %v1370, %v1418
  %v1420 = vpop.f32.mrf.mxu0
  %v1421 = vadd.f32 %v1372, %v1420
  %1422 = vmatmul.bf16.gmra.mxu0 %v518
  %v1423 = vpop.f32.mrf.mxu0
  %v1424 = vadd.f32 %v1375, %v1423
  %v1425 = vpop.f32.mrf.mxu0
  %v1426 = vadd.f32 %v1377, %v1425
  %1427 = vmatmul.bf16.gmra.mxu0 %v527
  %v1428 = vpop.f32.mrf.mxu0
  %v1429 = vadd.f32 %v1380, %v1428
  %v1430 = vpop.f32.mrf.mxu0
  %v1431 = vadd.f32 %v1382, %v1430
  %1432 = vmatmul.bf16.gmra.mxu0 %v536
  %v1433 = vpop.f32.mrf.mxu0
  %v1434 = vadd.f32 %v1385, %v1433
  %v1435 = vpop.f32.mrf.mxu0
  %v1436 = vadd.f32 %v1387, %v1435
  %1437 = vmatmul.bf16.gmra.mxu0 %v545
  %v1438 = vpop.f32.mrf.mxu0
  %v1439 = vadd.f32 %v1390, %v1438
  %v1440 = vpop.f32.mrf.mxu0
  %v1441 = vadd.f32 %v1392, %v1440
  %1442 = vdwg.mxu0
  %1443 = vmatpush.bf16.msra.mxu0 %v978
  %1444 = vmatpush.bf16.msra.mxu0 %v977
  %1445 = vmatpush.bf16.msra.mxu0 %v976
  %1446 = vmatpush.bf16.msra.mxu0 %v975
  %1447 = vmatpush.bf16.msra.mxu0 %v974
  %1448 = vmatpush.bf16.msra.mxu0 %v973
  %1449 = vmatpush.bf16.msra.mxu0 %v972
  %1450 = vmatpush.bf16.msra.mxu0 %v971
  %1451 = vmatmul.bf16.gmra.mxu0 %v483
  %v1452 = vpop.f32.mrf.mxu0
  %v1453 = vadd.f32 %v1404, %v1452
  %v1454 = vpop.f32.mrf.mxu0
  %v1455 = vadd.f32 %v1406, %v1454
  %1456 = vmatmul.bf16.gmra.mxu0 %v492
  %v1457 = vpop.f32.mrf.mxu0
  %v1458 = vadd.f32 %v1409, %v1457
  %v1459 = vpop.f32.mrf.mxu0
  %v1460 = vadd.f32 %v1411, %v1459
  %1461 = vmatmul.bf16.gmra.mxu0 %v501
  %v1462 = vpop.f32.mrf.mxu0
  %v1463 = vadd.f32 %v1414, %v1462
  %v1464 = vpop.f32.mrf.mxu0
  %v1465 = vadd.f32 %v1416, %v1464
  %1466 = vmatmul.bf16.gmra.mxu0 %v510
  %v1467 = vpop.f32.mrf.mxu0
  %v1468 = vadd.f32 %v1419, %v1467
  %v1469 = vpop.f32.mrf.mxu0
  %v1470 = vadd.f32 %v1421, %v1469
  %1471 = vmatmul.bf16.gmra.mxu0 %v519
  %v1472 = vpop.f32.mrf.mxu0
  %v1473 = vadd.f32 %v1424, %v1472
  %v1474 = vpop.f32.mrf.mxu0
  %v1475 = vadd.f32 %v1426, %v1474
  %1476 = vmatmul.bf16.gmra.mxu0 %v528
  %v1477 = vpop.f32.mrf.mxu0
  %v1478 = vadd.f32 %v1429, %v1477
  %v1479 = vpop.f32.mrf.mxu0
  %v1480 = vadd.f32 %v1431, %v1479
  %1481 = vmatmul.bf16.gmra.mxu0 %v537
  %v1482 = vpop.f32.mrf.mxu0
  %v1483 = vadd.f32 %v1434, %v1482
  %v1484 = vpop.f32.mrf.mxu0
  %v1485 = vadd.f32 %v1436, %v1484
  %1486 = vmatmul.bf16.gmra.mxu0 %v546
  %v1487 = vpop.f32.mrf.mxu0
  %v1488 = vadd.f32 %v1439, %v1487
  %v1489 = vpop.f32.mrf.mxu0
  %v1490 = vadd.f32 %v1441, %v1489
  %1491 = vdwg.mxu0
  %v1492 = vld [vmem:[%s3] sm:$0xf]
  %v1493 = vld [vmem:[%s3 + $0x4] sm:$0xf]
  %v1494 = vld [vmem:[%s3 + $0x8] sm:$0xf]
  %v1495 = vld [vmem:[%s3 + $0xc] sm:$0xf]
  %v1496 = vld [vmem:[%s3 + $0x10] sm:$0xf]
  %v1497 = vld [vmem:[%s3 + $0x14] sm:$0xf]
  %v1498 = vld [vmem:[%s3 + $0x18] sm:$0xf]
  %v1499 = vld [vmem:[%s3 + $0x1c] sm:$0xf]
  %v1500 = vld [vmem:[%s3 + $0x20] sm:$0xf]
  %v1501 = vld [vmem:[%s3 + $0x24] sm:$0xf]
  %v1502 = vld [vmem:[%s3 + $0x28] sm:$0xf]
  %v1503 = vld [vmem:[%s3 + $0x2c] sm:$0xf]
  %v1504 = vld [vmem:[%s3 + $0x30] sm:$0xf]
  %v1505 = vld [vmem:[%s3 + $0x34] sm:$0xf]
  %v1506 = vld [vmem:[%s3 + $0x38] sm:$0xf]
  %v1507 = vld [vmem:[%s3 + $0x3c] sm:$0xf]
  %v1508 = vld [vmem:[%s4] sm:$0xf]
  %v1509 = vld [vmem:[%s4 + $0x4] sm:$0xf]
  %v1510 = vld [vmem:[%s4 + $0x8] sm:$0xf]
  %v1511 = vld [vmem:[%s4 + $0xc] sm:$0xf]
  %v1512 = vld [vmem:[%s4 + $0x10] sm:$0xf]
  %v1513 = vld [vmem:[%s4 + $0x14] sm:$0xf]
  %v1514 = vld [vmem:[%s4 + $0x18] sm:$0xf]
  %v1515 = vld [vmem:[%s4 + $0x1c] sm:$0xf]
  %v1516 = vld [vmem:[%s4 + $0x20] sm:$0xf]
  %v1517 = vld [vmem:[%s4 + $0x24] sm:$0xf]
  %v1518 = vld [vmem:[%s4 + $0x28] sm:$0xf]
  %v1519 = vld [vmem:[%s4 + $0x2c] sm:$0xf]
  %v1520 = vld [vmem:[%s4 + $0x30] sm:$0xf]
  %v1521 = vld [vmem:[%s4 + $0x34] sm:$0xf]
  %v1522 = vld [vmem:[%s4 + $0x38] sm:$0xf]
  %v1523 = vld [vmem:[%s4 + $0x3c] sm:$0xf]
  %v1524 = vld [vmem:[%s5] sm:$0x1]
  %v1526 = vperm.slane %v1524, 0
  %v1544 = vunpack.c.l.b16 %v1492
  %v1545 = vunpack.c.l.b16 %v1493
  %v1546 = vunpack.c.l.b16 %v1494
  %v1547 = vunpack.c.l.b16 %v1495
  %v1548 = vunpack.c.l.b16 %v1496
  %v1549 = vunpack.c.l.b16 %v1497
  %v1550 = vunpack.c.l.b16 %v1498
  %v1551 = vunpack.c.l.b16 %v1499
  %v1552 = vunpack.c.l.b16 %v1500
  %v1553 = vunpack.c.l.b16 %v1501
  %v1554 = vunpack.c.l.b16 %v1502
  %v1555 = vunpack.c.l.b16 %v1503
  %v1556 = vunpack.c.l.b16 %v1504
  %v1557 = vunpack.c.l.b16 %v1505
  %v1558 = vunpack.c.l.b16 %v1506
  %v1559 = vunpack.c.l.b16 %v1507
  %v1560 = vpack.c.b16 %v1545, %v1544
  %v1561 = vpack.c.b16 %v1547, %v1546
  %v1562 = vpack.c.b16 %v1549, %v1548
  %v1563 = vpack.c.b16 %v1551, %v1550
  %v1564 = vpack.c.b16 %v1553, %v1552
  %v1565 = vpack.c.b16 %v1555, %v1554
  %v1566 = vpack.c.b16 %v1557, %v1556
  %v1567 = vpack.c.b16 %v1559, %v1558
  %v1592 = vunpack.c.l.b16 %v1508
  %v1593 = vunpack.c.l.b16 %v1509
  %v1594 = vunpack.c.l.b16 %v1510
  %v1595 = vunpack.c.l.b16 %v1511
  %v1596 = vunpack.c.l.b16 %v1512
  %v1597 = vunpack.c.l.b16 %v1513
  %v1598 = vunpack.c.l.b16 %v1514
  %v1599 = vunpack.c.l.b16 %v1515
  %v1600 = vunpack.c.l.b16 %v1516
  %v1601 = vunpack.c.l.b16 %v1517
  %v1602 = vunpack.c.l.b16 %v1518
  %v1603 = vunpack.c.l.b16 %v1519
  %v1604 = vunpack.c.l.b16 %v1520
  %v1605 = vunpack.c.l.b16 %v1521
  %v1606 = vunpack.c.l.b16 %v1522
  %v1607 = vunpack.c.l.b16 %v1523
  %v1608 = vpack.c.b16 %v1593, %v1592
  %v1609 = vpack.c.b16 %v1595, %v1594
  %v1610 = vpack.c.b16 %v1597, %v1596
  %v1611 = vpack.c.b16 %v1599, %v1598
  %v1612 = vpack.c.b16 %v1601, %v1600
  %v1613 = vpack.c.b16 %v1603, %v1602
  %v1614 = vpack.c.b16 %v1605, %v1604
  %v1615 = vpack.c.b16 %v1607, %v1606
  %1624 = vmatpush.bf16.msra.mxu0 %v1615
  %1625 = vmatpush.bf16.msra.mxu0 %v1614
  %1626 = vmatpush.bf16.msra.mxu0 %v1613
  %1627 = vmatpush.bf16.msra.mxu0 %v1612
  %1628 = vmatpush.bf16.msra.mxu0 %v1611
  %1629 = vmatpush.bf16.msra.mxu0 %v1610
  %1630 = vmatpush.bf16.msra.mxu0 %v1609
  %1631 = vmatpush.bf16.msra.mxu0 %v1608
  %1632 = vmatmul.bf16.gmra.mxu0 %v1560
  %v1633 = vpop.f32.mrf.mxu0
  %v1634 = vadd.f32 %v1526, %v1633
  %v1635 = vpop.f32.mrf.mxu0
  %v1636 = vadd.f32 %v1526, %v1635
  %1637 = vmatmul.bf16.gmra.mxu0 %v1561
  %v1638 = vpop.f32.mrf.mxu0
  %v1639 = vadd.f32 %v1526, %v1638
  %v1640 = vpop.f32.mrf.mxu0
  %v1641 = vadd.f32 %v1526, %v1640
  %1642 = vmatmul.bf16.gmra.mxu0 %v1562
  %v1643 = vpop.f32.mrf.mxu0
  %v1644 = vadd.f32 %v1526, %v1643
  %v1645 = vpop.f32.mrf.mxu0
  %v1646 = vadd.f32 %v1526, %v1645
  %1647 = vmatmul.bf16.gmra.mxu0 %v1563
  %v1648 = vpop.f32.mrf.mxu0
  %v1649 = vadd.f32 %v1526, %v1648
  %v1650 = vpop.f32.mrf.mxu0
  %v1651 = vadd.f32 %v1526, %v1650
  %1652 = vmatmul.bf16.gmra.mxu0 %v1564
  %v1653 = vpop.f32.mrf.mxu0
  %v1654 = vadd.f32 %v1526, %v1653
  %v1655 = vpop.f32.mrf.mxu0
  %v1656 = vadd.f32 %v1526, %v1655
  %1657 = vmatmul.bf16.gmra.mxu0 %v1565
  %v1658 = vpop.f32.mrf.mxu0
  %v1659 = vadd.f32 %v1526, %v1658
  %v1660 = vpop.f32.mrf.mxu0
  %v1661 = vadd.f32 %v1526, %v1660
  %1662 = vmatmul.bf16.gmra.mxu0 %v1566
  %v1663 = vpop.f32.mrf.mxu0
  %v1664 = vadd.f32 %v1526, %v1663
  %v1665 = vpop.f32.mrf.mxu0
  %v1666 = vadd.f32 %v1526, %v1665
  %1667 = vmatmul.bf16.gmra.mxu0 %v1567
  %v1668 = vpop.f32.mrf.mxu0
  %v1669 = vadd.f32 %v1526, %v1668
  %v1670 = vpop.f32.mrf.mxu0
  %v1671 = vadd.f32 %v1526, %v1670
  %1672 = vdwg.mxu0
  %v1673 = vadd.f32 %v1453, %v1634
  %v1674 = vadd.f32 %v1455, %v1636
  %v1675 = vadd.f32 %v1458, %v1639
  %v1676 = vadd.f32 %v1460, %v1641
  %v1677 = vadd.f32 %v1463, %v1644
  %v1678 = vadd.f32 %v1465, %v1646
  %v1679 = vadd.f32 %v1468, %v1649
  %v1680 = vadd.f32 %v1470, %v1651
  %v1681 = vadd.f32 %v1473, %v1654
  %v1682 = vadd.f32 %v1475, %v1656
  %v1683 = vadd.f32 %v1478, %v1659
  %v1684 = vadd.f32 %v1480, %v1661
  %v1685 = vadd.f32 %v1483, %v1664
  %v1686 = vadd.f32 %v1485, %v1666
  %v1687 = vadd.f32 %v1488, %v1669
  %v1688 = vadd.f32 %v1490, %v1671
  %v1689 = vmax.f32 %v1673, 0.0
  %v1690 = vmax.f32 %v1674, 0.0
  %v1691 = vmax.f32 %v1675, 0.0
  %v1692 = vmax.f32 %v1676, 0.0
  %v1693 = vmax.f32 %v1677, 0.0
  %v1694 = vmax.f32 %v1678, 0.0
  %v1695 = vmax.f32 %v1679, 0.0
  %v1696 = vmax.f32 %v1680, 0.0
  %v1697 = vmax.f32 %v1681, 0.0
  %v1698 = vmax.f32 %v1682, 0.0
  %v1699 = vmax.f32 %v1683, 0.0
  %v1700 = vmax.f32 %v1684, 0.0
  %v1701 = vmax.f32 %v1685, 0.0
  %v1702 = vmax.f32 %v1686, 0.0
  %v1703 = vmax.f32 %v1687, 0.0
  %v1704 = vmax.f32 %v1688, 0.0
  %v1705 = vpack.c.bf16 %v1689, %v1689
  %v1706 = vpack.c.bf16 %v1690, %v1690
  %v1707 = vpack.c.bf16 %v1691, %v1691
  %v1708 = vpack.c.bf16 %v1692, %v1692
  %v1709 = vpack.c.bf16 %v1693, %v1693
  %v1710 = vpack.c.bf16 %v1694, %v1694
  %v1711 = vpack.c.bf16 %v1695, %v1695
  %v1712 = vpack.c.bf16 %v1696, %v1696
  %v1713 = vpack.c.bf16 %v1697, %v1697
  %v1714 = vpack.c.bf16 %v1698, %v1698
  %v1715 = vpack.c.bf16 %v1699, %v1699
  %v1716 = vpack.c.bf16 %v1700, %v1700
  %v1717 = vpack.c.bf16 %v1701, %v1701
  %v1718 = vpack.c.bf16 %v1702, %v1702
  %v1719 = vpack.c.bf16 %v1703, %v1703
  %v1720 = vpack.c.bf16 %v1704, %v1704
  %1721 = vst [vmem:[%s6] sm:$0xf] %v1705
  %1722 = vst [vmem:[%s6 + $0x4] sm:$0xf] %v1706
  %1723 = vst [vmem:[%s6 + $0x8] sm:$0xf] %v1707
  %1724 = vst [vmem:[%s6 + $0xc] sm:$0xf] %v1708
  %1725 = vst [vmem:[%s6 + $0x10] sm:$0xf] %v1709
  %1726 = vst [vmem:[%s6 + $0x14] sm:$0xf] %v1710
  %1727 = vst [vmem:[%s6 + $0x18] sm:$0xf] %v1711
  %1728 = vst [vmem:[%s6 + $0x1c] sm:$0xf] %v1712
  %1729 = vst [vmem:[%s6 + $0x20] sm:$0xf] %v1713
  %1730 = vst [vmem:[%s6 + $0x24] sm:$0xf] %v1714
  %1731 = vst [vmem:[%s6 + $0x28] sm:$0xf] %v1715
  %1732 = vst [vmem:[%s6 + $0x2c] sm:$0xf] %v1716
  %1733 = vst [vmem:[%s6 + $0x30] sm:$0xf] %v1717
  %1734 = vst [vmem:[%s6 + $0x34] sm:$0xf] %v1718
  %1735 = vst [vmem:[%s6 + $0x38] sm:$0xf] %v1719
  %1736 = vst [vmem:[%s6 + $0x3c] sm:$0xf] %v1720
  // Predicated region
  $region26: #{encoder_forward.16} parent=0 // pred_check
    _
  $region27: #{encoder_forward.16} parent=0 // pred_check_branch
    %1738 = sbr.rel (0) target = $region29
  $region28: #{encoder_forward.16} parent=0 // pred_region
    _
  $region29: #{encoder_forward.16} parent=0 // pred_fallthru
    _
  // Predicated region
  $region30: #{encoder_forward.16} parent=0 // pred_check
    _
  $region31: #{encoder_forward.16} parent=0 // pred_check_branch
    %1740 = sbr.rel (0) target = $region33
  $region32: #{encoder_forward.16} parent=0 // pred_region
    _
  $region33: #{encoder_forward.16} parent=0 // pred_fallthru
    _

// kernel: encoder_forward.19
$region0: #{encoder_forward.19}
  #allocation0 [shape = 'u32[]', space=smem, size = 0x4, offset = 0x4, fixed_abs, tag = 'smem constant byte address 0x4 - core index']
  #allocation1 [shape = 'u32[72,128]{1,0:T(1,128)}', space=vmem, size = 0x9000, scoped, tag = 'internal scratch']
  %s0 = inlined_call_operand.vmem [shape: bf16[32,1152], index: 0, kind: input, shape index: {}]
  %s1 = inlined_call_operand.vmem [shape: bf16[1152,128], index: 1, kind: input, shape index: {}]
  %s2 = inlined_call_operand.vmem [shape: f32[1,128], index: 2, kind: input, shape index: {}]
  %s3 = inlined_call_operand.vmem [shape: bf16[32,128], index: 3, kind: output, shape index: {}]
  %s4 = sld [smem:[#allocation0]]
  $region22: #{encoder_forward.19} parent=0
    _
  %s6 = ssub.s32 1, %s4
  %s7 = scalar_select 0, %s6, %s4
  // Predicated region
  $region2: #{encoder_forward.19} parent=0 // pred_check
    _
  $region3: #{encoder_forward.19} parent=0 // pred_check_branch
    %9 = sbr.rel (0) target = $region5
  $region4: #{encoder_forward.19} parent=0 // pred_region
    _
  $region5: #{encoder_forward.19} parent=0 // pred_fallthru
    _
  // Predicated region
  $region6: #{encoder_forward.19} parent=0 // pred_check
    _
  $region7: #{encoder_forward.19} parent=0 // pred_check_branch
    %11 = sbr.rel (0) target = $region9
  $region8: #{encoder_forward.19} parent=0 // pred_region
    _
  $region9: #{encoder_forward.19} parent=0 // pred_fallthru
    _
  // Predicated region
  $region10: #{encoder_forward.19} parent=0 // pred_check
    _
  $region11: #{encoder_forward.19} parent=0 // pred_check_branch
    %13 = sbr.rel (0) target = $region13
  $region12: #{encoder_forward.19} parent=0 // pred_region
    _
  $region13: #{encoder_forward.19} parent=0 // pred_fallthru
    _
  %v14 = vld [vmem:[%s0] sm:$0xff]
  %v15 = vld [vmem:[%s0 + $0x8] sm:$0xff]
  %v16 = vld [vmem:[%s0 + $0x10] sm:$0xff]
  %v17 = vld [vmem:[%s0 + $0x18] sm:$0xff]
  %v18 = vld [vmem:[%s0 + $0x20] sm:$0xf]
  %v19 = vld [vmem:[%s0 + $0x24] sm:$0xff]
  %v20 = vld [vmem:[%s0 + $0x2c] sm:$0xff]
  %v21 = vld [vmem:[%s0 + $0x34] sm:$0xff]
  %v22 = vld [vmem:[%s0 + $0x3c] sm:$0xff]
  %v23 = vld [vmem:[%s0 + $0x44] sm:$0xf]
  %v24 = vld [vmem:[%s0 + $0x48] sm:$0xff]
  %v25 = vld [vmem:[%s0 + $0x50] sm:$0xff]
  %v26 = vld [vmem:[%s0 + $0x58] sm:$0xff]
  %v27 = vld [vmem:[%s0 + $0x60] sm:$0xff]
  %v28 = vld [vmem:[%s0 + $0x68] sm:$0xf]
  %v29 = vld [vmem:[%s0 + $0x6c] sm:$0xff]
  %v30 = vld [vmem:[%s0 + $0x74] sm:$0xff]
  %v31 = vld [vmem:[%s0 + $0x7c] sm:$0xff]
  %v32 = vld [vmem:[%s0 + $0x84] sm:$0xff]
  %v33 = vld [vmem:[%s0 + $0x8c] sm:$0xf]
  %v34 = vld [vmem:[%s1] sm:$0xf]
  %v35 = vld [vmem:[%s1 + $0x4] sm:$0xf]
  %v36 = vld [vmem:[%s1 + $0x8] sm:$0xf]
  %v37 = vld [vmem:[%s1 + $0xc] sm:$0xf]
  %v38 = vld [vmem:[%s1 + $0x10] sm:$0xf]
  %v39 = vld [vmem:[%s1 + $0x14] sm:$0xf]
  %v40 = vld [vmem:[%s1 + $0x18] sm:$0xf]
  %v41 = vld [vmem:[%s1 + $0x1c] sm:$0xf]
  %v42 = vld [vmem:[%s1 + $0x20] sm:$0xf]
  %v43 = vld [vmem:[%s1 + $0x24] sm:$0xf]
  %v44 = vld [vmem:[%s1 + $0x28] sm:$0xf]
  %v45 = vld [vmem:[%s1 + $0x2c] sm:$0xf]
  %v46 = vld [vmem:[%s1 + $0x30] sm:$0xf]
  %v47 = vld [vmem:[%s1 + $0x34] sm:$0xf]
  %v48 = vld [vmem:[%s1 + $0x38] sm:$0xf]
  %v49 = vld [vmem:[%s1 + $0x3c] sm:$0xf]
  %v50 = vld [vmem:[%s1 + $0x40] sm:$0xf]
  %v51 = vld [vmem:[%s1 + $0x44] sm:$0xf]
  %v52 = vld [vmem:[%s1 + $0x48] sm:$0xf]
  %v53 = vld [vmem:[%s1 + $0x4c] sm:$0xf]
  %v54 = vld [vmem:[%s1 + $0x50] sm:$0xf]
  %v55 = vld [vmem:[%s1 + $0x54] sm:$0xf]
  %v56 = vld [vmem:[%s1 + $0x58] sm:$0xf]
  %v57 = vld [vmem:[%s1 + $0x5c] sm:$0xf]
  %v58 = vld [vmem:[%s1 + $0x60] sm:$0xf]
  %v59 = vld [vmem:[%s1 + $0x64] sm:$0xf]
  %v60 = vld [vmem:[%s1 + $0x68] sm:$0xf]
  %v61 = vld [vmem:[%s1 + $0x6c] sm:$0xf]
  %v62 = vld [vmem:[%s1 + $0x70] sm:$0xf]
  %v63 = vld [vmem:[%s1 + $0x74] sm:$0xf]
  %v64 = vld [vmem:[%s1 + $0x78] sm:$0xf]
  %v65 = vld [vmem:[%s1 + $0x7c] sm:$0xf]
  %v66 = vld [vmem:[%s1 + $0x80] sm:$0xf]
  %v67 = vld [vmem:[%s1 + $0x84] sm:$0xf]
  %v68 = vld [vmem:[%s1 + $0x88] sm:$0xf]
  %v69 = vld [vmem:[%s1 + $0x8c] sm:$0xf]
  %v70 = vld [vmem:[%s1 + $0x90] sm:$0xf]
  %v71 = vld [vmem:[%s1 + $0x94] sm:$0xf]
  %v72 = vld [vmem:[%s1 + $0x98] sm:$0xf]
  %v73 = vld [vmem:[%s1 + $0x9c] sm:$0xf]
  %v74 = vld [vmem:[%s1 + $0xa0] sm:$0xf]
  %v75 = vld [vmem:[%s1 + $0xa4] sm:$0xf]
  %v76 = vld [vmem:[%s1 + $0xa8] sm:$0xf]
  %v77 = vld [vmem:[%s1 + $0xac] sm:$0xf]
  %v78 = vld [vmem:[%s1 + $0xb0] sm:$0xf]
  %v79 = vld [vmem:[%s1 + $0xb4] sm:$0xf]
  %v80 = vld [vmem:[%s1 + $0xb8] sm:$0xf]
  %v81 = vld [vmem:[%s1 + $0xbc] sm:$0xf]
  %v82 = vld [vmem:[%s1 + $0xc0] sm:$0xf]
  %v83 = vld [vmem:[%s1 + $0xc4] sm:$0xf]
  %v84 = vld [vmem:[%s1 + $0xc8] sm:$0xf]
  %v85 = vld [vmem:[%s1 + $0xcc] sm:$0xf]
  %v86 = vld [vmem:[%s1 + $0xd0] sm:$0xf]
  %v87 = vld [vmem:[%s1 + $0xd4] sm:$0xf]
  %v88 = vld [vmem:[%s1 + $0xd8] sm:$0xf]
  %v89 = vld [vmem:[%s1 + $0xdc] sm:$0xf]
  %v90 = vld [vmem:[%s1 + $0xe0] sm:$0xf]
  %v91 = vld [vmem:[%s1 + $0xe4] sm:$0xf]
  %v92 = vld [vmem:[%s1 + $0xe8] sm:$0xf]
  %v93 = vld [vmem:[%s1 + $0xec] sm:$0xf]
  %v94 = vld [vmem:[%s1 + $0xf0] sm:$0xf]
  %v95 = vld [vmem:[%s1 + $0xf4] sm:$0xf]
  %v96 = vld [vmem:[%s1 + $0xf8] sm:$0xf]
  %v97 = vld [vmem:[%s1 + $0xfc] sm:$0xf]
  %v98 = vld [vmem:[%s1 + $0x100] sm:$0xf]
  %v99 = vld [vmem:[%s1 + $0x104] sm:$0xf]
  %v100 = vld [vmem:[%s1 + $0x108] sm:$0xf]
  %v101 = vld [vmem:[%s1 + $0x10c] sm:$0xf]
  %v102 = vld [vmem:[%s1 + $0x110] sm:$0xf]
  %v103 = vld [vmem:[%s1 + $0x114] sm:$0xf]
  %v104 = vld [vmem:[%s1 + $0x118] sm:$0xf]
  %v105 = vld [vmem:[%s1 + $0x11c] sm:$0xf]
  %v106 = vld [vmem:[%s1 + $0x120] sm:$0xf]
  %v107 = vld [vmem:[%s1 + $0x124] sm:$0xf]
  %v108 = vld [vmem:[%s1 + $0x128] sm:$0xf]
  %v109 = vld [vmem:[%s1 + $0x12c] sm:$0xf]
  %v110 = vld [vmem:[%s1 + $0x130] sm:$0xf]
  %v111 = vld [vmem:[%s1 + $0x134] sm:$0xf]
  %v112 = vld [vmem:[%s1 + $0x138] sm:$0xf]
  %v113 = vld [vmem:[%s1 + $0x13c] sm:$0xf]
  %v114 = vld [vmem:[%s1 + $0x140] sm:$0xf]
  %v115 = vld [vmem:[%s1 + $0x144] sm:$0xf]
  %v116 = vld [vmem:[%s1 + $0x148] sm:$0xf]
  %v117 = vld [vmem:[%s1 + $0x14c] sm:$0xf]
  %v118 = vld [vmem:[%s1 + $0x150] sm:$0xf]
  %v119 = vld [vmem:[%s1 + $0x154] sm:$0xf]
  %v120 = vld [vmem:[%s1 + $0x158] sm:$0xf]
  %v121 = vld [vmem:[%s1 + $0x15c] sm:$0xf]
  %v122 = vld [vmem:[%s1 + $0x160] sm:$0xf]
  %v123 = vld [vmem:[%s1 + $0x164] sm:$0xf]
  %v124 = vld [vmem:[%s1 + $0x168] sm:$0xf]
  %v125 = vld [vmem:[%s1 + $0x16c] sm:$0xf]
  %v126 = vld [vmem:[%s1 + $0x170] sm:$0xf]
  %v127 = vld [vmem:[%s1 + $0x174] sm:$0xf]
  %v128 = vld [vmem:[%s1 + $0x178] sm:$0xf]
  %v129 = vld [vmem:[%s1 + $0x17c] sm:$0xf]
  %v130 = vld [vmem:[%s1 + $0x180] sm:$0xf]
  %v131 = vld [vmem:[%s1 + $0x184] sm:$0xf]
  %v132 = vld [vmem:[%s1 + $0x188] sm:$0xf]
  %v133 = vld [vmem:[%s1 + $0x18c] sm:$0xf]
  %v134 = vld [vmem:[%s1 + $0x190] sm:$0xf]
  %v135 = vld [vmem:[%s1 + $0x194] sm:$0xf]
  %v136 = vld [vmem:[%s1 + $0x198] sm:$0xf]
  %v137 = vld [vmem:[%s1 + $0x19c] sm:$0xf]
  %v138 = vld [vmem:[%s1 + $0x1a0] sm:$0xf]
  %v139 = vld [vmem:[%s1 + $0x1a4] sm:$0xf]
  %v140 = vld [vmem:[%s1 + $0x1a8] sm:$0xf]
  %v141 = vld [vmem:[%s1 + $0x1ac] sm:$0xf]
  %v142 = vld [vmem:[%s1 + $0x1b0] sm:$0xf]
  %v143 = vld [vmem:[%s1 + $0x1b4] sm:$0xf]
  %v144 = vld [vmem:[%s1 + $0x1b8] sm:$0xf]
  %v145 = vld [vmem:[%s1 + $0x1bc] sm:$0xf]
  %v146 = vld [vmem:[%s1 + $0x1c0] sm:$0xf]
  %v147 = vld [vmem:[%s1 + $0x1c4] sm:$0xf]
  %v148 = vld [vmem:[%s1 + $0x1c8] sm:$0xf]
  %v149 = vld [vmem:[%s1 + $0x1cc] sm:$0xf]
  %v150 = vld [vmem:[%s1 + $0x1d0] sm:$0xf]
  %v151 = vld [vmem:[%s1 + $0x1d4] sm:$0xf]
  %v152 = vld [vmem:[%s1 + $0x1d8] sm:$0xf]
  %v153 = vld [vmem:[%s1 + $0x1dc] sm:$0xf]
  %v154 = vld [vmem:[%s1 + $0x1e0] sm:$0xf]
  %v155 = vld [vmem:[%s1 + $0x1e4] sm:$0xf]
  %v156 = vld [vmem:[%s1 + $0x1e8] sm:$0xf]
  %v157 = vld [vmem:[%s1 + $0x1ec] sm:$0xf]
  %v158 = vld [vmem:[%s1 + $0x1f0] sm:$0xf]
  %v159 = vld [vmem:[%s1 + $0x1f4] sm:$0xf]
  %v160 = vld [vmem:[%s1 + $0x1f8] sm:$0xf]
  %v161 = vld [vmem:[%s1 + $0x1fc] sm:$0xf]
  %v162 = vld [vmem:[%s1 + $0x200] sm:$0xf]
  %v163 = vld [vmem:[%s1 + $0x204] sm:$0xf]
  %v164 = vld [vmem:[%s1 + $0x208] sm:$0xf]
  %v165 = vld [vmem:[%s1 + $0x20c] sm:$0xf]
  %v166 = vld [vmem:[%s1 + $0x210] sm:$0xf]
  %v167 = vld [vmem:[%s1 + $0x214] sm:$0xf]
  %v168 = vld [vmem:[%s1 + $0x218] sm:$0xf]
  %v169 = vld [vmem:[%s1 + $0x21c] sm:$0xf]
  %v170 = vld [vmem:[%s1 + $0x220] sm:$0xf]
  %v171 = vld [vmem:[%s1 + $0x224] sm:$0xf]
  %v172 = vld [vmem:[%s1 + $0x228] sm:$0xf]
  %v173 = vld [vmem:[%s1 + $0x22c] sm:$0xf]
  %v174 = vld [vmem:[%s1 + $0x230] sm:$0xf]
  %v175 = vld [vmem:[%s1 + $0x234] sm:$0xf]
  %v176 = vld [vmem:[%s1 + $0x238] sm:$0xf]
  %v177 = vld [vmem:[%s1 + $0x23c] sm:$0xf]
  %v178 = vld [vmem:[%s2] sm:$0x1]
  %v180 = vperm.slane %v178, 0
  %v202 = vunpack.c.l.b16 %v14
  %v203 = vunpack.c.h.b16 %v14
  %v204 = vunpack.c.l.b16 %v15
  %v205 = vunpack.c.h.b16 %v15
  %v206 = vunpack.c.l.b16 %v16
  %v207 = vunpack.c.h.b16 %v16
  %v208 = vunpack.c.l.b16 %v17
  %v209 = vunpack.c.h.b16 %v17
  %v210 = vunpack.c.l.b16 %v18
  %v211 = vunpack.c.l.b16 %v19
  %v212 = vunpack.c.h.b16 %v19
  %v213 = vunpack.c.l.b16 %v20
  %v214 = vunpack.c.h.b16 %v20
  %v215 = vunpack.c.l.b16 %v21
  %v216 = vunpack.c.h.b16 %v21
  %v217 = vunpack.c.l.b16 %v22
  %v218 = vunpack.c.h.b16 %v22
  %v219 = vunpack.c.l.b16 %v23
  %v220 = vunpack.c.l.b16 %v24
  %v221 = vunpack.c.h.b16 %v24
  %v222 = vunpack.c.l.b16 %v25
  %v223 = vunpack.c.h.b16 %v25
  %v224 = vunpack.c.l.b16 %v26
  %v225 = vunpack.c.h.b16 %v26
  %v226 = vunpack.c.l.b16 %v27
  %v227 = vunpack.c.h.b16 %v27
  %v228 = vunpack.c.l.b16 %v28
  %v229 = vunpack.c.l.b16 %v29
  %v230 = vunpack.c.h.b16 %v29
  %v231 = vunpack.c.l.b16 %v30
  %v232 = vunpack.c.h.b16 %v30
  %v233 = vunpack.c.l.b16 %v31
  %v234 = vunpack.c.h.b16 %v31
  %v235 = vunpack.c.l.b16 %v32
  %v236 = vunpack.c.h.b16 %v32
  %v237 = vunpack.c.l.b16 %v33
  %v238 = vpack.c.b16 %v211, %v202
  %v239 = vpack.c.b16 %v212, %v203
  %v240 = vpack.c.b16 %v213, %v204
  %v241 = vpack.c.b16 %v214, %v205
  %v242 = vpack.c.b16 %v215, %v206
  %v243 = vpack.c.b16 %v216, %v207
  %v244 = vpack.c.b16 %v217, %v208
  %v245 = vpack.c.b16 %v218, %v209
  %v246 = vpack.c.b16 %v219, %v210
  %v247 = vpack.c.b16 %v229, %v220
  %v248 = vpack.c.b16 %v230, %v221
  %v249 = vpack.c.b16 %v231, %v222
  %v250 = vpack.c.b16 %v232, %v223
  %v251 = vpack.c.b16 %v233, %v224
  %v252 = vpack.c.b16 %v234, %v225
  %v253 = vpack.c.b16 %v235, %v226
  %v254 = vpack.c.b16 %v236, %v227
  %v255 = vpack.c.b16 %v237, %v228
  %v418 = vunpack.c.l.b16 %v34
  %v419 = vunpack.c.l.b16 %v35
  %v420 = vunpack.c.l.b16 %v36
  %v421 = vunpack.c.l.b16 %v37
  %v422 = vunpack.c.l.b16 %v38
  %v423 = vunpack.c.l.b16 %v39
  %v424 = vunpack.c.l.b16 %v40
  %v425 = vunpack.c.l.b16 %v41
  %v426 = vunpack.c.l.b16 %v42
  %v427 = vunpack.c.l.b16 %v43
  %v428 = vunpack.c.l.b16 %v44
  %v429 = vunpack.c.l.b16 %v45
  %v430 = vunpack.c.l.b16 %v46
  %v431 = vunpack.c.l.b16 %v47
  %v432 = vunpack.c.l.b16 %v48
  %v433 = vunpack.c.l.b16 %v49
  %v434 = vunpack.c.l.b16 %v50
  %v435 = vunpack.c.l.b16 %v51
  %v436 = vunpack.c.l.b16 %v52
  %v437 = vunpack.c.l.b16 %v53
  %v438 = vunpack.c.l.b16 %v54
  %v439 = vunpack.c.l.b16 %v55
  %v440 = vunpack.c.l.b16 %v56
  %v441 = vunpack.c.l.b16 %v57
  %v442 = vunpack.c.l.b16 %v58
  %v443 = vunpack.c.l.b16 %v59
  %v444 = vunpack.c.l.b16 %v60
  %v445 = vunpack.c.l.b16 %v61
  %v446 = vunpack.c.l.b16 %v62
  %v447 = vunpack.c.l.b16 %v63
  %v448 = vunpack.c.l.b16 %v64
  %v449 = vunpack.c.l.b16 %v65
  %v450 = vunpack.c.l.b16 %v66
  %v451 = vunpack.c.l.b16 %v67
  %v452 = vunpack.c.l.b16 %v68
  %v453 = vunpack.c.l.b16 %v69
  %v454 = vunpack.c.l.b16 %v70
  %v455 = vunpack.c.l.b16 %v71
  %v456 = vunpack.c.l.b16 %v72
  %v457 = vunpack.c.l.b16 %v73
  %v458 = vunpack.c.l.b16 %v74
  %v459 = vunpack.c.l.b16 %v75
  %v460 = vunpack.c.l.b16 %v76
  %v461 = vunpack.c.l.b16 %v77
  %v462 = vunpack.c.l.b16 %v78
  %v463 = vunpack.c.l.b16 %v79
  %v464 = vunpack.c.l.b16 %v80
  %v465 = vunpack.c.l.b16 %v81
  %v466 = vunpack.c.l.b16 %v82
  %v467 = vunpack.c.l.b16 %v83
  %v468 = vunpack.c.l.b16 %v84
  %v469 = vunpack.c.l.b16 %v85
  %v470 = vunpack.c.l.b16 %v86
  %v471 = vunpack.c.l.b16 %v87
  %v472 = vunpack.c.l.b16 %v88
  %v473 = vunpack.c.l.b16 %v89
  %v474 = vunpack.c.l.b16 %v90
  %v475 = vunpack.c.l.b16 %v91
  %v476 = vunpack.c.l.b16 %v92
  %v477 = vunpack.c.l.b16 %v93
  %v478 = vunpack.c.l.b16 %v94
  %v479 = vunpack.c.l.b16 %v95
  %v480 = vunpack.c.l.b16 %v96
  %v481 = vunpack.c.l.b16 %v97
  %v482 = vunpack.c.l.b16 %v98
  %v483 = vunpack.c.l.b16 %v99
  %v484 = vunpack.c.l.b16 %v100
  %v485 = vunpack.c.l.b16 %v101
  %v486 = vunpack.c.l.b16 %v102
  %v487 = vunpack.c.l.b16 %v103
  %v488 = vunpack.c.l.b16 %v104
  %v489 = vunpack.c.l.b16 %v105
  %v490 = vunpack.c.l.b16 %v106
  %v491 = vunpack.c.l.b16 %v107
  %v492 = vunpack.c.l.b16 %v108
  %v493 = vunpack.c.l.b16 %v109
  %v494 = vunpack.c.l.b16 %v110
  %v495 = vunpack.c.l.b16 %v111
  %v496 = vunpack.c.l.b16 %v112
  %v497 = vunpack.c.l.b16 %v113
  %v498 = vunpack.c.l.b16 %v114
  %v499 = vunpack.c.l.b16 %v115
  %v500 = vunpack.c.l.b16 %v116
  %v501 = vunpack.c.l.b16 %v117
  %v502 = vunpack.c.l.b16 %v118
  %v503 = vunpack.c.l.b16 %v119
  %v504 = vunpack.c.l.b16 %v120
  %v505 = vunpack.c.l.b16 %v121
  %v506 = vunpack.c.l.b16 %v122
  %v507 = vunpack.c.l.b16 %v123
  %v508 = vunpack.c.l.b16 %v124
  %v509 = vunpack.c.l.b16 %v125
  %v510 = vunpack.c.l.b16 %v126
  %v511 = vunpack.c.l.b16 %v127
  %v512 = vunpack.c.l.b16 %v128
  %v513 = vunpack.c.l.b16 %v129
  %v514 = vunpack.c.l.b16 %v130
  %v515 = vunpack.c.l.b16 %v131
  %v516 = vunpack.c.l.b16 %v132
  %v517 = vunpack.c.l.b16 %v133
  %v518 = vunpack.c.l.b16 %v134
  %v519 = vunpack.c.l.b16 %v135
  %v520 = vunpack.c.l.b16 %v136
  %v521 = vunpack.c.l.b16 %v137
  %v522 = vunpack.c.l.b16 %v138
  %v523 = vunpack.c.l.b16 %v139
  %v524 = vunpack.c.l.b16 %v140
  %v525 = vunpack.c.l.b16 %v141
  %v526 = vunpack.c.l.b16 %v142
  %v527 = vunpack.c.l.b16 %v143
  %v528 = vunpack.c.l.b16 %v144
  %v529 = vunpack.c.l.b16 %v145
  %v530 = vunpack.c.l.b16 %v146
  %v531 = vunpack.c.l.b16 %v147
  %v532 = vunpack.c.l.b16 %v148
  %v533 = vunpack.c.l.b16 %v149
  %v534 = vunpack.c.l.b16 %v150
  %v535 = vunpack.c.l.b16 %v151
  %v536 = vunpack.c.l.b16 %v152
  %v537 = vunpack.c.l.b16 %v153
  %v538 = vunpack.c.l.b16 %v154
  %v539 = vunpack.c.l.b16 %v155
  %v540 = vunpack.c.l.b16 %v156
  %v541 = vunpack.c.l.b16 %v157
  %v542 = vunpack.c.l.b16 %v158
  %v543 = vunpack.c.l.b16 %v159
  %v544 = vunpack.c.l.b16 %v160
  %v545 = vunpack.c.l.b16 %v161
  %v546 = vunpack.c.l.b16 %v162
  %v547 = vunpack.c.l.b16 %v163
  %v548 = vunpack.c.l.b16 %v164
  %v549 = vunpack.c.l.b16 %v165
  %v550 = vunpack.c.l.b16 %v166
  %v551 = vunpack.c.l.b16 %v167
  %v552 = vunpack.c.l.b16 %v168
  %v553 = vunpack.c.l.b16 %v169
  %v554 = vunpack.c.l.b16 %v170
  %v555 = vunpack.c.l.b16 %v171
  %v556 = vunpack.c.l.b16 %v172
  %v557 = vunpack.c.l.b16 %v173
  %v558 = vunpack.c.l.b16 %v174
  %v559 = vunpack.c.l.b16 %v175
  %v560 = vunpack.c.l.b16 %v176
  %v561 = vunpack.c.l.b16 %v177
  %v562 = vpack.c.b16 %v419, %v418
  %v563 = vpack.c.b16 %v421, %v420
  %v564 = vpack.c.b16 %v423, %v422
  %v565 = vpack.c.b16 %v425, %v424
  %v566 = vpack.c.b16 %v427, %v426
  %v567 = vpack.c.b16 %v429, %v428
  %v568 = vpack.c.b16 %v431, %v430
  %v569 = vpack.c.b16 %v433, %v432
  %v570 = vpack.c.b16 %v435, %v434
  %v571 = vpack.c.b16 %v437, %v436
  %v572 = vpack.c.b16 %v439, %v438
  %v573 = vpack.c.b16 %v441, %v440
  %v574 = vpack.c.b16 %v443, %v442
  %v575 = vpack.c.b16 %v445, %v444
  %v576 = vpack.c.b16 %v447, %v446
  %v577 = vpack.c.b16 %v449, %v448
  %v578 = vpack.c.b16 %v451, %v450
  %v579 = vpack.c.b16 %v453, %v452
  %v580 = vpack.c.b16 %v455, %v454
  %v581 = vpack.c.b16 %v457, %v456
  %v582 = vpack.c.b16 %v459, %v458
  %v583 = vpack.c.b16 %v461, %v460
  %v584 = vpack.c.b16 %v463, %v462
  %v585 = vpack.c.b16 %v465, %v464
  %v586 = vpack.c.b16 %v467, %v466
  %v587 = vpack.c.b16 %v469, %v468
  %v588 = vpack.c.b16 %v471, %v470
  %v589 = vpack.c.b16 %v473, %v472
  %v590 = vpack.c.b16 %v475, %v474
  %v591 = vpack.c.b16 %v477, %v476
  %v592 = vpack.c.b16 %v479, %v478
  %v593 = vpack.c.b16 %v481, %v480
  %v594 = vpack.c.b16 %v483, %v482
  %v595 = vpack.c.b16 %v485, %v484
  %v596 = vpack.c.b16 %v487, %v486
  %v597 = vpack.c.b16 %v489, %v488
  %v598 = vpack.c.b16 %v491, %v490
  %v599 = vpack.c.b16 %v493, %v492
  %v600 = vpack.c.b16 %v495, %v494
  %v601 = vpack.c.b16 %v497, %v496
  %v602 = vpack.c.b16 %v499, %v498
  %v603 = vpack.c.b16 %v501, %v500
  %v604 = vpack.c.b16 %v503, %v502
  %v605 = vpack.c.b16 %v505, %v504
  %v606 = vpack.c.b16 %v507, %v506
  %v607 = vpack.c.b16 %v509, %v508
  %v608 = vpack.c.b16 %v511, %v510
  %v609 = vpack.c.b16 %v513, %v512
  %v610 = vpack.c.b16 %v515, %v514
  %v611 = vpack.c.b16 %v517, %v516
  %v612 = vpack.c.b16 %v519, %v518
  %v613 = vpack.c.b16 %v521, %v520
  %v614 = vpack.c.b16 %v523, %v522
  %v615 = vpack.c.b16 %v525, %v524
  %v616 = vpack.c.b16 %v527, %v526
  %v617 = vpack.c.b16 %v529, %v528
  %v618 = vpack.c.b16 %v531, %v530
  %v619 = vpack.c.b16 %v533, %v532
  %v620 = vpack.c.b16 %v535, %v534
  %v621 = vpack.c.b16 %v537, %v536
  %v622 = vpack.c.b16 %v539, %v538
  %v623 = vpack.c.b16 %v541, %v540
  %v624 = vpack.c.b16 %v543, %v542
  %v625 = vpack.c.b16 %v545, %v544
  %v626 = vpack.c.b16 %v547, %v546
  %v627 = vpack.c.b16 %v549, %v548
  %v628 = vpack.c.b16 %v551, %v550
  %v629 = vpack.c.b16 %v553, %v552
  %v630 = vpack.c.b16 %v555, %v554
  %v631 = vpack.c.b16 %v557, %v556
  %v632 = vpack.c.b16 %v559, %v558
  %v633 = vpack.c.b16 %v561, %v560
  %706 = vmatpush.bf16.msra.mxu0 %v569
  %707 = vmatpush.bf16.msra.mxu0 %v568
  %708 = vmatpush.bf16.msra.mxu0 %v567
  %709 = vmatpush.bf16.msra.mxu0 %v566
  %710 = vmatpush.bf16.msra.mxu0 %v565
  %711 = vmatpush.bf16.msra.mxu0 %v564
  %712 = vmatpush.bf16.msra.mxu0 %v563
  %713 = vmatpush.bf16.msra.mxu0 %v562
  %714 = vmatmul.bf16.gmra.mxu0 %v238
  %v715 = vpop.f32.mrf.mxu0
  %v716 = vadd.f32 %v180, %v715
  %v717 = vpop.f32.mrf.mxu0
  %v718 = vadd.f32 %v180, %v717
  %719 = vmatmul.bf16.gmra.mxu0 %v247
  %v720 = vpop.f32.mrf.mxu0
  %v721 = vadd.f32 %v180, %v720
  %v722 = vpop.f32.mrf.mxu0
  %v723 = vadd.f32 %v180, %v722
  %724 = vdwg.mxu0
  %725 = vmatpush.bf16.msra.mxu0 %v577
  %726 = vmatpush.bf16.msra.mxu0 %v576
  %727 = vmatpush.bf16.msra.mxu0 %v575
  %728 = vmatpush.bf16.msra.mxu0 %v574
  %729 = vmatpush.bf16.msra.mxu0 %v573
  %730 = vmatpush.bf16.msra.mxu0 %v572
  %731 = vmatpush.bf16.msra.mxu0 %v571
  %732 = vmatpush.bf16.msra.mxu0 %v570
  %733 = vmatmul.bf16.gmra.mxu0 %v239
  %v734 = vpop.f32.mrf.mxu0
  %v735 = vadd.f32 %v716, %v734
  %v736 = vpop.f32.mrf.mxu0
  %v737 = vadd.f32 %v718, %v736
  %738 = vmatmul.bf16.gmra.mxu0 %v248
  %v739 = vpop.f32.mrf.mxu0
  %v740 = vadd.f32 %v721, %v739
  %v741 = vpop.f32.mrf.mxu0
  %v742 = vadd.f32 %v723, %v741
  %743 = vdwg.mxu0
  %744 = vmatpush.bf16.msra.mxu0 %v585
  %745 = vmatpush.bf16.msra.mxu0 %v584
  %746 = vmatpush.bf16.msra.mxu0 %v583
  %747 = vmatpush.bf16.msra.mxu0 %v582
  %748 = vmatpush.bf16.msra.mxu0 %v581
  %749 = vmatpush.bf16.msra.mxu0 %v580
  %750 = vmatpush.bf16.msra.mxu0 %v579
  %751 = vmatpush.bf16.msra.mxu0 %v578
  %752 = vmatmul.bf16.gmra.mxu0 %v240
  %v753 = vpop.f32.mrf.mxu0
  %v754 = vadd.f32 %v735, %v753
  %v755 = vpop.f32.mrf.mxu0
  %v756 = vadd.f32 %v737, %v755
  %757 = vmatmul.bf16.gmra.mxu0 %v249
  %v758 = vpop.f32.mrf.mxu0
  %v759 = vadd.f32 %v740, %v758
  %v760 = vpop.f32.mrf.mxu0
  %v761 = vadd.f32 %v742, %v760
  %762 = vdwg.mxu0
  %763 = vmatpush.bf16.msra.mxu0 %v593
  %764 = vmatpush.bf16.msra.mxu0 %v592
  %765 = vmatpush.bf16.msra.mxu0 %v591
  %766 = vmatpush.bf16.msra.mxu0 %v590
  %767 = vmatpush.bf16.msra.mxu0 %v589
  %768 = vmatpush.bf16.msra.mxu0 %v588
  %769 = vmatpush.bf16.msra.mxu0 %v587
  %770 = vmatpush.bf16.msra.mxu0 %v586
  %771 = vmatmul.bf16.gmra.mxu0 %v241
  %v772 = vpop.f32.mrf.mxu0
  %v773 = vadd.f32 %v754, %v772
  %v774 = vpop.f32.mrf.mxu0
  %v775 = vadd.f32 %v756, %v774
  %776 = vmatmul.bf16.gmra.mxu0 %v250
  %v777 = vpop.f32.mrf.mxu0
  %v778 = vadd.f32 %v759, %v777
  %v779 = vpop.f32.mrf.mxu0
  %v780 = vadd.f32 %v761, %v779
  %781 = vdwg.mxu0
  %782 = vmatpush.bf16.msra.mxu0 %v601
  %783 = vmatpush.bf16.msra.mxu0 %v600
  %784 = vmatpush.bf16.msra.mxu0 %v599
  %785 = vmatpush.bf16.msra.mxu0 %v598
  %786 = vmatpush.bf16.msra.mxu0 %v597
  %787 = vmatpush.bf16.msra.mxu0 %v596
  %788 = vmatpush.bf16.msra.mxu0 %v595
  %789 = vmatpush.bf16.msra.mxu0 %v594
  %790 = vmatmul.bf16.gmra.mxu0 %v242
  %v791 = vpop.f32.mrf.mxu0
  %v792 = vadd.f32 %v773, %v791
  %v793 = vpop.f32.mrf.mxu0
  %v794 = vadd.f32 %v775, %v793
  %795 = vmatmul.bf16.gmra.mxu0 %v251
  %v796 = vpop.f32.mrf.mxu0
  %v797 = vadd.f32 %v778, %v796
  %v798 = vpop.f32.mrf.mxu0
  %v799 = vadd.f32 %v780, %v798
  %800 = vdwg.mxu0
  %801 = vmatpush.bf16.msra.mxu0 %v609
  %802 = vmatpush.bf16.msra.mxu0 %v608
  %803 = vmatpush.bf16.msra.mxu0 %v607
  %804 = vmatpush.bf16.msra.mxu0 %v606
  %805 = vmatpush.bf16.msra.mxu0 %v605
  %806 = vmatpush.bf16.msra.mxu0 %v604
  %807 = vmatpush.bf16.msra.mxu0 %v603
  %808 = vmatpush.bf16.msra.mxu0 %v602
  %809 = vmatmul.bf16.gmra.mxu0 %v243
  %v810 = vpop.f32.mrf.mxu0
  %v811 = vadd.f32 %v792, %v810
  %v812 = vpop.f32.mrf.mxu0
  %v813 = vadd.f32 %v794, %v812
  %814 = vmatmul.bf16.gmra.mxu0 %v252
  %v815 = vpop.f32.mrf.mxu0
  %v816 = vadd.f32 %v797, %v815
  %v817 = vpop.f32.mrf.mxu0
  %v818 = vadd.f32 %v799, %v817
  %819 = vdwg.mxu0
  %820 = vmatpush.bf16.msra.mxu0 %v617
  %821 = vmatpush.bf16.msra.mxu0 %v616
  %822 = vmatpush.bf16.msra.mxu0 %v615
  %823 = vmatpush.bf16.msra.mxu0 %v614
  %824 = vmatpush.bf16.msra.mxu0 %v613
  %825 = vmatpush.bf16.msra.mxu0 %v612
  %826 = vmatpush.bf16.msra.mxu0 %v611
  %827 = vmatpush.bf16.msra.mxu0 %v610
  %828 = vmatmul.bf16.gmra.mxu0 %v244
  %v829 = vpop.f32.mrf.mxu0
  %v830 = vadd.f32 %v811, %v829
  %v831 = vpop.f32.mrf.mxu0
  %v832 = vadd.f32 %v813, %v831
  %833 = vmatmul.bf16.gmra.mxu0 %v253
  %v834 = vpop.f32.mrf.mxu0
  %v835 = vadd.f32 %v816, %v834
  %v836 = vpop.f32.mrf.mxu0
  %v837 = vadd.f32 %v818, %v836
  %838 = vdwg.mxu0
  %839 = vmatpush.bf16.msra.mxu0 %v625
  %840 = vmatpush.bf16.msra.mxu0 %v624
  %841 = vmatpush.bf16.msra.mxu0 %v623
  %842 = vmatpush.bf16.msra.mxu0 %v622
  %843 = vmatpush.bf16.msra.mxu0 %v621
  %844 = vmatpush.bf16.msra.mxu0 %v620
  %845 = vmatpush.bf16.msra.mxu0 %v619
  %846 = vmatpush.bf16.msra.mxu0 %v618
  %847 = vmatmul.bf16.gmra.mxu0 %v245
  %v848 = vpop.f32.mrf.mxu0
  %v849 = vadd.f32 %v830, %v848
  %v850 = vpop.f32.mrf.mxu0
  %v851 = vadd.f32 %v832, %v850
  %852 = vmatmul.bf16.gmra.mxu0 %v254
  %v853 = vpop.f32.mrf.mxu0
  %v854 = vadd.f32 %v835, %v853
  %v855 = vpop.f32.mrf.mxu0
  %v856 = vadd.f32 %v837, %v855
  %857 = vdwg.mxu0
  %858 = vmatpush.bf16.msra.mxu0 %v633
  %859 = vmatpush.bf16.msra.mxu0 %v632
  %860 = vmatpush.bf16.msra.mxu0 %v631
  %861 = vmatpush.bf16.msra.mxu0 %v630
  %862 = vmatpush.bf16.msra.mxu0 %v629
  %863 = vmatpush.bf16.msra.mxu0 %v628
  %864 = vmatpush.bf16.msra.mxu0 %v627
  %865 = vmatpush.bf16.msra.mxu0 %v626
  %866 = vmatmul.bf16.gmra.mxu0 %v246
  %v867 = vpop.f32.mrf.mxu0
  %v868 = vadd.f32 %v849, %v867
  %v869 = vpop.f32.mrf.mxu0
  %v870 = vadd.f32 %v851, %v869
  %871 = vmatmul.bf16.gmra.mxu0 %v255
  %v872 = vpop.f32.mrf.mxu0
  %v873 = vadd.f32 %v854, %v872
  %v874 = vpop.f32.mrf.mxu0
  %v875 = vadd.f32 %v856, %v874
  %876 = vdwg.mxu0
  %v877 = vmax.f32 %v868, 0.0
  %v878 = vmax.f32 %v870, 0.0
  %v879 = vmax.f32 %v873, 0.0
  %v880 = vmax.f32 %v875, 0.0
  %v881 = vpack.c.bf16 %v877, %v877
  %v882 = vpack.c.bf16 %v878, %v878
  %v883 = vpack.c.bf16 %v879, %v879
  %v884 = vpack.c.bf16 %v880, %v880
  %885 = vst [vmem:[%s3] sm:$0xf] %v881
  %886 = vst [vmem:[%s3 + $0x4] sm:$0xf] %v882
  %887 = vst [vmem:[%s3 + $0x8] sm:$0xf] %v883
  %888 = vst [vmem:[%s3 + $0xc] sm:$0xf] %v884
  // Predicated region
  $region14: #{encoder_forward.19} parent=0 // pred_check
    _
  $region15: #{encoder_forward.19} parent=0 // pred_check_branch
    %890 = sbr.rel (0) target = $region17
  $region16: #{encoder_forward.19} parent=0 // pred_region
    _
  $region17: #{encoder_forward.19} parent=0 // pred_fallthru
    _
  // Predicated region
  $region18: #{encoder_forward.19} parent=0 // pred_check
    _
  $region19: #{encoder_forward.19} parent=0 // pred_check_branch
    %892 = sbr.rel (0) target = $region21
  $region20: #{encoder_forward.19} parent=0 // pred_region
    _
  $region21: #{encoder_forward.19} parent=0 // pred_fallthru
    _

// kernel: encoder_forward.22
$region0: #{encoder_forward.22}
  #allocation0 [shape = 'u32[]', space=smem, size = 0x4, offset = 0x4, fixed_abs, tag = 'smem constant byte address 0x4 - core index']
  #allocation1 [shape = 'u32[72,128]{1,0:T(1,128)}', space=vmem, size = 0x9000, scoped, tag = 'internal scratch']
  %s0 = inlined_call_operand.vmem [shape: bf16[32,1152], index: 0, kind: input, shape index: {}]
  %s1 = inlined_call_operand.vmem [shape: bf16[1152,128], index: 1, kind: input, shape index: {}]
  %s2 = inlined_call_operand.vmem [shape: f32[1,128], index: 2, kind: input, shape index: {}]
  %s3 = inlined_call_operand.vmem [shape: bf16[32,128], index: 3, kind: input, shape index: {}]
  %s4 = inlined_call_operand.vmem [shape: bf16[32,128], index: 4, kind: output, shape index: {}]
  %s5 = sld [smem:[#allocation0]]
  $region26: #{encoder_forward.22} parent=0
    _
  %s7 = ssub.s32 1, %s5
  %s8 = scalar_select 0, %s7, %s5
  // Predicated region
  $region2: #{encoder_forward.22} parent=0 // pred_check
    _
  $region3: #{encoder_forward.22} parent=0 // pred_check_branch
    %10 = sbr.rel (0) target = $region5
  $region4: #{encoder_forward.22} parent=0 // pred_region
    _
  $region5: #{encoder_forward.22} parent=0 // pred_fallthru
    _
  // Predicated region
  $region6: #{encoder_forward.22} parent=0 // pred_check
    _
  $region7: #{encoder_forward.22} parent=0 // pred_check_branch
    %12 = sbr.rel (0) target = $region9
  $region8: #{encoder_forward.22} parent=0 // pred_region
    _
  $region9: #{encoder_forward.22} parent=0 // pred_fallthru
    _
  // Predicated region
  $region10: #{encoder_forward.22} parent=0 // pred_check
    _
  $region11: #{encoder_forward.22} parent=0 // pred_check_branch
    %14 = sbr.rel (0) target = $region13
  $region12: #{encoder_forward.22} parent=0 // pred_region
    _
  $region13: #{encoder_forward.22} parent=0 // pred_fallthru
    _
  // Predicated region
  $region14: #{encoder_forward.22} parent=0 // pred_check
    _
  $region15: #{encoder_forward.22} parent=0 // pred_check_branch
    %16 = sbr.rel (0) target = $region17
  $region16: #{encoder_forward.22} parent=0 // pred_region
    _
  $region17: #{encoder_forward.22} parent=0 // pred_fallthru
    _
  %v17 = vld [vmem:[%s0] sm:$0xff]
  %v18 = vld [vmem:[%s0 + $0x8] sm:$0xff]
  %v19 = vld [vmem:[%s0 + $0x10] sm:$0xff]
  %v20 = vld [vmem:[%s0 + $0x18] sm:$0xff]
  %v21 = vld [vmem:[%s0 + $0x20] sm:$0xf]
  %v22 = vld [vmem:[%s0 + $0x24] sm:$0xff]
  %v23 = vld [vmem:[%s0 + $0x2c] sm:$0xff]
  %v24 = vld [vmem:[%s0 + $0x34] sm:$0xff]
  %v25 = vld [vmem:[%s0 + $0x3c] sm:$0xff]
  %v26 = vld [vmem:[%s0 + $0x44] sm:$0xf]
  %v27 = vld [vmem:[%s0 + $0x48] sm:$0xff]
  %v28 = vld [vmem:[%s0 + $0x50] sm:$0xff]
  %v29 = vld [vmem:[%s0 + $0x58] sm:$0xff]
  %v30 = vld [vmem:[%s0 + $0x60] sm:$0xff]
  %v31 = vld [vmem:[%s0 + $0x68] sm:$0xf]
  %v32 = vld [vmem:[%s0 + $0x6c] sm:$0xff]
  %v33 = vld [vmem:[%s0 + $0x74] sm:$0xff]
  %v34 = vld [vmem:[%s0 + $0x7c] sm:$0xff]
  %v35 = vld [vmem:[%s0 + $0x84] sm:$0xff]
  %v36 = vld [vmem:[%s0 + $0x8c] sm:$0xf]
  %v37 = vld [vmem:[%s1] sm:$0xf]
  %v38 = vld [vmem:[%s1 + $0x4] sm:$0xf]
  %v39 = vld [vmem:[%s1 + $0x8] sm:$0xf]
  %v40 = vld [vmem:[%s1 + $0xc] sm:$0xf]
  %v41 = vld [vmem:[%s1 + $0x10] sm:$0xf]
  %v42 = vld [vmem:[%s1 + $0x14] sm:$0xf]
  %v43 = vld [vmem:[%s1 + $0x18] sm:$0xf]
  %v44 = vld [vmem:[%s1 + $0x1c] sm:$0xf]
  %v45 = vld [vmem:[%s1 + $0x20] sm:$0xf]
  %v46 = vld [vmem:[%s1 + $0x24] sm:$0xf]
  %v47 = vld [vmem:[%s1 + $0x28] sm:$0xf]
  %v48 = vld [vmem:[%s1 + $0x2c] sm:$0xf]
  %v49 = vld [vmem:[%s1 + $0x30] sm:$0xf]
  %v50 = vld [vmem:[%s1 + $0x34] sm:$0xf]
  %v51 = vld [vmem:[%s1 + $0x38] sm:$0xf]
  %v52 = vld [vmem:[%s1 + $0x3c] sm:$0xf]
  %v53 = vld [vmem:[%s1 + $0x40] sm:$0xf]
  %v54 = vld [vmem:[%s1 + $0x44] sm:$0xf]
  %v55 = vld [vmem:[%s1 + $0x48] sm:$0xf]
  %v56 = vld [vmem:[%s1 + $0x4c] sm:$0xf]
  %v57 = vld [vmem:[%s1 + $0x50] sm:$0xf]
  %v58 = vld [vmem:[%s1 + $0x54] sm:$0xf]
  %v59 = vld [vmem:[%s1 + $0x58] sm:$0xf]
  %v60 = vld [vmem:[%s1 + $0x5c] sm:$0xf]
  %v61 = vld [vmem:[%s1 + $0x60] sm:$0xf]
  %v62 = vld [vmem:[%s1 + $0x64] sm:$0xf]
  %v63 = vld [vmem:[%s1 + $0x68] sm:$0xf]
  %v64 = vld [vmem:[%s1 + $0x6c] sm:$0xf]
  %v65 = vld [vmem:[%s1 + $0x70] sm:$0xf]
  %v66 = vld [vmem:[%s1 + $0x74] sm:$0xf]
  %v67 = vld [vmem:[%s1 + $0x78] sm:$0xf]
  %v68 = vld [vmem:[%s1 + $0x7c] sm:$0xf]
  %v69 = vld [vmem:[%s1 + $0x80] sm:$0xf]
  %v70 = vld [vmem:[%s1 + $0x84] sm:$0xf]
  %v71 = vld [vmem:[%s1 + $0x88] sm:$0xf]
  %v72 = vld [vmem:[%s1 + $0x8c] sm:$0xf]
  %v73 = vld [vmem:[%s1 + $0x90] sm:$0xf]
  %v74 = vld [vmem:[%s1 + $0x94] sm:$0xf]
  %v75 = vld [vmem:[%s1 + $0x98] sm:$0xf]
  %v76 = vld [vmem:[%s1 + $0x9c] sm:$0xf]
  %v77 = vld [vmem:[%s1 + $0xa0] sm:$0xf]
  %v78 = vld [vmem:[%s1 + $0xa4] sm:$0xf]
  %v79 = vld [vmem:[%s1 + $0xa8] sm:$0xf]
  %v80 = vld [vmem:[%s1 + $0xac] sm:$0xf]
  %v81 = vld [vmem:[%s1 + $0xb0] sm:$0xf]
  %v82 = vld [vmem:[%s1 + $0xb4] sm:$0xf]
  %v83 = vld [vmem:[%s1 + $0xb8] sm:$0xf]
  %v84 = vld [vmem:[%s1 + $0xbc] sm:$0xf]
  %v85 = vld [vmem:[%s1 + $0xc0] sm:$0xf]
  %v86 = vld [vmem:[%s1 + $0xc4] sm:$0xf]
  %v87 = vld [vmem:[%s1 + $0xc8] sm:$0xf]
  %v88 = vld [vmem:[%s1 + $0xcc] sm:$0xf]
  %v89 = vld [vmem:[%s1 + $0xd0] sm:$0xf]
  %v90 = vld [vmem:[%s1 + $0xd4] sm:$0xf]
  %v91 = vld [vmem:[%s1 + $0xd8] sm:$0xf]
  %v92 = vld [vmem:[%s1 + $0xdc] sm:$0xf]
  %v93 = vld [vmem:[%s1 + $0xe0] sm:$0xf]
  %v94 = vld [vmem:[%s1 + $0xe4] sm:$0xf]
  %v95 = vld [vmem:[%s1 + $0xe8] sm:$0xf]
  %v96 = vld [vmem:[%s1 + $0xec] sm:$0xf]
  %v97 = vld [vmem:[%s1 + $0xf0] sm:$0xf]
  %v98 = vld [vmem:[%s1 + $0xf4] sm:$0xf]
  %v99 = vld [vmem:[%s1 + $0xf8] sm:$0xf]
  %v100 = vld [vmem:[%s1 + $0xfc] sm:$0xf]
  %v101 = vld [vmem:[%s1 + $0x100] sm:$0xf]
  %v102 = vld [vmem:[%s1 + $0x104] sm:$0xf]
  %v103 = vld [vmem:[%s1 + $0x108] sm:$0xf]
  %v104 = vld [vmem:[%s1 + $0x10c] sm:$0xf]
  %v105 = vld [vmem:[%s1 + $0x110] sm:$0xf]
  %v106 = vld [vmem:[%s1 + $0x114] sm:$0xf]
  %v107 = vld [vmem:[%s1 + $0x118] sm:$0xf]
  %v108 = vld [vmem:[%s1 + $0x11c] sm:$0xf]
  %v109 = vld [vmem:[%s1 + $0x120] sm:$0xf]
  %v110 = vld [vmem:[%s1 + $0x124] sm:$0xf]
  %v111 = vld [vmem:[%s1 + $0x128] sm:$0xf]
  %v112 = vld [vmem:[%s1 + $0x12c] sm:$0xf]
  %v113 = vld [vmem:[%s1 + $0x130] sm:$0xf]
  %v114 = vld [vmem:[%s1 + $0x134] sm:$0xf]
  %v115 = vld [vmem:[%s1 + $0x138] sm:$0xf]
  %v116 = vld [vmem:[%s1 + $0x13c] sm:$0xf]
  %v117 = vld [vmem:[%s1 + $0x140] sm:$0xf]
  %v118 = vld [vmem:[%s1 + $0x144] sm:$0xf]
  %v119 = vld [vmem:[%s1 + $0x148] sm:$0xf]
  %v120 = vld [vmem:[%s1 + $0x14c] sm:$0xf]
  %v121 = vld [vmem:[%s1 + $0x150] sm:$0xf]
  %v122 = vld [vmem:[%s1 + $0x154] sm:$0xf]
  %v123 = vld [vmem:[%s1 + $0x158] sm:$0xf]
  %v124 = vld [vmem:[%s1 + $0x15c] sm:$0xf]
  %v125 = vld [vmem:[%s1 + $0x160] sm:$0xf]
  %v126 = vld [vmem:[%s1 + $0x164] sm:$0xf]
  %v127 = vld [vmem:[%s1 + $0x168] sm:$0xf]
  %v128 = vld [vmem:[%s1 + $0x16c] sm:$0xf]
  %v129 = vld [vmem:[%s1 + $0x170] sm:$0xf]
  %v130 = vld [vmem:[%s1 + $0x174] sm:$0xf]
  %v131 = vld [vmem:[%s1 + $0x178] sm:$0xf]
  %v132 = vld [vmem:[%s1 + $0x17c] sm:$0xf]
  %v133 = vld [vmem:[%s1 + $0x180] sm:$0xf]
  %v134 = vld [vmem:[%s1 + $0x184] sm:$0xf]
  %v135 = vld [vmem:[%s1 + $0x188] sm:$0xf]
  %v136 = vld [vmem:[%s1 + $0x18c] sm:$0xf]
  %v137 = vld [vmem:[%s1 + $0x190] sm:$0xf]
  %v138 = vld [vmem:[%s1 + $0x194] sm:$0xf]
  %v139 = vld [vmem:[%s1 + $0x198] sm:$0xf]
  %v140 = vld [vmem:[%s1 + $0x19c] sm:$0xf]
  %v141 = vld [vmem:[%s1 + $0x1a0] sm:$0xf]
  %v142 = vld [vmem:[%s1 + $0x1a4] sm:$0xf]
  %v143 = vld [vmem:[%s1 + $0x1a8] sm:$0xf]
  %v144 = vld [vmem:[%s1 + $0x1ac] sm:$0xf]
  %v145 = vld [vmem:[%s1 + $0x1b0] sm:$0xf]
  %v146 = vld [vmem:[%s1 + $0x1b4] sm:$0xf]
  %v147 = vld [vmem:[%s1 + $0x1b8] sm:$0xf]
  %v148 = vld [vmem:[%s1 + $0x1bc] sm:$0xf]
  %v149 = vld [vmem:[%s1 + $0x1c0] sm:$0xf]
  %v150 = vld [vmem:[%s1 + $0x1c4] sm:$0xf]
  %v151 = vld [vmem:[%s1 + $0x1c8] sm:$0xf]
  %v152 = vld [vmem:[%s1 + $0x1cc] sm:$0xf]
  %v153 = vld [vmem:[%s1 + $0x1d0] sm:$0xf]
  %v154 = vld [vmem:[%s1 + $0x1d4] sm:$0xf]
  %v155 = vld [vmem:[%s1 + $0x1d8] sm:$0xf]
  %v156 = vld [vmem:[%s1 + $0x1dc] sm:$0xf]
  %v157 = vld [vmem:[%s1 + $0x1e0] sm:$0xf]
  %v158 = vld [vmem:[%s1 + $0x1e4] sm:$0xf]
  %v159 = vld [vmem:[%s1 + $0x1e8] sm:$0xf]
  %v160 = vld [vmem:[%s1 + $0x1ec] sm:$0xf]
  %v161 = vld [vmem:[%s1 + $0x1f0] sm:$0xf]
  %v162 = vld [vmem:[%s1 + $0x1f4] sm:$0xf]
  %v163 = vld [vmem:[%s1 + $0x1f8] sm:$0xf]
  %v164 = vld [vmem:[%s1 + $0x1fc] sm:$0xf]
  %v165 = vld [vmem:[%s1 + $0x200] sm:$0xf]
  %v166 = vld [vmem:[%s1 + $0x204] sm:$0xf]
  %v167 = vld [vmem:[%s1 + $0x208] sm:$0xf]
  %v168 = vld [vmem:[%s1 + $0x20c] sm:$0xf]
  %v169 = vld [vmem:[%s1 + $0x210] sm:$0xf]
  %v170 = vld [vmem:[%s1 + $0x214] sm:$0xf]
  %v171 = vld [vmem:[%s1 + $0x218] sm:$0xf]
  %v172 = vld [vmem:[%s1 + $0x21c] sm:$0xf]
  %v173 = vld [vmem:[%s1 + $0x220] sm:$0xf]
  %v174 = vld [vmem:[%s1 + $0x224] sm:$0xf]
  %v175 = vld [vmem:[%s1 + $0x228] sm:$0xf]
  %v176 = vld [vmem:[%s1 + $0x22c] sm:$0xf]
  %v177 = vld [vmem:[%s1 + $0x230] sm:$0xf]
  %v178 = vld [vmem:[%s1 + $0x234] sm:$0xf]
  %v179 = vld [vmem:[%s1 + $0x238] sm:$0xf]
  %v180 = vld [vmem:[%s1 + $0x23c] sm:$0xf]
  %v181 = vld [vmem:[%s2] sm:$0x1]
  %v183 = vperm.slane %v181, 0
  %v205 = vunpack.c.l.b16 %v17
  %v206 = vunpack.c.h.b16 %v17
  %v207 = vunpack.c.l.b16 %v18
  %v208 = vunpack.c.h.b16 %v18
  %v209 = vunpack.c.l.b16 %v19
  %v210 = vunpack.c.h.b16 %v19
  %v211 = vunpack.c.l.b16 %v20
  %v212 = vunpack.c.h.b16 %v20
  %v213 = vunpack.c.l.b16 %v21
  %v214 = vunpack.c.l.b16 %v22
  %v215 = vunpack.c.h.b16 %v22
  %v216 = vunpack.c.l.b16 %v23
  %v217 = vunpack.c.h.b16 %v23
  %v218 = vunpack.c.l.b16 %v24
  %v219 = vunpack.c.h.b16 %v24
  %v220 = vunpack.c.l.b16 %v25
  %v221 = vunpack.c.h.b16 %v25
  %v222 = vunpack.c.l.b16 %v26
  %v223 = vunpack.c.l.b16 %v27
  %v224 = vunpack.c.h.b16 %v27
  %v225 = vunpack.c.l.b16 %v28
  %v226 = vunpack.c.h.b16 %v28
  %v227 = vunpack.c.l.b16 %v29
  %v228 = vunpack.c.h.b16 %v29
  %v229 = vunpack.c.l.b16 %v30
  %v230 = vunpack.c.h.b16 %v30
  %v231 = vunpack.c.l.b16 %v31
  %v232 = vunpack.c.l.b16 %v32
  %v233 = vunpack.c.h.b16 %v32
  %v234 = vunpack.c.l.b16 %v33
  %v235 = vunpack.c.h.b16 %v33
  %v236 = vunpack.c.l.b16 %v34
  %v237 = vunpack.c.h.b16 %v34
  %v238 = vunpack.c.l.b16 %v35
  %v239 = vunpack.c.h.b16 %v35
  %v240 = vunpack.c.l.b16 %v36
  %v241 = vpack.c.b16 %v214, %v205
  %v242 = vpack.c.b16 %v215, %v206
  %v243 = vpack.c.b16 %v216, %v207
  %v244 = vpack.c.b16 %v217, %v208
  %v245 = vpack.c.b16 %v218, %v209
  %v246 = vpack.c.b16 %v219, %v210
  %v247 = vpack.c.b16 %v220, %v211
  %v248 = vpack.c.b16 %v221, %v212
  %v249 = vpack.c.b16 %v222, %v213
  %v250 = vpack.c.b16 %v232, %v223
  %v251 = vpack.c.b16 %v233, %v224
  %v252 = vpack.c.b16 %v234, %v225
  %v253 = vpack.c.b16 %v235, %v226
  %v254 = vpack.c.b16 %v236, %v227
  %v255 = vpack.c.b16 %v237, %v228
  %v256 = vpack.c.b16 %v238, %v229
  %v257 = vpack.c.b16 %v239, %v230
  %v258 = vpack.c.b16 %v240, %v231
  %v421 = vunpack.c.l.b16 %v37
  %v422 = vunpack.c.l.b16 %v38
  %v423 = vunpack.c.l.b16 %v39
  %v424 = vunpack.c.l.b16 %v40
  %v425 = vunpack.c.l.b16 %v41
  %v426 = vunpack.c.l.b16 %v42
  %v427 = vunpack.c.l.b16 %v43
  %v428 = vunpack.c.l.b16 %v44
  %v429 = vunpack.c.l.b16 %v45
  %v430 = vunpack.c.l.b16 %v46
  %v431 = vunpack.c.l.b16 %v47
  %v432 = vunpack.c.l.b16 %v48
  %v433 = vunpack.c.l.b16 %v49
  %v434 = vunpack.c.l.b16 %v50
  %v435 = vunpack.c.l.b16 %v51
  %v436 = vunpack.c.l.b16 %v52
  %v437 = vunpack.c.l.b16 %v53
  %v438 = vunpack.c.l.b16 %v54
  %v439 = vunpack.c.l.b16 %v55
  %v440 = vunpack.c.l.b16 %v56
  %v441 = vunpack.c.l.b16 %v57
  %v442 = vunpack.c.l.b16 %v58
  %v443 = vunpack.c.l.b16 %v59
  %v444 = vunpack.c.l.b16 %v60
  %v445 = vunpack.c.l.b16 %v61
  %v446 = vunpack.c.l.b16 %v62
  %v447 = vunpack.c.l.b16 %v63
  %v448 = vunpack.c.l.b16 %v64
  %v449 = vunpack.c.l.b16 %v65
  %v450 = vunpack.c.l.b16 %v66
  %v451 = vunpack.c.l.b16 %v67
  %v452 = vunpack.c.l.b16 %v68
  %v453 = vunpack.c.l.b16 %v69
  %v454 = vunpack.c.l.b16 %v70
  %v455 = vunpack.c.l.b16 %v71
  %v456 = vunpack.c.l.b16 %v72
  %v457 = vunpack.c.l.b16 %v73
  %v458 = vunpack.c.l.b16 %v74
  %v459 = vunpack.c.l.b16 %v75
  %v460 = vunpack.c.l.b16 %v76
  %v461 = vunpack.c.l.b16 %v77
  %v462 = vunpack.c.l.b16 %v78
  %v463 = vunpack.c.l.b16 %v79
  %v464 = vunpack.c.l.b16 %v80
  %v465 = vunpack.c.l.b16 %v81
  %v466 = vunpack.c.l.b16 %v82
  %v467 = vunpack.c.l.b16 %v83
  %v468 = vunpack.c.l.b16 %v84
  %v469 = vunpack.c.l.b16 %v85
  %v470 = vunpack.c.l.b16 %v86
  %v471 = vunpack.c.l.b16 %v87
  %v472 = vunpack.c.l.b16 %v88
  %v473 = vunpack.c.l.b16 %v89
  %v474 = vunpack.c.l.b16 %v90
  %v475 = vunpack.c.l.b16 %v91
  %v476 = vunpack.c.l.b16 %v92
  %v477 = vunpack.c.l.b16 %v93
  %v478 = vunpack.c.l.b16 %v94
  %v479 = vunpack.c.l.b16 %v95
  %v480 = vunpack.c.l.b16 %v96
  %v481 = vunpack.c.l.b16 %v97
  %v482 = vunpack.c.l.b16 %v98
  %v483 = vunpack.c.l.b16 %v99
  %v484 = vunpack.c.l.b16 %v100
  %v485 = vunpack.c.l.b16 %v101
  %v486 = vunpack.c.l.b16 %v102
  %v487 = vunpack.c.l.b16 %v103
  %v488 = vunpack.c.l.b16 %v104
  %v489 = vunpack.c.l.b16 %v105
  %v490 = vunpack.c.l.b16 %v106
  %v491 = vunpack.c.l.b16 %v107
  %v492 = vunpack.c.l.b16 %v108
  %v493 = vunpack.c.l.b16 %v109
  %v494 = vunpack.c.l.b16 %v110
  %v495 = vunpack.c.l.b16 %v111
  %v496 = vunpack.c.l.b16 %v112
  %v497 = vunpack.c.l.b16 %v113
  %v498 = vunpack.c.l.b16 %v114
  %v499 = vunpack.c.l.b16 %v115
  %v500 = vunpack.c.l.b16 %v116
  %v501 = vunpack.c.l.b16 %v117
  %v502 = vunpack.c.l.b16 %v118
  %v503 = vunpack.c.l.b16 %v119
  %v504 = vunpack.c.l.b16 %v120
  %v505 = vunpack.c.l.b16 %v121
  %v506 = vunpack.c.l.b16 %v122
  %v507 = vunpack.c.l.b16 %v123
  %v508 = vunpack.c.l.b16 %v124
  %v509 = vunpack.c.l.b16 %v125
  %v510 = vunpack.c.l.b16 %v126
  %v511 = vunpack.c.l.b16 %v127
  %v512 = vunpack.c.l.b16 %v128
  %v513 = vunpack.c.l.b16 %v129
  %v514 = vunpack.c.l.b16 %v130
  %v515 = vunpack.c.l.b16 %v131
  %v516 = vunpack.c.l.b16 %v132
  %v517 = vunpack.c.l.b16 %v133
  %v518 = vunpack.c.l.b16 %v134
  %v519 = vunpack.c.l.b16 %v135
  %v520 = vunpack.c.l.b16 %v136
  %v521 = vunpack.c.l.b16 %v137
  %v522 = vunpack.c.l.b16 %v138
  %v523 = vunpack.c.l.b16 %v139
  %v524 = vunpack.c.l.b16 %v140
  %v525 = vunpack.c.l.b16 %v141
  %v526 = vunpack.c.l.b16 %v142
  %v527 = vunpack.c.l.b16 %v143
  %v528 = vunpack.c.l.b16 %v144
  %v529 = vunpack.c.l.b16 %v145
  %v530 = vunpack.c.l.b16 %v146
  %v531 = vunpack.c.l.b16 %v147
  %v532 = vunpack.c.l.b16 %v148
  %v533 = vunpack.c.l.b16 %v149
  %v534 = vunpack.c.l.b16 %v150
  %v535 = vunpack.c.l.b16 %v151
  %v536 = vunpack.c.l.b16 %v152
  %v537 = vunpack.c.l.b16 %v153
  %v538 = vunpack.c.l.b16 %v154
  %v539 = vunpack.c.l.b16 %v155
  %v540 = vunpack.c.l.b16 %v156
  %v541 = vunpack.c.l.b16 %v157
  %v542 = vunpack.c.l.b16 %v158
  %v543 = vunpack.c.l.b16 %v159
  %v544 = vunpack.c.l.b16 %v160
  %v545 = vunpack.c.l.b16 %v161
  %v546 = vunpack.c.l.b16 %v162
  %v547 = vunpack.c.l.b16 %v163
  %v548 = vunpack.c.l.b16 %v164
  %v549 = vunpack.c.l.b16 %v165
  %v550 = vunpack.c.l.b16 %v166
  %v551 = vunpack.c.l.b16 %v167
  %v552 = vunpack.c.l.b16 %v168
  %v553 = vunpack.c.l.b16 %v169
  %v554 = vunpack.c.l.b16 %v170
  %v555 = vunpack.c.l.b16 %v171
  %v556 = vunpack.c.l.b16 %v172
  %v557 = vunpack.c.l.b16 %v173
  %v558 = vunpack.c.l.b16 %v174
  %v559 = vunpack.c.l.b16 %v175
  %v560 = vunpack.c.l.b16 %v176
  %v561 = vunpack.c.l.b16 %v177
  %v562 = vunpack.c.l.b16 %v178
  %v563 = vunpack.c.l.b16 %v179
  %v564 = vunpack.c.l.b16 %v180
  %v565 = vpack.c.b16 %v422, %v421
  %v566 = vpack.c.b16 %v424, %v423
  %v567 = vpack.c.b16 %v426, %v425
  %v568 = vpack.c.b16 %v428, %v427
  %v569 = vpack.c.b16 %v430, %v429
  %v570 = vpack.c.b16 %v432, %v431
  %v571 = vpack.c.b16 %v434, %v433
  %v572 = vpack.c.b16 %v436, %v435
  %v573 = vpack.c.b16 %v438, %v437
  %v574 = vpack.c.b16 %v440, %v439
  %v575 = vpack.c.b16 %v442, %v441
  %v576 = vpack.c.b16 %v444, %v443
  %v577 = vpack.c.b16 %v446, %v445
  %v578 = vpack.c.b16 %v448, %v447
  %v579 = vpack.c.b16 %v450, %v449
  %v580 = vpack.c.b16 %v452, %v451
  %v581 = vpack.c.b16 %v454, %v453
  %v582 = vpack.c.b16 %v456, %v455
  %v583 = vpack.c.b16 %v458, %v457
  %v584 = vpack.c.b16 %v460, %v459
  %v585 = vpack.c.b16 %v462, %v461
  %v586 = vpack.c.b16 %v464, %v463
  %v587 = vpack.c.b16 %v466, %v465
  %v588 = vpack.c.b16 %v468, %v467
  %v589 = vpack.c.b16 %v470, %v469
  %v590 = vpack.c.b16 %v472, %v471
  %v591 = vpack.c.b16 %v474, %v473
  %v592 = vpack.c.b16 %v476, %v475
  %v593 = vpack.c.b16 %v478, %v477
  %v594 = vpack.c.b16 %v480, %v479
  %v595 = vpack.c.b16 %v482, %v481
  %v596 = vpack.c.b16 %v484, %v483
  %v597 = vpack.c.b16 %v486, %v485
  %v598 = vpack.c.b16 %v488, %v487
  %v599 = vpack.c.b16 %v490, %v489
  %v600 = vpack.c.b16 %v492, %v491
  %v601 = vpack.c.b16 %v494, %v493
  %v602 = vpack.c.b16 %v496, %v495
  %v603 = vpack.c.b16 %v498, %v497
  %v604 = vpack.c.b16 %v500, %v499
  %v605 = vpack.c.b16 %v502, %v501
  %v606 = vpack.c.b16 %v504, %v503
  %v607 = vpack.c.b16 %v506, %v505
  %v608 = vpack.c.b16 %v508, %v507
  %v609 = vpack.c.b16 %v510, %v509
  %v610 = vpack.c.b16 %v512, %v511
  %v611 = vpack.c.b16 %v514, %v513
  %v612 = vpack.c.b16 %v516, %v515
  %v613 = vpack.c.b16 %v518, %v517
  %v614 = vpack.c.b16 %v520, %v519
  %v615 = vpack.c.b16 %v522, %v521
  %v616 = vpack.c.b16 %v524, %v523
  %v617 = vpack.c.b16 %v526, %v525
  %v618 = vpack.c.b16 %v528, %v527
  %v619 = vpack.c.b16 %v530, %v529
  %v620 = vpack.c.b16 %v532, %v531
  %v621 = vpack.c.b16 %v534, %v533
  %v622 = vpack.c.b16 %v536, %v535
  %v623 = vpack.c.b16 %v538, %v537
  %v624 = vpack.c.b16 %v540, %v539
  %v625 = vpack.c.b16 %v542, %v541
  %v626 = vpack.c.b16 %v544, %v543
  %v627 = vpack.c.b16 %v546, %v545
  %v628 = vpack.c.b16 %v548, %v547
  %v629 = vpack.c.b16 %v550, %v549
  %v630 = vpack.c.b16 %v552, %v551
  %v631 = vpack.c.b16 %v554, %v553
  %v632 = vpack.c.b16 %v556, %v555
  %v633 = vpack.c.b16 %v558, %v557
  %v634 = vpack.c.b16 %v560, %v559
  %v635 = vpack.c.b16 %v562, %v561
  %v636 = vpack.c.b16 %v564, %v563
  %709 = vmatpush.bf16.msra.mxu0 %v572
  %710 = vmatpush.bf16.msra.mxu0 %v571
  %711 = vmatpush.bf16.msra.mxu0 %v570
  %712 = vmatpush.bf16.msra.mxu0 %v569
  %713 = vmatpush.bf16.msra.mxu0 %v568
  %714 = vmatpush.bf16.msra.mxu0 %v567
  %715 = vmatpush.bf16.msra.mxu0 %v566
  %716 = vmatpush.bf16.msra.mxu0 %v565
  %717 = vmatmul.bf16.gmra.mxu0 %v241
  %v718 = vpop.f32.mrf.mxu0
  %v719 = vadd.f32 %v183, %v718
  %v720 = vpop.f32.mrf.mxu0
  %v721 = vadd.f32 %v183, %v720
  %722 = vmatmul.bf16.gmra.mxu0 %v250
  %v723 = vpop.f32.mrf.mxu0
  %v724 = vadd.f32 %v183, %v723
  %v725 = vpop.f32.mrf.mxu0
  %v726 = vadd.f32 %v183, %v725
  %727 = vdwg.mxu0
  %728 = vmatpush.bf16.msra.mxu0 %v580
  %729 = vmatpush.bf16.msra.mxu0 %v579
  %730 = vmatpush.bf16.msra.mxu0 %v578
  %731 = vmatpush.bf16.msra.mxu0 %v577
  %732 = vmatpush.bf16.msra.mxu0 %v576
  %733 = vmatpush.bf16.msra.mxu0 %v575
  %734 = vmatpush.bf16.msra.mxu0 %v574
  %735 = vmatpush.bf16.msra.mxu0 %v573
  %736 = vmatmul.bf16.gmra.mxu0 %v242
  %v737 = vpop.f32.mrf.mxu0
  %v738 = vadd.f32 %v719, %v737
  %v739 = vpop.f32.mrf.mxu0
  %v740 = vadd.f32 %v721, %v739
  %741 = vmatmul.bf16.gmra.mxu0 %v251
  %v742 = vpop.f32.mrf.mxu0
  %v743 = vadd.f32 %v724, %v742
  %v744 = vpop.f32.mrf.mxu0
  %v745 = vadd.f32 %v726, %v744
  %746 = vdwg.mxu0
  %747 = vmatpush.bf16.msra.mxu0 %v588
  %748 = vmatpush.bf16.msra.mxu0 %v587
  %749 = vmatpush.bf16.msra.mxu0 %v586
  %750 = vmatpush.bf16.msra.mxu0 %v585
  %751 = vmatpush.bf16.msra.mxu0 %v584
  %752 = vmatpush.bf16.msra.mxu0 %v583
  %753 = vmatpush.bf16.msra.mxu0 %v582
  %754 = vmatpush.bf16.msra.mxu0 %v581
  %755 = vmatmul.bf16.gmra.mxu0 %v243
  %v756 = vpop.f32.mrf.mxu0
  %v757 = vadd.f32 %v738, %v756
  %v758 = vpop.f32.mrf.mxu0
  %v759 = vadd.f32 %v740, %v758
  %760 = vmatmul.bf16.gmra.mxu0 %v252
  %v761 = vpop.f32.mrf.mxu0
  %v762 = vadd.f32 %v743, %v761
  %v763 = vpop.f32.mrf.mxu0
  %v764 = vadd.f32 %v745, %v763
  %765 = vdwg.mxu0
  %766 = vmatpush.bf16.msra.mxu0 %v596
  %767 = vmatpush.bf16.msra.mxu0 %v595
  %768 = vmatpush.bf16.msra.mxu0 %v594
  %769 = vmatpush.bf16.msra.mxu0 %v593
  %770 = vmatpush.bf16.msra.mxu0 %v592
  %771 = vmatpush.bf16.msra.mxu0 %v591
  %772 = vmatpush.bf16.msra.mxu0 %v590
  %773 = vmatpush.bf16.msra.mxu0 %v589
  %774 = vmatmul.bf16.gmra.mxu0 %v244
  %v775 = vpop.f32.mrf.mxu0
  %v776 = vadd.f32 %v757, %v775
  %v777 = vpop.f32.mrf.mxu0
  %v778 = vadd.f32 %v759, %v777
  %779 = vmatmul.bf16.gmra.mxu0 %v253
  %v780 = vpop.f32.mrf.mxu0
  %v781 = vadd.f32 %v762, %v780
  %v782 = vpop.f32.mrf.mxu0
  %v783 = vadd.f32 %v764, %v782
  %784 = vdwg.mxu0
  %785 = vmatpush.bf16.msra.mxu0 %v604
  %786 = vmatpush.bf16.msra.mxu0 %v603
  %787 = vmatpush.bf16.msra.mxu0 %v602
  %788 = vmatpush.bf16.msra.mxu0 %v601
  %789 = vmatpush.bf16.msra.mxu0 %v600
  %790 = vmatpush.bf16.msra.mxu0 %v599
  %791 = vmatpush.bf16.msra.mxu0 %v598
  %792 = vmatpush.bf16.msra.mxu0 %v597
  %793 = vmatmul.bf16.gmra.mxu0 %v245
  %v794 = vpop.f32.mrf.mxu0
  %v795 = vadd.f32 %v776, %v794
  %v796 = vpop.f32.mrf.mxu0
  %v797 = vadd.f32 %v778, %v796
  %798 = vmatmul.bf16.gmra.mxu0 %v254
  %v799 = vpop.f32.mrf.mxu0
  %v800 = vadd.f32 %v781, %v799
  %v801 = vpop.f32.mrf.mxu0
  %v802 = vadd.f32 %v783, %v801
  %803 = vdwg.mxu0
  %804 = vmatpush.bf16.msra.mxu0 %v612
  %805 = vmatpush.bf16.msra.mxu0 %v611
  %806 = vmatpush.bf16.msra.mxu0 %v610
  %807 = vmatpush.bf16.msra.mxu0 %v609
  %808 = vmatpush.bf16.msra.mxu0 %v608
  %809 = vmatpush.bf16.msra.mxu0 %v607
  %810 = vmatpush.bf16.msra.mxu0 %v606
  %811 = vmatpush.bf16.msra.mxu0 %v605
  %812 = vmatmul.bf16.gmra.mxu0 %v246
  %v813 = vpop.f32.mrf.mxu0
  %v814 = vadd.f32 %v795, %v813
  %v815 = vpop.f32.mrf.mxu0
  %v816 = vadd.f32 %v797, %v815
  %817 = vmatmul.bf16.gmra.mxu0 %v255
  %v818 = vpop.f32.mrf.mxu0
  %v819 = vadd.f32 %v800, %v818
  %v820 = vpop.f32.mrf.mxu0
  %v821 = vadd.f32 %v802, %v820
  %822 = vdwg.mxu0
  %823 = vmatpush.bf16.msra.mxu0 %v620
  %824 = vmatpush.bf16.msra.mxu0 %v619
  %825 = vmatpush.bf16.msra.mxu0 %v618
  %826 = vmatpush.bf16.msra.mxu0 %v617
  %827 = vmatpush.bf16.msra.mxu0 %v616
  %828 = vmatpush.bf16.msra.mxu0 %v615
  %829 = vmatpush.bf16.msra.mxu0 %v614
  %830 = vmatpush.bf16.msra.mxu0 %v613
  %831 = vmatmul.bf16.gmra.mxu0 %v247
  %v832 = vpop.f32.mrf.mxu0
  %v833 = vadd.f32 %v814, %v832
  %v834 = vpop.f32.mrf.mxu0
  %v835 = vadd.f32 %v816, %v834
  %836 = vmatmul.bf16.gmra.mxu0 %v256
  %v837 = vpop.f32.mrf.mxu0
  %v838 = vadd.f32 %v819, %v837
  %v839 = vpop.f32.mrf.mxu0
  %v840 = vadd.f32 %v821, %v839
  %841 = vdwg.mxu0
  %842 = vmatpush.bf16.msra.mxu0 %v628
  %843 = vmatpush.bf16.msra.mxu0 %v627
  %844 = vmatpush.bf16.msra.mxu0 %v626
  %845 = vmatpush.bf16.msra.mxu0 %v625
  %846 = vmatpush.bf16.msra.mxu0 %v624
  %847 = vmatpush.bf16.msra.mxu0 %v623
  %848 = vmatpush.bf16.msra.mxu0 %v622
  %849 = vmatpush.bf16.msra.mxu0 %v621
  %850 = vmatmul.bf16.gmra.mxu0 %v248
  %v851 = vpop.f32.mrf.mxu0
  %v852 = vadd.f32 %v833, %v851
  %v853 = vpop.f32.mrf.mxu0
  %v854 = vadd.f32 %v835, %v853
  %855 = vmatmul.bf16.gmra.mxu0 %v257
  %v856 = vpop.f32.mrf.mxu0
  %v857 = vadd.f32 %v838, %v856
  %v858 = vpop.f32.mrf.mxu0
  %v859 = vadd.f32 %v840, %v858
  %860 = vdwg.mxu0
  %861 = vmatpush.bf16.msra.mxu0 %v636
  %862 = vmatpush.bf16.msra.mxu0 %v635
  %863 = vmatpush.bf16.msra.mxu0 %v634
  %864 = vmatpush.bf16.msra.mxu0 %v633
  %865 = vmatpush.bf16.msra.mxu0 %v632
  %866 = vmatpush.bf16.msra.mxu0 %v631
  %867 = vmatpush.bf16.msra.mxu0 %v630
  %868 = vmatpush.bf16.msra.mxu0 %v629
  %869 = vmatmul.bf16.gmra.mxu0 %v249
  %v870 = vpop.f32.mrf.mxu0
  %v871 = vadd.f32 %v852, %v870
  %v872 = vpop.f32.mrf.mxu0
  %v873 = vadd.f32 %v854, %v872
  %874 = vmatmul.bf16.gmra.mxu0 %v258
  %v875 = vpop.f32.mrf.mxu0
  %v876 = vadd.f32 %v857, %v875
  %v877 = vpop.f32.mrf.mxu0
  %v878 = vadd.f32 %v859, %v877
  %879 = vdwg.mxu0
  %v880 = vld [vmem:[%s3] sm:$0xf]
  %v881 = vld [vmem:[%s3 + $0x4] sm:$0xf]
  %v882 = vld [vmem:[%s3 + $0x8] sm:$0xf]
  %v883 = vld [vmem:[%s3 + $0xc] sm:$0xf]
  %v884 = vunpack.c.l.bf16 %v880
  %v885 = vunpack.c.l.bf16 %v881
  %v886 = vunpack.c.l.bf16 %v882
  %v887 = vunpack.c.l.bf16 %v883
  %v888 = vadd.f32 %v871, %v884
  %v889 = vadd.f32 %v873, %v885
  %v890 = vadd.f32 %v876, %v886
  %v891 = vadd.f32 %v878, %v887
  %v892 = vmax.f32 %v888, 0.0
  %v893 = vmax.f32 %v889, 0.0
  %v894 = vmax.f32 %v890, 0.0
  %v895 = vmax.f32 %v891, 0.0
  %v896 = vpack.c.bf16 %v892, %v892
  %v897 = vpack.c.bf16 %v893, %v893
  %v898 = vpack.c.bf16 %v894, %v894
  %v899 = vpack.c.bf16 %v895, %v895
  %900 = vst [vmem:[%s4] sm:$0xf] %v896
  %901 = vst [vmem:[%s4 + $0x4] sm:$0xf] %v897
  %902 = vst [vmem:[%s4 + $0x8] sm:$0xf] %v898
  %903 = vst [vmem:[%s4 + $0xc] sm:$0xf] %v899
  // Predicated region
  $region18: #{encoder_forward.22} parent=0 // pred_check
    _
  $region19: #{encoder_forward.22} parent=0 // pred_check_branch
    %905 = sbr.rel (0) target = $region21
  $region20: #{encoder_forward.22} parent=0 // pred_region
    _
  $region21: #{encoder_forward.22} parent=0 // pred_fallthru
    _
  // Predicated region
  $region22: #{encoder_forward.22} parent=0 // pred_check
    _
  $region23: #{encoder_forward.22} parent=0 // pred_check_branch
    %907 = sbr.rel (0) target = $region25
  $region24: #{encoder_forward.22} parent=0 // pred_region
    _
  $region25: #{encoder_forward.22} parent=0 // pred_fallthru
    _

// kernel: encoder_forward.20
$region0: #{encoder_forward.20}
  #allocation0 [shape = 'u32[]', space=smem, size = 0x4, offset = 0x4, fixed_abs, tag = 'smem constant byte address 0x4 - core index']
  #allocation1 [shape = 'u32[72,128]{1,0:T(1,128)}', space=vmem, size = 0x9000, scoped, tag = 'internal scratch']
  %s0 = inlined_call_operand.vmem [shape: bf16[32,1152], index: 0, kind: input, shape index: {}]
  %s1 = inlined_call_operand.vmem [shape: bf16[1152,128], index: 1, kind: input, shape index: {}]
  %s2 = inlined_call_operand.vmem [shape: f32[1,128], index: 2, kind: input, shape index: {}]
  %s3 = inlined_call_operand.vmem [shape: bf16[32,128], index: 3, kind: input, shape index: {}]
  %s4 = inlined_call_operand.vmem [shape: bf16[128,128], index: 4, kind: input, shape index: {}]
  %s5 = inlined_call_operand.vmem [shape: f32[1,128], index: 5, kind: input, shape index: {}]
  %s6 = inlined_call_operand.vmem [shape: bf16[32,128], index: 6, kind: output, shape index: {}]
  %s7 = sld [smem:[#allocation0]]
  $region34: #{encoder_forward.20} parent=0
    _
  %s9 = ssub.s32 1, %s7
  %s10 = scalar_select 0, %s9, %s7
  // Predicated region
  $region2: #{encoder_forward.20} parent=0 // pred_check
    _
  $region3: #{encoder_forward.20} parent=0 // pred_check_branch
    %12 = sbr.rel (0) target = $region5
  $region4: #{encoder_forward.20} parent=0 // pred_region
    _
  $region5: #{encoder_forward.20} parent=0 // pred_fallthru
    _
  // Predicated region
  $region6: #{encoder_forward.20} parent=0 // pred_check
    _
  $region7: #{encoder_forward.20} parent=0 // pred_check_branch
    %14 = sbr.rel (0) target = $region9
  $region8: #{encoder_forward.20} parent=0 // pred_region
    _
  $region9: #{encoder_forward.20} parent=0 // pred_fallthru
    _
  // Predicated region
  $region10: #{encoder_forward.20} parent=0 // pred_check
    _
  $region11: #{encoder_forward.20} parent=0 // pred_check_branch
    %16 = sbr.rel (0) target = $region13
  $region12: #{encoder_forward.20} parent=0 // pred_region
    _
  $region13: #{encoder_forward.20} parent=0 // pred_fallthru
    _
  // Predicated region
  $region14: #{encoder_forward.20} parent=0 // pred_check
    _
  $region15: #{encoder_forward.20} parent=0 // pred_check_branch
    %18 = sbr.rel (0) target = $region17
  $region16: #{encoder_forward.20} parent=0 // pred_region
    _
  $region17: #{encoder_forward.20} parent=0 // pred_fallthru
    _
  // Predicated region
  $region18: #{encoder_forward.20} parent=0 // pred_check
    _
  $region19: #{encoder_forward.20} parent=0 // pred_check_branch
    %20 = sbr.rel (0) target = $region21
  $region20: #{encoder_forward.20} parent=0 // pred_region
    _
  $region21: #{encoder_forward.20} parent=0 // pred_fallthru
    _
  // Predicated region
  $region22: #{encoder_forward.20} parent=0 // pred_check
    _
  $region23: #{encoder_forward.20} parent=0 // pred_check_branch
    %22 = sbr.rel (0) target = $region25
  $region24: #{encoder_forward.20} parent=0 // pred_region
    _
  $region25: #{encoder_forward.20} parent=0 // pred_fallthru
    _
  %v23 = vld [vmem:[%s0] sm:$0xff]
  %v24 = vld [vmem:[%s0 + $0x8] sm:$0xff]
  %v25 = vld [vmem:[%s0 + $0x10] sm:$0xff]
  %v26 = vld [vmem:[%s0 + $0x18] sm:$0xff]
  %v27 = vld [vmem:[%s0 + $0x20] sm:$0xf]
  %v28 = vld [vmem:[%s0 + $0x24] sm:$0xff]
  %v29 = vld [vmem:[%s0 + $0x2c] sm:$0xff]
  %v30 = vld [vmem:[%s0 + $0x34] sm:$0xff]
  %v31 = vld [vmem:[%s0 + $0x3c] sm:$0xff]
  %v32 = vld [vmem:[%s0 + $0x44] sm:$0xf]
  %v33 = vld [vmem:[%s0 + $0x48] sm:$0xff]
  %v34 = vld [vmem:[%s0 + $0x50] sm:$0xff]
  %v35 = vld [vmem:[%s0 + $0x58] sm:$0xff]
  %v36 = vld [vmem:[%s0 + $0x60] sm:$0xff]
  %v37 = vld [vmem:[%s0 + $0x68] sm:$0xf]
  %v38 = vld [vmem:[%s0 + $0x6c] sm:$0xff]
  %v39 = vld [vmem:[%s0 + $0x74] sm:$0xff]
  %v40 = vld [vmem:[%s0 + $0x7c] sm:$0xff]
  %v41 = vld [vmem:[%s0 + $0x84] sm:$0xff]
  %v42 = vld [vmem:[%s0 + $0x8c] sm:$0xf]
  %v43 = vld [vmem:[%s1] sm:$0xf]
  %v44 = vld [vmem:[%s1 + $0x4] sm:$0xf]
  %v45 = vld [vmem:[%s1 + $0x8] sm:$0xf]
  %v46 = vld [vmem:[%s1 + $0xc] sm:$0xf]
  %v47 = vld [vmem:[%s1 + $0x10] sm:$0xf]
  %v48 = vld [vmem:[%s1 + $0x14] sm:$0xf]
  %v49 = vld [vmem:[%s1 + $0x18] sm:$0xf]
  %v50 = vld [vmem:[%s1 + $0x1c] sm:$0xf]
  %v51 = vld [vmem:[%s1 + $0x20] sm:$0xf]
  %v52 = vld [vmem:[%s1 + $0x24] sm:$0xf]
  %v53 = vld [vmem:[%s1 + $0x28] sm:$0xf]
  %v54 = vld [vmem:[%s1 + $0x2c] sm:$0xf]
  %v55 = vld [vmem:[%s1 + $0x30] sm:$0xf]
  %v56 = vld [vmem:[%s1 + $0x34] sm:$0xf]
  %v57 = vld [vmem:[%s1 + $0x38] sm:$0xf]
  %v58 = vld [vmem:[%s1 + $0x3c] sm:$0xf]
  %v59 = vld [vmem:[%s1 + $0x40] sm:$0xf]
  %v60 = vld [vmem:[%s1 + $0x44] sm:$0xf]
  %v61 = vld [vmem:[%s1 + $0x48] sm:$0xf]
  %v62 = vld [vmem:[%s1 + $0x4c] sm:$0xf]
  %v63 = vld [vmem:[%s1 + $0x50] sm:$0xf]
  %v64 = vld [vmem:[%s1 + $0x54] sm:$0xf]
  %v65 = vld [vmem:[%s1 + $0x58] sm:$0xf]
  %v66 = vld [vmem:[%s1 + $0x5c] sm:$0xf]
  %v67 = vld [vmem:[%s1 + $0x60] sm:$0xf]
  %v68 = vld [vmem:[%s1 + $0x64] sm:$0xf]
  %v69 = vld [vmem:[%s1 + $0x68] sm:$0xf]
  %v70 = vld [vmem:[%s1 + $0x6c] sm:$0xf]
  %v71 = vld [vmem:[%s1 + $0x70] sm:$0xf]
  %v72 = vld [vmem:[%s1 + $0x74] sm:$0xf]
  %v73 = vld [vmem:[%s1 + $0x78] sm:$0xf]
  %v74 = vld [vmem:[%s1 + $0x7c] sm:$0xf]
  %v75 = vld [vmem:[%s1 + $0x80] sm:$0xf]
  %v76 = vld [vmem:[%s1 + $0x84] sm:$0xf]
  %v77 = vld [vmem:[%s1 + $0x88] sm:$0xf]
  %v78 = vld [vmem:[%s1 + $0x8c] sm:$0xf]
  %v79 = vld [vmem:[%s1 + $0x90] sm:$0xf]
  %v80 = vld [vmem:[%s1 + $0x94] sm:$0xf]
  %v81 = vld [vmem:[%s1 + $0x98] sm:$0xf]
  %v82 = vld [vmem:[%s1 + $0x9c] sm:$0xf]
  %v83 = vld [vmem:[%s1 + $0xa0] sm:$0xf]
  %v84 = vld [vmem:[%s1 + $0xa4] sm:$0xf]
  %v85 = vld [vmem:[%s1 + $0xa8] sm:$0xf]
  %v86 = vld [vmem:[%s1 + $0xac] sm:$0xf]
  %v87 = vld [vmem:[%s1 + $0xb0] sm:$0xf]
  %v88 = vld [vmem:[%s1 + $0xb4] sm:$0xf]
  %v89 = vld [vmem:[%s1 + $0xb8] sm:$0xf]
  %v90 = vld [vmem:[%s1 + $0xbc] sm:$0xf]
  %v91 = vld [vmem:[%s1 + $0xc0] sm:$0xf]
  %v92 = vld [vmem:[%s1 + $0xc4] sm:$0xf]
  %v93 = vld [vmem:[%s1 + $0xc8] sm:$0xf]
  %v94 = vld [vmem:[%s1 + $0xcc] sm:$0xf]
  %v95 = vld [vmem:[%s1 + $0xd0] sm:$0xf]
  %v96 = vld [vmem:[%s1 + $0xd4] sm:$0xf]
  %v97 = vld [vmem:[%s1 + $0xd8] sm:$0xf]
  %v98 = vld [vmem:[%s1 + $0xdc] sm:$0xf]
  %v99 = vld [vmem:[%s1 + $0xe0] sm:$0xf]
  %v100 = vld [vmem:[%s1 + $0xe4] sm:$0xf]
  %v101 = vld [vmem:[%s1 + $0xe8] sm:$0xf]
  %v102 = vld [vmem:[%s1 + $0xec] sm:$0xf]
  %v103 = vld [vmem:[%s1 + $0xf0] sm:$0xf]
  %v104 = vld [vmem:[%s1 + $0xf4] sm:$0xf]
  %v105 = vld [vmem:[%s1 + $0xf8] sm:$0xf]
  %v106 = vld [vmem:[%s1 + $0xfc] sm:$0xf]
  %v107 = vld [vmem:[%s1 + $0x100] sm:$0xf]
  %v108 = vld [vmem:[%s1 + $0x104] sm:$0xf]
  %v109 = vld [vmem:[%s1 + $0x108] sm:$0xf]
  %v110 = vld [vmem:[%s1 + $0x10c] sm:$0xf]
  %v111 = vld [vmem:[%s1 + $0x110] sm:$0xf]
  %v112 = vld [vmem:[%s1 + $0x114] sm:$0xf]
  %v113 = vld [vmem:[%s1 + $0x118] sm:$0xf]
  %v114 = vld [vmem:[%s1 + $0x11c] sm:$0xf]
  %v115 = vld [vmem:[%s1 + $0x120] sm:$0xf]
  %v116 = vld [vmem:[%s1 + $0x124] sm:$0xf]
  %v117 = vld [vmem:[%s1 + $0x128] sm:$0xf]
  %v118 = vld [vmem:[%s1 + $0x12c] sm:$0xf]
  %v119 = vld [vmem:[%s1 + $0x130] sm:$0xf]
  %v120 = vld [vmem:[%s1 + $0x134] sm:$0xf]
  %v121 = vld [vmem:[%s1 + $0x138] sm:$0xf]
  %v122 = vld [vmem:[%s1 + $0x13c] sm:$0xf]
  %v123 = vld [vmem:[%s1 + $0x140] sm:$0xf]
  %v124 = vld [vmem:[%s1 + $0x144] sm:$0xf]
  %v125 = vld [vmem:[%s1 + $0x148] sm:$0xf]
  %v126 = vld [vmem:[%s1 + $0x14c] sm:$0xf]
  %v127 = vld [vmem:[%s1 + $0x150] sm:$0xf]
  %v128 = vld [vmem:[%s1 + $0x154] sm:$0xf]
  %v129 = vld [vmem:[%s1 + $0x158] sm:$0xf]
  %v130 = vld [vmem:[%s1 + $0x15c] sm:$0xf]
  %v131 = vld [vmem:[%s1 + $0x160] sm:$0xf]
  %v132 = vld [vmem:[%s1 + $0x164] sm:$0xf]
  %v133 = vld [vmem:[%s1 + $0x168] sm:$0xf]
  %v134 = vld [vmem:[%s1 + $0x16c] sm:$0xf]
  %v135 = vld [vmem:[%s1 + $0x170] sm:$0xf]
  %v136 = vld [vmem:[%s1 + $0x174] sm:$0xf]
  %v137 = vld [vmem:[%s1 + $0x178] sm:$0xf]
  %v138 = vld [vmem:[%s1 + $0x17c] sm:$0xf]
  %v139 = vld [vmem:[%s1 + $0x180] sm:$0xf]
  %v140 = vld [vmem:[%s1 + $0x184] sm:$0xf]
  %v141 = vld [vmem:[%s1 + $0x188] sm:$0xf]
  %v142 = vld [vmem:[%s1 + $0x18c] sm:$0xf]
  %v143 = vld [vmem:[%s1 + $0x190] sm:$0xf]
  %v144 = vld [vmem:[%s1 + $0x194] sm:$0xf]
  %v145 = vld [vmem:[%s1 + $0x198] sm:$0xf]
  %v146 = vld [vmem:[%s1 + $0x19c] sm:$0xf]
  %v147 = vld [vmem:[%s1 + $0x1a0] sm:$0xf]
  %v148 = vld [vmem:[%s1 + $0x1a4] sm:$0xf]
  %v149 = vld [vmem:[%s1 + $0x1a8] sm:$0xf]
  %v150 = vld [vmem:[%s1 + $0x1ac] sm:$0xf]
  %v151 = vld [vmem:[%s1 + $0x1b0] sm:$0xf]
  %v152 = vld [vmem:[%s1 + $0x1b4] sm:$0xf]
  %v153 = vld [vmem:[%s1 + $0x1b8] sm:$0xf]
  %v154 = vld [vmem:[%s1 + $0x1bc] sm:$0xf]
  %v155 = vld [vmem:[%s1 + $0x1c0] sm:$0xf]
  %v156 = vld [vmem:[%s1 + $0x1c4] sm:$0xf]
  %v157 = vld [vmem:[%s1 + $0x1c8] sm:$0xf]
  %v158 = vld [vmem:[%s1 + $0x1cc] sm:$0xf]
  %v159 = vld [vmem:[%s1 + $0x1d0] sm:$0xf]
  %v160 = vld [vmem:[%s1 + $0x1d4] sm:$0xf]
  %v161 = vld [vmem:[%s1 + $0x1d8] sm:$0xf]
  %v162 = vld [vmem:[%s1 + $0x1dc] sm:$0xf]
  %v163 = vld [vmem:[%s1 + $0x1e0] sm:$0xf]
  %v164 = vld [vmem:[%s1 + $0x1e4] sm:$0xf]
  %v165 = vld [vmem:[%s1 + $0x1e8] sm:$0xf]
  %v166 = vld [vmem:[%s1 + $0x1ec] sm:$0xf]
  %v167 = vld [vmem:[%s1 + $0x1f0] sm:$0xf]
  %v168 = vld [vmem:[%s1 + $0x1f4] sm:$0xf]
  %v169 = vld [vmem:[%s1 + $0x1f8] sm:$0xf]
  %v170 = vld [vmem:[%s1 + $0x1fc] sm:$0xf]
  %v171 = vld [vmem:[%s1 + $0x200] sm:$0xf]
  %v172 = vld [vmem:[%s1 + $0x204] sm:$0xf]
  %v173 = vld [vmem:[%s1 + $0x208] sm:$0xf]
  %v174 = vld [vmem:[%s1 + $0x20c] sm:$0xf]
  %v175 = vld [vmem:[%s1 + $0x210] sm:$0xf]
  %v176 = vld [vmem:[%s1 + $0x214] sm:$0xf]
  %v177 = vld [vmem:[%s1 + $0x218] sm:$0xf]
  %v178 = vld [vmem:[%s1 + $0x21c] sm:$0xf]
  %v179 = vld [vmem:[%s1 + $0x220] sm:$0xf]
  %v180 = vld [vmem:[%s1 + $0x224] sm:$0xf]
  %v181 = vld [vmem:[%s1 + $0x228] sm:$0xf]
  %v182 = vld [vmem:[%s1 + $0x22c] sm:$0xf]
  %v183 = vld [vmem:[%s1 + $0x230] sm:$0xf]
  %v184 = vld [vmem:[%s1 + $0x234] sm:$0xf]
  %v185 = vld [vmem:[%s1 + $0x238] sm:$0xf]
  %v186 = vld [vmem:[%s1 + $0x23c] sm:$0xf]
  %v187 = vld [vmem:[%s2] sm:$0x1]
  %v189 = vperm.slane %v187, 0
  %v211 = vunpack.c.l.b16 %v23
  %v212 = vunpack.c.h.b16 %v23
  %v213 = vunpack.c.l.b16 %v24
  %v214 = vunpack.c.h.b16 %v24
  %v215 = vunpack.c.l.b16 %v25
  %v216 = vunpack.c.h.b16 %v25
  %v217 = vunpack.c.l.b16 %v26
  %v218 = vunpack.c.h.b16 %v26
  %v219 = vunpack.c.l.b16 %v27
  %v220 = vunpack.c.l.b16 %v28
  %v221 = vunpack.c.h.b16 %v28
  %v222 = vunpack.c.l.b16 %v29
  %v223 = vunpack.c.h.b16 %v29
  %v224 = vunpack.c.l.b16 %v30
  %v225 = vunpack.c.h.b16 %v30
  %v226 = vunpack.c.l.b16 %v31
  %v227 = vunpack.c.h.b16 %v31
  %v228 = vunpack.c.l.b16 %v32
  %v229 = vunpack.c.l.b16 %v33
  %v230 = vunpack.c.h.b16 %v33
  %v231 = vunpack.c.l.b16 %v34
  %v232 = vunpack.c.h.b16 %v34
  %v233 = vunpack.c.l.b16 %v35
  %v234 = vunpack.c.h.b16 %v35
  %v235 = vunpack.c.l.b16 %v36
  %v236 = vunpack.c.h.b16 %v36
  %v237 = vunpack.c.l.b16 %v37
  %v238 = vunpack.c.l.b16 %v38
  %v239 = vunpack.c.h.b16 %v38
  %v240 = vunpack.c.l.b16 %v39
  %v241 = vunpack.c.h.b16 %v39
  %v242 = vunpack.c.l.b16 %v40
  %v243 = vunpack.c.h.b16 %v40
  %v244 = vunpack.c.l.b16 %v41
  %v245 = vunpack.c.h.b16 %v41
  %v246 = vunpack.c.l.b16 %v42
  %v247 = vpack.c.b16 %v220, %v211
  %v248 = vpack.c.b16 %v221, %v212
  %v249 = vpack.c.b16 %v222, %v213
  %v250 = vpack.c.b16 %v223, %v214
  %v251 = vpack.c.b16 %v224, %v215
  %v252 = vpack.c.b16 %v225, %v216
  %v253 = vpack.c.b16 %v226, %v217
  %v254 = vpack.c.b16 %v227, %v218
  %v255 = vpack.c.b16 %v228, %v219
  %v256 = vpack.c.b16 %v238, %v229
  %v257 = vpack.c.b16 %v239, %v230
  %v258 = vpack.c.b16 %v240, %v231
  %v259 = vpack.c.b16 %v241, %v232
  %v260 = vpack.c.b16 %v242, %v233
  %v261 = vpack.c.b16 %v243, %v234
  %v262 = vpack.c.b16 %v244, %v235
  %v263 = vpack.c.b16 %v245, %v236
  %v264 = vpack.c.b16 %v246, %v237
  %v427 = vunpack.c.l.b16 %v43
  %v428 = vunpack.c.l.b16 %v44
  %v429 = vunpack.c.l.b16 %v45
  %v430 = vunpack.c.l.b16 %v46
  %v431 = vunpack.c.l.b16 %v47
  %v432 = vunpack.c.l.b16 %v48
  %v433 = vunpack.c.l.b16 %v49
  %v434 = vunpack.c.l.b16 %v50
  %v435 = vunpack.c.l.b16 %v51
  %v436 = vunpack.c.l.b16 %v52
  %v437 = vunpack.c.l.b16 %v53
  %v438 = vunpack.c.l.b16 %v54
  %v439 = vunpack.c.l.b16 %v55
  %v440 = vunpack.c.l.b16 %v56
  %v441 = vunpack.c.l.b16 %v57
  %v442 = vunpack.c.l.b16 %v58
  %v443 = vunpack.c.l.b16 %v59
  %v444 = vunpack.c.l.b16 %v60
  %v445 = vunpack.c.l.b16 %v61
  %v446 = vunpack.c.l.b16 %v62
  %v447 = vunpack.c.l.b16 %v63
  %v448 = vunpack.c.l.b16 %v64
  %v449 = vunpack.c.l.b16 %v65
  %v450 = vunpack.c.l.b16 %v66
  %v451 = vunpack.c.l.b16 %v67
  %v452 = vunpack.c.l.b16 %v68
  %v453 = vunpack.c.l.b16 %v69
  %v454 = vunpack.c.l.b16 %v70
  %v455 = vunpack.c.l.b16 %v71
  %v456 = vunpack.c.l.b16 %v72
  %v457 = vunpack.c.l.b16 %v73
  %v458 = vunpack.c.l.b16 %v74
  %v459 = vunpack.c.l.b16 %v75
  %v460 = vunpack.c.l.b16 %v76
  %v461 = vunpack.c.l.b16 %v77
  %v462 = vunpack.c.l.b16 %v78
  %v463 = vunpack.c.l.b16 %v79
  %v464 = vunpack.c.l.b16 %v80
  %v465 = vunpack.c.l.b16 %v81
  %v466 = vunpack.c.l.b16 %v82
  %v467 = vunpack.c.l.b16 %v83
  %v468 = vunpack.c.l.b16 %v84
  %v469 = vunpack.c.l.b16 %v85
  %v470 = vunpack.c.l.b16 %v86
  %v471 = vunpack.c.l.b16 %v87
  %v472 = vunpack.c.l.b16 %v88
  %v473 = vunpack.c.l.b16 %v89
  %v474 = vunpack.c.l.b16 %v90
  %v475 = vunpack.c.l.b16 %v91
  %v476 = vunpack.c.l.b16 %v92
  %v477 = vunpack.c.l.b16 %v93
  %v478 = vunpack.c.l.b16 %v94
  %v479 = vunpack.c.l.b16 %v95
  %v480 = vunpack.c.l.b16 %v96
  %v481 = vunpack.c.l.b16 %v97
  %v482 = vunpack.c.l.b16 %v98
  %v483 = vunpack.c.l.b16 %v99
  %v484 = vunpack.c.l.b16 %v100
  %v485 = vunpack.c.l.b16 %v101
  %v486 = vunpack.c.l.b16 %v102
  %v487 = vunpack.c.l.b16 %v103
  %v488 = vunpack.c.l.b16 %v104
  %v489 = vunpack.c.l.b16 %v105
  %v490 = vunpack.c.l.b16 %v106
  %v491 = vunpack.c.l.b16 %v107
  %v492 = vunpack.c.l.b16 %v108
  %v493 = vunpack.c.l.b16 %v109
  %v494 = vunpack.c.l.b16 %v110
  %v495 = vunpack.c.l.b16 %v111
  %v496 = vunpack.c.l.b16 %v112
  %v497 = vunpack.c.l.b16 %v113
  %v498 = vunpack.c.l.b16 %v114
  %v499 = vunpack.c.l.b16 %v115
  %v500 = vunpack.c.l.b16 %v116
  %v501 = vunpack.c.l.b16 %v117
  %v502 = vunpack.c.l.b16 %v118
  %v503 = vunpack.c.l.b16 %v119
  %v504 = vunpack.c.l.b16 %v120
  %v505 = vunpack.c.l.b16 %v121
  %v506 = vunpack.c.l.b16 %v122
  %v507 = vunpack.c.l.b16 %v123
  %v508 = vunpack.c.l.b16 %v124
  %v509 = vunpack.c.l.b16 %v125
  %v510 = vunpack.c.l.b16 %v126
  %v511 = vunpack.c.l.b16 %v127
  %v512 = vunpack.c.l.b16 %v128
  %v513 = vunpack.c.l.b16 %v129
  %v514 = vunpack.c.l.b16 %v130
  %v515 = vunpack.c.l.b16 %v131
  %v516 = vunpack.c.l.b16 %v132
  %v517 = vunpack.c.l.b16 %v133
  %v518 = vunpack.c.l.b16 %v134
  %v519 = vunpack.c.l.b16 %v135
  %v520 = vunpack.c.l.b16 %v136
  %v521 = vunpack.c.l.b16 %v137
  %v522 = vunpack.c.l.b16 %v138
  %v523 = vunpack.c.l.b16 %v139
  %v524 = vunpack.c.l.b16 %v140
  %v525 = vunpack.c.l.b16 %v141
  %v526 = vunpack.c.l.b16 %v142
  %v527 = vunpack.c.l.b16 %v143
  %v528 = vunpack.c.l.b16 %v144
  %v529 = vunpack.c.l.b16 %v145
  %v530 = vunpack.c.l.b16 %v146
  %v531 = vunpack.c.l.b16 %v147
  %v532 = vunpack.c.l.b16 %v148
  %v533 = vunpack.c.l.b16 %v149
  %v534 = vunpack.c.l.b16 %v150
  %v535 = vunpack.c.l.b16 %v151
  %v536 = vunpack.c.l.b16 %v152
  %v537 = vunpack.c.l.b16 %v153
  %v538 = vunpack.c.l.b16 %v154
  %v539 = vunpack.c.l.b16 %v155
  %v540 = vunpack.c.l.b16 %v156
  %v541 = vunpack.c.l.b16 %v157
  %v542 = vunpack.c.l.b16 %v158
  %v543 = vunpack.c.l.b16 %v159
  %v544 = vunpack.c.l.b16 %v160
  %v545 = vunpack.c.l.b16 %v161
  %v546 = vunpack.c.l.b16 %v162
  %v547 = vunpack.c.l.b16 %v163
  %v548 = vunpack.c.l.b16 %v164
  %v549 = vunpack.c.l.b16 %v165
  %v550 = vunpack.c.l.b16 %v166
  %v551 = vunpack.c.l.b16 %v167
  %v552 = vunpack.c.l.b16 %v168
  %v553 = vunpack.c.l.b16 %v169
  %v554 = vunpack.c.l.b16 %v170
  %v555 = vunpack.c.l.b16 %v171
  %v556 = vunpack.c.l.b16 %v172
  %v557 = vunpack.c.l.b16 %v173
  %v558 = vunpack.c.l.b16 %v174
  %v559 = vunpack.c.l.b16 %v175
  %v560 = vunpack.c.l.b16 %v176
  %v561 = vunpack.c.l.b16 %v177
  %v562 = vunpack.c.l.b16 %v178
  %v563 = vunpack.c.l.b16 %v179
  %v564 = vunpack.c.l.b16 %v180
  %v565 = vunpack.c.l.b16 %v181
  %v566 = vunpack.c.l.b16 %v182
  %v567 = vunpack.c.l.b16 %v183
  %v568 = vunpack.c.l.b16 %v184
  %v569 = vunpack.c.l.b16 %v185
  %v570 = vunpack.c.l.b16 %v186
  %v571 = vpack.c.b16 %v428, %v427
  %v572 = vpack.c.b16 %v430, %v429
  %v573 = vpack.c.b16 %v432, %v431
  %v574 = vpack.c.b16 %v434, %v433
  %v575 = vpack.c.b16 %v436, %v435
  %v576 = vpack.c.b16 %v438, %v437
  %v577 = vpack.c.b16 %v440, %v439
  %v578 = vpack.c.b16 %v442, %v441
  %v579 = vpack.c.b16 %v444, %v443
  %v580 = vpack.c.b16 %v446, %v445
  %v581 = vpack.c.b16 %v448, %v447
  %v582 = vpack.c.b16 %v450, %v449
  %v583 = vpack.c.b16 %v452, %v451
  %v584 = vpack.c.b16 %v454, %v453
  %v585 = vpack.c.b16 %v456, %v455
  %v586 = vpack.c.b16 %v458, %v457
  %v587 = vpack.c.b16 %v460, %v459
  %v588 = vpack.c.b16 %v462, %v461
  %v589 = vpack.c.b16 %v464, %v463
  %v590 = vpack.c.b16 %v466, %v465
  %v591 = vpack.c.b16 %v468, %v467
  %v592 = vpack.c.b16 %v470, %v469
  %v593 = vpack.c.b16 %v472, %v471
  %v594 = vpack.c.b16 %v474, %v473
  %v595 = vpack.c.b16 %v476, %v475
  %v596 = vpack.c.b16 %v478, %v477
  %v597 = vpack.c.b16 %v480, %v479
  %v598 = vpack.c.b16 %v482, %v481
  %v599 = vpack.c.b16 %v484, %v483
  %v600 = vpack.c.b16 %v486, %v485
  %v601 = vpack.c.b16 %v488, %v487
  %v602 = vpack.c.b16 %v490, %v489
  %v603 = vpack.c.b16 %v492, %v491
  %v604 = vpack.c.b16 %v494, %v493
  %v605 = vpack.c.b16 %v496, %v495
  %v606 = vpack.c.b16 %v498, %v497
  %v607 = vpack.c.b16 %v500, %v499
  %v608 = vpack.c.b16 %v502, %v501
  %v609 = vpack.c.b16 %v504, %v503
  %v610 = vpack.c.b16 %v506, %v505
  %v611 = vpack.c.b16 %v508, %v507
  %v612 = vpack.c.b16 %v510, %v509
  %v613 = vpack.c.b16 %v512, %v511
  %v614 = vpack.c.b16 %v514, %v513
  %v615 = vpack.c.b16 %v516, %v515
  %v616 = vpack.c.b16 %v518, %v517
  %v617 = vpack.c.b16 %v520, %v519
  %v618 = vpack.c.b16 %v522, %v521
  %v619 = vpack.c.b16 %v524, %v523
  %v620 = vpack.c.b16 %v526, %v525
  %v621 = vpack.c.b16 %v528, %v527
  %v622 = vpack.c.b16 %v530, %v529
  %v623 = vpack.c.b16 %v532, %v531
  %v624 = vpack.c.b16 %v534, %v533
  %v625 = vpack.c.b16 %v536, %v535
  %v626 = vpack.c.b16 %v538, %v537
  %v627 = vpack.c.b16 %v540, %v539
  %v628 = vpack.c.b16 %v542, %v541
  %v629 = vpack.c.b16 %v544, %v543
  %v630 = vpack.c.b16 %v546, %v545
  %v631 = vpack.c.b16 %v548, %v547
  %v632 = vpack.c.b16 %v550, %v549
  %v633 = vpack.c.b16 %v552, %v551
  %v634 = vpack.c.b16 %v554, %v553
  %v635 = vpack.c.b16 %v556, %v555
  %v636 = vpack.c.b16 %v558, %v557
  %v637 = vpack.c.b16 %v560, %v559
  %v638 = vpack.c.b16 %v562, %v561
  %v639 = vpack.c.b16 %v564, %v563
  %v640 = vpack.c.b16 %v566, %v565
  %v641 = vpack.c.b16 %v568, %v567
  %v642 = vpack.c.b16 %v570, %v569
  %715 = vmatpush.bf16.msra.mxu0 %v578
  %716 = vmatpush.bf16.msra.mxu0 %v577
  %717 = vmatpush.bf16.msra.mxu0 %v576
  %718 = vmatpush.bf16.msra.mxu0 %v575
  %719 = vmatpush.bf16.msra.mxu0 %v574
  %720 = vmatpush.bf16.msra.mxu0 %v573
  %721 = vmatpush.bf16.msra.mxu0 %v572
  %722 = vmatpush.bf16.msra.mxu0 %v571
  %723 = vmatmul.bf16.gmra.mxu0 %v247
  %v724 = vpop.f32.mrf.mxu0
  %v725 = vadd.f32 %v189, %v724
  %v726 = vpop.f32.mrf.mxu0
  %v727 = vadd.f32 %v189, %v726
  %728 = vmatmul.bf16.gmra.mxu0 %v256
  %v729 = vpop.f32.mrf.mxu0
  %v730 = vadd.f32 %v189, %v729
  %v731 = vpop.f32.mrf.mxu0
  %v732 = vadd.f32 %v189, %v731
  %733 = vdwg.mxu0
  %734 = vmatpush.bf16.msra.mxu0 %v586
  %735 = vmatpush.bf16.msra.mxu0 %v585
  %736 = vmatpush.bf16.msra.mxu0 %v584
  %737 = vmatpush.bf16.msra.mxu0 %v583
  %738 = vmatpush.bf16.msra.mxu0 %v582
  %739 = vmatpush.bf16.msra.mxu0 %v581
  %740 = vmatpush.bf16.msra.mxu0 %v580
  %741 = vmatpush.bf16.msra.mxu0 %v579
  %742 = vmatmul.bf16.gmra.mxu0 %v248
  %v743 = vpop.f32.mrf.mxu0
  %v744 = vadd.f32 %v725, %v743
  %v745 = vpop.f32.mrf.mxu0
  %v746 = vadd.f32 %v727, %v745
  %747 = vmatmul.bf16.gmra.mxu0 %v257
  %v748 = vpop.f32.mrf.mxu0
  %v749 = vadd.f32 %v730, %v748
  %v750 = vpop.f32.mrf.mxu0
  %v751 = vadd.f32 %v732, %v750
  %752 = vdwg.mxu0
  %753 = vmatpush.bf16.msra.mxu0 %v594
  %754 = vmatpush.bf16.msra.mxu0 %v593
  %755 = vmatpush.bf16.msra.mxu0 %v592
  %756 = vmatpush.bf16.msra.mxu0 %v591
  %757 = vmatpush.bf16.msra.mxu0 %v590
  %758 = vmatpush.bf16.msra.mxu0 %v589
  %759 = vmatpush.bf16.msra.mxu0 %v588
  %760 = vmatpush.bf16.msra.mxu0 %v587
  %761 = vmatmul.bf16.gmra.mxu0 %v249
  %v762 = vpop.f32.mrf.mxu0
  %v763 = vadd.f32 %v744, %v762
  %v764 = vpop.f32.mrf.mxu0
  %v765 = vadd.f32 %v746, %v764
  %766 = vmatmul.bf16.gmra.mxu0 %v258
  %v767 = vpop.f32.mrf.mxu0
  %v768 = vadd.f32 %v749, %v767
  %v769 = vpop.f32.mrf.mxu0
  %v770 = vadd.f32 %v751, %v769
  %771 = vdwg.mxu0
  %772 = vmatpush.bf16.msra.mxu0 %v602
  %773 = vmatpush.bf16.msra.mxu0 %v601
  %774 = vmatpush.bf16.msra.mxu0 %v600
  %775 = vmatpush.bf16.msra.mxu0 %v599
  %776 = vmatpush.bf16.msra.mxu0 %v598
  %777 = vmatpush.bf16.msra.mxu0 %v597
  %778 = vmatpush.bf16.msra.mxu0 %v596
  %779 = vmatpush.bf16.msra.mxu0 %v595
  %780 = vmatmul.bf16.gmra.mxu0 %v250
  %v781 = vpop.f32.mrf.mxu0
  %v782 = vadd.f32 %v763, %v781
  %v783 = vpop.f32.mrf.mxu0
  %v784 = vadd.f32 %v765, %v783
  %785 = vmatmul.bf16.gmra.mxu0 %v259
  %v786 = vpop.f32.mrf.mxu0
  %v787 = vadd.f32 %v768, %v786
  %v788 = vpop.f32.mrf.mxu0
  %v789 = vadd.f32 %v770, %v788
  %790 = vdwg.mxu0
  %791 = vmatpush.bf16.msra.mxu0 %v610
  %792 = vmatpush.bf16.msra.mxu0 %v609
  %793 = vmatpush.bf16.msra.mxu0 %v608
  %794 = vmatpush.bf16.msra.mxu0 %v607
  %795 = vmatpush.bf16.msra.mxu0 %v606
  %796 = vmatpush.bf16.msra.mxu0 %v605
  %797 = vmatpush.bf16.msra.mxu0 %v604
  %798 = vmatpush.bf16.msra.mxu0 %v603
  %799 = vmatmul.bf16.gmra.mxu0 %v251
  %v800 = vpop.f32.mrf.mxu0
  %v801 = vadd.f32 %v782, %v800
  %v802 = vpop.f32.mrf.mxu0
  %v803 = vadd.f32 %v784, %v802
  %804 = vmatmul.bf16.gmra.mxu0 %v260
  %v805 = vpop.f32.mrf.mxu0
  %v806 = vadd.f32 %v787, %v805
  %v807 = vpop.f32.mrf.mxu0
  %v808 = vadd.f32 %v789, %v807
  %809 = vdwg.mxu0
  %810 = vmatpush.bf16.msra.mxu0 %v618
  %811 = vmatpush.bf16.msra.mxu0 %v617
  %812 = vmatpush.bf16.msra.mxu0 %v616
  %813 = vmatpush.bf16.msra.mxu0 %v615
  %814 = vmatpush.bf16.msra.mxu0 %v614
  %815 = vmatpush.bf16.msra.mxu0 %v613
  %816 = vmatpush.bf16.msra.mxu0 %v612
  %817 = vmatpush.bf16.msra.mxu0 %v611
  %818 = vmatmul.bf16.gmra.mxu0 %v252
  %v819 = vpop.f32.mrf.mxu0
  %v820 = vadd.f32 %v801, %v819
  %v821 = vpop.f32.mrf.mxu0
  %v822 = vadd.f32 %v803, %v821
  %823 = vmatmul.bf16.gmra.mxu0 %v261
  %v824 = vpop.f32.mrf.mxu0
  %v825 = vadd.f32 %v806, %v824
  %v826 = vpop.f32.mrf.mxu0
  %v827 = vadd.f32 %v808, %v826
  %828 = vdwg.mxu0
  %829 = vmatpush.bf16.msra.mxu0 %v626
  %830 = vmatpush.bf16.msra.mxu0 %v625
  %831 = vmatpush.bf16.msra.mxu0 %v624
  %832 = vmatpush.bf16.msra.mxu0 %v623
  %833 = vmatpush.bf16.msra.mxu0 %v622
  %834 = vmatpush.bf16.msra.mxu0 %v621
  %835 = vmatpush.bf16.msra.mxu0 %v620
  %836 = vmatpush.bf16.msra.mxu0 %v619
  %837 = vmatmul.bf16.gmra.mxu0 %v253
  %v838 = vpop.f32.mrf.mxu0
  %v839 = vadd.f32 %v820, %v838
  %v840 = vpop.f32.mrf.mxu0
  %v841 = vadd.f32 %v822, %v840
  %842 = vmatmul.bf16.gmra.mxu0 %v262
  %v843 = vpop.f32.mrf.mxu0
  %v844 = vadd.f32 %v825, %v843
  %v845 = vpop.f32.mrf.mxu0
  %v846 = vadd.f32 %v827, %v845
  %847 = vdwg.mxu0
  %848 = vmatpush.bf16.msra.mxu0 %v634
  %849 = vmatpush.bf16.msra.mxu0 %v633
  %850 = vmatpush.bf16.msra.mxu0 %v632
  %851 = vmatpush.bf16.msra.mxu0 %v631
  %852 = vmatpush.bf16.msra.mxu0 %v630
  %853 = vmatpush.bf16.msra.mxu0 %v629
  %854 = vmatpush.bf16.msra.mxu0 %v628
  %855 = vmatpush.bf16.msra.mxu0 %v627
  %856 = vmatmul.bf16.gmra.mxu0 %v254
  %v857 = vpop.f32.mrf.mxu0
  %v858 = vadd.f32 %v839, %v857
  %v859 = vpop.f32.mrf.mxu0
  %v860 = vadd.f32 %v841, %v859
  %861 = vmatmul.bf16.gmra.mxu0 %v263
  %v862 = vpop.f32.mrf.mxu0
  %v863 = vadd.f32 %v844, %v862
  %v864 = vpop.f32.mrf.mxu0
  %v865 = vadd.f32 %v846, %v864
  %866 = vdwg.mxu0
  %867 = vmatpush.bf16.msra.mxu0 %v642
  %868 = vmatpush.bf16.msra.mxu0 %v641
  %869 = vmatpush.bf16.msra.mxu0 %v640
  %870 = vmatpush.bf16.msra.mxu0 %v639
  %871 = vmatpush.bf16.msra.mxu0 %v638
  %872 = vmatpush.bf16.msra.mxu0 %v637
  %873 = vmatpush.bf16.msra.mxu0 %v636
  %874 = vmatpush.bf16.msra.mxu0 %v635
  %875 = vmatmul.bf16.gmra.mxu0 %v255
  %v876 = vpop.f32.mrf.mxu0
  %v877 = vadd.f32 %v858, %v876
  %v878 = vpop.f32.mrf.mxu0
  %v879 = vadd.f32 %v860, %v878
  %880 = vmatmul.bf16.gmra.mxu0 %v264
  %v881 = vpop.f32.mrf.mxu0
  %v882 = vadd.f32 %v863, %v881
  %v883 = vpop.f32.mrf.mxu0
  %v884 = vadd.f32 %v865, %v883
  %885 = vdwg.mxu0
  %v886 = vld [vmem:[%s3] sm:$0xf]
  %v887 = vld [vmem:[%s3 + $0x4] sm:$0xf]
  %v888 = vld [vmem:[%s3 + $0x8] sm:$0xf]
  %v889 = vld [vmem:[%s3 + $0xc] sm:$0xf]
  %v890 = vld [vmem:[%s4] sm:$0xf]
  %v891 = vld [vmem:[%s4 + $0x4] sm:$0xf]
  %v892 = vld [vmem:[%s4 + $0x8] sm:$0xf]
  %v893 = vld [vmem:[%s4 + $0xc] sm:$0xf]
  %v894 = vld [vmem:[%s4 + $0x10] sm:$0xf]
  %v895 = vld [vmem:[%s4 + $0x14] sm:$0xf]
  %v896 = vld [vmem:[%s4 + $0x18] sm:$0xf]
  %v897 = vld [vmem:[%s4 + $0x1c] sm:$0xf]
  %v898 = vld [vmem:[%s4 + $0x20] sm:$0xf]
  %v899 = vld [vmem:[%s4 + $0x24] sm:$0xf]
  %v900 = vld [vmem:[%s4 + $0x28] sm:$0xf]
  %v901 = vld [vmem:[%s4 + $0x2c] sm:$0xf]
  %v902 = vld [vmem:[%s4 + $0x30] sm:$0xf]
  %v903 = vld [vmem:[%s4 + $0x34] sm:$0xf]
  %v904 = vld [vmem:[%s4 + $0x38] sm:$0xf]
  %v905 = vld [vmem:[%s4 + $0x3c] sm:$0xf]
  %v906 = vld [vmem:[%s5] sm:$0x1]
  %v908 = vperm.slane %v906, 0
  %v914 = vunpack.c.l.b16 %v886
  %v915 = vunpack.c.l.b16 %v887
  %v916 = vunpack.c.l.b16 %v888
  %v917 = vunpack.c.l.b16 %v889
  %v918 = vpack.c.b16 %v915, %v914
  %v919 = vpack.c.b16 %v917, %v916
  %v938 = vunpack.c.l.b16 %v890
  %v939 = vunpack.c.l.b16 %v891
  %v940 = vunpack.c.l.b16 %v892
  %v941 = vunpack.c.l.b16 %v893
  %v942 = vunpack.c.l.b16 %v894
  %v943 = vunpack.c.l.b16 %v895
  %v944 = vunpack.c.l.b16 %v896
  %v945 = vunpack.c.l.b16 %v897
  %v946 = vunpack.c.l.b16 %v898
  %v947 = vunpack.c.l.b16 %v899
  %v948 = vunpack.c.l.b16 %v900
  %v949 = vunpack.c.l.b16 %v901
  %v950 = vunpack.c.l.b16 %v902
  %v951 = vunpack.c.l.b16 %v903
  %v952 = vunpack.c.l.b16 %v904
  %v953 = vunpack.c.l.b16 %v905
  %v954 = vpack.c.b16 %v939, %v938
  %v955 = vpack.c.b16 %v941, %v940
  %v956 = vpack.c.b16 %v943, %v942
  %v957 = vpack.c.b16 %v945, %v944
  %v958 = vpack.c.b16 %v947, %v946
  %v959 = vpack.c.b16 %v949, %v948
  %v960 = vpack.c.b16 %v951, %v950
  %v961 = vpack.c.b16 %v953, %v952
  %970 = vmatpush.bf16.msra.mxu0 %v961
  %971 = vmatpush.bf16.msra.mxu0 %v960
  %972 = vmatpush.bf16.msra.mxu0 %v959
  %973 = vmatpush.bf16.msra.mxu0 %v958
  %974 = vmatpush.bf16.msra.mxu0 %v957
  %975 = vmatpush.bf16.msra.mxu0 %v956
  %976 = vmatpush.bf16.msra.mxu0 %v955
  %977 = vmatpush.bf16.msra.mxu0 %v954
  %978 = vmatmul.bf16.gmra.mxu0 %v918
  %v979 = vpop.f32.mrf.mxu0
  %v980 = vadd.f32 %v908, %v979
  %v981 = vpop.f32.mrf.mxu0
  %v982 = vadd.f32 %v908, %v981
  %983 = vmatmul.bf16.gmra.mxu0 %v919
  %v984 = vpop.f32.mrf.mxu0
  %v985 = vadd.f32 %v908, %v984
  %v986 = vpop.f32.mrf.mxu0
  %v987 = vadd.f32 %v908, %v986
  %988 = vdwg.mxu0
  %v989 = vadd.f32 %v877, %v980
  %v990 = vadd.f32 %v879, %v982
  %v991 = vadd.f32 %v882, %v985
  %v992 = vadd.f32 %v884, %v987
  %v993 = vmax.f32 %v989, 0.0
  %v994 = vmax.f32 %v990, 0.0
  %v995 = vmax.f32 %v991, 0.0
  %v996 = vmax.f32 %v992, 0.0
  %v997 = vpack.c.bf16 %v993, %v993
  %v998 = vpack.c.bf16 %v994, %v994
  %v999 = vpack.c.bf16 %v995, %v995
  %v1000 = vpack.c.bf16 %v996, %v996
  %1001 = vst [vmem:[%s6] sm:$0xf] %v997
  %1002 = vst [vmem:[%s6 + $0x4] sm:$0xf] %v998
  %1003 = vst [vmem:[%s6 + $0x8] sm:$0xf] %v999
  %1004 = vst [vmem:[%s6 + $0xc] sm:$0xf] %v1000
  // Predicated region
  $region26: #{encoder_forward.20} parent=0 // pred_check
    _
  $region27: #{encoder_forward.20} parent=0 // pred_check_branch
    %1006 = sbr.rel (0) target = $region29
  $region28: #{encoder_forward.20} parent=0 // pred_region
    _
  $region29: #{encoder_forward.20} parent=0 // pred_fallthru
    _
  // Predicated region
  $region30: #{encoder_forward.20} parent=0 // pred_check
    _
  $region31: #{encoder_forward.20} parent=0 // pred_check_branch
    %1008 = sbr.rel (0) target = $region33
  $region32: #{encoder_forward.20} parent=0 // pred_region
    _
  $region33: #{encoder_forward.20} parent=0 // pred_fallthru
    _

// kernel: encoder_forward.23
$region0: #{encoder_forward.23}
  #allocation0 [shape = 'u32[]', space=smem, size = 0x4, offset = 0x4, fixed_abs, tag = 'smem constant byte address 0x4 - core index']
  #allocation1 [shape = 'u32[72,128]{1,0:T(1,128)}', space=vmem, size = 0x9000, scoped, tag = 'internal scratch']
  %s0 = inlined_call_operand.vmem [shape: bf16[16,1152], index: 0, kind: input, shape index: {}]
  %s1 = inlined_call_operand.vmem [shape: bf16[1152,128], index: 1, kind: input, shape index: {}]
  %s2 = inlined_call_operand.vmem [shape: f32[1,128], index: 2, kind: input, shape index: {}]
  %s3 = inlined_call_operand.vmem [shape: bf16[16,128], index: 3, kind: output, shape index: {}]
  %s4 = sld [smem:[#allocation0]]
  $region22: #{encoder_forward.23} parent=0
    _
  %s6 = ssub.s32 1, %s4
  %s7 = scalar_select 0, %s6, %s4
  // Predicated region
  $region2: #{encoder_forward.23} parent=0 // pred_check
    _
  $region3: #{encoder_forward.23} parent=0 // pred_check_branch
    %9 = sbr.rel (0) target = $region5
  $region4: #{encoder_forward.23} parent=0 // pred_region
    _
  $region5: #{encoder_forward.23} parent=0 // pred_fallthru
    _
  // Predicated region
  $region6: #{encoder_forward.23} parent=0 // pred_check
    _
  $region7: #{encoder_forward.23} parent=0 // pred_check_branch
    %11 = sbr.rel (0) target = $region9
  $region8: #{encoder_forward.23} parent=0 // pred_region
    _
  $region9: #{encoder_forward.23} parent=0 // pred_fallthru
    _
  // Predicated region
  $region10: #{encoder_forward.23} parent=0 // pred_check
    _
  $region11: #{encoder_forward.23} parent=0 // pred_check_branch
    %13 = sbr.rel (0) target = $region13
  $region12: #{encoder_forward.23} parent=0 // pred_region
    _
  $region13: #{encoder_forward.23} parent=0 // pred_fallthru
    _
  %v14 = vld [vmem:[%s0] sm:$0xff]
  %v15 = vld [vmem:[%s0 + $0x8] sm:$0xff]
  %v16 = vld [vmem:[%s0 + $0x10] sm:$0xff]
  %v17 = vld [vmem:[%s0 + $0x18] sm:$0xff]
  %v18 = vld [vmem:[%s0 + $0x20] sm:$0xf]
  %v19 = vld [vmem:[%s0 + $0x24] sm:$0xff]
  %v20 = vld [vmem:[%s0 + $0x2c] sm:$0xff]
  %v21 = vld [vmem:[%s0 + $0x34] sm:$0xff]
  %v22 = vld [vmem:[%s0 + $0x3c] sm:$0xff]
  %v23 = vld [vmem:[%s0 + $0x44] sm:$0xf]
  %v24 = vld [vmem:[%s1] sm:$0xf]
  %v25 = vld [vmem:[%s1 + $0x4] sm:$0xf]
  %v26 = vld [vmem:[%s1 + $0x8] sm:$0xf]
  %v27 = vld [vmem:[%s1 + $0xc] sm:$0xf]
  %v28 = vld [vmem:[%s1 + $0x10] sm:$0xf]
  %v29 = vld [vmem:[%s1 + $0x14] sm:$0xf]
  %v30 = vld [vmem:[%s1 + $0x18] sm:$0xf]
  %v31 = vld [vmem:[%s1 + $0x1c] sm:$0xf]
  %v32 = vld [vmem:[%s1 + $0x20] sm:$0xf]
  %v33 = vld [vmem:[%s1 + $0x24] sm:$0xf]
  %v34 = vld [vmem:[%s1 + $0x28] sm:$0xf]
  %v35 = vld [vmem:[%s1 + $0x2c] sm:$0xf]
  %v36 = vld [vmem:[%s1 + $0x30] sm:$0xf]
  %v37 = vld [vmem:[%s1 + $0x34] sm:$0xf]
  %v38 = vld [vmem:[%s1 + $0x38] sm:$0xf]
  %v39 = vld [vmem:[%s1 + $0x3c] sm:$0xf]
  %v40 = vld [vmem:[%s1 + $0x40] sm:$0xf]
  %v41 = vld [vmem:[%s1 + $0x44] sm:$0xf]
  %v42 = vld [vmem:[%s1 + $0x48] sm:$0xf]
  %v43 = vld [vmem:[%s1 + $0x4c] sm:$0xf]
  %v44 = vld [vmem:[%s1 + $0x50] sm:$0xf]
  %v45 = vld [vmem:[%s1 + $0x54] sm:$0xf]
  %v46 = vld [vmem:[%s1 + $0x58] sm:$0xf]
  %v47 = vld [vmem:[%s1 + $0x5c] sm:$0xf]
  %v48 = vld [vmem:[%s1 + $0x60] sm:$0xf]
  %v49 = vld [vmem:[%s1 + $0x64] sm:$0xf]
  %v50 = vld [vmem:[%s1 + $0x68] sm:$0xf]
  %v51 = vld [vmem:[%s1 + $0x6c] sm:$0xf]
  %v52 = vld [vmem:[%s1 + $0x70] sm:$0xf]
  %v53 = vld [vmem:[%s1 + $0x74] sm:$0xf]
  %v54 = vld [vmem:[%s1 + $0x78] sm:$0xf]
  %v55 = vld [vmem:[%s1 + $0x7c] sm:$0xf]
  %v56 = vld [vmem:[%s1 + $0x80] sm:$0xf]
  %v57 = vld [vmem:[%s1 + $0x84] sm:$0xf]
  %v58 = vld [vmem:[%s1 + $0x88] sm:$0xf]
  %v59 = vld [vmem:[%s1 + $0x8c] sm:$0xf]
  %v60 = vld [vmem:[%s1 + $0x90] sm:$0xf]
  %v61 = vld [vmem:[%s1 + $0x94] sm:$0xf]
  %v62 = vld [vmem:[%s1 + $0x98] sm:$0xf]
  %v63 = vld [vmem:[%s1 + $0x9c] sm:$0xf]
  %v64 = vld [vmem:[%s1 + $0xa0] sm:$0xf]
  %v65 = vld [vmem:[%s1 + $0xa4] sm:$0xf]
  %v66 = vld [vmem:[%s1 + $0xa8] sm:$0xf]
  %v67 = vld [vmem:[%s1 + $0xac] sm:$0xf]
  %v68 = vld [vmem:[%s1 + $0xb0] sm:$0xf]
  %v69 = vld [vmem:[%s1 + $0xb4] sm:$0xf]
  %v70 = vld [vmem:[%s1 + $0xb8] sm:$0xf]
  %v71 = vld [vmem:[%s1 + $0xbc] sm:$0xf]
  %v72 = vld [vmem:[%s1 + $0xc0] sm:$0xf]
  %v73 = vld [vmem:[%s1 + $0xc4] sm:$0xf]
  %v74 = vld [vmem:[%s1 + $0xc8] sm:$0xf]
  %v75 = vld [vmem:[%s1 + $0xcc] sm:$0xf]
  %v76 = vld [vmem:[%s1 + $0xd0] sm:$0xf]
  %v77 = vld [vmem:[%s1 + $0xd4] sm:$0xf]
  %v78 = vld [vmem:[%s1 + $0xd8] sm:$0xf]
  %v79 = vld [vmem:[%s1 + $0xdc] sm:$0xf]
  %v80 = vld [vmem:[%s1 + $0xe0] sm:$0xf]
  %v81 = vld [vmem:[%s1 + $0xe4] sm:$0xf]
  %v82 = vld [vmem:[%s1 + $0xe8] sm:$0xf]
  %v83 = vld [vmem:[%s1 + $0xec] sm:$0xf]
  %v84 = vld [vmem:[%s1 + $0xf0] sm:$0xf]
  %v85 = vld [vmem:[%s1 + $0xf4] sm:$0xf]
  %v86 = vld [vmem:[%s1 + $0xf8] sm:$0xf]
  %v87 = vld [vmem:[%s1 + $0xfc] sm:$0xf]
  %v88 = vld [vmem:[%s1 + $0x100] sm:$0xf]
  %v89 = vld [vmem:[%s1 + $0x104] sm:$0xf]
  %v90 = vld [vmem:[%s1 + $0x108] sm:$0xf]
  %v91 = vld [vmem:[%s1 + $0x10c] sm:$0xf]
  %v92 = vld [vmem:[%s1 + $0x110] sm:$0xf]
  %v93 = vld [vmem:[%s1 + $0x114] sm:$0xf]
  %v94 = vld [vmem:[%s1 + $0x118] sm:$0xf]
  %v95 = vld [vmem:[%s1 + $0x11c] sm:$0xf]
  %v96 = vld [vmem:[%s1 + $0x120] sm:$0xf]
  %v97 = vld [vmem:[%s1 + $0x124] sm:$0xf]
  %v98 = vld [vmem:[%s1 + $0x128] sm:$0xf]
  %v99 = vld [vmem:[%s1 + $0x12c] sm:$0xf]
  %v100 = vld [vmem:[%s1 + $0x130] sm:$0xf]
  %v101 = vld [vmem:[%s1 + $0x134] sm:$0xf]
  %v102 = vld [vmem:[%s1 + $0x138] sm:$0xf]
  %v103 = vld [vmem:[%s1 + $0x13c] sm:$0xf]
  %v104 = vld [vmem:[%s1 + $0x140] sm:$0xf]
  %v105 = vld [vmem:[%s1 + $0x144] sm:$0xf]
  %v106 = vld [vmem:[%s1 + $0x148] sm:$0xf]
  %v107 = vld [vmem:[%s1 + $0x14c] sm:$0xf]
  %v108 = vld [vmem:[%s1 + $0x150] sm:$0xf]
  %v109 = vld [vmem:[%s1 + $0x154] sm:$0xf]
  %v110 = vld [vmem:[%s1 + $0x158] sm:$0xf]
  %v111 = vld [vmem:[%s1 + $0x15c] sm:$0xf]
  %v112 = vld [vmem:[%s1 + $0x160] sm:$0xf]
  %v113 = vld [vmem:[%s1 + $0x164] sm:$0xf]
  %v114 = vld [vmem:[%s1 + $0x168] sm:$0xf]
  %v115 = vld [vmem:[%s1 + $0x16c] sm:$0xf]
  %v116 = vld [vmem:[%s1 + $0x170] sm:$0xf]
  %v117 = vld [vmem:[%s1 + $0x174] sm:$0xf]
  %v118 = vld [vmem:[%s1 + $0x178] sm:$0xf]
  %v119 = vld [vmem:[%s1 + $0x17c] sm:$0xf]
  %v120 = vld [vmem:[%s1 + $0x180] sm:$0xf]
  %v121 = vld [vmem:[%s1 + $0x184] sm:$0xf]
  %v122 = vld [vmem:[%s1 + $0x188] sm:$0xf]
  %v123 = vld [vmem:[%s1 + $0x18c] sm:$0xf]
  %v124 = vld [vmem:[%s1 + $0x190] sm:$0xf]
  %v125 = vld [vmem:[%s1 + $0x194] sm:$0xf]
  %v126 = vld [vmem:[%s1 + $0x198] sm:$0xf]
  %v127 = vld [vmem:[%s1 + $0x19c] sm:$0xf]
  %v128 = vld [vmem:[%s1 + $0x1a0] sm:$0xf]
  %v129 = vld [vmem:[%s1 + $0x1a4] sm:$0xf]
  %v130 = vld [vmem:[%s1 + $0x1a8] sm:$0xf]
  %v131 = vld [vmem:[%s1 + $0x1ac] sm:$0xf]
  %v132 = vld [vmem:[%s1 + $0x1b0] sm:$0xf]
  %v133 = vld [vmem:[%s1 + $0x1b4] sm:$0xf]
  %v134 = vld [vmem:[%s1 + $0x1b8] sm:$0xf]
  %v135 = vld [vmem:[%s1 + $0x1bc] sm:$0xf]
  %v136 = vld [vmem:[%s1 + $0x1c0] sm:$0xf]
  %v137 = vld [vmem:[%s1 + $0x1c4] sm:$0xf]
  %v138 = vld [vmem:[%s1 + $0x1c8] sm:$0xf]
  %v139 = vld [vmem:[%s1 + $0x1cc] sm:$0xf]
  %v140 = vld [vmem:[%s1 + $0x1d0] sm:$0xf]
  %v141 = vld [vmem:[%s1 + $0x1d4] sm:$0xf]
  %v142 = vld [vmem:[%s1 + $0x1d8] sm:$0xf]
  %v143 = vld [vmem:[%s1 + $0x1dc] sm:$0xf]
  %v144 = vld [vmem:[%s1 + $0x1e0] sm:$0xf]
  %v145 = vld [vmem:[%s1 + $0x1e4] sm:$0xf]
  %v146 = vld [vmem:[%s1 + $0x1e8] sm:$0xf]
  %v147 = vld [vmem:[%s1 + $0x1ec] sm:$0xf]
  %v148 = vld [vmem:[%s1 + $0x1f0] sm:$0xf]
  %v149 = vld [vmem:[%s1 + $0x1f4] sm:$0xf]
  %v150 = vld [vmem:[%s1 + $0x1f8] sm:$0xf]
  %v151 = vld [vmem:[%s1 + $0x1fc] sm:$0xf]
  %v152 = vld [vmem:[%s1 + $0x200] sm:$0xf]
  %v153 = vld [vmem:[%s1 + $0x204] sm:$0xf]
  %v154 = vld [vmem:[%s1 + $0x208] sm:$0xf]
  %v155 = vld [vmem:[%s1 + $0x20c] sm:$0xf]
  %v156 = vld [vmem:[%s1 + $0x210] sm:$0xf]
  %v157 = vld [vmem:[%s1 + $0x214] sm:$0xf]
  %v158 = vld [vmem:[%s1 + $0x218] sm:$0xf]
  %v159 = vld [vmem:[%s1 + $0x21c] sm:$0xf]
  %v160 = vld [vmem:[%s1 + $0x220] sm:$0xf]
  %v161 = vld [vmem:[%s1 + $0x224] sm:$0xf]
  %v162 = vld [vmem:[%s1 + $0x228] sm:$0xf]
  %v163 = vld [vmem:[%s1 + $0x22c] sm:$0xf]
  %v164 = vld [vmem:[%s1 + $0x230] sm:$0xf]
  %v165 = vld [vmem:[%s1 + $0x234] sm:$0xf]
  %v166 = vld [vmem:[%s1 + $0x238] sm:$0xf]
  %v167 = vld [vmem:[%s1 + $0x23c] sm:$0xf]
  %v168 = vld [vmem:[%s2] sm:$0x1]
  %v170 = vperm.slane %v168, 0
  %v182 = vunpack.c.l.b16 %v14
  %v183 = vunpack.c.h.b16 %v14
  %v184 = vunpack.c.l.b16 %v15
  %v185 = vunpack.c.h.b16 %v15
  %v186 = vunpack.c.l.b16 %v16
  %v187 = vunpack.c.h.b16 %v16
  %v188 = vunpack.c.l.b16 %v17
  %v189 = vunpack.c.h.b16 %v17
  %v190 = vunpack.c.l.b16 %v18
  %v191 = vunpack.c.l.b16 %v19
  %v192 = vunpack.c.h.b16 %v19
  %v193 = vunpack.c.l.b16 %v20
  %v194 = vunpack.c.h.b16 %v20
  %v195 = vunpack.c.l.b16 %v21
  %v196 = vunpack.c.h.b16 %v21
  %v197 = vunpack.c.l.b16 %v22
  %v198 = vunpack.c.h.b16 %v22
  %v199 = vunpack.c.l.b16 %v23
  %v200 = vpack.c.b16 %v191, %v182
  %v201 = vpack.c.b16 %v192, %v183
  %v202 = vpack.c.b16 %v193, %v184
  %v203 = vpack.c.b16 %v194, %v185
  %v204 = vpack.c.b16 %v195, %v186
  %v205 = vpack.c.b16 %v196, %v187
  %v206 = vpack.c.b16 %v197, %v188
  %v207 = vpack.c.b16 %v198, %v189
  %v208 = vpack.c.b16 %v199, %v190
  %v362 = vunpack.c.l.b16 %v24
  %v363 = vunpack.c.l.b16 %v25
  %v364 = vunpack.c.l.b16 %v26
  %v365 = vunpack.c.l.b16 %v27
  %v366 = vunpack.c.l.b16 %v28
  %v367 = vunpack.c.l.b16 %v29
  %v368 = vunpack.c.l.b16 %v30
  %v369 = vunpack.c.l.b16 %v31
  %v370 = vunpack.c.l.b16 %v32
  %v371 = vunpack.c.l.b16 %v33
  %v372 = vunpack.c.l.b16 %v34
  %v373 = vunpack.c.l.b16 %v35
  %v374 = vunpack.c.l.b16 %v36
  %v375 = vunpack.c.l.b16 %v37
  %v376 = vunpack.c.l.b16 %v38
  %v377 = vunpack.c.l.b16 %v39
  %v378 = vunpack.c.l.b16 %v40
  %v379 = vunpack.c.l.b16 %v41
  %v380 = vunpack.c.l.b16 %v42
  %v381 = vunpack.c.l.b16 %v43
  %v382 = vunpack.c.l.b16 %v44
  %v383 = vunpack.c.l.b16 %v45
  %v384 = vunpack.c.l.b16 %v46
  %v385 = vunpack.c.l.b16 %v47
  %v386 = vunpack.c.l.b16 %v48
  %v387 = vunpack.c.l.b16 %v49
  %v388 = vunpack.c.l.b16 %v50
  %v389 = vunpack.c.l.b16 %v51
  %v390 = vunpack.c.l.b16 %v52
  %v391 = vunpack.c.l.b16 %v53
  %v392 = vunpack.c.l.b16 %v54
  %v393 = vunpack.c.l.b16 %v55
  %v394 = vunpack.c.l.b16 %v56
  %v395 = vunpack.c.l.b16 %v57
  %v396 = vunpack.c.l.b16 %v58
  %v397 = vunpack.c.l.b16 %v59
  %v398 = vunpack.c.l.b16 %v60
  %v399 = vunpack.c.l.b16 %v61
  %v400 = vunpack.c.l.b16 %v62
  %v401 = vunpack.c.l.b16 %v63
  %v402 = vunpack.c.l.b16 %v64
  %v403 = vunpack.c.l.b16 %v65
  %v404 = vunpack.c.l.b16 %v66
  %v405 = vunpack.c.l.b16 %v67
  %v406 = vunpack.c.l.b16 %v68
  %v407 = vunpack.c.l.b16 %v69
  %v408 = vunpack.c.l.b16 %v70
  %v409 = vunpack.c.l.b16 %v71
  %v410 = vunpack.c.l.b16 %v72
  %v411 = vunpack.c.l.b16 %v73
  %v412 = vunpack.c.l.b16 %v74
  %v413 = vunpack.c.l.b16 %v75
  %v414 = vunpack.c.l.b16 %v76
  %v415 = vunpack.c.l.b16 %v77
  %v416 = vunpack.c.l.b16 %v78
  %v417 = vunpack.c.l.b16 %v79
  %v418 = vunpack.c.l.b16 %v80
  %v419 = vunpack.c.l.b16 %v81
  %v420 = vunpack.c.l.b16 %v82
  %v421 = vunpack.c.l.b16 %v83
  %v422 = vunpack.c.l.b16 %v84
  %v423 = vunpack.c.l.b16 %v85
  %v424 = vunpack.c.l.b16 %v86
  %v425 = vunpack.c.l.b16 %v87
  %v426 = vunpack.c.l.b16 %v88
  %v427 = vunpack.c.l.b16 %v89
  %v428 = vunpack.c.l.b16 %v90
  %v429 = vunpack.c.l.b16 %v91
  %v430 = vunpack.c.l.b16 %v92
  %v431 = vunpack.c.l.b16 %v93
  %v432 = vunpack.c.l.b16 %v94
  %v433 = vunpack.c.l.b16 %v95
  %v434 = vunpack.c.l.b16 %v96
  %v435 = vunpack.c.l.b16 %v97
  %v436 = vunpack.c.l.b16 %v98
  %v437 = vunpack.c.l.b16 %v99
  %v438 = vunpack.c.l.b16 %v100
  %v439 = vunpack.c.l.b16 %v101
  %v440 = vunpack.c.l.b16 %v102
  %v441 = vunpack.c.l.b16 %v103
  %v442 = vunpack.c.l.b16 %v104
  %v443 = vunpack.c.l.b16 %v105
  %v444 = vunpack.c.l.b16 %v106
  %v445 = vunpack.c.l.b16 %v107
  %v446 = vunpack.c.l.b16 %v108
  %v447 = vunpack.c.l.b16 %v109
  %v448 = vunpack.c.l.b16 %v110
  %v449 = vunpack.c.l.b16 %v111
  %v450 = vunpack.c.l.b16 %v112
  %v451 = vunpack.c.l.b16 %v113
  %v452 = vunpack.c.l.b16 %v114
  %v453 = vunpack.c.l.b16 %v115
  %v454 = vunpack.c.l.b16 %v116
  %v455 = vunpack.c.l.b16 %v117
  %v456 = vunpack.c.l.b16 %v118
  %v457 = vunpack.c.l.b16 %v119
  %v458 = vunpack.c.l.b16 %v120
  %v459 = vunpack.c.l.b16 %v121
  %v460 = vunpack.c.l.b16 %v122
  %v461 = vunpack.c.l.b16 %v123
  %v462 = vunpack.c.l.b16 %v124
  %v463 = vunpack.c.l.b16 %v125
  %v464 = vunpack.c.l.b16 %v126
  %v465 = vunpack.c.l.b16 %v127
  %v466 = vunpack.c.l.b16 %v128
  %v467 = vunpack.c.l.b16 %v129
  %v468 = vunpack.c.l.b16 %v130
  %v469 = vunpack.c.l.b16 %v131
  %v470 = vunpack.c.l.b16 %v132
  %v471 = vunpack.c.l.b16 %v133
  %v472 = vunpack.c.l.b16 %v134
  %v473 = vunpack.c.l.b16 %v135
  %v474 = vunpack.c.l.b16 %v136
  %v475 = vunpack.c.l.b16 %v137
  %v476 = vunpack.c.l.b16 %v138
  %v477 = vunpack.c.l.b16 %v139
  %v478 = vunpack.c.l.b16 %v140
  %v479 = vunpack.c.l.b16 %v141
  %v480 = vunpack.c.l.b16 %v142
  %v481 = vunpack.c.l.b16 %v143
  %v482 = vunpack.c.l.b16 %v144
  %v483 = vunpack.c.l.b16 %v145
  %v484 = vunpack.c.l.b16 %v146
  %v485 = vunpack.c.l.b16 %v147
  %v486 = vunpack.c.l.b16 %v148
  %v487 = vunpack.c.l.b16 %v149
  %v488 = vunpack.c.l.b16 %v150
  %v489 = vunpack.c.l.b16 %v151
  %v490 = vunpack.c.l.b16 %v152
  %v491 = vunpack.c.l.b16 %v153
  %v492 = vunpack.c.l.b16 %v154
  %v493 = vunpack.c.l.b16 %v155
  %v494 = vunpack.c.l.b16 %v156
  %v495 = vunpack.c.l.b16 %v157
  %v496 = vunpack.c.l.b16 %v158
  %v497 = vunpack.c.l.b16 %v159
  %v498 = vunpack.c.l.b16 %v160
  %v499 = vunpack.c.l.b16 %v161
  %v500 = vunpack.c.l.b16 %v162
  %v501 = vunpack.c.l.b16 %v163
  %v502 = vunpack.c.l.b16 %v164
  %v503 = vunpack.c.l.b16 %v165
  %v504 = vunpack.c.l.b16 %v166
  %v505 = vunpack.c.l.b16 %v167
  %v506 = vpack.c.b16 %v363, %v362
  %v507 = vpack.c.b16 %v365, %v364
  %v508 = vpack.c.b16 %v367, %v366
  %v509 = vpack.c.b16 %v369, %v368
  %v510 = vpack.c.b16 %v371, %v370
  %v511 = vpack.c.b16 %v373, %v372
  %v512 = vpack.c.b16 %v375, %v374
  %v513 = vpack.c.b16 %v377, %v376
  %v514 = vpack.c.b16 %v379, %v378
  %v515 = vpack.c.b16 %v381, %v380
  %v516 = vpack.c.b16 %v383, %v382
  %v517 = vpack.c.b16 %v385, %v384
  %v518 = vpack.c.b16 %v387, %v386
  %v519 = vpack.c.b16 %v389, %v388
  %v520 = vpack.c.b16 %v391, %v390
  %v521 = vpack.c.b16 %v393, %v392
  %v522 = vpack.c.b16 %v395, %v394
  %v523 = vpack.c.b16 %v397, %v396
  %v524 = vpack.c.b16 %v399, %v398
  %v525 = vpack.c.b16 %v401, %v400
  %v526 = vpack.c.b16 %v403, %v402
  %v527 = vpack.c.b16 %v405, %v404
  %v528 = vpack.c.b16 %v407, %v406
  %v529 = vpack.c.b16 %v409, %v408
  %v530 = vpack.c.b16 %v411, %v410
  %v531 = vpack.c.b16 %v413, %v412
  %v532 = vpack.c.b16 %v415, %v414
  %v533 = vpack.c.b16 %v417, %v416
  %v534 = vpack.c.b16 %v419, %v418
  %v535 = vpack.c.b16 %v421, %v420
  %v536 = vpack.c.b16 %v423, %v422
  %v537 = vpack.c.b16 %v425, %v424
  %v538 = vpack.c.b16 %v427, %v426
  %v539 = vpack.c.b16 %v429, %v428
  %v540 = vpack.c.b16 %v431, %v430
  %v541 = vpack.c.b16 %v433, %v432
  %v542 = vpack.c.b16 %v435, %v434
  %v543 = vpack.c.b16 %v437, %v436
  %v544 = vpack.c.b16 %v439, %v438
  %v545 = vpack.c.b16 %v441, %v440
  %v546 = vpack.c.b16 %v443, %v442
  %v547 = vpack.c.b16 %v445, %v444
  %v548 = vpack.c.b16 %v447, %v446
  %v549 = vpack.c.b16 %v449, %v448
  %v550 = vpack.c.b16 %v451, %v450
  %v551 = vpack.c.b16 %v453, %v452
  %v552 = vpack.c.b16 %v455, %v454
  %v553 = vpack.c.b16 %v457, %v456
  %v554 = vpack.c.b16 %v459, %v458
  %v555 = vpack.c.b16 %v461, %v460
  %v556 = vpack.c.b16 %v463, %v462
  %v557 = vpack.c.b16 %v465, %v464
  %v558 = vpack.c.b16 %v467, %v466
  %v559 = vpack.c.b16 %v469, %v468
  %v560 = vpack.c.b16 %v471, %v470
  %v561 = vpack.c.b16 %v473, %v472
  %v562 = vpack.c.b16 %v475, %v474
  %v563 = vpack.c.b16 %v477, %v476
  %v564 = vpack.c.b16 %v479, %v478
  %v565 = vpack.c.b16 %v481, %v480
  %v566 = vpack.c.b16 %v483, %v482
  %v567 = vpack.c.b16 %v485, %v484
  %v568 = vpack.c.b16 %v487, %v486
  %v569 = vpack.c.b16 %v489, %v488
  %v570 = vpack.c.b16 %v491, %v490
  %v571 = vpack.c.b16 %v493, %v492
  %v572 = vpack.c.b16 %v495, %v494
  %v573 = vpack.c.b16 %v497, %v496
  %v574 = vpack.c.b16 %v499, %v498
  %v575 = vpack.c.b16 %v501, %v500
  %v576 = vpack.c.b16 %v503, %v502
  %v577 = vpack.c.b16 %v505, %v504
  %650 = vmatpush.bf16.msra.mxu0 %v513
  %651 = vmatpush.bf16.msra.mxu0 %v512
  %652 = vmatpush.bf16.msra.mxu0 %v511
  %653 = vmatpush.bf16.msra.mxu0 %v510
  %654 = vmatpush.bf16.msra.mxu0 %v509
  %655 = vmatpush.bf16.msra.mxu0 %v508
  %656 = vmatpush.bf16.msra.mxu0 %v507
  %657 = vmatpush.bf16.msra.mxu0 %v506
  %658 = vmatmul.bf16.gmra.mxu0 %v200
  %v659 = vpop.f32.mrf.mxu0
  %v660 = vadd.f32 %v170, %v659
  %v661 = vpop.f32.mrf.mxu0
  %v662 = vadd.f32 %v170, %v661
  %663 = vdwg.mxu0
  %664 = vmatpush.bf16.msra.mxu0 %v521
  %665 = vmatpush.bf16.msra.mxu0 %v520
  %666 = vmatpush.bf16.msra.mxu0 %v519
  %667 = vmatpush.bf16.msra.mxu0 %v518
  %668 = vmatpush.bf16.msra.mxu0 %v517
  %669 = vmatpush.bf16.msra.mxu0 %v516
  %670 = vmatpush.bf16.msra.mxu0 %v515
  %671 = vmatpush.bf16.msra.mxu0 %v514
  %672 = vmatmul.bf16.gmra.mxu0 %v201
  %v673 = vpop.f32.mrf.mxu0
  %v674 = vadd.f32 %v660, %v673
  %v675 = vpop.f32.mrf.mxu0
  %v676 = vadd.f32 %v662, %v675
  %677 = vdwg.mxu0
  %678 = vmatpush.bf16.msra.mxu0 %v529
  %679 = vmatpush.bf16.msra.mxu0 %v528
  %680 = vmatpush.bf16.msra.mxu0 %v527
  %681 = vmatpush.bf16.msra.mxu0 %v526
  %682 = vmatpush.bf16.msra.mxu0 %v525
  %683 = vmatpush.bf16.msra.mxu0 %v524
  %684 = vmatpush.bf16.msra.mxu0 %v523
  %685 = vmatpush.bf16.msra.mxu0 %v522
  %686 = vmatmul.bf16.gmra.mxu0 %v202
  %v687 = vpop.f32.mrf.mxu0
  %v688 = vadd.f32 %v674, %v687
  %v689 = vpop.f32.mrf.mxu0
  %v690 = vadd.f32 %v676, %v689
  %691 = vdwg.mxu0
  %692 = vmatpush.bf16.msra.mxu0 %v537
  %693 = vmatpush.bf16.msra.mxu0 %v536
  %694 = vmatpush.bf16.msra.mxu0 %v535
  %695 = vmatpush.bf16.msra.mxu0 %v534
  %696 = vmatpush.bf16.msra.mxu0 %v533
  %697 = vmatpush.bf16.msra.mxu0 %v532
  %698 = vmatpush.bf16.msra.mxu0 %v531
  %699 = vmatpush.bf16.msra.mxu0 %v530
  %700 = vmatmul.bf16.gmra.mxu0 %v203
  %v701 = vpop.f32.mrf.mxu0
  %v702 = vadd.f32 %v688, %v701
  %v703 = vpop.f32.mrf.mxu0
  %v704 = vadd.f32 %v690, %v703
  %705 = vdwg.mxu0
  %706 = vmatpush.bf16.msra.mxu0 %v545
  %707 = vmatpush.bf16.msra.mxu0 %v544
  %708 = vmatpush.bf16.msra.mxu0 %v543
  %709 = vmatpush.bf16.msra.mxu0 %v542
  %710 = vmatpush.bf16.msra.mxu0 %v541
  %711 = vmatpush.bf16.msra.mxu0 %v540
  %712 = vmatpush.bf16.msra.mxu0 %v539
  %713 = vmatpush.bf16.msra.mxu0 %v538
  %714 = vmatmul.bf16.gmra.mxu0 %v204
  %v715 = vpop.f32.mrf.mxu0
  %v716 = vadd.f32 %v702, %v715
  %v717 = vpop.f32.mrf.mxu0
  %v718 = vadd.f32 %v704, %v717
  %719 = vdwg.mxu0
  %720 = vmatpush.bf16.msra.mxu0 %v553
  %721 = vmatpush.bf16.msra.mxu0 %v552
  %722 = vmatpush.bf16.msra.mxu0 %v551
  %723 = vmatpush.bf16.msra.mxu0 %v550
  %724 = vmatpush.bf16.msra.mxu0 %v549
  %725 = vmatpush.bf16.msra.mxu0 %v548
  %726 = vmatpush.bf16.msra.mxu0 %v547
  %727 = vmatpush.bf16.msra.mxu0 %v546
  %728 = vmatmul.bf16.gmra.mxu0 %v205
  %v729 = vpop.f32.mrf.mxu0
  %v730 = vadd.f32 %v716, %v729
  %v731 = vpop.f32.mrf.mxu0
  %v732 = vadd.f32 %v718, %v731
  %733 = vdwg.mxu0
  %734 = vmatpush.bf16.msra.mxu0 %v561
  %735 = vmatpush.bf16.msra.mxu0 %v560
  %736 = vmatpush.bf16.msra.mxu0 %v559
  %737 = vmatpush.bf16.msra.mxu0 %v558
  %738 = vmatpush.bf16.msra.mxu0 %v557
  %739 = vmatpush.bf16.msra.mxu0 %v556
  %740 = vmatpush.bf16.msra.mxu0 %v555
  %741 = vmatpush.bf16.msra.mxu0 %v554
  %742 = vmatmul.bf16.gmra.mxu0 %v206
  %v743 = vpop.f32.mrf.mxu0
  %v744 = vadd.f32 %v730, %v743
  %v745 = vpop.f32.mrf.mxu0
  %v746 = vadd.f32 %v732, %v745
  %747 = vdwg.mxu0
  %748 = vmatpush.bf16.msra.mxu0 %v569
  %749 = vmatpush.bf16.msra.mxu0 %v568
  %750 = vmatpush.bf16.msra.mxu0 %v567
  %751 = vmatpush.bf16.msra.mxu0 %v566
  %752 = vmatpush.bf16.msra.mxu0 %v565
  %753 = vmatpush.bf16.msra.mxu0 %v564
  %754 = vmatpush.bf16.msra.mxu0 %v563
  %755 = vmatpush.bf16.msra.mxu0 %v562
  %756 = vmatmul.bf16.gmra.mxu0 %v207
  %v757 = vpop.f32.mrf.mxu0
  %v758 = vadd.f32 %v744, %v757
  %v759 = vpop.f32.mrf.mxu0
  %v760 = vadd.f32 %v746, %v759
  %761 = vdwg.mxu0
  %762 = vmatpush.bf16.msra.mxu0 %v577
  %763 = vmatpush.bf16.msra.mxu0 %v576
  %764 = vmatpush.bf16.msra.mxu0 %v575
  %765 = vmatpush.bf16.msra.mxu0 %v574
  %766 = vmatpush.bf16.msra.mxu0 %v573
  %767 = vmatpush.bf16.msra.mxu0 %v572
  %768 = vmatpush.bf16.msra.mxu0 %v571
  %769 = vmatpush.bf16.msra.mxu0 %v570
  %770 = vmatmul.bf16.gmra.mxu0 %v208
  %v771 = vpop.f32.mrf.mxu0
  %v772 = vadd.f32 %v758, %v771
  %v773 = vpop.f32.mrf.mxu0
  %v774 = vadd.f32 %v760, %v773
  %775 = vdwg.mxu0
  %v776 = vmax.f32 %v772, 0.0
  %v777 = vmax.f32 %v774, 0.0
  %v778 = vpack.c.bf16 %v776, %v776
  %v779 = vpack.c.bf16 %v777, %v777
  %780 = vst [vmem:[%s3] sm:$0xf] %v778
  %781 = vst [vmem:[%s3 + $0x4] sm:$0xf] %v779
  // Predicated region
  $region14: #{encoder_forward.23} parent=0 // pred_check
    _
  $region15: #{encoder_forward.23} parent=0 // pred_check_branch
    %783 = sbr.rel (0) target = $region17
  $region16: #{encoder_forward.23} parent=0 // pred_region
    _
  $region17: #{encoder_forward.23} parent=0 // pred_fallthru
    _
  // Predicated region
  $region18: #{encoder_forward.23} parent=0 // pred_check
    _
  $region19: #{encoder_forward.23} parent=0 // pred_check_branch
    %785 = sbr.rel (0) target = $region21
  $region20: #{encoder_forward.23} parent=0 // pred_region
    _
  $region21: #{encoder_forward.23} parent=0 // pred_fallthru
    _

// kernel: encoder_forward.26
$region0: #{encoder_forward.26}
  #allocation0 [shape = 'u32[]', space=smem, size = 0x4, offset = 0x4, fixed_abs, tag = 'smem constant byte address 0x4 - core index']
  #allocation1 [shape = 'u32[72,128]{1,0:T(1,128)}', space=vmem, size = 0x9000, scoped, tag = 'internal scratch']
  %s0 = inlined_call_operand.vmem [shape: bf16[16,1152], index: 0, kind: input, shape index: {}]
  %s1 = inlined_call_operand.vmem [shape: bf16[1152,128], index: 1, kind: input, shape index: {}]
  %s2 = inlined_call_operand.vmem [shape: f32[1,128], index: 2, kind: input, shape index: {}]
  %s3 = inlined_call_operand.vmem [shape: bf16[16,128], index: 3, kind: input, shape index: {}]
  %s4 = inlined_call_operand.vmem [shape: bf16[16,128], index: 4, kind: output, shape index: {}]
  %s5 = sld [smem:[#allocation0]]
  $region26: #{encoder_forward.26} parent=0
    _
  %s7 = ssub.s32 1, %s5
  %s8 = scalar_select 0, %s7, %s5
  // Predicated region
  $region2: #{encoder_forward.26} parent=0 // pred_check
    _
  $region3: #{encoder_forward.26} parent=0 // pred_check_branch
    %10 = sbr.rel (0) target = $region5
  $region4: #{encoder_forward.26} parent=0 // pred_region
    _
  $region5: #{encoder_forward.26} parent=0 // pred_fallthru
    _
  // Predicated region
  $region6: #{encoder_forward.26} parent=0 // pred_check
    _
  $region7: #{encoder_forward.26} parent=0 // pred_check_branch
    %12 = sbr.rel (0) target = $region9
  $region8: #{encoder_forward.26} parent=0 // pred_region
    _
  $region9: #{encoder_forward.26} parent=0 // pred_fallthru
    _
  // Predicated region
  $region10: #{encoder_forward.26} parent=0 // pred_check
    _
  $region11: #{encoder_forward.26} parent=0 // pred_check_branch
    %14 = sbr.rel (0) target = $region13
  $region12: #{encoder_forward.26} parent=0 // pred_region
    _
  $region13: #{encoder_forward.26} parent=0 // pred_fallthru
    _
  // Predicated region
  $region14: #{encoder_forward.26} parent=0 // pred_check
    _
  $region15: #{encoder_forward.26} parent=0 // pred_check_branch
    %16 = sbr.rel (0) target = $region17
  $region16: #{encoder_forward.26} parent=0 // pred_region
    _
  $region17: #{encoder_forward.26} parent=0 // pred_fallthru
    _
  %v17 = vld [vmem:[%s0] sm:$0xff]
  %v18 = vld [vmem:[%s0 + $0x8] sm:$0xff]
  %v19 = vld [vmem:[%s0 + $0x10] sm:$0xff]
  %v20 = vld [vmem:[%s0 + $0x18] sm:$0xff]
  %v21 = vld [vmem:[%s0 + $0x20] sm:$0xf]
  %v22 = vld [vmem:[%s0 + $0x24] sm:$0xff]
  %v23 = vld [vmem:[%s0 + $0x2c] sm:$0xff]
  %v24 = vld [vmem:[%s0 + $0x34] sm:$0xff]
  %v25 = vld [vmem:[%s0 + $0x3c] sm:$0xff]
  %v26 = vld [vmem:[%s0 + $0x44] sm:$0xf]
  %v27 = vld [vmem:[%s1] sm:$0xf]
  %v28 = vld [vmem:[%s1 + $0x4] sm:$0xf]
  %v29 = vld [vmem:[%s1 + $0x8] sm:$0xf]
  %v30 = vld [vmem:[%s1 + $0xc] sm:$0xf]
  %v31 = vld [vmem:[%s1 + $0x10] sm:$0xf]
  %v32 = vld [vmem:[%s1 + $0x14] sm:$0xf]
  %v33 = vld [vmem:[%s1 + $0x18] sm:$0xf]
  %v34 = vld [vmem:[%s1 + $0x1c] sm:$0xf]
  %v35 = vld [vmem:[%s1 + $0x20] sm:$0xf]
  %v36 = vld [vmem:[%s1 + $0x24] sm:$0xf]
  %v37 = vld [vmem:[%s1 + $0x28] sm:$0xf]
  %v38 = vld [vmem:[%s1 + $0x2c] sm:$0xf]
  %v39 = vld [vmem:[%s1 + $0x30] sm:$0xf]
  %v40 = vld [vmem:[%s1 + $0x34] sm:$0xf]
  %v41 = vld [vmem:[%s1 + $0x38] sm:$0xf]
  %v42 = vld [vmem:[%s1 + $0x3c] sm:$0xf]
  %v43 = vld [vmem:[%s1 + $0x40] sm:$0xf]
  %v44 = vld [vmem:[%s1 + $0x44] sm:$0xf]
  %v45 = vld [vmem:[%s1 + $0x48] sm:$0xf]
  %v46 = vld [vmem:[%s1 + $0x4c] sm:$0xf]
  %v47 = vld [vmem:[%s1 + $0x50] sm:$0xf]
  %v48 = vld [vmem:[%s1 + $0x54] sm:$0xf]
  %v49 = vld [vmem:[%s1 + $0x58] sm:$0xf]
  %v50 = vld [vmem:[%s1 + $0x5c] sm:$0xf]
  %v51 = vld [vmem:[%s1 + $0x60] sm:$0xf]
  %v52 = vld [vmem:[%s1 + $0x64] sm:$0xf]
  %v53 = vld [vmem:[%s1 + $0x68] sm:$0xf]
  %v54 = vld [vmem:[%s1 + $0x6c] sm:$0xf]
  %v55 = vld [vmem:[%s1 + $0x70] sm:$0xf]
  %v56 = vld [vmem:[%s1 + $0x74] sm:$0xf]
  %v57 = vld [vmem:[%s1 + $0x78] sm:$0xf]
  %v58 = vld [vmem:[%s1 + $0x7c] sm:$0xf]
  %v59 = vld [vmem:[%s1 + $0x80] sm:$0xf]
  %v60 = vld [vmem:[%s1 + $0x84] sm:$0xf]
  %v61 = vld [vmem:[%s1 + $0x88] sm:$0xf]
  %v62 = vld [vmem:[%s1 + $0x8c] sm:$0xf]
  %v63 = vld [vmem:[%s1 + $0x90] sm:$0xf]
  %v64 = vld [vmem:[%s1 + $0x94] sm:$0xf]
  %v65 = vld [vmem:[%s1 + $0x98] sm:$0xf]
  %v66 = vld [vmem:[%s1 + $0x9c] sm:$0xf]
  %v67 = vld [vmem:[%s1 + $0xa0] sm:$0xf]
  %v68 = vld [vmem:[%s1 + $0xa4] sm:$0xf]
  %v69 = vld [vmem:[%s1 + $0xa8] sm:$0xf]
  %v70 = vld [vmem:[%s1 + $0xac] sm:$0xf]
  %v71 = vld [vmem:[%s1 + $0xb0] sm:$0xf]
  %v72 = vld [vmem:[%s1 + $0xb4] sm:$0xf]
  %v73 = vld [vmem:[%s1 + $0xb8] sm:$0xf]
  %v74 = vld [vmem:[%s1 + $0xbc] sm:$0xf]
  %v75 = vld [vmem:[%s1 + $0xc0] sm:$0xf]
  %v76 = vld [vmem:[%s1 + $0xc4] sm:$0xf]
  %v77 = vld [vmem:[%s1 + $0xc8] sm:$0xf]
  %v78 = vld [vmem:[%s1 + $0xcc] sm:$0xf]
  %v79 = vld [vmem:[%s1 + $0xd0] sm:$0xf]
  %v80 = vld [vmem:[%s1 + $0xd4] sm:$0xf]
  %v81 = vld [vmem:[%s1 + $0xd8] sm:$0xf]
  %v82 = vld [vmem:[%s1 + $0xdc] sm:$0xf]
  %v83 = vld [vmem:[%s1 + $0xe0] sm:$0xf]
  %v84 = vld [vmem:[%s1 + $0xe4] sm:$0xf]
  %v85 = vld [vmem:[%s1 + $0xe8] sm:$0xf]
  %v86 = vld [vmem:[%s1 + $0xec] sm:$0xf]
  %v87 = vld [vmem:[%s1 + $0xf0] sm:$0xf]
  %v88 = vld [vmem:[%s1 + $0xf4] sm:$0xf]
  %v89 = vld [vmem:[%s1 + $0xf8] sm:$0xf]
  %v90 = vld [vmem:[%s1 + $0xfc] sm:$0xf]
  %v91 = vld [vmem:[%s1 + $0x100] sm:$0xf]
  %v92 = vld [vmem:[%s1 + $0x104] sm:$0xf]
  %v93 = vld [vmem:[%s1 + $0x108] sm:$0xf]
  %v94 = vld [vmem:[%s1 + $0x10c] sm:$0xf]
  %v95 = vld [vmem:[%s1 + $0x110] sm:$0xf]
  %v96 = vld [vmem:[%s1 + $0x114] sm:$0xf]
  %v97 = vld [vmem:[%s1 + $0x118] sm:$0xf]
  %v98 = vld [vmem:[%s1 + $0x11c] sm:$0xf]
  %v99 = vld [vmem:[%s1 + $0x120] sm:$0xf]
  %v100 = vld [vmem:[%s1 + $0x124] sm:$0xf]
  %v101 = vld [vmem:[%s1 + $0x128] sm:$0xf]
  %v102 = vld [vmem:[%s1 + $0x12c] sm:$0xf]
  %v103 = vld [vmem:[%s1 + $0x130] sm:$0xf]
  %v104 = vld [vmem:[%s1 + $0x134] sm:$0xf]
  %v105 = vld [vmem:[%s1 + $0x138] sm:$0xf]
  %v106 = vld [vmem:[%s1 + $0x13c] sm:$0xf]
  %v107 = vld [vmem:[%s1 + $0x140] sm:$0xf]
  %v108 = vld [vmem:[%s1 + $0x144] sm:$0xf]
  %v109 = vld [vmem:[%s1 + $0x148] sm:$0xf]
  %v110 = vld [vmem:[%s1 + $0x14c] sm:$0xf]
  %v111 = vld [vmem:[%s1 + $0x150] sm:$0xf]
  %v112 = vld [vmem:[%s1 + $0x154] sm:$0xf]
  %v113 = vld [vmem:[%s1 + $0x158] sm:$0xf]
  %v114 = vld [vmem:[%s1 + $0x15c] sm:$0xf]
  %v115 = vld [vmem:[%s1 + $0x160] sm:$0xf]
  %v116 = vld [vmem:[%s1 + $0x164] sm:$0xf]
  %v117 = vld [vmem:[%s1 + $0x168] sm:$0xf]
  %v118 = vld [vmem:[%s1 + $0x16c] sm:$0xf]
  %v119 = vld [vmem:[%s1 + $0x170] sm:$0xf]
  %v120 = vld [vmem:[%s1 + $0x174] sm:$0xf]
  %v121 = vld [vmem:[%s1 + $0x178] sm:$0xf]
  %v122 = vld [vmem:[%s1 + $0x17c] sm:$0xf]
  %v123 = vld [vmem:[%s1 + $0x180] sm:$0xf]
  %v124 = vld [vmem:[%s1 + $0x184] sm:$0xf]
  %v125 = vld [vmem:[%s1 + $0x188] sm:$0xf]
  %v126 = vld [vmem:[%s1 + $0x18c] sm:$0xf]
  %v127 = vld [vmem:[%s1 + $0x190] sm:$0xf]
  %v128 = vld [vmem:[%s1 + $0x194] sm:$0xf]
  %v129 = vld [vmem:[%s1 + $0x198] sm:$0xf]
  %v130 = vld [vmem:[%s1 + $0x19c] sm:$0xf]
  %v131 = vld [vmem:[%s1 + $0x1a0] sm:$0xf]
  %v132 = vld [vmem:[%s1 + $0x1a4] sm:$0xf]
  %v133 = vld [vmem:[%s1 + $0x1a8] sm:$0xf]
  %v134 = vld [vmem:[%s1 + $0x1ac] sm:$0xf]
  %v135 = vld [vmem:[%s1 + $0x1b0] sm:$0xf]
  %v136 = vld [vmem:[%s1 + $0x1b4] sm:$0xf]
  %v137 = vld [vmem:[%s1 + $0x1b8] sm:$0xf]
  %v138 = vld [vmem:[%s1 + $0x1bc] sm:$0xf]
  %v139 = vld [vmem:[%s1 + $0x1c0] sm:$0xf]
  %v140 = vld [vmem:[%s1 + $0x1c4] sm:$0xf]
  %v141 = vld [vmem:[%s1 + $0x1c8] sm:$0xf]
  %v142 = vld [vmem:[%s1 + $0x1cc] sm:$0xf]
  %v143 = vld [vmem:[%s1 + $0x1d0] sm:$0xf]
  %v144 = vld [vmem:[%s1 + $0x1d4] sm:$0xf]
  %v145 = vld [vmem:[%s1 + $0x1d8] sm:$0xf]
  %v146 = vld [vmem:[%s1 + $0x1dc] sm:$0xf]
  %v147 = vld [vmem:[%s1 + $0x1e0] sm:$0xf]
  %v148 = vld [vmem:[%s1 + $0x1e4] sm:$0xf]
  %v149 = vld [vmem:[%s1 + $0x1e8] sm:$0xf]
  %v150 = vld [vmem:[%s1 + $0x1ec] sm:$0xf]
  %v151 = vld [vmem:[%s1 + $0x1f0] sm:$0xf]
  %v152 = vld [vmem:[%s1 + $0x1f4] sm:$0xf]
  %v153 = vld [vmem:[%s1 + $0x1f8] sm:$0xf]
  %v154 = vld [vmem:[%s1 + $0x1fc] sm:$0xf]
  %v155 = vld [vmem:[%s1 + $0x200] sm:$0xf]
  %v156 = vld [vmem:[%s1 + $0x204] sm:$0xf]
  %v157 = vld [vmem:[%s1 + $0x208] sm:$0xf]
  %v158 = vld [vmem:[%s1 + $0x20c] sm:$0xf]
  %v159 = vld [vmem:[%s1 + $0x210] sm:$0xf]
  %v160 = vld [vmem:[%s1 + $0x214] sm:$0xf]
  %v161 = vld [vmem:[%s1 + $0x218] sm:$0xf]
  %v162 = vld [vmem:[%s1 + $0x21c] sm:$0xf]
  %v163 = vld [vmem:[%s1 + $0x220] sm:$0xf]
  %v164 = vld [vmem:[%s1 + $0x224] sm:$0xf]
  %v165 = vld [vmem:[%s1 + $0x228] sm:$0xf]
  %v166 = vld [vmem:[%s1 + $0x22c] sm:$0xf]
  %v167 = vld [vmem:[%s1 + $0x230] sm:$0xf]
  %v168 = vld [vmem:[%s1 + $0x234] sm:$0xf]
  %v169 = vld [vmem:[%s1 + $0x238] sm:$0xf]
  %v170 = vld [vmem:[%s1 + $0x23c] sm:$0xf]
  %v171 = vld [vmem:[%s2] sm:$0x1]
  %v173 = vperm.slane %v171, 0
  %v185 = vunpack.c.l.b16 %v17
  %v186 = vunpack.c.h.b16 %v17
  %v187 = vunpack.c.l.b16 %v18
  %v188 = vunpack.c.h.b16 %v18
  %v189 = vunpack.c.l.b16 %v19
  %v190 = vunpack.c.h.b16 %v19
  %v191 = vunpack.c.l.b16 %v20
  %v192 = vunpack.c.h.b16 %v20
  %v193 = vunpack.c.l.b16 %v21
  %v194 = vunpack.c.l.b16 %v22
  %v195 = vunpack.c.h.b16 %v22
  %v196 = vunpack.c.l.b16 %v23
  %v197 = vunpack.c.h.b16 %v23
  %v198 = vunpack.c.l.b16 %v24
  %v199 = vunpack.c.h.b16 %v24
  %v200 = vunpack.c.l.b16 %v25
  %v201 = vunpack.c.h.b16 %v25
  %v202 = vunpack.c.l.b16 %v26
  %v203 = vpack.c.b16 %v194, %v185
  %v204 = vpack.c.b16 %v195, %v186
  %v205 = vpack.c.b16 %v196, %v187
  %v206 = vpack.c.b16 %v197, %v188
  %v207 = vpack.c.b16 %v198, %v189
  %v208 = vpack.c.b16 %v199, %v190
  %v209 = vpack.c.b16 %v200, %v191
  %v210 = vpack.c.b16 %v201, %v192
  %v211 = vpack.c.b16 %v202, %v193
  %v365 = vunpack.c.l.b16 %v27
  %v366 = vunpack.c.l.b16 %v28
  %v367 = vunpack.c.l.b16 %v29
  %v368 = vunpack.c.l.b16 %v30
  %v369 = vunpack.c.l.b16 %v31
  %v370 = vunpack.c.l.b16 %v32
  %v371 = vunpack.c.l.b16 %v33
  %v372 = vunpack.c.l.b16 %v34
  %v373 = vunpack.c.l.b16 %v35
  %v374 = vunpack.c.l.b16 %v36
  %v375 = vunpack.c.l.b16 %v37
  %v376 = vunpack.c.l.b16 %v38
  %v377 = vunpack.c.l.b16 %v39
  %v378 = vunpack.c.l.b16 %v40
  %v379 = vunpack.c.l.b16 %v41
  %v380 = vunpack.c.l.b16 %v42
  %v381 = vunpack.c.l.b16 %v43
  %v382 = vunpack.c.l.b16 %v44
  %v383 = vunpack.c.l.b16 %v45
  %v384 = vunpack.c.l.b16 %v46
  %v385 = vunpack.c.l.b16 %v47
  %v386 = vunpack.c.l.b16 %v48
  %v387 = vunpack.c.l.b16 %v49
  %v388 = vunpack.c.l.b16 %v50
  %v389 = vunpack.c.l.b16 %v51
  %v390 = vunpack.c.l.b16 %v52
  %v391 = vunpack.c.l.b16 %v53
  %v392 = vunpack.c.l.b16 %v54
  %v393 = vunpack.c.l.b16 %v55
  %v394 = vunpack.c.l.b16 %v56
  %v395 = vunpack.c.l.b16 %v57
  %v396 = vunpack.c.l.b16 %v58
  %v397 = vunpack.c.l.b16 %v59
  %v398 = vunpack.c.l.b16 %v60
  %v399 = vunpack.c.l.b16 %v61
  %v400 = vunpack.c.l.b16 %v62
  %v401 = vunpack.c.l.b16 %v63
  %v402 = vunpack.c.l.b16 %v64
  %v403 = vunpack.c.l.b16 %v65
  %v404 = vunpack.c.l.b16 %v66
  %v405 = vunpack.c.l.b16 %v67
  %v406 = vunpack.c.l.b16 %v68
  %v407 = vunpack.c.l.b16 %v69
  %v408 = vunpack.c.l.b16 %v70
  %v409 = vunpack.c.l.b16 %v71
  %v410 = vunpack.c.l.b16 %v72
  %v411 = vunpack.c.l.b16 %v73
  %v412 = vunpack.c.l.b16 %v74
  %v413 = vunpack.c.l.b16 %v75
  %v414 = vunpack.c.l.b16 %v76
  %v415 = vunpack.c.l.b16 %v77
  %v416 = vunpack.c.l.b16 %v78
  %v417 = vunpack.c.l.b16 %v79
  %v418 = vunpack.c.l.b16 %v80
  %v419 = vunpack.c.l.b16 %v81
  %v420 = vunpack.c.l.b16 %v82
  %v421 = vunpack.c.l.b16 %v83
  %v422 = vunpack.c.l.b16 %v84
  %v423 = vunpack.c.l.b16 %v85
  %v424 = vunpack.c.l.b16 %v86
  %v425 = vunpack.c.l.b16 %v87
  %v426 = vunpack.c.l.b16 %v88
  %v427 = vunpack.c.l.b16 %v89
  %v428 = vunpack.c.l.b16 %v90
  %v429 = vunpack.c.l.b16 %v91
  %v430 = vunpack.c.l.b16 %v92
  %v431 = vunpack.c.l.b16 %v93
  %v432 = vunpack.c.l.b16 %v94
  %v433 = vunpack.c.l.b16 %v95
  %v434 = vunpack.c.l.b16 %v96
  %v435 = vunpack.c.l.b16 %v97
  %v436 = vunpack.c.l.b16 %v98
  %v437 = vunpack.c.l.b16 %v99
  %v438 = vunpack.c.l.b16 %v100
  %v439 = vunpack.c.l.b16 %v101
  %v440 = vunpack.c.l.b16 %v102
  %v441 = vunpack.c.l.b16 %v103
  %v442 = vunpack.c.l.b16 %v104
  %v443 = vunpack.c.l.b16 %v105
  %v444 = vunpack.c.l.b16 %v106
  %v445 = vunpack.c.l.b16 %v107
  %v446 = vunpack.c.l.b16 %v108
  %v447 = vunpack.c.l.b16 %v109
  %v448 = vunpack.c.l.b16 %v110
  %v449 = vunpack.c.l.b16 %v111
  %v450 = vunpack.c.l.b16 %v112
  %v451 = vunpack.c.l.b16 %v113
  %v452 = vunpack.c.l.b16 %v114
  %v453 = vunpack.c.l.b16 %v115
  %v454 = vunpack.c.l.b16 %v116
  %v455 = vunpack.c.l.b16 %v117
  %v456 = vunpack.c.l.b16 %v118
  %v457 = vunpack.c.l.b16 %v119
  %v458 = vunpack.c.l.b16 %v120
  %v459 = vunpack.c.l.b16 %v121
  %v460 = vunpack.c.l.b16 %v122
  %v461 = vunpack.c.l.b16 %v123
  %v462 = vunpack.c.l.b16 %v124
  %v463 = vunpack.c.l.b16 %v125
  %v464 = vunpack.c.l.b16 %v126
  %v465 = vunpack.c.l.b16 %v127
  %v466 = vunpack.c.l.b16 %v128
  %v467 = vunpack.c.l.b16 %v129
  %v468 = vunpack.c.l.b16 %v130
  %v469 = vunpack.c.l.b16 %v131
  %v470 = vunpack.c.l.b16 %v132
  %v471 = vunpack.c.l.b16 %v133
  %v472 = vunpack.c.l.b16 %v134
  %v473 = vunpack.c.l.b16 %v135
  %v474 = vunpack.c.l.b16 %v136
  %v475 = vunpack.c.l.b16 %v137
  %v476 = vunpack.c.l.b16 %v138
  %v477 = vunpack.c.l.b16 %v139
  %v478 = vunpack.c.l.b16 %v140
  %v479 = vunpack.c.l.b16 %v141
  %v480 = vunpack.c.l.b16 %v142
  %v481 = vunpack.c.l.b16 %v143
  %v482 = vunpack.c.l.b16 %v144
  %v483 = vunpack.c.l.b16 %v145
  %v484 = vunpack.c.l.b16 %v146
  %v485 = vunpack.c.l.b16 %v147
  %v486 = vunpack.c.l.b16 %v148
  %v487 = vunpack.c.l.b16 %v149
  %v488 = vunpack.c.l.b16 %v150
  %v489 = vunpack.c.l.b16 %v151
  %v490 = vunpack.c.l.b16 %v152
  %v491 = vunpack.c.l.b16 %v153
  %v492 = vunpack.c.l.b16 %v154
  %v493 = vunpack.c.l.b16 %v155
  %v494 = vunpack.c.l.b16 %v156
  %v495 = vunpack.c.l.b16 %v157
  %v496 = vunpack.c.l.b16 %v158
  %v497 = vunpack.c.l.b16 %v159
  %v498 = vunpack.c.l.b16 %v160
  %v499 = vunpack.c.l.b16 %v161
  %v500 = vunpack.c.l.b16 %v162
  %v501 = vunpack.c.l.b16 %v163
  %v502 = vunpack.c.l.b16 %v164
  %v503 = vunpack.c.l.b16 %v165
  %v504 = vunpack.c.l.b16 %v166
  %v505 = vunpack.c.l.b16 %v167
  %v506 = vunpack.c.l.b16 %v168
  %v507 = vunpack.c.l.b16 %v169
  %v508 = vunpack.c.l.b16 %v170
  %v509 = vpack.c.b16 %v366, %v365
  %v510 = vpack.c.b16 %v368, %v367
  %v511 = vpack.c.b16 %v370, %v369
  %v512 = vpack.c.b16 %v372, %v371
  %v513 = vpack.c.b16 %v374, %v373
  %v514 = vpack.c.b16 %v376, %v375
  %v515 = vpack.c.b16 %v378, %v377
  %v516 = vpack.c.b16 %v380, %v379
  %v517 = vpack.c.b16 %v382, %v381
  %v518 = vpack.c.b16 %v384, %v383
  %v519 = vpack.c.b16 %v386, %v385
  %v520 = vpack.c.b16 %v388, %v387
  %v521 = vpack.c.b16 %v390, %v389
  %v522 = vpack.c.b16 %v392, %v391
  %v523 = vpack.c.b16 %v394, %v393
  %v524 = vpack.c.b16 %v396, %v395
  %v525 = vpack.c.b16 %v398, %v397
  %v526 = vpack.c.b16 %v400, %v399
  %v527 = vpack.c.b16 %v402, %v401
  %v528 = vpack.c.b16 %v404, %v403
  %v529 = vpack.c.b16 %v406, %v405
  %v530 = vpack.c.b16 %v408, %v407
  %v531 = vpack.c.b16 %v410, %v409
  %v532 = vpack.c.b16 %v412, %v411
  %v533 = vpack.c.b16 %v414, %v413
  %v534 = vpack.c.b16 %v416, %v415
  %v535 = vpack.c.b16 %v418, %v417
  %v536 = vpack.c.b16 %v420, %v419
  %v537 = vpack.c.b16 %v422, %v421
  %v538 = vpack.c.b16 %v424, %v423
  %v539 = vpack.c.b16 %v426, %v425
  %v540 = vpack.c.b16 %v428, %v427
  %v541 = vpack.c.b16 %v430, %v429
  %v542 = vpack.c.b16 %v432, %v431
  %v543 = vpack.c.b16 %v434, %v433
  %v544 = vpack.c.b16 %v436, %v435
  %v545 = vpack.c.b16 %v438, %v437
  %v546 = vpack.c.b16 %v440, %v439
  %v547 = vpack.c.b16 %v442, %v441
  %v548 = vpack.c.b16 %v444, %v443
  %v549 = vpack.c.b16 %v446, %v445
  %v550 = vpack.c.b16 %v448, %v447
  %v551 = vpack.c.b16 %v450, %v449
  %v552 = vpack.c.b16 %v452, %v451
  %v553 = vpack.c.b16 %v454, %v453
  %v554 = vpack.c.b16 %v456, %v455
  %v555 = vpack.c.b16 %v458, %v457
  %v556 = vpack.c.b16 %v460, %v459
  %v557 = vpack.c.b16 %v462, %v461
  %v558 = vpack.c.b16 %v464, %v463
  %v559 = vpack.c.b16 %v466, %v465
  %v560 = vpack.c.b16 %v468, %v467
  %v561 = vpack.c.b16 %v470, %v469
  %v562 = vpack.c.b16 %v472, %v471
  %v563 = vpack.c.b16 %v474, %v473
  %v564 = vpack.c.b16 %v476, %v475
  %v565 = vpack.c.b16 %v478, %v477
  %v566 = vpack.c.b16 %v480, %v479
  %v567 = vpack.c.b16 %v482, %v481
  %v568 = vpack.c.b16 %v484, %v483
  %v569 = vpack.c.b16 %v486, %v485
  %v570 = vpack.c.b16 %v488, %v487
  %v571 = vpack.c.b16 %v490, %v489
  %v572 = vpack.c.b16 %v492, %v491
  %v573 = vpack.c.b16 %v494, %v493
  %v574 = vpack.c.b16 %v496, %v495
  %v575 = vpack.c.b16 %v498, %v497
  %v576 = vpack.c.b16 %v500, %v499
  %v577 = vpack.c.b16 %v502, %v501
  %v578 = vpack.c.b16 %v504, %v503
  %v579 = vpack.c.b16 %v506, %v505
  %v580 = vpack.c.b16 %v508, %v507
  %653 = vmatpush.bf16.msra.mxu0 %v516
  %654 = vmatpush.bf16.msra.mxu0 %v515
  %655 = vmatpush.bf16.msra.mxu0 %v514
  %656 = vmatpush.bf16.msra.mxu0 %v513
  %657 = vmatpush.bf16.msra.mxu0 %v512
  %658 = vmatpush.bf16.msra.mxu0 %v511
  %659 = vmatpush.bf16.msra.mxu0 %v510
  %660 = vmatpush.bf16.msra.mxu0 %v509
  %661 = vmatmul.bf16.gmra.mxu0 %v203
  %v662 = vpop.f32.mrf.mxu0
  %v663 = vadd.f32 %v173, %v662
  %v664 = vpop.f32.mrf.mxu0
  %v665 = vadd.f32 %v173, %v664
  %666 = vdwg.mxu0
  %667 = vmatpush.bf16.msra.mxu0 %v524
  %668 = vmatpush.bf16.msra.mxu0 %v523
  %669 = vmatpush.bf16.msra.mxu0 %v522
  %670 = vmatpush.bf16.msra.mxu0 %v521
  %671 = vmatpush.bf16.msra.mxu0 %v520
  %672 = vmatpush.bf16.msra.mxu0 %v519
  %673 = vmatpush.bf16.msra.mxu0 %v518
  %674 = vmatpush.bf16.msra.mxu0 %v517
  %675 = vmatmul.bf16.gmra.mxu0 %v204
  %v676 = vpop.f32.mrf.mxu0
  %v677 = vadd.f32 %v663, %v676
  %v678 = vpop.f32.mrf.mxu0
  %v679 = vadd.f32 %v665, %v678
  %680 = vdwg.mxu0
  %681 = vmatpush.bf16.msra.mxu0 %v532
  %682 = vmatpush.bf16.msra.mxu0 %v531
  %683 = vmatpush.bf16.msra.mxu0 %v530
  %684 = vmatpush.bf16.msra.mxu0 %v529
  %685 = vmatpush.bf16.msra.mxu0 %v528
  %686 = vmatpush.bf16.msra.mxu0 %v527
  %687 = vmatpush.bf16.msra.mxu0 %v526
  %688 = vmatpush.bf16.msra.mxu0 %v525
  %689 = vmatmul.bf16.gmra.mxu0 %v205
  %v690 = vpop.f32.mrf.mxu0
  %v691 = vadd.f32 %v677, %v690
  %v692 = vpop.f32.mrf.mxu0
  %v693 = vadd.f32 %v679, %v692
  %694 = vdwg.mxu0
  %695 = vmatpush.bf16.msra.mxu0 %v540
  %696 = vmatpush.bf16.msra.mxu0 %v539
  %697 = vmatpush.bf16.msra.mxu0 %v538
  %698 = vmatpush.bf16.msra.mxu0 %v537
  %699 = vmatpush.bf16.msra.mxu0 %v536
  %700 = vmatpush.bf16.msra.mxu0 %v535
  %701 = vmatpush.bf16.msra.mxu0 %v534
  %702 = vmatpush.bf16.msra.mxu0 %v533
  %703 = vmatmul.bf16.gmra.mxu0 %v206
  %v704 = vpop.f32.mrf.mxu0
  %v705 = vadd.f32 %v691, %v704
  %v706 = vpop.f32.mrf.mxu0
  %v707 = vadd.f32 %v693, %v706
  %708 = vdwg.mxu0
  %709 = vmatpush.bf16.msra.mxu0 %v548
  %710 = vmatpush.bf16.msra.mxu0 %v547
  %711 = vmatpush.bf16.msra.mxu0 %v546
  %712 = vmatpush.bf16.msra.mxu0 %v545
  %713 = vmatpush.bf16.msra.mxu0 %v544
  %714 = vmatpush.bf16.msra.mxu0 %v543
  %715 = vmatpush.bf16.msra.mxu0 %v542
  %716 = vmatpush.bf16.msra.mxu0 %v541
  %717 = vmatmul.bf16.gmra.mxu0 %v207
  %v718 = vpop.f32.mrf.mxu0
  %v719 = vadd.f32 %v705, %v718
  %v720 = vpop.f32.mrf.mxu0
  %v721 = vadd.f32 %v707, %v720
  %722 = vdwg.mxu0
  %723 = vmatpush.bf16.msra.mxu0 %v556
  %724 = vmatpush.bf16.msra.mxu0 %v555
  %725 = vmatpush.bf16.msra.mxu0 %v554
  %726 = vmatpush.bf16.msra.mxu0 %v553
  %727 = vmatpush.bf16.msra.mxu0 %v552
  %728 = vmatpush.bf16.msra.mxu0 %v551
  %729 = vmatpush.bf16.msra.mxu0 %v550
  %730 = vmatpush.bf16.msra.mxu0 %v549
  %731 = vmatmul.bf16.gmra.mxu0 %v208
  %v732 = vpop.f32.mrf.mxu0
  %v733 = vadd.f32 %v719, %v732
  %v734 = vpop.f32.mrf.mxu0
  %v735 = vadd.f32 %v721, %v734
  %736 = vdwg.mxu0
  %737 = vmatpush.bf16.msra.mxu0 %v564
  %738 = vmatpush.bf16.msra.mxu0 %v563
  %739 = vmatpush.bf16.msra.mxu0 %v562
  %740 = vmatpush.bf16.msra.mxu0 %v561
  %741 = vmatpush.bf16.msra.mxu0 %v560
  %742 = vmatpush.bf16.msra.mxu0 %v559
  %743 = vmatpush.bf16.msra.mxu0 %v558
  %744 = vmatpush.bf16.msra.mxu0 %v557
  %745 = vmatmul.bf16.gmra.mxu0 %v209
  %v746 = vpop.f32.mrf.mxu0
  %v747 = vadd.f32 %v733, %v746
  %v748 = vpop.f32.mrf.mxu0
  %v749 = vadd.f32 %v735, %v748
  %750 = vdwg.mxu0
  %751 = vmatpush.bf16.msra.mxu0 %v572
  %752 = vmatpush.bf16.msra.mxu0 %v571
  %753 = vmatpush.bf16.msra.mxu0 %v570
  %754 = vmatpush.bf16.msra.mxu0 %v569
  %755 = vmatpush.bf16.msra.mxu0 %v568
  %756 = vmatpush.bf16.msra.mxu0 %v567
  %757 = vmatpush.bf16.msra.mxu0 %v566
  %758 = vmatpush.bf16.msra.mxu0 %v565
  %759 = vmatmul.bf16.gmra.mxu0 %v210
  %v760 = vpop.f32.mrf.mxu0
  %v761 = vadd.f32 %v747, %v760
  %v762 = vpop.f32.mrf.mxu0
  %v763 = vadd.f32 %v749, %v762
  %764 = vdwg.mxu0
  %765 = vmatpush.bf16.msra.mxu0 %v580
  %766 = vmatpush.bf16.msra.mxu0 %v579
  %767 = vmatpush.bf16.msra.mxu0 %v578
  %768 = vmatpush.bf16.msra.mxu0 %v577
  %769 = vmatpush.bf16.msra.mxu0 %v576
  %770 = vmatpush.bf16.msra.mxu0 %v575
  %771 = vmatpush.bf16.msra.mxu0 %v574
  %772 = vmatpush.bf16.msra.mxu0 %v573
  %773 = vmatmul.bf16.gmra.mxu0 %v211
  %v774 = vpop.f32.mrf.mxu0
  %v775 = vadd.f32 %v761, %v774
  %v776 = vpop.f32.mrf.mxu0
  %v777 = vadd.f32 %v763, %v776
  %778 = vdwg.mxu0
  %v779 = vld [vmem:[%s3] sm:$0xf]
  %v780 = vld [vmem:[%s3 + $0x4] sm:$0xf]
  %v781 = vunpack.c.l.bf16 %v779
  %v782 = vunpack.c.l.bf16 %v780
  %v783 = vadd.f32 %v775, %v781
  %v784 = vadd.f32 %v777, %v782
  %v785 = vmax.f32 %v783, 0.0
  %v786 = vmax.f32 %v784, 0.0
  %v787 = vpack.c.bf16 %v785, %v785
  %v788 = vpack.c.bf16 %v786, %v786
  %789 = vst [vmem:[%s4] sm:$0xf] %v787
  %790 = vst [vmem:[%s4 + $0x4] sm:$0xf] %v788
  // Predicated region
  $region18: #{encoder_forward.26} parent=0 // pred_check
    _
  $region19: #{encoder_forward.26} parent=0 // pred_check_branch
    %792 = sbr.rel (0) target = $region21
  $region20: #{encoder_forward.26} parent=0 // pred_region
    _
  $region21: #{encoder_forward.26} parent=0 // pred_fallthru
    _
  // Predicated region
  $region22: #{encoder_forward.26} parent=0 // pred_check
    _
  $region23: #{encoder_forward.26} parent=0 // pred_check_branch
    %794 = sbr.rel (0) target = $region25
  $region24: #{encoder_forward.26} parent=0 // pred_region
    _
  $region25: #{encoder_forward.26} parent=0 // pred_fallthru
    _

// kernel: encoder_forward.24
$region0: #{encoder_forward.24}
  #allocation0 [shape = 'u32[]', space=smem, size = 0x4, offset = 0x4, fixed_abs, tag = 'smem constant byte address 0x4 - core index']
  #allocation1 [shape = 'u32[72,128]{1,0:T(1,128)}', space=vmem, size = 0x9000, scoped, tag = 'internal scratch']
  %s0 = inlined_call_operand.vmem [shape: bf16[16,1152], index: 0, kind: input, shape index: {}]
  %s1 = inlined_call_operand.vmem [shape: bf16[1152,128], index: 1, kind: input, shape index: {}]
  %s2 = inlined_call_operand.vmem [shape: f32[1,128], index: 2, kind: input, shape index: {}]
  %s3 = inlined_call_operand.vmem [shape: bf16[16,128], index: 3, kind: input, shape index: {}]
  %s4 = inlined_call_operand.vmem [shape: bf16[128,128], index: 4, kind: input, shape index: {}]
  %s5 = inlined_call_operand.vmem [shape: f32[1,128], index: 5, kind: input, shape index: {}]
  %s6 = inlined_call_operand.vmem [shape: bf16[16,128], index: 6, kind: output, shape index: {}]
  %s7 = sld [smem:[#allocation0]]
  $region34: #{encoder_forward.24} parent=0
    _
  %s9 = ssub.s32 1, %s7
  %s10 = scalar_select 0, %s9, %s7
  // Predicated region
  $region2: #{encoder_forward.24} parent=0 // pred_check
    _
  $region3: #{encoder_forward.24} parent=0 // pred_check_branch
    %12 = sbr.rel (0) target = $region5
  $region4: #{encoder_forward.24} parent=0 // pred_region
    _
  $region5: #{encoder_forward.24} parent=0 // pred_fallthru
    _
  // Predicated region
  $region6: #{encoder_forward.24} parent=0 // pred_check
    _
  $region7: #{encoder_forward.24} parent=0 // pred_check_branch
    %14 = sbr.rel (0) target = $region9
  $region8: #{encoder_forward.24} parent=0 // pred_region
    _
  $region9: #{encoder_forward.24} parent=0 // pred_fallthru
    _
  // Predicated region
  $region10: #{encoder_forward.24} parent=0 // pred_check
    _
  $region11: #{encoder_forward.24} parent=0 // pred_check_branch
    %16 = sbr.rel (0) target = $region13
  $region12: #{encoder_forward.24} parent=0 // pred_region
    _
  $region13: #{encoder_forward.24} parent=0 // pred_fallthru
    _
  // Predicated region
  $region14: #{encoder_forward.24} parent=0 // pred_check
    _
  $region15: #{encoder_forward.24} parent=0 // pred_check_branch
    %18 = sbr.rel (0) target = $region17
  $region16: #{encoder_forward.24} parent=0 // pred_region
    _
  $region17: #{encoder_forward.24} parent=0 // pred_fallthru
    _
  // Predicated region
  $region18: #{encoder_forward.24} parent=0 // pred_check
    _
  $region19: #{encoder_forward.24} parent=0 // pred_check_branch
    %20 = sbr.rel (0) target = $region21
  $region20: #{encoder_forward.24} parent=0 // pred_region
    _
  $region21: #{encoder_forward.24} parent=0 // pred_fallthru
    _
  // Predicated region
  $region22: #{encoder_forward.24} parent=0 // pred_check
    _
  $region23: #{encoder_forward.24} parent=0 // pred_check_branch
    %22 = sbr.rel (0) target = $region25
  $region24: #{encoder_forward.24} parent=0 // pred_region
    _
  $region25: #{encoder_forward.24} parent=0 // pred_fallthru
    _
  %v23 = vld [vmem:[%s0] sm:$0xff]
  %v24 = vld [vmem:[%s0 + $0x8] sm:$0xff]
  %v25 = vld [vmem:[%s0 + $0x10] sm:$0xff]
  %v26 = vld [vmem:[%s0 + $0x18] sm:$0xff]
  %v27 = vld [vmem:[%s0 + $0x20] sm:$0xf]
  %v28 = vld [vmem:[%s0 + $0x24] sm:$0xff]
  %v29 = vld [vmem:[%s0 + $0x2c] sm:$0xff]
  %v30 = vld [vmem:[%s0 + $0x34] sm:$0xff]
  %v31 = vld [vmem:[%s0 + $0x3c] sm:$0xff]
  %v32 = vld [vmem:[%s0 + $0x44] sm:$0xf]
  %v33 = vld [vmem:[%s1] sm:$0xf]
  %v34 = vld [vmem:[%s1 + $0x4] sm:$0xf]
  %v35 = vld [vmem:[%s1 + $0x8] sm:$0xf]
  %v36 = vld [vmem:[%s1 + $0xc] sm:$0xf]
  %v37 = vld [vmem:[%s1 + $0x10] sm:$0xf]
  %v38 = vld [vmem:[%s1 + $0x14] sm:$0xf]
  %v39 = vld [vmem:[%s1 + $0x18] sm:$0xf]
  %v40 = vld [vmem:[%s1 + $0x1c] sm:$0xf]
  %v41 = vld [vmem:[%s1 + $0x20] sm:$0xf]
  %v42 = vld [vmem:[%s1 + $0x24] sm:$0xf]
  %v43 = vld [vmem:[%s1 + $0x28] sm:$0xf]
  %v44 = vld [vmem:[%s1 + $0x2c] sm:$0xf]
  %v45 = vld [vmem:[%s1 + $0x30] sm:$0xf]
  %v46 = vld [vmem:[%s1 + $0x34] sm:$0xf]
  %v47 = vld [vmem:[%s1 + $0x38] sm:$0xf]
  %v48 = vld [vmem:[%s1 + $0x3c] sm:$0xf]
  %v49 = vld [vmem:[%s1 + $0x40] sm:$0xf]
  %v50 = vld [vmem:[%s1 + $0x44] sm:$0xf]
  %v51 = vld [vmem:[%s1 + $0x48] sm:$0xf]
  %v52 = vld [vmem:[%s1 + $0x4c] sm:$0xf]
  %v53 = vld [vmem:[%s1 + $0x50] sm:$0xf]
  %v54 = vld [vmem:[%s1 + $0x54] sm:$0xf]
  %v55 = vld [vmem:[%s1 + $0x58] sm:$0xf]
  %v56 = vld [vmem:[%s1 + $0x5c] sm:$0xf]
  %v57 = vld [vmem:[%s1 + $0x60] sm:$0xf]
  %v58 = vld [vmem:[%s1 + $0x64] sm:$0xf]
  %v59 = vld [vmem:[%s1 + $0x68] sm:$0xf]
  %v60 = vld [vmem:[%s1 + $0x6c] sm:$0xf]
  %v61 = vld [vmem:[%s1 + $0x70] sm:$0xf]
  %v62 = vld [vmem:[%s1 + $0x74] sm:$0xf]
  %v63 = vld [vmem:[%s1 + $0x78] sm:$0xf]
  %v64 = vld [vmem:[%s1 + $0x7c] sm:$0xf]
  %v65 = vld [vmem:[%s1 + $0x80] sm:$0xf]
  %v66 = vld [vmem:[%s1 + $0x84] sm:$0xf]
  %v67 = vld [vmem:[%s1 + $0x88] sm:$0xf]
  %v68 = vld [vmem:[%s1 + $0x8c] sm:$0xf]
  %v69 = vld [vmem:[%s1 + $0x90] sm:$0xf]
  %v70 = vld [vmem:[%s1 + $0x94] sm:$0xf]
  %v71 = vld [vmem:[%s1 + $0x98] sm:$0xf]
  %v72 = vld [vmem:[%s1 + $0x9c] sm:$0xf]
  %v73 = vld [vmem:[%s1 + $0xa0] sm:$0xf]
  %v74 = vld [vmem:[%s1 + $0xa4] sm:$0xf]
  %v75 = vld [vmem:[%s1 + $0xa8] sm:$0xf]
  %v76 = vld [vmem:[%s1 + $0xac] sm:$0xf]
  %v77 = vld [vmem:[%s1 + $0xb0] sm:$0xf]
  %v78 = vld [vmem:[%s1 + $0xb4] sm:$0xf]
  %v79 = vld [vmem:[%s1 + $0xb8] sm:$0xf]
  %v80 = vld [vmem:[%s1 + $0xbc] sm:$0xf]
  %v81 = vld [vmem:[%s1 + $0xc0] sm:$0xf]
  %v82 = vld [vmem:[%s1 + $0xc4] sm:$0xf]
  %v83 = vld [vmem:[%s1 + $0xc8] sm:$0xf]
  %v84 = vld [vmem:[%s1 + $0xcc] sm:$0xf]
  %v85 = vld [vmem:[%s1 + $0xd0] sm:$0xf]
  %v86 = vld [vmem:[%s1 + $0xd4] sm:$0xf]
  %v87 = vld [vmem:[%s1 + $0xd8] sm:$0xf]
  %v88 = vld [vmem:[%s1 + $0xdc] sm:$0xf]
  %v89 = vld [vmem:[%s1 + $0xe0] sm:$0xf]
  %v90 = vld [vmem:[%s1 + $0xe4] sm:$0xf]
  %v91 = vld [vmem:[%s1 + $0xe8] sm:$0xf]
  %v92 = vld [vmem:[%s1 + $0xec] sm:$0xf]
  %v93 = vld [vmem:[%s1 + $0xf0] sm:$0xf]
  %v94 = vld [vmem:[%s1 + $0xf4] sm:$0xf]
  %v95 = vld [vmem:[%s1 + $0xf8] sm:$0xf]
  %v96 = vld [vmem:[%s1 + $0xfc] sm:$0xf]
  %v97 = vld [vmem:[%s1 + $0x100] sm:$0xf]
  %v98 = vld [vmem:[%s1 + $0x104] sm:$0xf]
  %v99 = vld [vmem:[%s1 + $0x108] sm:$0xf]
  %v100 = vld [vmem:[%s1 + $0x10c] sm:$0xf]
  %v101 = vld [vmem:[%s1 + $0x110] sm:$0xf]
  %v102 = vld [vmem:[%s1 + $0x114] sm:$0xf]
  %v103 = vld [vmem:[%s1 + $0x118] sm:$0xf]
  %v104 = vld [vmem:[%s1 + $0x11c] sm:$0xf]
  %v105 = vld [vmem:[%s1 + $0x120] sm:$0xf]
  %v106 = vld [vmem:[%s1 + $0x124] sm:$0xf]
  %v107 = vld [vmem:[%s1 + $0x128] sm:$0xf]
  %v108 = vld [vmem:[%s1 + $0x12c] sm:$0xf]
  %v109 = vld [vmem:[%s1 + $0x130] sm:$0xf]
  %v110 = vld [vmem:[%s1 + $0x134] sm:$0xf]
  %v111 = vld [vmem:[%s1 + $0x138] sm:$0xf]
  %v112 = vld [vmem:[%s1 + $0x13c] sm:$0xf]
  %v113 = vld [vmem:[%s1 + $0x140] sm:$0xf]
  %v114 = vld [vmem:[%s1 + $0x144] sm:$0xf]
  %v115 = vld [vmem:[%s1 + $0x148] sm:$0xf]
  %v116 = vld [vmem:[%s1 + $0x14c] sm:$0xf]
  %v117 = vld [vmem:[%s1 + $0x150] sm:$0xf]
  %v118 = vld [vmem:[%s1 + $0x154] sm:$0xf]
  %v119 = vld [vmem:[%s1 + $0x158] sm:$0xf]
  %v120 = vld [vmem:[%s1 + $0x15c] sm:$0xf]
  %v121 = vld [vmem:[%s1 + $0x160] sm:$0xf]
  %v122 = vld [vmem:[%s1 + $0x164] sm:$0xf]
  %v123 = vld [vmem:[%s1 + $0x168] sm:$0xf]
  %v124 = vld [vmem:[%s1 + $0x16c] sm:$0xf]
  %v125 = vld [vmem:[%s1 + $0x170] sm:$0xf]
  %v126 = vld [vmem:[%s1 + $0x174] sm:$0xf]
  %v127 = vld [vmem:[%s1 + $0x178] sm:$0xf]
  %v128 = vld [vmem:[%s1 + $0x17c] sm:$0xf]
  %v129 = vld [vmem:[%s1 + $0x180] sm:$0xf]
  %v130 = vld [vmem:[%s1 + $0x184] sm:$0xf]
  %v131 = vld [vmem:[%s1 + $0x188] sm:$0xf]
  %v132 = vld [vmem:[%s1 + $0x18c] sm:$0xf]
  %v133 = vld [vmem:[%s1 + $0x190] sm:$0xf]
  %v134 = vld [vmem:[%s1 + $0x194] sm:$0xf]
  %v135 = vld [vmem:[%s1 + $0x198] sm:$0xf]
  %v136 = vld [vmem:[%s1 + $0x19c] sm:$0xf]
  %v137 = vld [vmem:[%s1 + $0x1a0] sm:$0xf]
  %v138 = vld [vmem:[%s1 + $0x1a4] sm:$0xf]
  %v139 = vld [vmem:[%s1 + $0x1a8] sm:$0xf]
  %v140 = vld [vmem:[%s1 + $0x1ac] sm:$0xf]
  %v141 = vld [vmem:[%s1 + $0x1b0] sm:$0xf]
  %v142 = vld [vmem:[%s1 + $0x1b4] sm:$0xf]
  %v143 = vld [vmem:[%s1 + $0x1b8] sm:$0xf]
  %v144 = vld [vmem:[%s1 + $0x1bc] sm:$0xf]
  %v145 = vld [vmem:[%s1 + $0x1c0] sm:$0xf]
  %v146 = vld [vmem:[%s1 + $0x1c4] sm:$0xf]
  %v147 = vld [vmem:[%s1 + $0x1c8] sm:$0xf]
  %v148 = vld [vmem:[%s1 + $0x1cc] sm:$0xf]
  %v149 = vld [vmem:[%s1 + $0x1d0] sm:$0xf]
  %v150 = vld [vmem:[%s1 + $0x1d4] sm:$0xf]
  %v151 = vld [vmem:[%s1 + $0x1d8] sm:$0xf]
  %v152 = vld [vmem:[%s1 + $0x1dc] sm:$0xf]
  %v153 = vld [vmem:[%s1 + $0x1e0] sm:$0xf]
  %v154 = vld [vmem:[%s1 + $0x1e4] sm:$0xf]
  %v155 = vld [vmem:[%s1 + $0x1e8] sm:$0xf]
  %v156 = vld [vmem:[%s1 + $0x1ec] sm:$0xf]
  %v157 = vld [vmem:[%s1 + $0x1f0] sm:$0xf]
  %v158 = vld [vmem:[%s1 + $0x1f4] sm:$0xf]
  %v159 = vld [vmem:[%s1 + $0x1f8] sm:$0xf]
  %v160 = vld [vmem:[%s1 + $0x1fc] sm:$0xf]
  %v161 = vld [vmem:[%s1 + $0x200] sm:$0xf]
  %v162 = vld [vmem:[%s1 + $0x204] sm:$0xf]
  %v163 = vld [vmem:[%s1 + $0x208] sm:$0xf]
  %v164 = vld [vmem:[%s1 + $0x20c] sm:$0xf]
  %v165 = vld [vmem:[%s1 + $0x210] sm:$0xf]
  %v166 = vld [vmem:[%s1 + $0x214] sm:$0xf]
  %v167 = vld [vmem:[%s1 + $0x218] sm:$0xf]
  %v168 = vld [vmem:[%s1 + $0x21c] sm:$0xf]
  %v169 = vld [vmem:[%s1 + $0x220] sm:$0xf]
  %v170 = vld [vmem:[%s1 + $0x224] sm:$0xf]
  %v171 = vld [vmem:[%s1 + $0x228] sm:$0xf]
  %v172 = vld [vmem:[%s1 + $0x22c] sm:$0xf]
  %v173 = vld [vmem:[%s1 + $0x230] sm:$0xf]
  %v174 = vld [vmem:[%s1 + $0x234] sm:$0xf]
  %v175 = vld [vmem:[%s1 + $0x238] sm:$0xf]
  %v176 = vld [vmem:[%s1 + $0x23c] sm:$0xf]
  %v177 = vld [vmem:[%s2] sm:$0x1]
  %v179 = vperm.slane %v177, 0
  %v191 = vunpack.c.l.b16 %v23
  %v192 = vunpack.c.h.b16 %v23
  %v193 = vunpack.c.l.b16 %v24
  %v194 = vunpack.c.h.b16 %v24
  %v195 = vunpack.c.l.b16 %v25
  %v196 = vunpack.c.h.b16 %v25
  %v197 = vunpack.c.l.b16 %v26
  %v198 = vunpack.c.h.b16 %v26
  %v199 = vunpack.c.l.b16 %v27
  %v200 = vunpack.c.l.b16 %v28
  %v201 = vunpack.c.h.b16 %v28
  %v202 = vunpack.c.l.b16 %v29
  %v203 = vunpack.c.h.b16 %v29
  %v204 = vunpack.c.l.b16 %v30
  %v205 = vunpack.c.h.b16 %v30
  %v206 = vunpack.c.l.b16 %v31
  %v207 = vunpack.c.h.b16 %v31
  %v208 = vunpack.c.l.b16 %v32
  %v209 = vpack.c.b16 %v200, %v191
  %v210 = vpack.c.b16 %v201, %v192
  %v211 = vpack.c.b16 %v202, %v193
  %v212 = vpack.c.b16 %v203, %v194
  %v213 = vpack.c.b16 %v204, %v195
  %v214 = vpack.c.b16 %v205, %v196
  %v215 = vpack.c.b16 %v206, %v197
  %v216 = vpack.c.b16 %v207, %v198
  %v217 = vpack.c.b16 %v208, %v199
  %v371 = vunpack.c.l.b16 %v33
  %v372 = vunpack.c.l.b16 %v34
  %v373 = vunpack.c.l.b16 %v35
  %v374 = vunpack.c.l.b16 %v36
  %v375 = vunpack.c.l.b16 %v37
  %v376 = vunpack.c.l.b16 %v38
  %v377 = vunpack.c.l.b16 %v39
  %v378 = vunpack.c.l.b16 %v40
  %v379 = vunpack.c.l.b16 %v41
  %v380 = vunpack.c.l.b16 %v42
  %v381 = vunpack.c.l.b16 %v43
  %v382 = vunpack.c.l.b16 %v44
  %v383 = vunpack.c.l.b16 %v45
  %v384 = vunpack.c.l.b16 %v46
  %v385 = vunpack.c.l.b16 %v47
  %v386 = vunpack.c.l.b16 %v48
  %v387 = vunpack.c.l.b16 %v49
  %v388 = vunpack.c.l.b16 %v50
  %v389 = vunpack.c.l.b16 %v51
  %v390 = vunpack.c.l.b16 %v52
  %v391 = vunpack.c.l.b16 %v53
  %v392 = vunpack.c.l.b16 %v54
  %v393 = vunpack.c.l.b16 %v55
  %v394 = vunpack.c.l.b16 %v56
  %v395 = vunpack.c.l.b16 %v57
  %v396 = vunpack.c.l.b16 %v58
  %v397 = vunpack.c.l.b16 %v59
  %v398 = vunpack.c.l.b16 %v60
  %v399 = vunpack.c.l.b16 %v61
  %v400 = vunpack.c.l.b16 %v62
  %v401 = vunpack.c.l.b16 %v63
  %v402 = vunpack.c.l.b16 %v64
  %v403 = vunpack.c.l.b16 %v65
  %v404 = vunpack.c.l.b16 %v66
  %v405 = vunpack.c.l.b16 %v67
  %v406 = vunpack.c.l.b16 %v68
  %v407 = vunpack.c.l.b16 %v69
  %v408 = vunpack.c.l.b16 %v70
  %v409 = vunpack.c.l.b16 %v71
  %v410 = vunpack.c.l.b16 %v72
  %v411 = vunpack.c.l.b16 %v73
  %v412 = vunpack.c.l.b16 %v74
  %v413 = vunpack.c.l.b16 %v75
  %v414 = vunpack.c.l.b16 %v76
  %v415 = vunpack.c.l.b16 %v77
  %v416 = vunpack.c.l.b16 %v78
  %v417 = vunpack.c.l.b16 %v79
  %v418 = vunpack.c.l.b16 %v80
  %v419 = vunpack.c.l.b16 %v81
  %v420 = vunpack.c.l.b16 %v82
  %v421 = vunpack.c.l.b16 %v83
  %v422 = vunpack.c.l.b16 %v84
  %v423 = vunpack.c.l.b16 %v85
  %v424 = vunpack.c.l.b16 %v86
  %v425 = vunpack.c.l.b16 %v87
  %v426 = vunpack.c.l.b16 %v88
  %v427 = vunpack.c.l.b16 %v89
  %v428 = vunpack.c.l.b16 %v90
  %v429 = vunpack.c.l.b16 %v91
  %v430 = vunpack.c.l.b16 %v92
  %v431 = vunpack.c.l.b16 %v93
  %v432 = vunpack.c.l.b16 %v94
  %v433 = vunpack.c.l.b16 %v95
  %v434 = vunpack.c.l.b16 %v96
  %v435 = vunpack.c.l.b16 %v97
  %v436 = vunpack.c.l.b16 %v98
  %v437 = vunpack.c.l.b16 %v99
  %v438 = vunpack.c.l.b16 %v100
  %v439 = vunpack.c.l.b16 %v101
  %v440 = vunpack.c.l.b16 %v102
  %v441 = vunpack.c.l.b16 %v103
  %v442 = vunpack.c.l.b16 %v104
  %v443 = vunpack.c.l.b16 %v105
  %v444 = vunpack.c.l.b16 %v106
  %v445 = vunpack.c.l.b16 %v107
  %v446 = vunpack.c.l.b16 %v108
  %v447 = vunpack.c.l.b16 %v109
  %v448 = vunpack.c.l.b16 %v110
  %v449 = vunpack.c.l.b16 %v111
  %v450 = vunpack.c.l.b16 %v112
  %v451 = vunpack.c.l.b16 %v113
  %v452 = vunpack.c.l.b16 %v114
  %v453 = vunpack.c.l.b16 %v115
  %v454 = vunpack.c.l.b16 %v116
  %v455 = vunpack.c.l.b16 %v117
  %v456 = vunpack.c.l.b16 %v118
  %v457 = vunpack.c.l.b16 %v119
  %v458 = vunpack.c.l.b16 %v120
  %v459 = vunpack.c.l.b16 %v121
  %v460 = vunpack.c.l.b16 %v122
  %v461 = vunpack.c.l.b16 %v123
  %v462 = vunpack.c.l.b16 %v124
  %v463 = vunpack.c.l.b16 %v125
  %v464 = vunpack.c.l.b16 %v126
  %v465 = vunpack.c.l.b16 %v127
  %v466 = vunpack.c.l.b16 %v128
  %v467 = vunpack.c.l.b16 %v129
  %v468 = vunpack.c.l.b16 %v130
  %v469 = vunpack.c.l.b16 %v131
  %v470 = vunpack.c.l.b16 %v132
  %v471 = vunpack.c.l.b16 %v133
  %v472 = vunpack.c.l.b16 %v134
  %v473 = vunpack.c.l.b16 %v135
  %v474 = vunpack.c.l.b16 %v136
  %v475 = vunpack.c.l.b16 %v137
  %v476 = vunpack.c.l.b16 %v138
  %v477 = vunpack.c.l.b16 %v139
  %v478 = vunpack.c.l.b16 %v140
  %v479 = vunpack.c.l.b16 %v141
  %v480 = vunpack.c.l.b16 %v142
  %v481 = vunpack.c.l.b16 %v143
  %v482 = vunpack.c.l.b16 %v144
  %v483 = vunpack.c.l.b16 %v145
  %v484 = vunpack.c.l.b16 %v146
  %v485 = vunpack.c.l.b16 %v147
  %v486 = vunpack.c.l.b16 %v148
  %v487 = vunpack.c.l.b16 %v149
  %v488 = vunpack.c.l.b16 %v150
  %v489 = vunpack.c.l.b16 %v151
  %v490 = vunpack.c.l.b16 %v152
  %v491 = vunpack.c.l.b16 %v153
  %v492 = vunpack.c.l.b16 %v154
  %v493 = vunpack.c.l.b16 %v155
  %v494 = vunpack.c.l.b16 %v156
  %v495 = vunpack.c.l.b16 %v157
  %v496 = vunpack.c.l.b16 %v158
  %v497 = vunpack.c.l.b16 %v159
  %v498 = vunpack.c.l.b16 %v160
  %v499 = vunpack.c.l.b16 %v161
  %v500 = vunpack.c.l.b16 %v162
  %v501 = vunpack.c.l.b16 %v163
  %v502 = vunpack.c.l.b16 %v164
  %v503 = vunpack.c.l.b16 %v165
  %v504 = vunpack.c.l.b16 %v166
  %v505 = vunpack.c.l.b16 %v167
  %v506 = vunpack.c.l.b16 %v168
  %v507 = vunpack.c.l.b16 %v169
  %v508 = vunpack.c.l.b16 %v170
  %v509 = vunpack.c.l.b16 %v171
  %v510 = vunpack.c.l.b16 %v172
  %v511 = vunpack.c.l.b16 %v173
  %v512 = vunpack.c.l.b16 %v174
  %v513 = vunpack.c.l.b16 %v175
  %v514 = vunpack.c.l.b16 %v176
  %v515 = vpack.c.b16 %v372, %v371
  %v516 = vpack.c.b16 %v374, %v373
  %v517 = vpack.c.b16 %v376, %v375
  %v518 = vpack.c.b16 %v378, %v377
  %v519 = vpack.c.b16 %v380, %v379
  %v520 = vpack.c.b16 %v382, %v381
  %v521 = vpack.c.b16 %v384, %v383
  %v522 = vpack.c.b16 %v386, %v385
  %v523 = vpack.c.b16 %v388, %v387
  %v524 = vpack.c.b16 %v390, %v389
  %v525 = vpack.c.b16 %v392, %v391
  %v526 = vpack.c.b16 %v394, %v393
  %v527 = vpack.c.b16 %v396, %v395
  %v528 = vpack.c.b16 %v398, %v397
  %v529 = vpack.c.b16 %v400, %v399
  %v530 = vpack.c.b16 %v402, %v401
  %v531 = vpack.c.b16 %v404, %v403
  %v532 = vpack.c.b16 %v406, %v405
  %v533 = vpack.c.b16 %v408, %v407
  %v534 = vpack.c.b16 %v410, %v409
  %v535 = vpack.c.b16 %v412, %v411
  %v536 = vpack.c.b16 %v414, %v413
  %v537 = vpack.c.b16 %v416, %v415
  %v538 = vpack.c.b16 %v418, %v417
  %v539 = vpack.c.b16 %v420, %v419
  %v540 = vpack.c.b16 %v422, %v421
  %v541 = vpack.c.b16 %v424, %v423
  %v542 = vpack.c.b16 %v426, %v425
  %v543 = vpack.c.b16 %v428, %v427
  %v544 = vpack.c.b16 %v430, %v429
  %v545 = vpack.c.b16 %v432, %v431
  %v546 = vpack.c.b16 %v434, %v433
  %v547 = vpack.c.b16 %v436, %v435
  %v548 = vpack.c.b16 %v438, %v437
  %v549 = vpack.c.b16 %v440, %v439
  %v550 = vpack.c.b16 %v442, %v441
  %v551 = vpack.c.b16 %v444, %v443
  %v552 = vpack.c.b16 %v446, %v445
  %v553 = vpack.c.b16 %v448, %v447
  %v554 = vpack.c.b16 %v450, %v449
  %v555 = vpack.c.b16 %v452, %v451
  %v556 = vpack.c.b16 %v454, %v453
  %v557 = vpack.c.b16 %v456, %v455
  %v558 = vpack.c.b16 %v458, %v457
  %v559 = vpack.c.b16 %v460, %v459
  %v560 = vpack.c.b16 %v462, %v461
  %v561 = vpack.c.b16 %v464, %v463
  %v562 = vpack.c.b16 %v466, %v465
  %v563 = vpack.c.b16 %v468, %v467
  %v564 = vpack.c.b16 %v470, %v469
  %v565 = vpack.c.b16 %v472, %v471
  %v566 = vpack.c.b16 %v474, %v473
  %v567 = vpack.c.b16 %v476, %v475
  %v568 = vpack.c.b16 %v478, %v477
  %v569 = vpack.c.b16 %v480, %v479
  %v570 = vpack.c.b16 %v482, %v481
  %v571 = vpack.c.b16 %v484, %v483
  %v572 = vpack.c.b16 %v486, %v485
  %v573 = vpack.c.b16 %v488, %v487
  %v574 = vpack.c.b16 %v490, %v489
  %v575 = vpack.c.b16 %v492, %v491
  %v576 = vpack.c.b16 %v494, %v493
  %v577 = vpack.c.b16 %v496, %v495
  %v578 = vpack.c.b16 %v498, %v497
  %v579 = vpack.c.b16 %v500, %v499
  %v580 = vpack.c.b16 %v502, %v501
  %v581 = vpack.c.b16 %v504, %v503
  %v582 = vpack.c.b16 %v506, %v505
  %v583 = vpack.c.b16 %v508, %v507
  %v584 = vpack.c.b16 %v510, %v509
  %v585 = vpack.c.b16 %v512, %v511
  %v586 = vpack.c.b16 %v514, %v513
  %659 = vmatpush.bf16.msra.mxu0 %v522
  %660 = vmatpush.bf16.msra.mxu0 %v521
  %661 = vmatpush.bf16.msra.mxu0 %v520
  %662 = vmatpush.bf16.msra.mxu0 %v519
  %663 = vmatpush.bf16.msra.mxu0 %v518
  %664 = vmatpush.bf16.msra.mxu0 %v517
  %665 = vmatpush.bf16.msra.mxu0 %v516
  %666 = vmatpush.bf16.msra.mxu0 %v515
  %667 = vmatmul.bf16.gmra.mxu0 %v209
  %v668 = vpop.f32.mrf.mxu0
  %v669 = vadd.f32 %v179, %v668
  %v670 = vpop.f32.mrf.mxu0
  %v671 = vadd.f32 %v179, %v670
  %672 = vdwg.mxu0
  %673 = vmatpush.bf16.msra.mxu0 %v530
  %674 = vmatpush.bf16.msra.mxu0 %v529
  %675 = vmatpush.bf16.msra.mxu0 %v528
  %676 = vmatpush.bf16.msra.mxu0 %v527
  %677 = vmatpush.bf16.msra.mxu0 %v526
  %678 = vmatpush.bf16.msra.mxu0 %v525
  %679 = vmatpush.bf16.msra.mxu0 %v524
  %680 = vmatpush.bf16.msra.mxu0 %v523
  %681 = vmatmul.bf16.gmra.mxu0 %v210
  %v682 = vpop.f32.mrf.mxu0
  %v683 = vadd.f32 %v669, %v682
  %v684 = vpop.f32.mrf.mxu0
  %v685 = vadd.f32 %v671, %v684
  %686 = vdwg.mxu0
  %687 = vmatpush.bf16.msra.mxu0 %v538
  %688 = vmatpush.bf16.msra.mxu0 %v537
  %689 = vmatpush.bf16.msra.mxu0 %v536
  %690 = vmatpush.bf16.msra.mxu0 %v535
  %691 = vmatpush.bf16.msra.mxu0 %v534
  %692 = vmatpush.bf16.msra.mxu0 %v533
  %693 = vmatpush.bf16.msra.mxu0 %v532
  %694 = vmatpush.bf16.msra.mxu0 %v531
  %695 = vmatmul.bf16.gmra.mxu0 %v211
  %v696 = vpop.f32.mrf.mxu0
  %v697 = vadd.f32 %v683, %v696
  %v698 = vpop.f32.mrf.mxu0
  %v699 = vadd.f32 %v685, %v698
  %700 = vdwg.mxu0
  %701 = vmatpush.bf16.msra.mxu0 %v546
  %702 = vmatpush.bf16.msra.mxu0 %v545
  %703 = vmatpush.bf16.msra.mxu0 %v544
  %704 = vmatpush.bf16.msra.mxu0 %v543
  %705 = vmatpush.bf16.msra.mxu0 %v542
  %706 = vmatpush.bf16.msra.mxu0 %v541
  %707 = vmatpush.bf16.msra.mxu0 %v540
  %708 = vmatpush.bf16.msra.mxu0 %v539
  %709 = vmatmul.bf16.gmra.mxu0 %v212
  %v710 = vpop.f32.mrf.mxu0
  %v711 = vadd.f32 %v697, %v710
  %v712 = vpop.f32.mrf.mxu0
  %v713 = vadd.f32 %v699, %v712
  %714 = vdwg.mxu0
  %715 = vmatpush.bf16.msra.mxu0 %v554
  %716 = vmatpush.bf16.msra.mxu0 %v553
  %717 = vmatpush.bf16.msra.mxu0 %v552
  %718 = vmatpush.bf16.msra.mxu0 %v551
  %719 = vmatpush.bf16.msra.mxu0 %v550
  %720 = vmatpush.bf16.msra.mxu0 %v549
  %721 = vmatpush.bf16.msra.mxu0 %v548
  %722 = vmatpush.bf16.msra.mxu0 %v547
  %723 = vmatmul.bf16.gmra.mxu0 %v213
  %v724 = vpop.f32.mrf.mxu0
  %v725 = vadd.f32 %v711, %v724
  %v726 = vpop.f32.mrf.mxu0
  %v727 = vadd.f32 %v713, %v726
  %728 = vdwg.mxu0
  %729 = vmatpush.bf16.msra.mxu0 %v562
  %730 = vmatpush.bf16.msra.mxu0 %v561
  %731 = vmatpush.bf16.msra.mxu0 %v560
  %732 = vmatpush.bf16.msra.mxu0 %v559
  %733 = vmatpush.bf16.msra.mxu0 %v558
  %734 = vmatpush.bf16.msra.mxu0 %v557
  %735 = vmatpush.bf16.msra.mxu0 %v556
  %736 = vmatpush.bf16.msra.mxu0 %v555
  %737 = vmatmul.bf16.gmra.mxu0 %v214
  %v738 = vpop.f32.mrf.mxu0
  %v739 = vadd.f32 %v725, %v738
  %v740 = vpop.f32.mrf.mxu0
  %v741 = vadd.f32 %v727, %v740
  %742 = vdwg.mxu0
  %743 = vmatpush.bf16.msra.mxu0 %v570
  %744 = vmatpush.bf16.msra.mxu0 %v569
  %745 = vmatpush.bf16.msra.mxu0 %v568
  %746 = vmatpush.bf16.msra.mxu0 %v567
  %747 = vmatpush.bf16.msra.mxu0 %v566
  %748 = vmatpush.bf16.msra.mxu0 %v565
  %749 = vmatpush.bf16.msra.mxu0 %v564
  %750 = vmatpush.bf16.msra.mxu0 %v563
  %751 = vmatmul.bf16.gmra.mxu0 %v215
  %v752 = vpop.f32.mrf.mxu0
  %v753 = vadd.f32 %v739, %v752
  %v754 = vpop.f32.mrf.mxu0
  %v755 = vadd.f32 %v741, %v754
  %756 = vdwg.mxu0
  %757 = vmatpush.bf16.msra.mxu0 %v578
  %758 = vmatpush.bf16.msra.mxu0 %v577
  %759 = vmatpush.bf16.msra.mxu0 %v576
  %760 = vmatpush.bf16.msra.mxu0 %v575
  %761 = vmatpush.bf16.msra.mxu0 %v574
  %762 = vmatpush.bf16.msra.mxu0 %v573
  %763 = vmatpush.bf16.msra.mxu0 %v572
  %764 = vmatpush.bf16.msra.mxu0 %v571
  %765 = vmatmul.bf16.gmra.mxu0 %v216
  %v766 = vpop.f32.mrf.mxu0
  %v767 = vadd.f32 %v753, %v766
  %v768 = vpop.f32.mrf.mxu0
  %v769 = vadd.f32 %v755, %v768
  %770 = vdwg.mxu0
  %771 = vmatpush.bf16.msra.mxu0 %v586
  %772 = vmatpush.bf16.msra.mxu0 %v585
  %773 = vmatpush.bf16.msra.mxu0 %v584
  %774 = vmatpush.bf16.msra.mxu0 %v583
  %775 = vmatpush.bf16.msra.mxu0 %v582
  %776 = vmatpush.bf16.msra.mxu0 %v581
  %777 = vmatpush.bf16.msra.mxu0 %v580
  %778 = vmatpush.bf16.msra.mxu0 %v579
  %779 = vmatmul.bf16.gmra.mxu0 %v217
  %v780 = vpop.f32.mrf.mxu0
  %v781 = vadd.f32 %v767, %v780
  %v782 = vpop.f32.mrf.mxu0
  %v783 = vadd.f32 %v769, %v782
  %784 = vdwg.mxu0
  %v785 = vld [vmem:[%s3] sm:$0xf]
  %v786 = vld [vmem:[%s3 + $0x4] sm:$0xf]
  %v787 = vld [vmem:[%s4] sm:$0xf]
  %v788 = vld [vmem:[%s4 + $0x4] sm:$0xf]
  %v789 = vld [vmem:[%s4 + $0x8] sm:$0xf]
  %v790 = vld [vmem:[%s4 + $0xc] sm:$0xf]
  %v791 = vld [vmem:[%s4 + $0x10] sm:$0xf]
  %v792 = vld [vmem:[%s4 + $0x14] sm:$0xf]
  %v793 = vld [vmem:[%s4 + $0x18] sm:$0xf]
  %v794 = vld [vmem:[%s4 + $0x1c] sm:$0xf]
  %v795 = vld [vmem:[%s4 + $0x20] sm:$0xf]
  %v796 = vld [vmem:[%s4 + $0x24] sm:$0xf]
  %v797 = vld [vmem:[%s4 + $0x28] sm:$0xf]
  %v798 = vld [vmem:[%s4 + $0x2c] sm:$0xf]
  %v799 = vld [vmem:[%s4 + $0x30] sm:$0xf]
  %v800 = vld [vmem:[%s4 + $0x34] sm:$0xf]
  %v801 = vld [vmem:[%s4 + $0x38] sm:$0xf]
  %v802 = vld [vmem:[%s4 + $0x3c] sm:$0xf]
  %v803 = vld [vmem:[%s5] sm:$0x1]
  %v805 = vperm.slane %v803, 0
  %v809 = vunpack.c.l.b16 %v785
  %v810 = vunpack.c.l.b16 %v786
  %v811 = vpack.c.b16 %v810, %v809
  %v829 = vunpack.c.l.b16 %v787
  %v830 = vunpack.c.l.b16 %v788
  %v831 = vunpack.c.l.b16 %v789
  %v832 = vunpack.c.l.b16 %v790
  %v833 = vunpack.c.l.b16 %v791
  %v834 = vunpack.c.l.b16 %v792
  %v835 = vunpack.c.l.b16 %v793
  %v836 = vunpack.c.l.b16 %v794
  %v837 = vunpack.c.l.b16 %v795
  %v838 = vunpack.c.l.b16 %v796
  %v839 = vunpack.c.l.b16 %v797
  %v840 = vunpack.c.l.b16 %v798
  %v841 = vunpack.c.l.b16 %v799
  %v842 = vunpack.c.l.b16 %v800
  %v843 = vunpack.c.l.b16 %v801
  %v844 = vunpack.c.l.b16 %v802
  %v845 = vpack.c.b16 %v830, %v829
  %v846 = vpack.c.b16 %v832, %v831
  %v847 = vpack.c.b16 %v834, %v833
  %v848 = vpack.c.b16 %v836, %v835
  %v849 = vpack.c.b16 %v838, %v837
  %v850 = vpack.c.b16 %v840, %v839
  %v851 = vpack.c.b16 %v842, %v841
  %v852 = vpack.c.b16 %v844, %v843
  %861 = vmatpush.bf16.msra.mxu0 %v852
  %862 = vmatpush.bf16.msra.mxu0 %v851
  %863 = vmatpush.bf16.msra.mxu0 %v850
  %864 = vmatpush.bf16.msra.mxu0 %v849
  %865 = vmatpush.bf16.msra.mxu0 %v848
  %866 = vmatpush.bf16.msra.mxu0 %v847
  %867 = vmatpush.bf16.msra.mxu0 %v846
  %868 = vmatpush.bf16.msra.mxu0 %v845
  %869 = vmatmul.bf16.gmra.mxu0 %v811
  %v870 = vpop.f32.mrf.mxu0
  %v871 = vadd.f32 %v805, %v870
  %v872 = vpop.f32.mrf.mxu0
  %v873 = vadd.f32 %v805, %v872
  %874 = vdwg.mxu0
  %v875 = vadd.f32 %v781, %v871
  %v876 = vadd.f32 %v783, %v873
  %v877 = vmax.f32 %v875, 0.0
  %v878 = vmax.f32 %v876, 0.0
  %v879 = vpack.c.bf16 %v877, %v877
  %v880 = vpack.c.bf16 %v878, %v878
  %881 = vst [vmem:[%s6] sm:$0xf] %v879
  %882 = vst [vmem:[%s6 + $0x4] sm:$0xf] %v880
  // Predicated region
  $region26: #{encoder_forward.24} parent=0 // pred_check
    _
  $region27: #{encoder_forward.24} parent=0 // pred_check_branch
    %884 = sbr.rel (0) target = $region29
  $region28: #{encoder_forward.24} parent=0 // pred_region
    _
  $region29: #{encoder_forward.24} parent=0 // pred_fallthru
    _
  // Predicated region
  $region30: #{encoder_forward.24} parent=0 // pred_check
    _
  $region31: #{encoder_forward.24} parent=0 // pred_check_branch
    %886 = sbr.rel (0) target = $region33
  $region32: #{encoder_forward.24} parent=0 // pred_region
    _
  $region33: #{encoder_forward.24} parent=0 // pred_fallthru
    _

// kernel: encoder_forward.27
$region0: #{encoder_forward.27}
  #allocation0 [shape = 'u32[]', space=smem, size = 0x4, offset = 0x4, fixed_abs, tag = 'smem constant byte address 0x4 - core index']
  #allocation1 [shape = 'u32[72,128]{1,0:T(1,128)}', space=vmem, size = 0x9000, scoped, tag = 'internal scratch']
  %s0 = inlined_call_operand.vmem [shape: bf16[16,512], index: 0, kind: input, shape index: {}]
  %s1 = inlined_call_operand.vmem [shape: bf16[512,128], index: 1, kind: input, shape index: {}]
  %s2 = inlined_call_operand.vmem [shape: f32[1,128], index: 2, kind: input, shape index: {}]
  %s3 = inlined_call_operand.vmem [shape: f32[16,128], index: 3, kind: output, shape index: {}]
  %s4 = sld [smem:[#allocation0]]
  $region22: #{encoder_forward.27} parent=0
    _
  %s6 = ssub.s32 1, %s4
  %s7 = scalar_select 0, %s6, %s4
  // Predicated region
  $region2: #{encoder_forward.27} parent=0 // pred_check
    _
  $region3: #{encoder_forward.27} parent=0 // pred_check_branch
    %9 = sbr.rel (0) target = $region5
  $region4: #{encoder_forward.27} parent=0 // pred_region
    _
  $region5: #{encoder_forward.27} parent=0 // pred_fallthru
    _
  // Predicated region
  $region6: #{encoder_forward.27} parent=0 // pred_check
    _
  $region7: #{encoder_forward.27} parent=0 // pred_check_branch
    %11 = sbr.rel (0) target = $region9
  $region8: #{encoder_forward.27} parent=0 // pred_region
    _
  $region9: #{encoder_forward.27} parent=0 // pred_fallthru
    _
  // Predicated region
  $region10: #{encoder_forward.27} parent=0 // pred_check
    _
  $region11: #{encoder_forward.27} parent=0 // pred_check_branch
    %13 = sbr.rel (0) target = $region13
  $region12: #{encoder_forward.27} parent=0 // pred_region
    _
  $region13: #{encoder_forward.27} parent=0 // pred_fallthru
    _
  %v14 = vld [vmem:[%s0] sm:$0xff]
  %v15 = vld [vmem:[%s0 + $0x8] sm:$0xff]
  %v16 = vld [vmem:[%s0 + $0x10] sm:$0xff]
  %v17 = vld [vmem:[%s0 + $0x18] sm:$0xff]
  %v18 = vld [vmem:[%s1] sm:$0xf]
  %v19 = vld [vmem:[%s1 + $0x4] sm:$0xf]
  %v20 = vld [vmem:[%s1 + $0x8] sm:$0xf]
  %v21 = vld [vmem:[%s1 + $0xc] sm:$0xf]
  %v22 = vld [vmem:[%s1 + $0x10] sm:$0xf]
  %v23 = vld [vmem:[%s1 + $0x14] sm:$0xf]
  %v24 = vld [vmem:[%s1 + $0x18] sm:$0xf]
  %v25 = vld [vmem:[%s1 + $0x1c] sm:$0xf]
  %v26 = vld [vmem:[%s1 + $0x20] sm:$0xf]
  %v27 = vld [vmem:[%s1 + $0x24] sm:$0xf]
  %v28 = vld [vmem:[%s1 + $0x28] sm:$0xf]
  %v29 = vld [vmem:[%s1 + $0x2c] sm:$0xf]
  %v30 = vld [vmem:[%s1 + $0x30] sm:$0xf]
  %v31 = vld [vmem:[%s1 + $0x34] sm:$0xf]
  %v32 = vld [vmem:[%s1 + $0x38] sm:$0xf]
  %v33 = vld [vmem:[%s1 + $0x3c] sm:$0xf]
  %v34 = vld [vmem:[%s1 + $0x40] sm:$0xf]
  %v35 = vld [vmem:[%s1 + $0x44] sm:$0xf]
  %v36 = vld [vmem:[%s1 + $0x48] sm:$0xf]
  %v37 = vld [vmem:[%s1 + $0x4c] sm:$0xf]
  %v38 = vld [vmem:[%s1 + $0x50] sm:$0xf]
  %v39 = vld [vmem:[%s1 + $0x54] sm:$0xf]
  %v40 = vld [vmem:[%s1 + $0x58] sm:$0xf]
  %v41 = vld [vmem:[%s1 + $0x5c] sm:$0xf]
  %v42 = vld [vmem:[%s1 + $0x60] sm:$0xf]
  %v43 = vld [vmem:[%s1 + $0x64] sm:$0xf]
  %v44 = vld [vmem:[%s1 + $0x68] sm:$0xf]
  %v45 = vld [vmem:[%s1 + $0x6c] sm:$0xf]
  %v46 = vld [vmem:[%s1 + $0x70] sm:$0xf]
  %v47 = vld [vmem:[%s1 + $0x74] sm:$0xf]
  %v48 = vld [vmem:[%s1 + $0x78] sm:$0xf]
  %v49 = vld [vmem:[%s1 + $0x7c] sm:$0xf]
  %v50 = vld [vmem:[%s1 + $0x80] sm:$0xf]
  %v51 = vld [vmem:[%s1 + $0x84] sm:$0xf]
  %v52 = vld [vmem:[%s1 + $0x88] sm:$0xf]
  %v53 = vld [vmem:[%s1 + $0x8c] sm:$0xf]
  %v54 = vld [vmem:[%s1 + $0x90] sm:$0xf]
  %v55 = vld [vmem:[%s1 + $0x94] sm:$0xf]
  %v56 = vld [vmem:[%s1 + $0x98] sm:$0xf]
  %v57 = vld [vmem:[%s1 + $0x9c] sm:$0xf]
  %v58 = vld [vmem:[%s1 + $0xa0] sm:$0xf]
  %v59 = vld [vmem:[%s1 + $0xa4] sm:$0xf]
  %v60 = vld [vmem:[%s1 + $0xa8] sm:$0xf]
  %v61 = vld [vmem:[%s1 + $0xac] sm:$0xf]
  %v62 = vld [vmem:[%s1 + $0xb0] sm:$0xf]
  %v63 = vld [vmem:[%s1 + $0xb4] sm:$0xf]
  %v64 = vld [vmem:[%s1 + $0xb8] sm:$0xf]
  %v65 = vld [vmem:[%s1 + $0xbc] sm:$0xf]
  %v66 = vld [vmem:[%s1 + $0xc0] sm:$0xf]
  %v67 = vld [vmem:[%s1 + $0xc4] sm:$0xf]
  %v68 = vld [vmem:[%s1 + $0xc8] sm:$0xf]
  %v69 = vld [vmem:[%s1 + $0xcc] sm:$0xf]
  %v70 = vld [vmem:[%s1 + $0xd0] sm:$0xf]
  %v71 = vld [vmem:[%s1 + $0xd4] sm:$0xf]
  %v72 = vld [vmem:[%s1 + $0xd8] sm:$0xf]
  %v73 = vld [vmem:[%s1 + $0xdc] sm:$0xf]
  %v74 = vld [vmem:[%s1 + $0xe0] sm:$0xf]
  %v75 = vld [vmem:[%s1 + $0xe4] sm:$0xf]
  %v76 = vld [vmem:[%s1 + $0xe8] sm:$0xf]
  %v77 = vld [vmem:[%s1 + $0xec] sm:$0xf]
  %v78 = vld [vmem:[%s1 + $0xf0] sm:$0xf]
  %v79 = vld [vmem:[%s1 + $0xf4] sm:$0xf]
  %v80 = vld [vmem:[%s1 + $0xf8] sm:$0xf]
  %v81 = vld [vmem:[%s1 + $0xfc] sm:$0xf]
  %v82 = vld [vmem:[%s2] sm:$0x1]
  %v84 = vperm.slane %v82, 0
  %v90 = vunpack.c.l.b16 %v14
  %v91 = vunpack.c.h.b16 %v14
  %v92 = vunpack.c.l.b16 %v15
  %v93 = vunpack.c.h.b16 %v15
  %v94 = vunpack.c.l.b16 %v16
  %v95 = vunpack.c.h.b16 %v16
  %v96 = vunpack.c.l.b16 %v17
  %v97 = vunpack.c.h.b16 %v17
  %v98 = vpack.c.b16 %v94, %v90
  %v99 = vpack.c.b16 %v95, %v91
  %v100 = vpack.c.b16 %v96, %v92
  %v101 = vpack.c.b16 %v97, %v93
  %v170 = vunpack.c.l.b16 %v18
  %v171 = vunpack.c.l.b16 %v19
  %v172 = vunpack.c.l.b16 %v20
  %v173 = vunpack.c.l.b16 %v21
  %v174 = vunpack.c.l.b16 %v22
  %v175 = vunpack.c.l.b16 %v23
  %v176 = vunpack.c.l.b16 %v24
  %v177 = vunpack.c.l.b16 %v25
  %v178 = vunpack.c.l.b16 %v26
  %v179 = vunpack.c.l.b16 %v27
  %v180 = vunpack.c.l.b16 %v28
  %v181 = vunpack.c.l.b16 %v29
  %v182 = vunpack.c.l.b16 %v30
  %v183 = vunpack.c.l.b16 %v31
  %v184 = vunpack.c.l.b16 %v32
  %v185 = vunpack.c.l.b16 %v33
  %v186 = vunpack.c.l.b16 %v34
  %v187 = vunpack.c.l.b16 %v35
  %v188 = vunpack.c.l.b16 %v36
  %v189 = vunpack.c.l.b16 %v37
  %v190 = vunpack.c.l.b16 %v38
  %v191 = vunpack.c.l.b16 %v39
  %v192 = vunpack.c.l.b16 %v40
  %v193 = vunpack.c.l.b16 %v41
  %v194 = vunpack.c.l.b16 %v42
  %v195 = vunpack.c.l.b16 %v43
  %v196 = vunpack.c.l.b16 %v44
  %v197 = vunpack.c.l.b16 %v45
  %v198 = vunpack.c.l.b16 %v46
  %v199 = vunpack.c.l.b16 %v47
  %v200 = vunpack.c.l.b16 %v48
  %v201 = vunpack.c.l.b16 %v49
  %v202 = vunpack.c.l.b16 %v50
  %v203 = vunpack.c.l.b16 %v51
  %v204 = vunpack.c.l.b16 %v52
  %v205 = vunpack.c.l.b16 %v53
  %v206 = vunpack.c.l.b16 %v54
  %v207 = vunpack.c.l.b16 %v55
  %v208 = vunpack.c.l.b16 %v56
  %v209 = vunpack.c.l.b16 %v57
  %v210 = vunpack.c.l.b16 %v58
  %v211 = vunpack.c.l.b16 %v59
  %v212 = vunpack.c.l.b16 %v60
  %v213 = vunpack.c.l.b16 %v61
  %v214 = vunpack.c.l.b16 %v62
  %v215 = vunpack.c.l.b16 %v63
  %v216 = vunpack.c.l.b16 %v64
  %v217 = vunpack.c.l.b16 %v65
  %v218 = vunpack.c.l.b16 %v66
  %v219 = vunpack.c.l.b16 %v67
  %v220 = vunpack.c.l.b16 %v68
  %v221 = vunpack.c.l.b16 %v69
  %v222 = vunpack.c.l.b16 %v70
  %v223 = vunpack.c.l.b16 %v71
  %v224 = vunpack.c.l.b16 %v72
  %v225 = vunpack.c.l.b16 %v73
  %v226 = vunpack.c.l.b16 %v74
  %v227 = vunpack.c.l.b16 %v75
  %v228 = vunpack.c.l.b16 %v76
  %v229 = vunpack.c.l.b16 %v77
  %v230 = vunpack.c.l.b16 %v78
  %v231 = vunpack.c.l.b16 %v79
  %v232 = vunpack.c.l.b16 %v80
  %v233 = vunpack.c.l.b16 %v81
  %v234 = vpack.c.b16 %v171, %v170
  %v235 = vpack.c.b16 %v173, %v172
  %v236 = vpack.c.b16 %v175, %v174
  %v237 = vpack.c.b16 %v177, %v176
  %v238 = vpack.c.b16 %v179, %v178
  %v239 = vpack.c.b16 %v181, %v180
  %v240 = vpack.c.b16 %v183, %v182
  %v241 = vpack.c.b16 %v185, %v184
  %v242 = vpack.c.b16 %v187, %v186
  %v243 = vpack.c.b16 %v189, %v188
  %v244 = vpack.c.b16 %v191, %v190
  %v245 = vpack.c.b16 %v193, %v192
  %v246 = vpack.c.b16 %v195, %v194
  %v247 = vpack.c.b16 %v197, %v196
  %v248 = vpack.c.b16 %v199, %v198
  %v249 = vpack.c.b16 %v201, %v200
  %v250 = vpack.c.b16 %v203, %v202
  %v251 = vpack.c.b16 %v205, %v204
  %v252 = vpack.c.b16 %v207, %v206
  %v253 = vpack.c.b16 %v209, %v208
  %v254 = vpack.c.b16 %v211, %v210
  %v255 = vpack.c.b16 %v213, %v212
  %v256 = vpack.c.b16 %v215, %v214
  %v257 = vpack.c.b16 %v217, %v216
  %v258 = vpack.c.b16 %v219, %v218
  %v259 = vpack.c.b16 %v221, %v220
  %v260 = vpack.c.b16 %v223, %v222
  %v261 = vpack.c.b16 %v225, %v224
  %v262 = vpack.c.b16 %v227, %v226
  %v263 = vpack.c.b16 %v229, %v228
  %v264 = vpack.c.b16 %v231, %v230
  %v265 = vpack.c.b16 %v233, %v232
  %298 = vmatpush.bf16.msra.mxu0 %v241
  %299 = vmatpush.bf16.msra.mxu0 %v240
  %300 = vmatpush.bf16.msra.mxu0 %v239
  %301 = vmatpush.bf16.msra.mxu0 %v238
  %302 = vmatpush.bf16.msra.mxu0 %v237
  %303 = vmatpush.bf16.msra.mxu0 %v236
  %304 = vmatpush.bf16.msra.mxu0 %v235
  %305 = vmatpush.bf16.msra.mxu0 %v234
  %306 = vmatmul.bf16.gmra.mxu0 %v98
  %v307 = vpop.f32.mrf.mxu0
  %v308 = vadd.f32 %v84, %v307
  %v309 = vpop.f32.mrf.mxu0
  %v310 = vadd.f32 %v84, %v309
  %311 = vdwg.mxu0
  %312 = vmatpush.bf16.msra.mxu0 %v249
  %313 = vmatpush.bf16.msra.mxu0 %v248
  %314 = vmatpush.bf16.msra.mxu0 %v247
  %315 = vmatpush.bf16.msra.mxu0 %v246
  %316 = vmatpush.bf16.msra.mxu0 %v245
  %317 = vmatpush.bf16.msra.mxu0 %v244
  %318 = vmatpush.bf16.msra.mxu0 %v243
  %319 = vmatpush.bf16.msra.mxu0 %v242
  %320 = vmatmul.bf16.gmra.mxu0 %v99
  %v321 = vpop.f32.mrf.mxu0
  %v322 = vadd.f32 %v308, %v321
  %v323 = vpop.f32.mrf.mxu0
  %v324 = vadd.f32 %v310, %v323
  %325 = vdwg.mxu0
  %326 = vmatpush.bf16.msra.mxu0 %v257
  %327 = vmatpush.bf16.msra.mxu0 %v256
  %328 = vmatpush.bf16.msra.mxu0 %v255
  %329 = vmatpush.bf16.msra.mxu0 %v254
  %330 = vmatpush.bf16.msra.mxu0 %v253
  %331 = vmatpush.bf16.msra.mxu0 %v252
  %332 = vmatpush.bf16.msra.mxu0 %v251
  %333 = vmatpush.bf16.msra.mxu0 %v250
  %334 = vmatmul.bf16.gmra.mxu0 %v100
  %v335 = vpop.f32.mrf.mxu0
  %v336 = vadd.f32 %v322, %v335
  %v337 = vpop.f32.mrf.mxu0
  %v338 = vadd.f32 %v324, %v337
  %339 = vdwg.mxu0
  %340 = vmatpush.bf16.msra.mxu0 %v265
  %341 = vmatpush.bf16.msra.mxu0 %v264
  %342 = vmatpush.bf16.msra.mxu0 %v263
  %343 = vmatpush.bf16.msra.mxu0 %v262
  %344 = vmatpush.bf16.msra.mxu0 %v261
  %345 = vmatpush.bf16.msra.mxu0 %v260
  %346 = vmatpush.bf16.msra.mxu0 %v259
  %347 = vmatpush.bf16.msra.mxu0 %v258
  %348 = vmatmul.bf16.gmra.mxu0 %v101
  %v349 = vpop.f32.mrf.mxu0
  %v350 = vadd.f32 %v336, %v349
  %v351 = vpop.f32.mrf.mxu0
  %v352 = vadd.f32 %v338, %v351
  %353 = vdwg.mxu0
  %354 = vst [vmem:[%s3] sm:$0xff] %v350
  %355 = vst [vmem:[%s3 + $0x8] sm:$0xff] %v352
  // Predicated region
  $region14: #{encoder_forward.27} parent=0 // pred_check
    _
  $region15: #{encoder_forward.27} parent=0 // pred_check_branch
    %357 = sbr.rel (0) target = $region17
  $region16: #{encoder_forward.27} parent=0 // pred_region
    _
  $region17: #{encoder_forward.27} parent=0 // pred_fallthru
    _
  // Predicated region
  $region18: #{encoder_forward.27} parent=0 // pred_check
    _
  $region19: #{encoder_forward.27} parent=0 // pred_check_branch
    %359 = sbr.rel (0) target = $region21
  $region20: #{encoder_forward.27} parent=0 // pred_region
    _
  $region21: #{encoder_forward.27} parent=0 // pred_fallthru
    _

</llo_original>
